<compile_context>
chip_gen: v7x
topology: tpu7x:2x2x1
jax: 0.10.0
libtpu: 0.0.40
codegen_flags: <defaults>
</compile_context>

<pallas_src>
import functools
import math

import jax
import jax.numpy as jnp
from jax import lax
from jax.experimental import pallas as pl
from jax.experimental.pallas import tpu as pltpu

# Full-precision f32 matmuls everywhere (kernel + reference) so numerics match
# tightly on the MXU (which otherwise uses low-precision passes for f32).
jax.config.update("jax_default_matmul_precision", "highest")

NEG_INF = -1e30                      # finite "-inf" for masked_fill (softmax-safe)
_HIGHEST = lax.Precision.HIGHEST


# ----------------------------------------------------------------------------
# Shared in-kernel LayerNorm (module semantics: unbiased std, (std + eps),
# scalar alpha / bias).  Single-pass moments + per-row reciprocal.
# ----------------------------------------------------------------------------
def _layer_norm_rows(x, alpha, beta, eps):
    d = x.shape[-1]
    sum_x = jnp.sum(x, axis=-1, keepdims=True)
    sum_xx = jnp.sum(x * x, axis=-1, keepdims=True)
    mean = sum_x * (1.0 / d)
    var = (sum_xx - sum_x * mean) * (1.0 / (d - 1))      # unbiased (n - 1)
    std = jnp.sqrt(jnp.maximum(var, 0.0))
    inv = alpha / (std + eps)                            # (rows, 1): folds alpha in
    return (x - mean) * inv + beta


# ----------------------------------------------------------------------------
# Kernel 1: fused  LN -> QKV -> multi-head attention (+mask) -> W_O -> residual
# One grid step per batch element.
# ----------------------------------------------------------------------------
def _attn_block_kernel(ln_a_ref, ln_b_ref, x_ref, mask_ref,
                       wq_ref, bq_ref, wk_ref, bk_ref, wv_ref, bv_ref,
                       wo_ref, bo_ref, o_ref, *, h, d_k, eps):
    x = x_ref[0].astype(jnp.float32)                     # (S, D)
    S, D = x.shape

    n = _layer_norm_rows(x, ln_a_ref[0], ln_b_ref[0], eps)

    q = jnp.dot(n, wq_ref[...], precision=_HIGHEST,
                preferred_element_type=jnp.float32) + bq_ref[...]
    k = jnp.dot(n, wk_ref[...], precision=_HIGHEST,
                preferred_element_type=jnp.float32) + bk_ref[...]
    v = jnp.dot(n, wv_ref[...], precision=_HIGHEST,
                preferred_element_type=jnp.float32) + bv_ref[...]

    mask2d = mask_ref[0, 0]                              # (S, S)
    neg_bias = jnp.where(mask2d == 0.0, NEG_INF, 0.0)    # additive mask, hoisted
    scale = 1.0 / math.sqrt(d_k)

    # Per-head attention, statically unrolled; the output projection W_O is
    # folded in per head (sum over heads == concat(ctx) @ W_O).
    acc = jnp.zeros((S, D), jnp.float32)
    for head in range(h):
        lo = head * d_k
        qh = q[:, lo:lo + d_k]
        kh = k[:, lo:lo + d_k]
        vh = v[:, lo:lo + d_k]
        s = lax.dot_general(qh, kh, (((1,), (1,)), ((), ())),
                            precision=_HIGHEST,
                            preferred_element_type=jnp.float32) * scale
        s = s + neg_bias
        s = s - jnp.max(s, axis=-1, keepdims=True)
        e = jnp.exp(s)
        p = e * (1.0 / jnp.sum(e, axis=-1, keepdims=True))   # per-row reciprocal
        # TODO(synk): training-mode dropout on attention probabilities.
        ctx = jnp.dot(p, vh, precision=_HIGHEST,
                      preferred_element_type=jnp.float32)    # (S, d_k)
        acc = acc + jnp.dot(ctx, wo_ref[lo:lo + d_k, :], precision=_HIGHEST,
                            preferred_element_type=jnp.float32)

    out = acc + bo_ref[...]
    # Residual add (ResidualConnection dropout is identity in eval mode).
    o_ref[0] = (x + out).astype(o_ref.dtype)


def attention_block_pallas(x, mask, ln_a, ln_b,
                           wq, bq, wk, bk, wv, bv, wo, bo, *, h, eps):
    B, S, D = x.shape
    d_k = D // h
    kernel = functools.partial(_attn_block_kernel, h=h, d_k=d_k, eps=eps)
    wspec = pl.BlockSpec((D, D), lambda b: (0, 0))
    bspec = pl.BlockSpec((1, D), lambda b: (0, 0))
    return pl.pallas_call(
        kernel,
        out_shape=jax.ShapeDtypeStruct((B, S, D), x.dtype),
        grid=(B,),
        in_specs=[
            pl.BlockSpec(memory_space=pltpu.MemorySpace.SMEM),     # ln alpha (1,)
            pl.BlockSpec(memory_space=pltpu.MemorySpace.SMEM),     # ln bias  (1,)
            pl.BlockSpec((1, S, D), lambda b: (b, 0, 0)),          # x
            pl.BlockSpec((1, 1, S, S), lambda b: (b, 0, 0, 0)),    # mask
            wspec, bspec,                                          # W_Q, b_Q
            wspec, bspec,                                          # W_K, b_K
            wspec, bspec,                                          # W_V, b_V
            wspec, bspec,                                          # W_O, b_O
        ],
        out_specs=pl.BlockSpec((1, S, D), lambda b: (b, 0, 0)),
        compiler_params=pltpu.CompilerParams(
            dimension_semantics=("parallel",)),
    )(ln_a, ln_b, x, mask, wq, bq, wk, bk, wv, bv, wo, bo)


# ----------------------------------------------------------------------------
# Kernel 2: fused  LN -> Linear(D->F) -> ReLU -> Linear(F->D) -> residual
# Grid over flattened (B*S, D) row tiles.
# ----------------------------------------------------------------------------
def _ffn_block_kernel(ln_a_ref, ln_b_ref, x_ref, w1_ref, b1_ref, w2_ref, b2_ref,
                      o_ref, *, eps):
    x = x_ref[...].astype(jnp.float32)                   # (TM, D)
    n = _layer_norm_rows(x, ln_a_ref[0], ln_b_ref[0], eps)
    h1 = jnp.dot(n, w1_ref[...], precision=_HIGHEST,
                 preferred_element_type=jnp.float32) + b1_ref[...]
    h1 = jnp.maximum(h1, 0.0)
    # TODO(synk): training-mode dropout between ReLU and the second Linear.
    y = jnp.dot(h1, w2_ref[...], precision=_HIGHEST,
                preferred_element_type=jnp.float32) + b2_ref[...]
    # Residual add (ResidualConnection dropout is identity in eval mode).
    o_ref[...] = (x + y).astype(o_ref.dtype)


def _pick_row_tile(rows, cap=512):
    """Largest multiple of 8 that divides `rows`, capped; else the full extent."""
    if rows % 8 != 0:
        return rows
    tm = min(cap, rows)
    tm -= tm % 8
    while rows % tm != 0:
        tm -= 8
    return tm


def ffn_block_pallas(x, ln_a, ln_b, w1, b1, w2, b2, *, eps):
    B, S, D = x.shape
    F = w1.shape[1]
    rows = B * S
    x2 = x.reshape(rows, D)
    tm = _pick_row_tile(rows)
    kernel = functools.partial(_ffn_block_kernel, eps=eps)
    out = pl.pallas_call(
        kernel,
        out_shape=jax.ShapeDtypeStruct((rows, D), x.dtype),
        grid=(rows // tm,),
        in_specs=[
            pl.BlockSpec(memory_space=pltpu.MemorySpace.SMEM),     # ln alpha (1,)
            pl.BlockSpec(memory_space=pltpu.MemorySpace.SMEM),     # ln bias  (1,)
            pl.BlockSpec((tm, D), lambda i: (i, 0)),               # x rows
            pl.BlockSpec((D, F), lambda i: (0, 0)),                # W1
            pl.BlockSpec((1, F), lambda i: (0, 0)),                # b1
            pl.BlockSpec((F, D), lambda i: (0, 0)),                # W2
            pl.BlockSpec((1, D), lambda i: (0, 0)),                # b2
        ],
        out_specs=pl.BlockSpec((tm, D), lambda i: (i, 0)),
        compiler_params=pltpu.CompilerParams(
            dimension_semantics=("parallel",)),
    )(ln_a, ln_b, x2, w1, b1, w2, b2)
    return out.reshape(B, S, D)


# ----------------------------------------------------------------------------
# Module-equivalent wrapper (eval-mode Encoder)
# ----------------------------------------------------------------------------
class Encoder:
    """JAX/Pallas equivalent of the PyTorch Encoder (inference mode).

    The PyTorch Encoder appends the SAME EncoderBlock object N times, so all
    layers share one parameter set; this class does the same.
    """

    def __init__(self, d_model, d_ff, h, n_layers, dropout=0.1, eps=1e-6, key=None):
        assert d_model % h == 0
        self.d_model, self.d_ff, self.h, self.n_layers = d_model, d_ff, h, n_layers
        self.eps = float(eps)
        self.p = float(dropout)      # unused: eval-mode forward (dropout = identity)
        key = jax.random.PRNGKey(0) if key is None else key
        ks = jax.random.split(key, 6)

        def linear(k, fan_in, fan_out):
            kw, kb = jax.random.split(k)
            w = jax.random.normal(kw, (fan_in, fan_out), jnp.float32) / jnp.sqrt(fan_in)
            b = jax.random.normal(kb, (1, fan_out), jnp.float32) * 0.01
            return w, b

        wq, bq = linear(ks[0], d_model, d_model)
        wk, bk = linear(ks[1], d_model, d_model)
        wv, bv = linear(ks[2], d_model, d_model)
        wo, bo = linear(ks[3], d_model, d_model)
        w1, b1 = linear(ks[4], d_model, d_ff)
        w2, b2 = linear(ks[5], d_ff, d_model)
        self.params = dict(
            wq=wq, bq=bq, wk=wk, bk=bk, wv=wv, bv=bv, wo=wo, bo=bo,
            w1=w1, b1=b1, w2=w2, b2=b2,
            ln1_a=jnp.ones((1,), jnp.float32), ln1_b=jnp.zeros((1,), jnp.float32),
            ln2_a=jnp.ones((1,), jnp.float32), ln2_b=jnp.zeros((1,), jnp.float32),
        )

    def __call__(self, x, mask):
        p = self.params
        for _ in range(self.n_layers):
            x = attention_block_pallas(
                x, mask, p["ln1_a"], p["ln1_b"],
                p["wq"], p["bq"], p["wk"], p["bk"], p["wv"], p["bv"],
                p["wo"], p["bo"], h=self.h, eps=self.eps)
            x = ffn_block_pallas(
                x, p["ln2_a"], p["ln2_b"],
                p["w1"], p["b1"], p["w2"], p["b2"], eps=self.eps)
        return x


# ----------------------------------------------------------------------------
# Pure-JAX reference (same eval-mode semantics) for the correctness check
# ----------------------------------------------------------------------------
def _ref_layer_norm(x, alpha, bias, eps):
    mean = jnp.mean(x, axis=-1, keepdims=True)
    var = jnp.sum((x - mean) ** 2, axis=-1, keepdims=True) / (x.shape[-1] - 1)
    std = jnp.sqrt(var)
    return alpha * (x - mean) / (std + eps) + bias


def _ref_mha(x, mask, p, h):
    B, S, D = x.shape
    dk = D // h
    q = x @ p["wq"] + p["bq"]
    k = x @ p["wk"] + p["bk"]
    v = x @ p["wv"] + p["bv"]

    def split(t):
        return t.reshape(B, S, h, dk).transpose(0, 2, 1, 3)     # (B, h, S, dk)

    q, k, v = split(q), split(k), split(v)
    s = jnp.einsum("bhqd,bhkd->bhqk", q, k) / math.sqrt(dk)
    s = jnp.where(mask == 0.0, NEG_INF, s)
    a = jax.nn.softmax(s, axis=-1)
    ctx = jnp.einsum("bhqk,bhkd->bhqd", a, v)
    ctx = ctx.transpose(0, 2, 1, 3).reshape(B, S, D)
    return ctx @ p["wo"] + p["bo"]


def _ref_ffn(x, p):
    h1 = jnp.maximum(x @ p["w1"] + p["b1"], 0.0)
    return h1 @ p["w2"] + p["b2"]


def _ref_encoder(x, mask, params, *, h, n_layers, eps):
    for _ in range(n_layers):
        n1 = _ref_layer_norm(x, params["ln1_a"][0], params["ln1_b"][0], eps)
        x = x + _ref_mha(n1, mask, params, h)
        n2 = _ref_layer_norm(x, params["ln2_a"][0], params["ln2_b"][0], eps)
        x = x + _ref_ffn(n2, params)
    return x


if __name__ == "__main__":
    B, S, D, F, HEADS, N_LAYERS = 2, 8, 128, 256, 4, 2
    root = jax.random.PRNGKey(0)
    k_x, k_enc = jax.random.split(root)
    x = jax.random.normal(k_x, (B, S, D), dtype=jnp.float32)

    # Padding-style attention mask (B, 1, S, S): batch 1 masks its last 2 keys.
    mask = jnp.ones((B, 1, S, S), jnp.float32)
    mask = mask.at[1, :, :, S - 2:].set(0.0)

    enc = Encoder(d_model=D, d_ff=F, h=HEADS, n_layers=N_LAYERS,
                  dropout=0.1, key=k_enc)
    out = jax.block_until_ready(enc(x, mask))
    assert out.shape == (B, S, D)

    ref = _ref_encoder(x, mask, enc.params, h=HEADS, n_layers=N_LAYERS, eps=enc.eps)
    assert jnp.allclose(out, ref, atol=2e-4, rtol=2e-4), (
        "Pallas encoder mismatch vs pure-JAX reference: "
        f"max abs err = {float(jnp.max(jnp.abs(out - ref)))}")

    print("KERNEL_OK")
</pallas_src>

<mosaic_0001>
module attributes {stable_mosaic.version = 11 : i64} {
  func.func @_attn_block_kernel(%arg0: i32, %arg1: memref<1xf32, #tpu.memory_space<smem>>, %arg2: memref<1xf32, #tpu.memory_space<smem>>, %arg3: memref<1x8x128xf32, #tpu.memory_space<vmem>>, %arg4: memref<1x1x8x8xf32, #tpu.memory_space<vmem>>, %arg5: memref<128x128xf32, #tpu.memory_space<vmem>>, %arg6: memref<1x128xf32, #tpu.memory_space<vmem>>, %arg7: memref<128x128xf32, #tpu.memory_space<vmem>>, %arg8: memref<1x128xf32, #tpu.memory_space<vmem>>, %arg9: memref<128x128xf32, #tpu.memory_space<vmem>>, %arg10: memref<1x128xf32, #tpu.memory_space<vmem>>, %arg11: memref<128x128xf32, #tpu.memory_space<vmem>>, %arg12: memref<1x128xf32, #tpu.memory_space<vmem>>, %arg13: memref<1x8x128xf32, #tpu.memory_space<vmem>>) attributes {dimension_semantics = [#tpu.dimension_semantics<parallel>], iteration_bounds = array<i64: 2>, scalar_prefetch = 0 : i64, scratch_operands = 0 : i64, tpu.core_type = #tpu.core_type<tc>, window_params = [{transform_indices = @transform_0, window_bounds = array<i64: 1>}, {transform_indices = @transform_1, window_bounds = array<i64: 1>}, {transform_indices = @transform_2, window_bounds = array<i64: 1, 8, 128>}, {transform_indices = @transform_3, window_bounds = array<i64: 1, 1, 8, 8>}, {pipeline_mode = #tpu.pipeline_mode<synchronous>, transform_indices = @transform_4, window_bounds = array<i64: 128, 128>}, {pipeline_mode = #tpu.pipeline_mode<synchronous>, transform_indices = @transform_5, window_bounds = array<i64: 1, 128>}, {pipeline_mode = #tpu.pipeline_mode<synchronous>, transform_indices = @transform_6, window_bounds = array<i64: 128, 128>}, {pipeline_mode = #tpu.pipeline_mode<synchronous>, transform_indices = @transform_7, window_bounds = array<i64: 1, 128>}, {pipeline_mode = #tpu.pipeline_mode<synchronous>, transform_indices = @transform_8, window_bounds = array<i64: 128, 128>}, {pipeline_mode = #tpu.pipeline_mode<synchronous>, transform_indices = @transform_9, window_bounds = array<i64: 1, 128>}, {pipeline_mode = #tpu.pipeline_mode<synchronous>, transform_indices = @transform_10, window_bounds = array<i64: 128, 128>}, {pipeline_mode = #tpu.pipeline_mode<synchronous>, transform_indices = @transform_11, window_bounds = array<i64: 1, 128>}, {transform_indices = @transform_12, window_bounds = array<i64: 1, 8, 128>}]} {
    %c0 = arith.constant 0 : index
    %c0_0 = arith.constant 0 : index
    %c0_1 = arith.constant 0 : index
    %0 = vector.load %arg3[%c0, %c0_0, %c0_1] : memref<1x8x128xf32, #tpu.memory_space<vmem>>, vector<1x8x128xf32>
    %1 = vector.shape_cast %0 : vector<1x8x128xf32> to vector<8x128xf32>
    %c0_2 = arith.constant 0 : index
    %2 = memref.load %arg1[%c0_2] : memref<1xf32, #tpu.memory_space<smem>>
    %c0_3 = arith.constant 0 : index
    %3 = memref.load %arg2[%c0_3] : memref<1xf32, #tpu.memory_space<smem>>
    %cst = arith.constant dense<0.000000e+00> : vector<8xf32>
    %4 = vector.multi_reduction <add>, %1, %cst [1] : vector<8x128xf32> to vector<8xf32>
    %5 = vector.shape_cast %4 : vector<8xf32> to vector<8x1xf32>
    %6 = arith.mulf %1, %1 : vector<8x128xf32>
    %cst_4 = arith.constant dense<0.000000e+00> : vector<8xf32>
    %7 = vector.multi_reduction <add>, %6, %cst_4 [1] : vector<8x128xf32> to vector<8xf32>
    %8 = vector.shape_cast %7 : vector<8xf32> to vector<8x1xf32>
    %cst_5 = arith.constant 7.812500e-03 : f32
    %9 = vector.broadcast %cst_5 : f32 to vector<8x1xf32>
    %10 = arith.mulf %5, %9 : vector<8x1xf32>
    %11 = arith.mulf %5, %10 : vector<8x1xf32>
    %12 = arith.subf %8, %11 : vector<8x1xf32>
    %cst_6 = arith.constant 0.00787401571 : f32
    %13 = vector.broadcast %cst_6 : f32 to vector<8x1xf32>
    %14 = arith.mulf %12, %13 : vector<8x1xf32>
    %cst_7 = arith.constant 0.000000e+00 : f32
    %15 = vector.broadcast %cst_7 : f32 to vector<8x1xf32>
    %16 = arith.maximumf %14, %15 : vector<8x1xf32>
    %17 = math.sqrt %16 : vector<8x1xf32>
    %cst_8 = arith.constant 9.99999997E-7 : f32
    %18 = vector.broadcast %cst_8 : f32 to vector<8x1xf32>
    %19 = arith.addf %17, %18 : vector<8x1xf32>
    %20 = vector.broadcast %2 : f32 to vector<8x1xf32>
    %21 = arith.divf %20, %19 : vector<8x1xf32>
    %22 = vector.broadcast %10 : vector<8x1xf32> to vector<8x128xf32>
    %23 = arith.subf %1, %22 : vector<8x128xf32>
    %24 = vector.broadcast %21 : vector<8x1xf32> to vector<8x128xf32>
    %25 = arith.mulf %23, %24 : vector<8x128xf32>
    %26 = vector.broadcast %3 : f32 to vector<8x128xf32>
    %27 = arith.addf %25, %26 : vector<8x128xf32>
    %c0_9 = arith.constant 0 : index
    %c0_10 = arith.constant 0 : index
    %28 = vector.load %arg5[%c0_9, %c0_10] : memref<128x128xf32, #tpu.memory_space<vmem>>, vector<128x128xf32>
    %cst_11 = arith.constant dense<0.000000e+00> : vector<8x128xf32>
    %29 = tpu.matmul %27, %28, %cst_11 {dimension_numbers = #tpu.dot_dimension_numbers<[1], [0], [0], [1], [0, 0, 1, 1], [], []>, precision = #tpu.contract_precision<fp32>} : vector<8x128xf32>, vector<128x128xf32>, vector<8x128xf32> -> vector<8x128xf32>
    %c0_12 = arith.constant 0 : index
    %c0_13 = arith.constant 0 : index
    %30 = vector.load %arg6[%c0_12, %c0_13] : memref<1x128xf32, #tpu.memory_space<vmem>>, vector<1x128xf32>
    %31 = vector.broadcast %30 : vector<1x128xf32> to vector<8x128xf32>
    %32 = arith.addf %29, %31 : vector<8x128xf32>
    %c0_14 = arith.constant 0 : index
    %c0_15 = arith.constant 0 : index
    %33 = vector.load %arg7[%c0_14, %c0_15] : memref<128x128xf32, #tpu.memory_space<vmem>>, vector<128x128xf32>
    %cst_16 = arith.constant dense<0.000000e+00> : vector<8x128xf32>
    %34 = tpu.matmul %27, %33, %cst_16 {dimension_numbers = #tpu.dot_dimension_numbers<[1], [0], [0], [1], [0, 0, 1, 1], [], []>, precision = #tpu.contract_precision<fp32>} : vector<8x128xf32>, vector<128x128xf32>, vector<8x128xf32> -> vector<8x128xf32>
    %c0_17 = arith.constant 0 : index
    %c0_18 = arith.constant 0 : index
    %35 = vector.load %arg8[%c0_17, %c0_18] : memref<1x128xf32, #tpu.memory_space<vmem>>, vector<1x128xf32>
    %36 = vector.broadcast %35 : vector<1x128xf32> to vector<8x128xf32>
    %37 = arith.addf %34, %36 : vector<8x128xf32>
    %c0_19 = arith.constant 0 : index
    %c0_20 = arith.constant 0 : index
    %38 = vector.load %arg9[%c0_19, %c0_20] : memref<128x128xf32, #tpu.memory_space<vmem>>, vector<128x128xf32>
    %cst_21 = arith.constant dense<0.000000e+00> : vector<8x128xf32>
    %39 = tpu.matmul %27, %38, %cst_21 {dimension_numbers = #tpu.dot_dimension_numbers<[1], [0], [0], [1], [0, 0, 1, 1], [], []>, precision = #tpu.contract_precision<fp32>} : vector<8x128xf32>, vector<128x128xf32>, vector<8x128xf32> -> vector<8x128xf32>
    %c0_22 = arith.constant 0 : index
    %c0_23 = arith.constant 0 : index
    %40 = vector.load %arg10[%c0_22, %c0_23] : memref<1x128xf32, #tpu.memory_space<vmem>>, vector<1x128xf32>
    %41 = vector.broadcast %40 : vector<1x128xf32> to vector<8x128xf32>
    %42 = arith.addf %39, %41 : vector<8x128xf32>
    %c0_24 = arith.constant 0 : index
    %c0_25 = arith.constant 0 : index
    %c0_26 = arith.constant 0 : index
    %c0_27 = arith.constant 0 : index
    %43 = vector.load %arg4[%c0_24, %c0_25, %c0_26, %c0_27] : memref<1x1x8x8xf32, #tpu.memory_space<vmem>>, vector<1x1x8x8xf32>
    %44 = vector.shape_cast %43 : vector<1x1x8x8xf32> to vector<8x8xf32>
    %cst_28 = arith.constant 0.000000e+00 : f32
    %45 = vector.broadcast %cst_28 : f32 to vector<8x8xf32>
    %46 = arith.cmpf oeq, %44, %45 : vector<8x8xf32>
    %cst_29 = arith.constant -1.000000e+30 : f32
    %cst_30 = arith.constant 0.000000e+00 : f32
    %47 = vector.broadcast %cst_29 : f32 to vector<8x8xf32>
    %48 = vector.broadcast %cst_30 : f32 to vector<8x8xf32>
    %49 = arith.select %46, %47, %48 : vector<8x8xi1>, vector<8x8xf32>
    %cst_31 = arith.constant 0.000000e+00 : f32
    %50 = vector.broadcast %cst_31 : f32 to vector<8x128xf32>
    %51 = vector.extract_strided_slice %32 {offsets = [0, 0], sizes = [8, 32], strides = [1, 1]} : vector<8x128xf32> to vector<8x32xf32>
    %52 = vector.extract_strided_slice %37 {offsets = [0, 0], sizes = [8, 32], strides = [1, 1]} : vector<8x128xf32> to vector<8x32xf32>
    %53 = vector.extract_strided_slice %42 {offsets = [0, 0], sizes = [8, 32], strides = [1, 1]} : vector<8x128xf32> to vector<8x32xf32>
    %cst_32 = arith.constant dense<0.000000e+00> : vector<8x8xf32>
    %54 = tpu.matmul %51, %52, %cst_32 {dimension_numbers = #tpu.dot_dimension_numbers<[1], [1], [0], [0], [0, 0, 1, 0], [], []>, precision = #tpu.contract_precision<fp32>} : vector<8x32xf32>, vector<8x32xf32>, vector<8x8xf32> -> vector<8x8xf32>
    %cst_33 = arith.constant 0.176776692 : f32
    %55 = vector.broadcast %cst_33 : f32 to vector<8x8xf32>
    %56 = arith.mulf %54, %55 : vector<8x8xf32>
    %57 = arith.addf %56, %49 : vector<8x8xf32>
    %cst_34 = arith.constant dense<0xFF800000> : vector<8xf32>
    %58 = vector.multi_reduction <maximumf>, %57, %cst_34 [1] : vector<8x8xf32> to vector<8xf32>
    %59 = vector.shape_cast %58 : vector<8xf32> to vector<8x1xf32>
    %60 = vector.broadcast %59 : vector<8x1xf32> to vector<8x8xf32>
    %61 = arith.subf %57, %60 : vector<8x8xf32>
    %62 = math.exp %61 : vector<8x8xf32>
    %cst_35 = arith.constant dense<0.000000e+00> : vector<8xf32>
    %63 = vector.multi_reduction <add>, %62, %cst_35 [1] : vector<8x8xf32> to vector<8xf32>
    %64 = vector.shape_cast %63 : vector<8xf32> to vector<8x1xf32>
    %cst_36 = arith.constant 1.000000e+00 : f32
    %65 = vector.broadcast %cst_36 : f32 to vector<8x1xf32>
    %66 = arith.divf %65, %64 : vector<8x1xf32>
    %67 = vector.broadcast %66 : vector<8x1xf32> to vector<8x8xf32>
    %68 = arith.mulf %62, %67 : vector<8x8xf32>
    %cst_37 = arith.constant dense<0.000000e+00> : vector<8x32xf32>
    %69 = tpu.matmul %68, %53, %cst_37 {dimension_numbers = #tpu.dot_dimension_numbers<[1], [0], [0], [1], [0, 0, 1, 1], [], []>, precision = #tpu.contract_precision<fp32>} : vector<8x8xf32>, vector<8x32xf32>, vector<8x32xf32> -> vector<8x32xf32>
    %c0_38 = arith.constant 0 : index
    %c0_39 = arith.constant 0 : index
    %70 = vector.load %arg11[%c0_38, %c0_39] : memref<128x128xf32, #tpu.memory_space<vmem>>, vector<32x128xf32>
    %cst_40 = arith.constant dense<0.000000e+00> : vector<8x128xf32>
    %71 = tpu.matmul %69, %70, %cst_40 {dimension_numbers = #tpu.dot_dimension_numbers<[1], [0], [0], [1], [0, 0, 1, 1], [], []>, precision = #tpu.contract_precision<fp32>} : vector<8x32xf32>, vector<32x128xf32>, vector<8x128xf32> -> vector<8x128xf32>
    %72 = arith.addf %50, %71 : vector<8x128xf32>
    %73 = vector.extract_strided_slice %32 {offsets = [0, 32], sizes = [8, 32], strides = [1, 1]} : vector<8x128xf32> to vector<8x32xf32>
    %74 = vector.extract_strided_slice %37 {offsets = [0, 32], sizes = [8, 32], strides = [1, 1]} : vector<8x128xf32> to vector<8x32xf32>
    %75 = vector.extract_strided_slice %42 {offsets = [0, 32], sizes = [8, 32], strides = [1, 1]} : vector<8x128xf32> to vector<8x32xf32>
    %cst_41 = arith.constant dense<0.000000e+00> : vector<8x8xf32>
    %76 = tpu.matmul %73, %74, %cst_41 {dimension_numbers = #tpu.dot_dimension_numbers<[1], [1], [0], [0], [0, 0, 1, 0], [], []>, precision = #tpu.contract_precision<fp32>} : vector<8x32xf32>, vector<8x32xf32>, vector<8x8xf32> -> vector<8x8xf32>
    %cst_42 = arith.constant 0.176776692 : f32
    %77 = vector.broadcast %cst_42 : f32 to vector<8x8xf32>
    %78 = arith.mulf %76, %77 : vector<8x8xf32>
    %79 = arith.addf %78, %49 : vector<8x8xf32>
    %cst_43 = arith.constant dense<0xFF800000> : vector<8xf32>
    %80 = vector.multi_reduction <maximumf>, %79, %cst_43 [1] : vector<8x8xf32> to vector<8xf32>
    %81 = vector.shape_cast %80 : vector<8xf32> to vector<8x1xf32>
    %82 = vector.broadcast %81 : vector<8x1xf32> to vector<8x8xf32>
    %83 = arith.subf %79, %82 : vector<8x8xf32>
    %84 = math.exp %83 : vector<8x8xf32>
    %cst_44 = arith.constant dense<0.000000e+00> : vector<8xf32>
    %85 = vector.multi_reduction <add>, %84, %cst_44 [1] : vector<8x8xf32> to vector<8xf32>
    %86 = vector.shape_cast %85 : vector<8xf32> to vector<8x1xf32>
    %cst_45 = arith.constant 1.000000e+00 : f32
    %87 = vector.broadcast %cst_45 : f32 to vector<8x1xf32>
    %88 = arith.divf %87, %86 : vector<8x1xf32>
    %89 = vector.broadcast %88 : vector<8x1xf32> to vector<8x8xf32>
    %90 = arith.mulf %84, %89 : vector<8x8xf32>
    %cst_46 = arith.constant dense<0.000000e+00> : vector<8x32xf32>
    %91 = tpu.matmul %90, %75, %cst_46 {dimension_numbers = #tpu.dot_dimension_numbers<[1], [0], [0], [1], [0, 0, 1, 1], [], []>, precision = #tpu.contract_precision<fp32>} : vector<8x8xf32>, vector<8x32xf32>, vector<8x32xf32> -> vector<8x32xf32>
    %c32 = arith.constant 32 : index
    %c0_47 = arith.constant 0 : index
    %92 = vector.load %arg11[%c32, %c0_47] : memref<128x128xf32, #tpu.memory_space<vmem>>, vector<32x128xf32>
    %cst_48 = arith.constant dense<0.000000e+00> : vector<8x128xf32>
    %93 = tpu.matmul %91, %92, %cst_48 {dimension_numbers = #tpu.dot_dimension_numbers<[1], [0], [0], [1], [0, 0, 1, 1], [], []>, precision = #tpu.contract_precision<fp32>} : vector<8x32xf32>, vector<32x128xf32>, vector<8x128xf32> -> vector<8x128xf32>
    %94 = arith.addf %72, %93 : vector<8x128xf32>
    %95 = vector.extract_strided_slice %32 {offsets = [0, 64], sizes = [8, 32], strides = [1, 1]} : vector<8x128xf32> to vector<8x32xf32>
    %96 = vector.extract_strided_slice %37 {offsets = [0, 64], sizes = [8, 32], strides = [1, 1]} : vector<8x128xf32> to vector<8x32xf32>
    %97 = vector.extract_strided_slice %42 {offsets = [0, 64], sizes = [8, 32], strides = [1, 1]} : vector<8x128xf32> to vector<8x32xf32>
    %cst_49 = arith.constant dense<0.000000e+00> : vector<8x8xf32>
    %98 = tpu.matmul %95, %96, %cst_49 {dimension_numbers = #tpu.dot_dimension_numbers<[1], [1], [0], [0], [0, 0, 1, 0], [], []>, precision = #tpu.contract_precision<fp32>} : vector<8x32xf32>, vector<8x32xf32>, vector<8x8xf32> -> vector<8x8xf32>
    %cst_50 = arith.constant 0.176776692 : f32
    %99 = vector.broadcast %cst_50 : f32 to vector<8x8xf32>
    %100 = arith.mulf %98, %99 : vector<8x8xf32>
    %101 = arith.addf %100, %49 : vector<8x8xf32>
    %cst_51 = arith.constant dense<0xFF800000> : vector<8xf32>
    %102 = vector.multi_reduction <maximumf>, %101, %cst_51 [1] : vector<8x8xf32> to vector<8xf32>
    %103 = vector.shape_cast %102 : vector<8xf32> to vector<8x1xf32>
    %104 = vector.broadcast %103 : vector<8x1xf32> to vector<8x8xf32>
    %105 = arith.subf %101, %104 : vector<8x8xf32>
    %106 = math.exp %105 : vector<8x8xf32>
    %cst_52 = arith.constant dense<0.000000e+00> : vector<8xf32>
    %107 = vector.multi_reduction <add>, %106, %cst_52 [1] : vector<8x8xf32> to vector<8xf32>
    %108 = vector.shape_cast %107 : vector<8xf32> to vector<8x1xf32>
    %cst_53 = arith.constant 1.000000e+00 : f32
    %109 = vector.broadcast %cst_53 : f32 to vector<8x1xf32>
    %110 = arith.divf %109, %108 : vector<8x1xf32>
    %111 = vector.broadcast %110 : vector<8x1xf32> to vector<8x8xf32>
    %112 = arith.mulf %106, %111 : vector<8x8xf32>
    %cst_54 = arith.constant dense<0.000000e+00> : vector<8x32xf32>
    %113 = tpu.matmul %112, %97, %cst_54 {dimension_numbers = #tpu.dot_dimension_numbers<[1], [0], [0], [1], [0, 0, 1, 1], [], []>, precision = #tpu.contract_precision<fp32>} : vector<8x8xf32>, vector<8x32xf32>, vector<8x32xf32> -> vector<8x32xf32>
    %c64 = arith.constant 64 : index
    %c0_55 = arith.constant 0 : index
    %114 = vector.load %arg11[%c64, %c0_55] : memref<128x128xf32, #tpu.memory_space<vmem>>, vector<32x128xf32>
    %cst_56 = arith.constant dense<0.000000e+00> : vector<8x128xf32>
    %115 = tpu.matmul %113, %114, %cst_56 {dimension_numbers = #tpu.dot_dimension_numbers<[1], [0], [0], [1], [0, 0, 1, 1], [], []>, precision = #tpu.contract_precision<fp32>} : vector<8x32xf32>, vector<32x128xf32>, vector<8x128xf32> -> vector<8x128xf32>
    %116 = arith.addf %94, %115 : vector<8x128xf32>
    %117 = vector.extract_strided_slice %32 {offsets = [0, 96], sizes = [8, 32], strides = [1, 1]} : vector<8x128xf32> to vector<8x32xf32>
    %118 = vector.extract_strided_slice %37 {offsets = [0, 96], sizes = [8, 32], strides = [1, 1]} : vector<8x128xf32> to vector<8x32xf32>
    %119 = vector.extract_strided_slice %42 {offsets = [0, 96], sizes = [8, 32], strides = [1, 1]} : vector<8x128xf32> to vector<8x32xf32>
    %cst_57 = arith.constant dense<0.000000e+00> : vector<8x8xf32>
    %120 = tpu.matmul %117, %118, %cst_57 {dimension_numbers = #tpu.dot_dimension_numbers<[1], [1], [0], [0], [0, 0, 1, 0], [], []>, precision = #tpu.contract_precision<fp32>} : vector<8x32xf32>, vector<8x32xf32>, vector<8x8xf32> -> vector<8x8xf32>
    %cst_58 = arith.constant 0.176776692 : f32
    %121 = vector.broadcast %cst_58 : f32 to vector<8x8xf32>
    %122 = arith.mulf %120, %121 : vector<8x8xf32>
    %123 = arith.addf %122, %49 : vector<8x8xf32>
    %cst_59 = arith.constant dense<0xFF800000> : vector<8xf32>
    %124 = vector.multi_reduction <maximumf>, %123, %cst_59 [1] : vector<8x8xf32> to vector<8xf32>
    %125 = vector.shape_cast %124 : vector<8xf32> to vector<8x1xf32>
    %126 = vector.broadcast %125 : vector<8x1xf32> to vector<8x8xf32>
    %127 = arith.subf %123, %126 : vector<8x8xf32>
    %128 = math.exp %127 : vector<8x8xf32>
    %cst_60 = arith.constant dense<0.000000e+00> : vector<8xf32>
    %129 = vector.multi_reduction <add>, %128, %cst_60 [1] : vector<8x8xf32> to vector<8xf32>
    %130 = vector.shape_cast %129 : vector<8xf32> to vector<8x1xf32>
    %cst_61 = arith.constant 1.000000e+00 : f32
    %131 = vector.broadcast %cst_61 : f32 to vector<8x1xf32>
    %132 = arith.divf %131, %130 : vector<8x1xf32>
    %133 = vector.broadcast %132 : vector<8x1xf32> to vector<8x8xf32>
    %134 = arith.mulf %128, %133 : vector<8x8xf32>
    %cst_62 = arith.constant dense<0.000000e+00> : vector<8x32xf32>
    %135 = tpu.matmul %134, %119, %cst_62 {dimension_numbers = #tpu.dot_dimension_numbers<[1], [0], [0], [1], [0, 0, 1, 1], [], []>, precision = #tpu.contract_precision<fp32>} : vector<8x8xf32>, vector<8x32xf32>, vector<8x32xf32> -> vector<8x32xf32>
    %c96 = arith.constant 96 : index
    %c0_63 = arith.constant 0 : index
    %136 = vector.load %arg11[%c96, %c0_63] : memref<128x128xf32, #tpu.memory_space<vmem>>, vector<32x128xf32>
    %cst_64 = arith.constant dense<0.000000e+00> : vector<8x128xf32>
    %137 = tpu.matmul %135, %136, %cst_64 {dimension_numbers = #tpu.dot_dimension_numbers<[1], [0], [0], [1], [0, 0, 1, 1], [], []>, precision = #tpu.contract_precision<fp32>} : vector<8x32xf32>, vector<32x128xf32>, vector<8x128xf32> -> vector<8x128xf32>
    %138 = arith.addf %116, %137 : vector<8x128xf32>
    %c0_65 = arith.constant 0 : index
    %c0_66 = arith.constant 0 : index
    %139 = vector.load %arg12[%c0_65, %c0_66] : memref<1x128xf32, #tpu.memory_space<vmem>>, vector<1x128xf32>
    %140 = vector.broadcast %139 : vector<1x128xf32> to vector<8x128xf32>
    %141 = arith.addf %138, %140 : vector<8x128xf32>
    %142 = arith.addf %1, %141 : vector<8x128xf32>
    %c0_67 = arith.constant 0 : index
    %c0_68 = arith.constant 0 : index
    %c0_69 = arith.constant 0 : index
    %143 = vector.load %arg13[%c0_67, %c0_68, %c0_69] : memref<1x8x128xf32, #tpu.memory_space<vmem>>, vector<1x8x128xf32>
    %144 = vector.shape_cast %143 : vector<1x8x128xf32> to vector<8x128xf32>
    %145 = vector.shape_cast %142 : vector<8x128xf32> to vector<1x8x128xf32>
    tpu.vector_store %arg13[%c0_67, %c0_68, %c0_69], %145 {strides = array<i32>} : memref<1x8x128xf32, #tpu.memory_space<vmem>>, vector<1x8x128xf32>,
    return
  }
  func.func @transform_0(%arg0: i32) -> i32 {
    %c0_i32 = arith.constant 0 : i32
    %c0_i32_0 = arith.constant 0 : i32
    return %c0_i32 : i32
  }
  func.func @transform_1(%arg0: i32) -> i32 {
    %c0_i32 = arith.constant 0 : i32
    %c0_i32_0 = arith.constant 0 : i32
    return %c0_i32 : i32
  }
  func.func @transform_2(%arg0: i32) -> (i32, i32, i32) {
    %c0_i32 = arith.constant 0 : i32
    %c0_i32_0 = arith.constant 0 : i32
    %c0_i32_1 = arith.constant 0 : i32
    return %arg0, %c0_i32, %c0_i32_0 : i32, i32, i32
  }
  func.func @transform_3(%arg0: i32) -> (i32, i32, i32, i32) {
    %c0_i32 = arith.constant 0 : i32
    %c0_i32_0 = arith.constant 0 : i32
    %c0_i32_1 = arith.constant 0 : i32
    %c0_i32_2 = arith.constant 0 : i32
    return %arg0, %c0_i32, %c0_i32_0, %c0_i32_1 : i32, i32, i32, i32
  }
  func.func @transform_4(%arg0: i32) -> (i32, i32) {
    %c0_i32 = arith.constant 0 : i32
    %c0_i32_0 = arith.constant 0 : i32
    %c0_i32_1 = arith.constant 0 : i32
    return %c0_i32, %c0_i32_0 : i32, i32
  }
  func.func @transform_5(%arg0: i32) -> (i32, i32) {
    %c0_i32 = arith.constant 0 : i32
    %c0_i32_0 = arith.constant 0 : i32
    %c0_i32_1 = arith.constant 0 : i32
    return %c0_i32, %c0_i32_0 : i32, i32
  }
  func.func @transform_6(%arg0: i32) -> (i32, i32) {
    %c0_i32 = arith.constant 0 : i32
    %c0_i32_0 = arith.constant 0 : i32
    %c0_i32_1 = arith.constant 0 : i32
    return %c0_i32, %c0_i32_0 : i32, i32
  }
  func.func @transform_7(%arg0: i32) -> (i32, i32) {
    %c0_i32 = arith.constant 0 : i32
    %c0_i32_0 = arith.constant 0 : i32
    %c0_i32_1 = arith.constant 0 : i32
    return %c0_i32, %c0_i32_0 : i32, i32
  }
  func.func @transform_8(%arg0: i32) -> (i32, i32) {
    %c0_i32 = arith.constant 0 : i32
    %c0_i32_0 = arith.constant 0 : i32
    %c0_i32_1 = arith.constant 0 : i32
    return %c0_i32, %c0_i32_0 : i32, i32
  }
  func.func @transform_9(%arg0: i32) -> (i32, i32) {
    %c0_i32 = arith.constant 0 : i32
    %c0_i32_0 = arith.constant 0 : i32
    %c0_i32_1 = arith.constant 0 : i32
    return %c0_i32, %c0_i32_0 : i32, i32
  }
  func.func @transform_10(%arg0: i32) -> (i32, i32) {
    %c0_i32 = arith.constant 0 : i32
    %c0_i32_0 = arith.constant 0 : i32
    %c0_i32_1 = arith.constant 0 : i32
    return %c0_i32, %c0_i32_0 : i32, i32
  }
  func.func @transform_11(%arg0: i32) -> (i32, i32) {
    %c0_i32 = arith.constant 0 : i32
    %c0_i32_0 = arith.constant 0 : i32
    %c0_i32_1 = arith.constant 0 : i32
    return %c0_i32, %c0_i32_0 : i32, i32
  }
  func.func @transform_12(%arg0: i32) -> (i32, i32, i32) {
    %c0_i32 = arith.constant 0 : i32
    %c0_i32_0 = arith.constant 0 : i32
    %c0_i32_1 = arith.constant 0 : i32
    return %arg0, %c0_i32, %c0_i32_0 : i32, i32, i32
  }
}

</mosaic_0001>

<llo_original>
// kernel: tpu_custom_call.1
$region0: #{tpu_custom_call.1}
  #allocation0 [shape = 'u32[]', space=smem, size = 0x4, offset = 0x4, fixed_abs, tag = 'smem constant byte address 0x4 - core index']
  #allocation1 [shape = 'u32[144,128]{1,0:T(1,128)}', space=vmem, size = 0x12000, scoped, tag = 'internal scratch']
  #allocation2 [shape = 'f32[1]{0:T(128)S(6)}', space=smem, size = 0x200, scoped, tag = 'scoped memory for tpu_custom_call.1']
  #allocation3 [shape = 'f32[1]{0:T(128)S(6)}', space=smem, size = 0x200, scoped, tag = 'scoped memory for tpu_custom_call.1']
  %s0 = inlined_call_operand.<no memory space> [shape: f32[1], index: 0, kind: input, shape index: {}]
  %s1 = inlined_call_operand.<no memory space> [shape: f32[1], index: 1, kind: input, shape index: {}]
  %s2 = inlined_call_operand.hbm [shape: f32[2,8,128], index: 2, kind: input, shape index: {}]
  %s3 = inlined_call_operand.hbm [shape: f32[2,1,8,8], index: 3, kind: input, shape index: {}]
  %s4 = inlined_call_operand.hbm [shape: f32[128,128], index: 4, kind: input, shape index: {}]
  %s5 = inlined_call_operand.vmem [shape: f32[1,128], index: 5, kind: input, shape index: {}]
  %s6 = inlined_call_operand.hbm [shape: f32[128,128], index: 6, kind: input, shape index: {}]
  %s7 = inlined_call_operand.vmem [shape: f32[1,128], index: 7, kind: input, shape index: {}]
  %s8 = inlined_call_operand.hbm [shape: f32[128,128], index: 8, kind: input, shape index: {}]
  %s9 = inlined_call_operand.vmem [shape: f32[1,128], index: 9, kind: input, shape index: {}]
  %s10 = inlined_call_operand.hbm [shape: f32[128,128], index: 10, kind: input, shape index: {}]
  %s11 = inlined_call_operand.vmem [shape: f32[1,128], index: 11, kind: input, shape index: {}]
  %s12 = inlined_call_operand.hbm [shape: f32[2,8,128], index: 12, kind: output, shape index: {}]
  %s13 = sld [smem:[#allocation0]]
  $region105: #{tpu_custom_call.1} parent=0
    _
  %s15 = ssub.s32 1, %s13
  %s16 = scalar_select 0, %s15, %s13
  %17 = sst [smem:[#allocation2]] %s0
  %18 = sst [smem:[#allocation3]] %s1
  $region1: #{tpu_custom_call.1} parent=0
    #allocation4 [shape = 'u8[8192]{0}', space=vmem, size = 0x2000, scoped, tag = 'input window, operand 2']
    #allocation5 [shape = 's32[2]{0}', space=sflag, size = 0x8, scoped, tag = 'scoped memory for tpu_custom_call.1']
    #allocation6 [shape = 's32[2]{0}', space=sflag, size = 0x8, scoped, tag = 'scoped memory for tpu_custom_call.1']
    #allocation7 [shape = 'u8[8192]{0}', space=vmem, size = 0x2000, scoped, tag = 'input window, operand 3']
    #allocation8 [shape = 's32[2]{0}', space=sflag, size = 0x8, scoped, tag = 'scoped memory for tpu_custom_call.1']
    #allocation9 [shape = 'u8[65536]{0}', space=vmem, size = 0x10000, scoped, tag = 'input window, operand 4, single buffered']
    #allocation10 [shape = 'u8[65536]{0}', space=vmem, size = 0x10000, scoped, tag = 'input window, operand 6, single buffered']
    #allocation11 [shape = 's32[1]{0}', space=sflag, size = 0x4, scoped, tag = 'scoped memory for tpu_custom_call.1']
    #allocation12 [shape = 'u8[65536]{0}', space=vmem, size = 0x10000, scoped, tag = 'input window, operand 8, single buffered']
    #allocation13 [shape = 'u8[65536]{0}', space=vmem, size = 0x10000, scoped, tag = 'input window, operand 10, single buffered']
    #allocation14 [shape = 's32[1]{0}', space=sflag, size = 0x4, scoped, tag = 'scoped memory for tpu_custom_call.1']
    #allocation15 [shape = 'u8[8192]{0}', space=vmem, size = 0x2000, scoped, tag = 'output window, operand 0']
    %19 = vsyncpa [#allocation5], 0
    %s20 = scalar_lea.sflag [#allocation5], 1
    %21 = vsyncpa %s20, 0
    %22 = vsyncpa [#allocation8], 0
    %s23 = scalar_lea.sflag [#allocation8], 1
    %24 = vsyncpa %s23, 0
    %25 = vsyncpa [#allocation11], 0
    %26 = vsyncpa [#allocation14], 0
    %27 = vsyncpa [#allocation6], 0
    %s28 = scalar_lea.sflag [#allocation6], 1
    %29 = vsyncpa %s28, 0
    loop: start=0, step=1, limit=4
    $region2: #{tpu_custom_call.1} parent=1 // loop_pre_header
      _
    $region3: #{tpu_custom_call.1} parent=1 // loop_header
      %s31 = sphi 0, %s35
      %p32 = scmp.ge.s32.totalorder %s31, 4
      %s39 = sphi 0, %s39
      %s41 = sphi 0, %s39
      %s42 = sphi 0, %s41
      %s56 = sphi 0, %s42
      %s60 = sphi 0, %s60
      %s62 = sphi 0, %s60
      %s63 = sphi 0, %s62
      %s77 = sphi 0, %s63
      %s83 = sphi 0, %s85
      %s86 = sphi 0, %s83
      %s87 = sphi 0, %s86
      %s103 = sphi 0, %s87
      %s109 = sphi 0, %s111
      %s112 = sphi 0, %s109
      %s113 = sphi 0, %s112
      %s129 = sphi 0, %s113
      %s133 = sphi 0, %s133
      %s135 = sphi 0, %s133
      %s136 = sphi 0, %s135
      %s150 = sphi 0, %s136
      %s154 = sphi 0, %s154
      %s156 = sphi 0, %s154
      %s157 = sphi 0, %s156
      %s171 = sphi 0, %s157
      %s175 = sphi 0, %s175
      %s177 = sphi 0, %s175
      %s178 = sphi 0, %s177
      %s192 = sphi 0, %s178
      %s196 = sphi 0, %s196
      %s198 = sphi 0, %s196
      %s199 = sphi 0, %s198
      %s213 = sphi 0, %s199
      %s217 = sphi 0, %s217
      %s219 = sphi 0, %s217
      %s220 = sphi 0, %s219
      %s234 = sphi 0, %s220
      %s238 = sphi 0, %s238
      %s240 = sphi 0, %s238
      %s241 = sphi 0, %s240
      %s255 = sphi 0, %s241
      %s259 = sphi 0, %s259
      %s261 = sphi 0, %s259
      %s262 = sphi 0, %s261
      %s276 = sphi 0, %s262
      %s280 = sphi 0, %s280
      %s282 = sphi 0, %s280
      %s283 = sphi 0, %s282
      %s297 = sphi 0, %s283
      %s303 = sphi 0, %s305
      %s306 = sphi 0, %s303
      %s307 = sphi 0, %s306
      %s323 = sphi 0, %s307
    $region4: #{tpu_custom_call.1} parent=1 // loop_header_branch
      %34 = sbr.rel (%p32) target = $region8
    $region5: #{tpu_custom_call.1} parent=1 // loop_body
      %s36 = ssub.s32 %s31, 1
      %s37 = ssub.s32 %s31, 2
      %s38 = sadd.s32 %s31, 1
      %s40 = sadd.s32 %s39, 1
      %p43 = scmp.eq.s32.totalorder %s31, 1
      %p44 = scmp.ne.s32.totalorder %s39, %s41
      %p45 = scmp.eq.s32.totalorder %s31, 0
      %p46 = por %p44, %p45
      %p47 = scmp.ne.s32.totalorder %s39, %s41
      %p48 = scmp.eq.s32.totalorder %s36, 1
      %p49 = por %p47, %p48
      %p50 = scmp.ne.s32.totalorder %s41, %s42
      %p51 = scmp.eq.s32.totalorder %s36, 0
      %p52 = por %p50, %p51
      %p53 = scmp.ne.s32.totalorder %s41, %s42
      %p54 = scmp.eq.s32.totalorder %s37, 1
      %p55 = por %p53, %p54
      %p57 = scmp.ne.s32.totalorder %s42, %s56
      %p58 = scmp.eq.s32.totalorder %s37, 0
      %p59 = por %p57, %p58
      %s61 = sadd.s32 %s60, 1
      %p64 = scmp.eq.s32.totalorder %s31, 1
      %p65 = scmp.ne.s32.totalorder %s60, %s62
      %p66 = scmp.eq.s32.totalorder %s31, 0
      %p67 = por %p65, %p66
      %p68 = scmp.ne.s32.totalorder %s60, %s62
      %p69 = scmp.eq.s32.totalorder %s36, 1
      %p70 = por %p68, %p69
      %p71 = scmp.ne.s32.totalorder %s62, %s63
      %p72 = scmp.eq.s32.totalorder %s36, 0
      %p73 = por %p71, %p72
      %p74 = scmp.ne.s32.totalorder %s62, %s63
      %p75 = scmp.eq.s32.totalorder %s37, 1
      %p76 = por %p74, %p75
      %p78 = scmp.ne.s32.totalorder %s63, %s77
      %p79 = scmp.eq.s32.totalorder %s37, 0
      %p80 = por %p78, %p79
      %s81 = ssub.s32 %s31, %s38
      %p82 = scmp.eq.s32.totalorder %s81, 0
      %s84 = sadd.s32 %s83, 1
      %s85 = scalar_select %p82, %s83, %s84
      %p88 = pneg %p82
      %p89 = scmp.eq.s32.totalorder %s31, 1
      %p90 = por %p88, %p89
      %p91 = scmp.ne.s32.totalorder %s83, %s86
      %p92 = scmp.eq.s32.totalorder %s31, 0
      %p93 = por %p91, %p92
      %p94 = scmp.ne.s32.totalorder %s83, %s86
      %p95 = scmp.eq.s32.totalorder %s36, 1
      %p96 = por %p94, %p95
      %p97 = scmp.ne.s32.totalorder %s86, %s87
      %p98 = scmp.eq.s32.totalorder %s36, 0
      %p99 = por %p97, %p98
      %p100 = scmp.ne.s32.totalorder %s86, %s87
      %p101 = scmp.eq.s32.totalorder %s37, 1
      %p102 = por %p100, %p101
      %p104 = scmp.ne.s32.totalorder %s87, %s103
      %p105 = scmp.eq.s32.totalorder %s37, 0
      %p106 = por %p104, %p105
      %s107 = ssub.s32 %s31, %s38
      %p108 = scmp.eq.s32.totalorder %s107, 0
      %s110 = sadd.s32 %s109, 1
      %s111 = scalar_select %p108, %s109, %s110
      %p114 = pneg %p108
      %p115 = scmp.eq.s32.totalorder %s31, 1
      %p116 = por %p114, %p115
      %p117 = scmp.ne.s32.totalorder %s109, %s112
      %p118 = scmp.eq.s32.totalorder %s31, 0
      %p119 = por %p117, %p118
      %p120 = scmp.ne.s32.totalorder %s109, %s112
      %p121 = scmp.eq.s32.totalorder %s36, 1
      %p122 = por %p120, %p121
      %p123 = scmp.ne.s32.totalorder %s112, %s113
      %p124 = scmp.eq.s32.totalorder %s36, 0
      %p125 = por %p123, %p124
      %p126 = scmp.ne.s32.totalorder %s112, %s113
      %p127 = scmp.eq.s32.totalorder %s37, 1
      %p128 = por %p126, %p127
      %p130 = scmp.ne.s32.totalorder %s113, %s129
      %p131 = scmp.eq.s32.totalorder %s37, 0
      %p132 = por %p130, %p131
      %s134 = sadd.s32 %s133, 1
      %p137 = scmp.eq.s32.totalorder %s31, 1
      %p138 = scmp.ne.s32.totalorder %s133, %s135
      %p139 = scmp.eq.s32.totalorder %s31, 0
      %p140 = por %p138, %p139
      %p141 = scmp.ne.s32.totalorder %s133, %s135
      %p142 = scmp.eq.s32.totalorder %s36, 1
      %p143 = por %p141, %p142
      %p144 = scmp.ne.s32.totalorder %s135, %s136
      %p145 = scmp.eq.s32.totalorder %s36, 0
      %p146 = por %p144, %p145
      %p147 = scmp.ne.s32.totalorder %s135, %s136
      %p148 = scmp.eq.s32.totalorder %s37, 1
      %p149 = por %p147, %p148
      %p151 = scmp.ne.s32.totalorder %s136, %s150
      %p152 = scmp.eq.s32.totalorder %s37, 0
      %p153 = por %p151, %p152
      %s155 = sadd.s32 %s154, 1
      %p158 = scmp.eq.s32.totalorder %s31, 1
      %p159 = scmp.ne.s32.totalorder %s154, %s156
      %p160 = scmp.eq.s32.totalorder %s31, 0
      %p161 = por %p159, %p160
      %p162 = scmp.ne.s32.totalorder %s154, %s156
      %p163 = scmp.eq.s32.totalorder %s36, 1
      %p164 = por %p162, %p163
      %p165 = scmp.ne.s32.totalorder %s156, %s157
      %p166 = scmp.eq.s32.totalorder %s36, 0
      %p167 = por %p165, %p166
      %p168 = scmp.ne.s32.totalorder %s156, %s157
      %p169 = scmp.eq.s32.totalorder %s37, 1
      %p170 = por %p168, %p169
      %p172 = scmp.ne.s32.totalorder %s157, %s171
      %p173 = scmp.eq.s32.totalorder %s37, 0
      %p174 = por %p172, %p173
      %s176 = sadd.s32 %s175, 1
      %p179 = scmp.eq.s32.totalorder %s31, 1
      %p180 = scmp.ne.s32.totalorder %s175, %s177
      %p181 = scmp.eq.s32.totalorder %s31, 0
      %p182 = por %p180, %p181
      %p183 = scmp.ne.s32.totalorder %s175, %s177
      %p184 = scmp.eq.s32.totalorder %s36, 1
      %p185 = por %p183, %p184
      %p186 = scmp.ne.s32.totalorder %s177, %s178
      %p187 = scmp.eq.s32.totalorder %s36, 0
      %p188 = por %p186, %p187
      %p189 = scmp.ne.s32.totalorder %s177, %s178
      %p190 = scmp.eq.s32.totalorder %s37, 1
      %p191 = por %p189, %p190
      %p193 = scmp.ne.s32.totalorder %s178, %s192
      %p194 = scmp.eq.s32.totalorder %s37, 0
      %p195 = por %p193, %p194
      %s197 = sadd.s32 %s196, 1
      %p200 = scmp.eq.s32.totalorder %s31, 1
      %p201 = scmp.ne.s32.totalorder %s196, %s198
      %p202 = scmp.eq.s32.totalorder %s31, 0
      %p203 = por %p201, %p202
      %p204 = scmp.ne.s32.totalorder %s196, %s198
      %p205 = scmp.eq.s32.totalorder %s36, 1
      %p206 = por %p204, %p205
      %p207 = scmp.ne.s32.totalorder %s198, %s199
      %p208 = scmp.eq.s32.totalorder %s36, 0
      %p209 = por %p207, %p208
      %p210 = scmp.ne.s32.totalorder %s198, %s199
      %p211 = scmp.eq.s32.totalorder %s37, 1
      %p212 = por %p210, %p211
      %p214 = scmp.ne.s32.totalorder %s199, %s213
      %p215 = scmp.eq.s32.totalorder %s37, 0
      %p216 = por %p214, %p215
      %s218 = sadd.s32 %s217, 1
      %p221 = scmp.eq.s32.totalorder %s31, 1
      %p222 = scmp.ne.s32.totalorder %s217, %s219
      %p223 = scmp.eq.s32.totalorder %s31, 0
      %p224 = por %p222, %p223
      %p225 = scmp.ne.s32.totalorder %s217, %s219
      %p226 = scmp.eq.s32.totalorder %s36, 1
      %p227 = por %p225, %p226
      %p228 = scmp.ne.s32.totalorder %s219, %s220
      %p229 = scmp.eq.s32.totalorder %s36, 0
      %p230 = por %p228, %p229
      %p231 = scmp.ne.s32.totalorder %s219, %s220
      %p232 = scmp.eq.s32.totalorder %s37, 1
      %p233 = por %p231, %p232
      %p235 = scmp.ne.s32.totalorder %s220, %s234
      %p236 = scmp.eq.s32.totalorder %s37, 0
      %p237 = por %p235, %p236
      %s239 = sadd.s32 %s238, 1
      %p242 = scmp.eq.s32.totalorder %s31, 1
      %p243 = scmp.ne.s32.totalorder %s238, %s240
      %p244 = scmp.eq.s32.totalorder %s31, 0
      %p245 = por %p243, %p244
      %p246 = scmp.ne.s32.totalorder %s238, %s240
      %p247 = scmp.eq.s32.totalorder %s36, 1
      %p248 = por %p246, %p247
      %p249 = scmp.ne.s32.totalorder %s240, %s241
      %p250 = scmp.eq.s32.totalorder %s36, 0
      %p251 = por %p249, %p250
      %p252 = scmp.ne.s32.totalorder %s240, %s241
      %p253 = scmp.eq.s32.totalorder %s37, 1
      %p254 = por %p252, %p253
      %p256 = scmp.ne.s32.totalorder %s241, %s255
      %p257 = scmp.eq.s32.totalorder %s37, 0
      %p258 = por %p256, %p257
      %s260 = sadd.s32 %s259, 1
      %p263 = scmp.eq.s32.totalorder %s31, 1
      %p264 = scmp.ne.s32.totalorder %s259, %s261
      %p265 = scmp.eq.s32.totalorder %s31, 0
      %p266 = por %p264, %p265
      %p267 = scmp.ne.s32.totalorder %s259, %s261
      %p268 = scmp.eq.s32.totalorder %s36, 1
      %p269 = por %p267, %p268
      %p270 = scmp.ne.s32.totalorder %s261, %s262
      %p271 = scmp.eq.s32.totalorder %s36, 0
      %p272 = por %p270, %p271
      %p273 = scmp.ne.s32.totalorder %s261, %s262
      %p274 = scmp.eq.s32.totalorder %s37, 1
      %p275 = por %p273, %p274
      %p277 = scmp.ne.s32.totalorder %s262, %s276
      %p278 = scmp.eq.s32.totalorder %s37, 0
      %p279 = por %p277, %p278
      %s281 = sadd.s32 %s280, 1
      %p284 = scmp.eq.s32.totalorder %s31, 1
      %p285 = scmp.ne.s32.totalorder %s280, %s282
      %p286 = scmp.eq.s32.totalorder %s31, 0
      %p287 = por %p285, %p286
      %p288 = scmp.ne.s32.totalorder %s280, %s282
      %p289 = scmp.eq.s32.totalorder %s36, 1
      %p290 = por %p288, %p289
      %p291 = scmp.ne.s32.totalorder %s282, %s283
      %p292 = scmp.eq.s32.totalorder %s36, 0
      %p293 = por %p291, %p292
      %p294 = scmp.ne.s32.totalorder %s282, %s283
      %p295 = scmp.eq.s32.totalorder %s37, 1
      %p296 = por %p294, %p295
      %p298 = scmp.ne.s32.totalorder %s283, %s297
      %p299 = scmp.eq.s32.totalorder %s37, 0
      %p300 = por %p298, %p299
      %s301 = ssub.s32 %s31, %s38
      %p302 = scmp.eq.s32.totalorder %s301, 0
      %s304 = sadd.s32 %s303, 1
      %s305 = scalar_select %p302, %s303, %s304
      %p308 = pneg %p302
      %p309 = scmp.eq.s32.totalorder %s31, 1
      %p310 = por %p308, %p309
      %p311 = scmp.ne.s32.totalorder %s303, %s306
      %p312 = scmp.eq.s32.totalorder %s31, 0
      %p313 = por %p311, %p312
      %p314 = scmp.ne.s32.totalorder %s303, %s306
      %p315 = scmp.eq.s32.totalorder %s36, 1
      %p316 = por %p314, %p315
      %p317 = scmp.ne.s32.totalorder %s306, %s307
      %p318 = scmp.eq.s32.totalorder %s36, 0
      %p319 = por %p317, %p318
      %p320 = scmp.ne.s32.totalorder %s306, %s307
      %p321 = scmp.eq.s32.totalorder %s37, 1
      %p322 = por %p320, %p321
      %p324 = scmp.ne.s32.totalorder %s307, %s323
      %p325 = scmp.eq.s32.totalorder %s37, 0
      %p326 = por %p324, %p325
      %p327 = scmp.le.s32.totalorder 1, %s31
      %p328 = scmp.lt.s32.totalorder %s31, 3
      %p329 = pnand %p327, %p328
      %p330 = pneg %p329
      // Predicated region
      $region9: #{tpu_custom_call.1} parent=5 // pred_check
        _
      $region10: #{tpu_custom_call.1} parent=5 // pred_check_branch
        %332 = sbr.rel (%p329) target = $region12
      $region11: #{tpu_custom_call.1} parent=5 // pred_region
        %s333 = ssub.s32 %s31, 1
        // Predicated region
        $region13: #{tpu_custom_call.1} parent=11 // pred_check
          %p334 = pneg %p52
        $region14: #{tpu_custom_call.1} parent=11 // pred_check_branch
          %336 = sbr.rel (%p334) target = $region16
        $region15: #{tpu_custom_call.1} parent=11 // pred_region
          _
        $region16: #{tpu_custom_call.1} parent=11 // pred_fallthru
          _
        // Predicated region
        $region17: #{tpu_custom_call.1} parent=11 // pred_check
          %p337 = pneg %p73
        $region18: #{tpu_custom_call.1} parent=11 // pred_check_branch
          %339 = sbr.rel (%p337) target = $region20
        $region19: #{tpu_custom_call.1} parent=11 // pred_region
          _
        $region20: #{tpu_custom_call.1} parent=11 // pred_fallthru
          _
        // Predicated region
        $region21: #{tpu_custom_call.1} parent=11 // pred_check
          %p340 = pneg %p146
        $region22: #{tpu_custom_call.1} parent=11 // pred_check_branch
          %342 = sbr.rel (%p340) target = $region24
        $region23: #{tpu_custom_call.1} parent=11 // pred_region
          %s344 = ssub.s32 2048, 2048
          %345 = vsyncadd [#allocation8], %s344
          %s346 = sshll.u32 [#allocation9], 4
          %s347 = int_to_ptr.vmem [resolvable:$true] %s346
          %352 = dma.hbm_to_vmem [thread:$0]  %s4, 2048, %s347, [#allocation8], 128, 128, 8
        $region24: #{tpu_custom_call.1} parent=11 // pred_fallthru
          _
        // Predicated region
        $region25: #{tpu_custom_call.1} parent=11 // pred_check
          %p353 = pneg %p167
        $region26: #{tpu_custom_call.1} parent=11 // pred_check_branch
          %355 = sbr.rel (%p353) target = $region28
        $region27: #{tpu_custom_call.1} parent=11 // pred_region
          _
        $region28: #{tpu_custom_call.1} parent=11 // pred_fallthru
          _
        // Predicated region
        $region29: #{tpu_custom_call.1} parent=11 // pred_check
          %p356 = pneg %p188
        $region30: #{tpu_custom_call.1} parent=11 // pred_check_branch
          %358 = sbr.rel (%p356) target = $region32
        $region31: #{tpu_custom_call.1} parent=11 // pred_region
          %s360 = ssub.s32 2048, 2048
          %361 = vsyncadd [#allocation11], %s360
          %s362 = sshll.u32 [#allocation10], 4
          %s363 = int_to_ptr.vmem [resolvable:$true] %s362
          %368 = dma.hbm_to_vmem [thread:$0]  %s6, 2048, %s363, [#allocation11], 128, 128, 8
        $region32: #{tpu_custom_call.1} parent=11 // pred_fallthru
          _
        // Predicated region
        $region33: #{tpu_custom_call.1} parent=11 // pred_check
          %p369 = pneg %p209
        $region34: #{tpu_custom_call.1} parent=11 // pred_check_branch
          %371 = sbr.rel (%p369) target = $region36
        $region35: #{tpu_custom_call.1} parent=11 // pred_region
          _
        $region36: #{tpu_custom_call.1} parent=11 // pred_fallthru
          _
        // Predicated region
        $region37: #{tpu_custom_call.1} parent=11 // pred_check
          %p372 = pneg %p230
        $region38: #{tpu_custom_call.1} parent=11 // pred_check_branch
          %374 = sbr.rel (%p372) target = $region40
        $region39: #{tpu_custom_call.1} parent=11 // pred_region
          %s376 = ssub.s32 2048, 2048
          %377 = vsyncadd [#allocation11], %s376
          %s378 = sshll.u32 [#allocation12], 4
          %s379 = int_to_ptr.vmem [resolvable:$true] %s378
          %384 = dma.hbm_to_vmem [thread:$0]  %s8, 2048, %s379, [#allocation11], 128, 128, 8
        $region40: #{tpu_custom_call.1} parent=11 // pred_fallthru
          _
        // Predicated region
        $region41: #{tpu_custom_call.1} parent=11 // pred_check
          %p385 = pneg %p251
        $region42: #{tpu_custom_call.1} parent=11 // pred_check_branch
          %387 = sbr.rel (%p385) target = $region44
        $region43: #{tpu_custom_call.1} parent=11 // pred_region
          _
        $region44: #{tpu_custom_call.1} parent=11 // pred_fallthru
          _
        // Predicated region
        $region45: #{tpu_custom_call.1} parent=11 // pred_check
          %p388 = pneg %p272
        $region46: #{tpu_custom_call.1} parent=11 // pred_check_branch
          %390 = sbr.rel (%p388) target = $region48
        $region47: #{tpu_custom_call.1} parent=11 // pred_region
          %s392 = ssub.s32 2048, 2048
          %393 = vsyncadd [#allocation14], %s392
          %s394 = sshll.u32 [#allocation13], 4
          %s395 = int_to_ptr.vmem [resolvable:$true] %s394
          %400 = dma.hbm_to_vmem [thread:$0]  %s10, 2048, %s395, [#allocation14], 128, 128, 8
        $region48: #{tpu_custom_call.1} parent=11 // pred_fallthru
          _
        // Predicated region
        $region49: #{tpu_custom_call.1} parent=11 // pred_check
          %p401 = pneg %p293
        $region50: #{tpu_custom_call.1} parent=11 // pred_check_branch
          %403 = sbr.rel (%p401) target = $region52
        $region51: #{tpu_custom_call.1} parent=11 // pred_region
          _
        $region52: #{tpu_custom_call.1} parent=11 // pred_fallthru
          _
      $region12: #{tpu_custom_call.1} parent=5 // pred_fallthru
        _
      %p404 = scmp.lt.s32.totalorder %s31, 2
      // Predicated region
      $region53: #{tpu_custom_call.1} parent=5 // pred_check
        %p405 = pneg %p404
      $region54: #{tpu_custom_call.1} parent=5 // pred_check_branch
        %407 = sbr.rel (%p405) target = $region56
      $region55: #{tpu_custom_call.1} parent=5 // pred_region
        // Predicated region
        $region57: #{tpu_custom_call.1} parent=55 // pred_check
          %p408 = pneg %p93
        $region58: #{tpu_custom_call.1} parent=55 // pred_check_branch
          %410 = sbr.rel (%p408) target = $region60
        $region59: #{tpu_custom_call.1} parent=55 // pred_region
          %s411 = sand.u32 %s83, 1
          %s412 = scalar_lea.sflag [#allocation5], %s411
          %s413 = sand.u32 %s83, 1
          %s414 = smul.addr %s413, 8
          %s415 = scalar_lea.vmem [#allocation4], %s414
          %s417 = ssub.s32 128, 128
          %418 = vsyncadd %s412, %s417
          %s419 = smul.addr %s31, 128
          %s420 = scalar_lea.hbm %s2, %s419
          %s422 = sshll.u32 %s415, 4
          %s423 = int_to_ptr.vmem [resolvable:$true] %s422
          %425 = dma.hbm_to_vmem [thread:$0]  %s420, 128, %s423, %s412
        $region60: #{tpu_custom_call.1} parent=55 // pred_fallthru
          _
        // Predicated region
        $region61: #{tpu_custom_call.1} parent=55 // pred_check
          %p426 = pneg %p119
        $region62: #{tpu_custom_call.1} parent=55 // pred_check_branch
          %428 = sbr.rel (%p426) target = $region64
        $region63: #{tpu_custom_call.1} parent=55 // pred_region
          %s429 = sand.u32 %s31, 1
          %s430 = scalar_lea.sflag [#allocation8], %s429
          %s431 = sand.u32 %s109, 1
          %s432 = smul.addr %s431, 8
          %s433 = scalar_lea.vmem [#allocation7], %s432
          %s435 = ssub.s32 128, 128
          %436 = vsyncadd %s430, %s435
          %s437 = smul.addr %s31, 128
          %s438 = scalar_lea.hbm %s3, %s437
          %s440 = sshll.u32 %s433, 4
          %s441 = int_to_ptr.vmem [resolvable:$true] %s440
          %443 = dma.hbm_to_vmem [thread:$0]  %s438, 128, %s441, %s430
        $region64: #{tpu_custom_call.1} parent=55 // pred_fallthru
          _
      $region56: #{tpu_custom_call.1} parent=5 // pred_fallthru
        _
      %p444 = scmp.le.s32.totalorder 1, %s31
      %p445 = scmp.lt.s32.totalorder %s31, 3
      %p446 = pnand %p444, %p445
      %p447 = pneg %p446
      // Predicated region
      $region65: #{tpu_custom_call.1} parent=5 // pred_check
        _
      $region66: #{tpu_custom_call.1} parent=5 // pred_check_branch
        %449 = sbr.rel (%p446) target = $region68
      $region67: #{tpu_custom_call.1} parent=5 // pred_region
        %s450 = ssub.s32 %s31, 1
        %s451 = sand.u32 %s86, 1
        %s452 = scalar_lea.sflag [#allocation5], %s451
        %s453 = sand.u32 %s86, 1
        %s454 = smul.addr %s453, 8
        %s455 = scalar_lea.vmem [#allocation4], %s454
        // Predicated region
        $region69: #{tpu_custom_call.1} parent=67 // pred_check
          %p456 = pneg %p99
        $region70: #{tpu_custom_call.1} parent=67 // pred_check_branch
          %458 = sbr.rel (%p456) target = $region72
        $region71: #{tpu_custom_call.1} parent=67 // pred_region
          %459 = dma.done %s452, 128
        $region72: #{tpu_custom_call.1} parent=67 // pred_fallthru
          _
        %s460 = sand.u32 %s36, 1
        %s461 = scalar_lea.sflag [#allocation8], %s460
        %s462 = sand.u32 %s112, 1
        %s463 = smul.addr %s462, 8
        %s464 = scalar_lea.vmem [#allocation7], %s463
        // Predicated region
        $region73: #{tpu_custom_call.1} parent=67 // pred_check
          %p465 = pneg %p125
        $region74: #{tpu_custom_call.1} parent=67 // pred_check_branch
          %467 = sbr.rel (%p465) target = $region76
        $region75: #{tpu_custom_call.1} parent=67 // pred_region
          %468 = dma.done %s461, 128
        $region76: #{tpu_custom_call.1} parent=67 // pred_fallthru
          _
        // Predicated region
        $region77: #{tpu_custom_call.1} parent=67 // pred_check
          %p469 = pneg %p146
        $region78: #{tpu_custom_call.1} parent=67 // pred_check_branch
          %471 = sbr.rel (%p469) target = $region80
        $region79: #{tpu_custom_call.1} parent=67 // pred_region
          %472 = dma.done [#allocation8], 2048
        $region80: #{tpu_custom_call.1} parent=67 // pred_fallthru
          _
        // Predicated region
        $region81: #{tpu_custom_call.1} parent=67 // pred_check
          %p473 = pneg %p188
        $region82: #{tpu_custom_call.1} parent=67 // pred_check_branch
          %475 = sbr.rel (%p473) target = $region84
        $region83: #{tpu_custom_call.1} parent=67 // pred_region
          %476 = dma.done [#allocation11], 2048
        $region84: #{tpu_custom_call.1} parent=67 // pred_fallthru
          _
        // Predicated region
        $region85: #{tpu_custom_call.1} parent=67 // pred_check
          %p477 = pneg %p230
        $region86: #{tpu_custom_call.1} parent=67 // pred_check_branch
          %479 = sbr.rel (%p477) target = $region88
        $region87: #{tpu_custom_call.1} parent=67 // pred_region
          %480 = dma.done [#allocation11], 2048
        $region88: #{tpu_custom_call.1} parent=67 // pred_fallthru
          _
        // Predicated region
        $region89: #{tpu_custom_call.1} parent=67 // pred_check
          %p481 = pneg %p272
        $region90: #{tpu_custom_call.1} parent=67 // pred_check_branch
          %483 = sbr.rel (%p481) target = $region92
        $region91: #{tpu_custom_call.1} parent=67 // pred_region
          %484 = dma.done [#allocation14], 2048
        $region92: #{tpu_custom_call.1} parent=67 // pred_fallthru
          _
        %p485 = pneg %p52
        %p486 = pneg %p49
        %p487 = pneg %p73
        %p488 = pneg %p70
        %s489 = sand.u32 %s86, 1
        %s490 = scalar_lea.sflag [#allocation5], %s489
        %s491 = sand.u32 %s86, 1
        %s492 = smul.addr %s491, 8
        %s493 = scalar_lea.vmem [#allocation4], %s492
        %p494 = pneg %p99
        %p495 = pneg %p96
        %s496 = sand.u32 %s36, 1
        %s497 = scalar_lea.sflag [#allocation8], %s496
        %s498 = sand.u32 %s112, 1
        %s499 = smul.addr %s498, 8
        %s500 = scalar_lea.vmem [#allocation7], %s499
        %p501 = pneg %p125
        %p502 = pneg %p122
        %p503 = pneg %p146
        %p504 = pneg %p143
        %p505 = pneg %p167
        %p506 = pneg %p164
        %p507 = pneg %p188
        %p508 = pneg %p185
        %p509 = pneg %p209
        %p510 = pneg %p206
        %p511 = pneg %p230
        %p512 = pneg %p227
        %p513 = pneg %p251
        %p514 = pneg %p248
        %p515 = pneg %p272
        %p516 = pneg %p269
        %p517 = pneg %p293
        %p518 = pneg %p290
        %p519 = pneg %p319
        %p520 = pneg %p316
        %s521 = sand.u32 %s306, 1
        %s522 = scalar_lea.sflag [#allocation6], %s521
        %s523 = sand.u32 %s306, 1
        %s524 = smul.addr %s523, 8
        %s525 = scalar_lea.vmem [#allocation15], %s524
        %v526 = vld [vmem:[%s455] sm:$0xff]
        %s527 = sld [smem:[#allocation2]]
        %s528 = sld [smem:[#allocation3]]
        %529 = vadd.xlane.f32.xlu0 %v526
        %v530 = vpop.xlane.xlu0 %529
        %v531 = vmul.f32 %v526, %v526
        %532 = vadd.xlane.f32.xlu0 %v531
        %v533 = vpop.xlane.xlu0 %532
        %v534 = vmul.f32 %v530, 0.0078125
        %v535 = vmul.f32 %v530, %v534
        %v536 = vsub.f32 %v533, %v535
        %v537 = vmul.f32 %v536, 0.007874016
        %v538 = vmax.f32 %v537, 0.0
        %v539 = vrsqrt.pop %v538
        %v540 = vmul.f32 %v538, %v539
        %vm541 = vcmp.eq.f32.partialorder %v538, inf
        %v542 = vsel %vm541, %v538, %v540
        %vm543 = vcmp.eq.f32.partialorder %v538, 0.0
        %v544 = vand.u32 %v538, 2147483648
        %v545 = vsel %vm543, %v544, %v542
        %v546 = vadd.f32 %v545, 1e-06
        %v547 = vstv %s527
        %v548 = vrcp.pop %v546
        %v549 = vmul.f32 %v547, %v548
        %v550 = vsub.f32 %v526, %v534
        %v551 = vmul.f32 %v550, %v549
        %v552 = vstv %s528
        %v553 = vadd.f32 %v551, %v552
        %v554 = vld [vmem:[#allocation9] sm:$0xff]
        %v555 = vld [vmem:[#allocation9 + $0x8] sm:$0xff]
        %v556 = vld [vmem:[#allocation9 + $0x10] sm:$0xff]
        %v557 = vld [vmem:[#allocation9 + $0x18] sm:$0xff]
        %v558 = vld [vmem:[#allocation9 + $0x20] sm:$0xff]
        %v559 = vld [vmem:[#allocation9 + $0x28] sm:$0xff]
        %v560 = vld [vmem:[#allocation9 + $0x30] sm:$0xff]
        %v561 = vld [vmem:[#allocation9 + $0x38] sm:$0xff]
        %v562 = vld [vmem:[#allocation9 + $0x40] sm:$0xff]
        %v563 = vld [vmem:[#allocation9 + $0x48] sm:$0xff]
        %v564 = vld [vmem:[#allocation9 + $0x50] sm:$0xff]
        %v565 = vld [vmem:[#allocation9 + $0x58] sm:$0xff]
        %v566 = vld [vmem:[#allocation9 + $0x60] sm:$0xff]
        %v567 = vld [vmem:[#allocation9 + $0x68] sm:$0xff]
        %v568 = vld [vmem:[#allocation9 + $0x70] sm:$0xff]
        %v569 = vld [vmem:[#allocation9 + $0x78] sm:$0xff]
        %v570 = vld [vmem:[%s5] sm:$0x1]
        %v572 = vlaneseq
        %v573 = vshrl.u32 %v572, 7
        %v574 = vsub.s32 0, %v573
        %v575 = vrot.slane %v570, %v574
        %577 = vmatprep.subr.mxu0 0.0
        %v578 = vand.u32 %v554, 4294901760
        %579 = vmatpush1.msra.mxu0 %v578
        %580 = vmatprep.subr.mxu0 0.0
        %v581 = vand.u32 %v555, 4294901760
        %582 = vmatpush1.msra.mxu0 %v581
        %583 = vmatprep.subr.mxu0 0.0
        %v584 = vand.u32 %v556, 4294901760
        %585 = vmatpush1.msra.mxu0 %v584
        %586 = vmatprep.subr.mxu0 0.0
        %v587 = vand.u32 %v557, 4294901760
        %588 = vmatpush1.msra.mxu0 %v587
        %589 = vmatprep.subr.mxu0 0.0
        %v590 = vand.u32 %v558, 4294901760
        %591 = vmatpush1.msra.mxu0 %v590
        %592 = vmatprep.subr.mxu0 0.0
        %v593 = vand.u32 %v559, 4294901760
        %594 = vmatpush1.msra.mxu0 %v593
        %595 = vmatprep.subr.mxu0 0.0
        %v596 = vand.u32 %v560, 4294901760
        %597 = vmatpush1.msra.mxu0 %v596
        %598 = vmatprep.subr.mxu0 0.0
        %v599 = vand.u32 %v561, 4294901760
        %600 = vmatpush1.msra.mxu0 %v599
        %601 = vmatprep.subr.mxu0 0.0
        %v602 = vand.u32 %v562, 4294901760
        %603 = vmatpush1.msra.mxu0 %v602
        %604 = vmatprep.subr.mxu0 0.0
        %v605 = vand.u32 %v563, 4294901760
        %606 = vmatpush1.msra.mxu0 %v605
        %607 = vmatprep.subr.mxu0 0.0
        %v608 = vand.u32 %v564, 4294901760
        %609 = vmatpush1.msra.mxu0 %v608
        %610 = vmatprep.subr.mxu0 0.0
        %v611 = vand.u32 %v565, 4294901760
        %612 = vmatpush1.msra.mxu0 %v611
        %613 = vmatprep.subr.mxu0 0.0
        %v614 = vand.u32 %v566, 4294901760
        %615 = vmatpush1.msra.mxu0 %v614
        %616 = vmatprep.subr.mxu0 0.0
        %v617 = vand.u32 %v567, 4294901760
        %618 = vmatpush1.msra.mxu0 %v617
        %619 = vmatprep.subr.mxu0 0.0
        %v620 = vand.u32 %v568, 4294901760
        %621 = vmatpush1.msra.mxu0 %v620
        %622 = vmatprep.subr.mxu0 0.0
        %v623 = vand.u32 %v569, 4294901760
        %624 = vmatpush1.msra.mxu0 %v623
        %625 = vmatprep.subr.mxu0 0.0
        %626 = vmatpush1.msra.mxu0 0.0
        %627 = vmatprep.subr.mxu0 0.0
        %628 = vmatpush1.msra.mxu0 0.0
        %629 = vmatprep.subr.mxu0 0.0
        %630 = vmatpush1.msra.mxu0 0.0
        %631 = vmatprep.subr.mxu0 0.0
        %632 = vmatpush1.msra.mxu0 0.0
        %633 = vmatprep.subr.mxu0 0.0
        %634 = vmatpush1.msra.mxu0 0.0
        %635 = vmatprep.subr.mxu0 0.0
        %636 = vmatpush1.msra.mxu0 0.0
        %637 = vmatprep.subr.mxu0 0.0
        %638 = vmatpush1.msra.mxu0 0.0
        %639 = vmatprep.subr.mxu0 0.0
        %640 = vmatpush1.msra.mxu0 0.0
        %641 = vmatprep.subr.mxu0 0.0
        %642 = vmatpush1.msra.mxu0 0.0
        %643 = vmatprep.subr.mxu0 0.0
        %644 = vmatpush1.msra.mxu0 0.0
        %645 = vmatprep.subr.mxu0 0.0
        %646 = vmatpush1.msra.mxu0 0.0
        %647 = vmatprep.subr.mxu0 0.0
        %648 = vmatpush1.msra.mxu0 0.0
        %649 = vmatprep.subr.mxu0 0.0
        %650 = vmatpush1.msra.mxu0 0.0
        %651 = vmatprep.subr.mxu0 0.0
        %652 = vmatpush1.msra.mxu0 0.0
        %653 = vmatprep.subr.mxu0 0.0
        %654 = vmatpush1.msra.mxu0 0.0
        %655 = vmatprep.subr.mxu0 0.0
        %656 = vmatpush1.msra.mxu0 0.0
        %657 = vmatprep.mubr.f32.mxu0 0.0
        %v658 = vand.u32 %v553, 4294901760
        %v659 = vsub.f32 %v553, %v658
        %v660 = vand.u32 %v659, 4294901760
        %v661 = vsub.f32 %v659, %v660
        %v662 = vand.u32 %v661, 4294901760
        %663 = vmatmul.mubr.f32.gmra.mrb[0].mxu0 %v662
        %v664 = vpop.f32.mrb[0].mxu0
        %v665 = vadd.f32 %v575, %v664
        %v666 = vpop.f32.mrb[0].mxu0
        %667 = vdwg.mxu0
        %668 = vmatprep.subr.mxu0 0.0
        %v669 = vand.u32 %v554, 4294901760
        %v670 = vsub.f32 %v554, %v669
        %v671 = vand.u32 %v670, 4294901760
        %v672 = vsub.f32 %v670, %v671
        %v673 = vand.u32 %v672, 4294901760
        %674 = vmatpush1.msra.mxu0 %v673
        %675 = vmatprep.subr.mxu0 0.0
        %v676 = vand.u32 %v555, 4294901760
        %v677 = vsub.f32 %v555, %v676
        %v678 = vand.u32 %v677, 4294901760
        %v679 = vsub.f32 %v677, %v678
        %v680 = vand.u32 %v679, 4294901760
        %681 = vmatpush1.msra.mxu0 %v680
        %682 = vmatprep.subr.mxu0 0.0
        %v683 = vand.u32 %v556, 4294901760
        %v684 = vsub.f32 %v556, %v683
        %v685 = vand.u32 %v684, 4294901760
        %v686 = vsub.f32 %v684, %v685
        %v687 = vand.u32 %v686, 4294901760
        %688 = vmatpush1.msra.mxu0 %v687
        %689 = vmatprep.subr.mxu0 0.0
        %v690 = vand.u32 %v557, 4294901760
        %v691 = vsub.f32 %v557, %v690
        %v692 = vand.u32 %v691, 4294901760
        %v693 = vsub.f32 %v691, %v692
        %v694 = vand.u32 %v693, 4294901760
        %695 = vmatpush1.msra.mxu0 %v694
        %696 = vmatprep.subr.mxu0 0.0
        %v697 = vand.u32 %v558, 4294901760
        %v698 = vsub.f32 %v558, %v697
        %v699 = vand.u32 %v698, 4294901760
        %v700 = vsub.f32 %v698, %v699
        %v701 = vand.u32 %v700, 4294901760
        %702 = vmatpush1.msra.mxu0 %v701
        %703 = vmatprep.subr.mxu0 0.0
        %v704 = vand.u32 %v559, 4294901760
        %v705 = vsub.f32 %v559, %v704
        %v706 = vand.u32 %v705, 4294901760
        %v707 = vsub.f32 %v705, %v706
        %v708 = vand.u32 %v707, 4294901760
        %709 = vmatpush1.msra.mxu0 %v708
        %710 = vmatprep.subr.mxu0 0.0
        %v711 = vand.u32 %v560, 4294901760
        %v712 = vsub.f32 %v560, %v711
        %v713 = vand.u32 %v712, 4294901760
        %v714 = vsub.f32 %v712, %v713
        %v715 = vand.u32 %v714, 4294901760
        %716 = vmatpush1.msra.mxu0 %v715
        %717 = vmatprep.subr.mxu0 0.0
        %v718 = vand.u32 %v561, 4294901760
        %v719 = vsub.f32 %v561, %v718
        %v720 = vand.u32 %v719, 4294901760
        %v721 = vsub.f32 %v719, %v720
        %v722 = vand.u32 %v721, 4294901760
        %723 = vmatpush1.msra.mxu0 %v722
        %724 = vmatprep.subr.mxu0 0.0
        %v725 = vand.u32 %v562, 4294901760
        %v726 = vsub.f32 %v562, %v725
        %v727 = vand.u32 %v726, 4294901760
        %v728 = vsub.f32 %v726, %v727
        %v729 = vand.u32 %v728, 4294901760
        %730 = vmatpush1.msra.mxu0 %v729
        %731 = vmatprep.subr.mxu0 0.0
        %v732 = vand.u32 %v563, 4294901760
        %v733 = vsub.f32 %v563, %v732
        %v734 = vand.u32 %v733, 4294901760
        %v735 = vsub.f32 %v733, %v734
        %v736 = vand.u32 %v735, 4294901760
        %737 = vmatpush1.msra.mxu0 %v736
        %738 = vmatprep.subr.mxu0 0.0
        %v739 = vand.u32 %v564, 4294901760
        %v740 = vsub.f32 %v564, %v739
        %v741 = vand.u32 %v740, 4294901760
        %v742 = vsub.f32 %v740, %v741
        %v743 = vand.u32 %v742, 4294901760
        %744 = vmatpush1.msra.mxu0 %v743
        %745 = vmatprep.subr.mxu0 0.0
        %v746 = vand.u32 %v565, 4294901760
        %v747 = vsub.f32 %v565, %v746
        %v748 = vand.u32 %v747, 4294901760
        %v749 = vsub.f32 %v747, %v748
        %v750 = vand.u32 %v749, 4294901760
        %751 = vmatpush1.msra.mxu0 %v750
        %752 = vmatprep.subr.mxu0 0.0
        %v753 = vand.u32 %v566, 4294901760
        %v754 = vsub.f32 %v566, %v753
        %v755 = vand.u32 %v754, 4294901760
        %v756 = vsub.f32 %v754, %v755
        %v757 = vand.u32 %v756, 4294901760
        %758 = vmatpush1.msra.mxu0 %v757
        %759 = vmatprep.subr.mxu0 0.0
        %v760 = vand.u32 %v567, 4294901760
        %v761 = vsub.f32 %v567, %v760
        %v762 = vand.u32 %v761, 4294901760
        %v763 = vsub.f32 %v761, %v762
        %v764 = vand.u32 %v763, 4294901760
        %765 = vmatpush1.msra.mxu0 %v764
        %766 = vmatprep.subr.mxu0 0.0
        %v767 = vand.u32 %v568, 4294901760
        %v768 = vsub.f32 %v568, %v767
        %v769 = vand.u32 %v768, 4294901760
        %v770 = vsub.f32 %v768, %v769
        %v771 = vand.u32 %v770, 4294901760
        %772 = vmatpush1.msra.mxu0 %v771
        %773 = vmatprep.subr.mxu0 0.0
        %v774 = vand.u32 %v569, 4294901760
        %v775 = vsub.f32 %v569, %v774
        %v776 = vand.u32 %v775, 4294901760
        %v777 = vsub.f32 %v775, %v776
        %v778 = vand.u32 %v777, 4294901760
        %779 = vmatpush1.msra.mxu0 %v778
        %780 = vmatprep.subr.mxu0 0.0
        %781 = vmatpush1.msra.mxu0 0.0
        %782 = vmatprep.subr.mxu0 0.0
        %783 = vmatpush1.msra.mxu0 0.0
        %784 = vmatprep.subr.mxu0 0.0
        %785 = vmatpush1.msra.mxu0 0.0
        %786 = vmatprep.subr.mxu0 0.0
        %787 = vmatpush1.msra.mxu0 0.0
        %788 = vmatprep.subr.mxu0 0.0
        %789 = vmatpush1.msra.mxu0 0.0
        %790 = vmatprep.subr.mxu0 0.0
        %791 = vmatpush1.msra.mxu0 0.0
        %792 = vmatprep.subr.mxu0 0.0
        %793 = vmatpush1.msra.mxu0 0.0
        %794 = vmatprep.subr.mxu0 0.0
        %795 = vmatpush1.msra.mxu0 0.0
        %796 = vmatprep.subr.mxu0 0.0
        %797 = vmatpush1.msra.mxu0 0.0
        %798 = vmatprep.subr.mxu0 0.0
        %799 = vmatpush1.msra.mxu0 0.0
        %800 = vmatprep.subr.mxu0 0.0
        %801 = vmatpush1.msra.mxu0 0.0
        %802 = vmatprep.subr.mxu0 0.0
        %803 = vmatpush1.msra.mxu0 0.0
        %804 = vmatprep.subr.mxu0 0.0
        %805 = vmatpush1.msra.mxu0 0.0
        %806 = vmatprep.subr.mxu0 0.0
        %807 = vmatpush1.msra.mxu0 0.0
        %808 = vmatprep.subr.mxu0 0.0
        %809 = vmatpush1.msra.mxu0 0.0
        %810 = vmatprep.subr.mxu0 0.0
        %811 = vmatpush1.msra.mxu0 0.0
        %812 = vmatprep.mubr.f32.mxu0 0.0
        %v813 = vand.u32 %v553, 4294901760
        %814 = vmatmul.mubr.f32.gmra.mrb[0].mxu0 %v813
        %v815 = vpop.f32.mrb[0].mxu0
        %v816 = vadd.f32 %v665, %v815
        %v817 = vpop.f32.mrb[0].mxu0
        %818 = vdwg.mxu0
        %819 = vmatprep.subr.mxu0 0.0
        %v820 = vand.u32 %v554, 4294901760
        %v821 = vsub.f32 %v554, %v820
        %822 = vmatpush1.msra.mxu0 %v821
        %823 = vmatprep.subr.mxu0 0.0
        %v824 = vand.u32 %v555, 4294901760
        %v825 = vsub.f32 %v555, %v824
        %826 = vmatpush1.msra.mxu0 %v825
        %827 = vmatprep.subr.mxu0 0.0
        %v828 = vand.u32 %v556, 4294901760
        %v829 = vsub.f32 %v556, %v828
        %830 = vmatpush1.msra.mxu0 %v829
        %831 = vmatprep.subr.mxu0 0.0
        %v832 = vand.u32 %v557, 4294901760
        %v833 = vsub.f32 %v557, %v832
        %834 = vmatpush1.msra.mxu0 %v833
        %835 = vmatprep.subr.mxu0 0.0
        %v836 = vand.u32 %v558, 4294901760
        %v837 = vsub.f32 %v558, %v836
        %838 = vmatpush1.msra.mxu0 %v837
        %839 = vmatprep.subr.mxu0 0.0
        %v840 = vand.u32 %v559, 4294901760
        %v841 = vsub.f32 %v559, %v840
        %842 = vmatpush1.msra.mxu0 %v841
        %843 = vmatprep.subr.mxu0 0.0
        %v844 = vand.u32 %v560, 4294901760
        %v845 = vsub.f32 %v560, %v844
        %846 = vmatpush1.msra.mxu0 %v845
        %847 = vmatprep.subr.mxu0 0.0
        %v848 = vand.u32 %v561, 4294901760
        %v849 = vsub.f32 %v561, %v848
        %850 = vmatpush1.msra.mxu0 %v849
        %851 = vmatprep.subr.mxu0 0.0
        %v852 = vand.u32 %v562, 4294901760
        %v853 = vsub.f32 %v562, %v852
        %854 = vmatpush1.msra.mxu0 %v853
        %855 = vmatprep.subr.mxu0 0.0
        %v856 = vand.u32 %v563, 4294901760
        %v857 = vsub.f32 %v563, %v856
        %858 = vmatpush1.msra.mxu0 %v857
        %859 = vmatprep.subr.mxu0 0.0
        %v860 = vand.u32 %v564, 4294901760
        %v861 = vsub.f32 %v564, %v860
        %862 = vmatpush1.msra.mxu0 %v861
        %863 = vmatprep.subr.mxu0 0.0
        %v864 = vand.u32 %v565, 4294901760
        %v865 = vsub.f32 %v565, %v864
        %866 = vmatpush1.msra.mxu0 %v865
        %867 = vmatprep.subr.mxu0 0.0
        %v868 = vand.u32 %v566, 4294901760
        %v869 = vsub.f32 %v566, %v868
        %870 = vmatpush1.msra.mxu0 %v869
        %871 = vmatprep.subr.mxu0 0.0
        %v872 = vand.u32 %v567, 4294901760
        %v873 = vsub.f32 %v567, %v872
        %874 = vmatpush1.msra.mxu0 %v873
        %875 = vmatprep.subr.mxu0 0.0
        %v876 = vand.u32 %v568, 4294901760
        %v877 = vsub.f32 %v568, %v876
        %878 = vmatpush1.msra.mxu0 %v877
        %879 = vmatprep.subr.mxu0 0.0
        %v880 = vand.u32 %v569, 4294901760
        %v881 = vsub.f32 %v569, %v880
        %882 = vmatpush1.msra.mxu0 %v881
        %883 = vmatprep.subr.mxu0 0.0
        %884 = vmatpush1.msra.mxu0 0.0
        %885 = vmatprep.subr.mxu0 0.0
        %886 = vmatpush1.msra.mxu0 0.0
        %887 = vmatprep.subr.mxu0 0.0
        %888 = vmatpush1.msra.mxu0 0.0
        %889 = vmatprep.subr.mxu0 0.0
        %890 = vmatpush1.msra.mxu0 0.0
        %891 = vmatprep.subr.mxu0 0.0
        %892 = vmatpush1.msra.mxu0 0.0
        %893 = vmatprep.subr.mxu0 0.0
        %894 = vmatpush1.msra.mxu0 0.0
        %895 = vmatprep.subr.mxu0 0.0
        %896 = vmatpush1.msra.mxu0 0.0
        %897 = vmatprep.subr.mxu0 0.0
        %898 = vmatpush1.msra.mxu0 0.0
        %899 = vmatprep.subr.mxu0 0.0
        %900 = vmatpush1.msra.mxu0 0.0
        %901 = vmatprep.subr.mxu0 0.0
        %902 = vmatpush1.msra.mxu0 0.0
        %903 = vmatprep.subr.mxu0 0.0
        %904 = vmatpush1.msra.mxu0 0.0
        %905 = vmatprep.subr.mxu0 0.0
        %906 = vmatpush1.msra.mxu0 0.0
        %907 = vmatprep.subr.mxu0 0.0
        %908 = vmatpush1.msra.mxu0 0.0
        %909 = vmatprep.subr.mxu0 0.0
        %910 = vmatpush1.msra.mxu0 0.0
        %911 = vmatprep.subr.mxu0 0.0
        %912 = vmatpush1.msra.mxu0 0.0
        %913 = vmatprep.subr.mxu0 0.0
        %914 = vmatpush1.msra.mxu0 0.0
        %915 = vmatprep.mubr.f32.mxu0 0.0
        %v916 = vand.u32 %v553, 4294901760
        %v917 = vsub.f32 %v553, %v916
        %918 = vmatmul.mubr.f32.gmra.mrb[0].mxu0 %v917
        %v919 = vpop.f32.mrb[0].mxu0
        %v920 = vadd.f32 %v816, %v919
        %v921 = vpop.f32.mrb[0].mxu0
        %922 = vdwg.mxu0
        %923 = vmatprep.subr.mxu0 0.0
        %v924 = vand.u32 %v554, 4294901760
        %925 = vmatpush1.msra.mxu0 %v924
        %926 = vmatprep.subr.mxu0 0.0
        %v927 = vand.u32 %v555, 4294901760
        %928 = vmatpush1.msra.mxu0 %v927
        %929 = vmatprep.subr.mxu0 0.0
        %v930 = vand.u32 %v556, 4294901760
        %931 = vmatpush1.msra.mxu0 %v930
        %932 = vmatprep.subr.mxu0 0.0
        %v933 = vand.u32 %v557, 4294901760
        %934 = vmatpush1.msra.mxu0 %v933
        %935 = vmatprep.subr.mxu0 0.0
        %v936 = vand.u32 %v558, 4294901760
        %937 = vmatpush1.msra.mxu0 %v936
        %938 = vmatprep.subr.mxu0 0.0
        %v939 = vand.u32 %v559, 4294901760
        %940 = vmatpush1.msra.mxu0 %v939
        %941 = vmatprep.subr.mxu0 0.0
        %v942 = vand.u32 %v560, 4294901760
        %943 = vmatpush1.msra.mxu0 %v942
        %944 = vmatprep.subr.mxu0 0.0
        %v945 = vand.u32 %v561, 4294901760
        %946 = vmatpush1.msra.mxu0 %v945
        %947 = vmatprep.subr.mxu0 0.0
        %v948 = vand.u32 %v562, 4294901760
        %949 = vmatpush1.msra.mxu0 %v948
        %950 = vmatprep.subr.mxu0 0.0
        %v951 = vand.u32 %v563, 4294901760
        %952 = vmatpush1.msra.mxu0 %v951
        %953 = vmatprep.subr.mxu0 0.0
        %v954 = vand.u32 %v564, 4294901760
        %955 = vmatpush1.msra.mxu0 %v954
        %956 = vmatprep.subr.mxu0 0.0
        %v957 = vand.u32 %v565, 4294901760
        %958 = vmatpush1.msra.mxu0 %v957
        %959 = vmatprep.subr.mxu0 0.0
        %v960 = vand.u32 %v566, 4294901760
        %961 = vmatpush1.msra.mxu0 %v960
        %962 = vmatprep.subr.mxu0 0.0
        %v963 = vand.u32 %v567, 4294901760
        %964 = vmatpush1.msra.mxu0 %v963
        %965 = vmatprep.subr.mxu0 0.0
        %v966 = vand.u32 %v568, 4294901760
        %967 = vmatpush1.msra.mxu0 %v966
        %968 = vmatprep.subr.mxu0 0.0
        %v969 = vand.u32 %v569, 4294901760
        %970 = vmatpush1.msra.mxu0 %v969
        %971 = vmatprep.subr.mxu0 0.0
        %972 = vmatpush1.msra.mxu0 0.0
        %973 = vmatprep.subr.mxu0 0.0
        %974 = vmatpush1.msra.mxu0 0.0
        %975 = vmatprep.subr.mxu0 0.0
        %976 = vmatpush1.msra.mxu0 0.0
        %977 = vmatprep.subr.mxu0 0.0
        %978 = vmatpush1.msra.mxu0 0.0
        %979 = vmatprep.subr.mxu0 0.0
        %980 = vmatpush1.msra.mxu0 0.0
        %981 = vmatprep.subr.mxu0 0.0
        %982 = vmatpush1.msra.mxu0 0.0
        %983 = vmatprep.subr.mxu0 0.0
        %984 = vmatpush1.msra.mxu0 0.0
        %985 = vmatprep.subr.mxu0 0.0
        %986 = vmatpush1.msra.mxu0 0.0
        %987 = vmatprep.subr.mxu0 0.0
        %988 = vmatpush1.msra.mxu0 0.0
        %989 = vmatprep.subr.mxu0 0.0
        %990 = vmatpush1.msra.mxu0 0.0
        %991 = vmatprep.subr.mxu0 0.0
        %992 = vmatpush1.msra.mxu0 0.0
        %993 = vmatprep.subr.mxu0 0.0
        %994 = vmatpush1.msra.mxu0 0.0
        %995 = vmatprep.subr.mxu0 0.0
        %996 = vmatpush1.msra.mxu0 0.0
        %997 = vmatprep.subr.mxu0 0.0
        %998 = vmatpush1.msra.mxu0 0.0
        %999 = vmatprep.subr.mxu0 0.0
        %1000 = vmatpush1.msra.mxu0 0.0
        %1001 = vmatprep.subr.mxu0 0.0
        %1002 = vmatpush1.msra.mxu0 0.0
        %1003 = vmatprep.mubr.f32.mxu0 0.0
        %v1004 = vand.u32 %v553, 4294901760
        %v1005 = vsub.f32 %v553, %v1004
        %v1006 = vand.u32 %v1005, 4294901760
        %1007 = vmatmul.mubr.f32.gmra.mrb[0].mxu0 %v1006
        %v1008 = vpop.f32.mrb[0].mxu0
        %v1009 = vadd.f32 %v920, %v1008
        %v1010 = vpop.f32.mrb[0].mxu0
        %1011 = vdwg.mxu0
        %1012 = vmatprep.subr.mxu0 0.0
        %v1013 = vand.u32 %v554, 4294901760
        %v1014 = vsub.f32 %v554, %v1013
        %v1015 = vand.u32 %v1014, 4294901760
        %1016 = vmatpush1.msra.mxu0 %v1015
        %1017 = vmatprep.subr.mxu0 0.0
        %v1018 = vand.u32 %v555, 4294901760
        %v1019 = vsub.f32 %v555, %v1018
        %v1020 = vand.u32 %v1019, 4294901760
        %1021 = vmatpush1.msra.mxu0 %v1020
        %1022 = vmatprep.subr.mxu0 0.0
        %v1023 = vand.u32 %v556, 4294901760
        %v1024 = vsub.f32 %v556, %v1023
        %v1025 = vand.u32 %v1024, 4294901760
        %1026 = vmatpush1.msra.mxu0 %v1025
        %1027 = vmatprep.subr.mxu0 0.0
        %v1028 = vand.u32 %v557, 4294901760
        %v1029 = vsub.f32 %v557, %v1028
        %v1030 = vand.u32 %v1029, 4294901760
        %1031 = vmatpush1.msra.mxu0 %v1030
        %1032 = vmatprep.subr.mxu0 0.0
        %v1033 = vand.u32 %v558, 4294901760
        %v1034 = vsub.f32 %v558, %v1033
        %v1035 = vand.u32 %v1034, 4294901760
        %1036 = vmatpush1.msra.mxu0 %v1035
        %1037 = vmatprep.subr.mxu0 0.0
        %v1038 = vand.u32 %v559, 4294901760
        %v1039 = vsub.f32 %v559, %v1038
        %v1040 = vand.u32 %v1039, 4294901760
        %1041 = vmatpush1.msra.mxu0 %v1040
        %1042 = vmatprep.subr.mxu0 0.0
        %v1043 = vand.u32 %v560, 4294901760
        %v1044 = vsub.f32 %v560, %v1043
        %v1045 = vand.u32 %v1044, 4294901760
        %1046 = vmatpush1.msra.mxu0 %v1045
        %1047 = vmatprep.subr.mxu0 0.0
        %v1048 = vand.u32 %v561, 4294901760
        %v1049 = vsub.f32 %v561, %v1048
        %v1050 = vand.u32 %v1049, 4294901760
        %1051 = vmatpush1.msra.mxu0 %v1050
        %1052 = vmatprep.subr.mxu0 0.0
        %v1053 = vand.u32 %v562, 4294901760
        %v1054 = vsub.f32 %v562, %v1053
        %v1055 = vand.u32 %v1054, 4294901760
        %1056 = vmatpush1.msra.mxu0 %v1055
        %1057 = vmatprep.subr.mxu0 0.0
        %v1058 = vand.u32 %v563, 4294901760
        %v1059 = vsub.f32 %v563, %v1058
        %v1060 = vand.u32 %v1059, 4294901760
        %1061 = vmatpush1.msra.mxu0 %v1060
        %1062 = vmatprep.subr.mxu0 0.0
        %v1063 = vand.u32 %v564, 4294901760
        %v1064 = vsub.f32 %v564, %v1063
        %v1065 = vand.u32 %v1064, 4294901760
        %1066 = vmatpush1.msra.mxu0 %v1065
        %1067 = vmatprep.subr.mxu0 0.0
        %v1068 = vand.u32 %v565, 4294901760
        %v1069 = vsub.f32 %v565, %v1068
        %v1070 = vand.u32 %v1069, 4294901760
        %1071 = vmatpush1.msra.mxu0 %v1070
        %1072 = vmatprep.subr.mxu0 0.0
        %v1073 = vand.u32 %v566, 4294901760
        %v1074 = vsub.f32 %v566, %v1073
        %v1075 = vand.u32 %v1074, 4294901760
        %1076 = vmatpush1.msra.mxu0 %v1075
        %1077 = vmatprep.subr.mxu0 0.0
        %v1078 = vand.u32 %v567, 4294901760
        %v1079 = vsub.f32 %v567, %v1078
        %v1080 = vand.u32 %v1079, 4294901760
        %1081 = vmatpush1.msra.mxu0 %v1080
        %1082 = vmatprep.subr.mxu0 0.0
        %v1083 = vand.u32 %v568, 4294901760
        %v1084 = vsub.f32 %v568, %v1083
        %v1085 = vand.u32 %v1084, 4294901760
        %1086 = vmatpush1.msra.mxu0 %v1085
        %1087 = vmatprep.subr.mxu0 0.0
        %v1088 = vand.u32 %v569, 4294901760
        %v1089 = vsub.f32 %v569, %v1088
        %v1090 = vand.u32 %v1089, 4294901760
        %1091 = vmatpush1.msra.mxu0 %v1090
        %1092 = vmatprep.subr.mxu0 0.0
        %1093 = vmatpush1.msra.mxu0 0.0
        %1094 = vmatprep.subr.mxu0 0.0
        %1095 = vmatpush1.msra.mxu0 0.0
        %1096 = vmatprep.subr.mxu0 0.0
        %1097 = vmatpush1.msra.mxu0 0.0
        %1098 = vmatprep.subr.mxu0 0.0
        %1099 = vmatpush1.msra.mxu0 0.0
        %1100 = vmatprep.subr.mxu0 0.0
        %1101 = vmatpush1.msra.mxu0 0.0
        %1102 = vmatprep.subr.mxu0 0.0
        %1103 = vmatpush1.msra.mxu0 0.0
        %1104 = vmatprep.subr.mxu0 0.0
        %1105 = vmatpush1.msra.mxu0 0.0
        %1106 = vmatprep.subr.mxu0 0.0
        %1107 = vmatpush1.msra.mxu0 0.0
        %1108 = vmatprep.subr.mxu0 0.0
        %1109 = vmatpush1.msra.mxu0 0.0
        %1110 = vmatprep.subr.mxu0 0.0
        %1111 = vmatpush1.msra.mxu0 0.0
        %1112 = vmatprep.subr.mxu0 0.0
        %1113 = vmatpush1.msra.mxu0 0.0
        %1114 = vmatprep.subr.mxu0 0.0
        %1115 = vmatpush1.msra.mxu0 0.0
        %1116 = vmatprep.subr.mxu0 0.0
        %1117 = vmatpush1.msra.mxu0 0.0
        %1118 = vmatprep.subr.mxu0 0.0
        %1119 = vmatpush1.msra.mxu0 0.0
        %1120 = vmatprep.subr.mxu0 0.0
        %1121 = vmatpush1.msra.mxu0 0.0
        %1122 = vmatprep.subr.mxu0 0.0
        %1123 = vmatpush1.msra.mxu0 0.0
        %1124 = vmatprep.mubr.f32.mxu0 0.0
        %v1125 = vand.u32 %v553, 4294901760
        %1126 = vmatmul.mubr.f32.gmra.mrb[0].mxu0 %v1125
        %v1127 = vpop.f32.mrb[0].mxu0
        %v1128 = vadd.f32 %v1009, %v1127
        %v1129 = vpop.f32.mrb[0].mxu0
        %1130 = vdwg.mxu0
        %1131 = vmatprep.subr.mxu0 0.0
        %v1132 = vand.u32 %v554, 4294901760
        %1133 = vmatpush1.msra.mxu0 %v1132
        %1134 = vmatprep.subr.mxu0 0.0
        %v1135 = vand.u32 %v555, 4294901760
        %1136 = vmatpush1.msra.mxu0 %v1135
        %1137 = vmatprep.subr.mxu0 0.0
        %v1138 = vand.u32 %v556, 4294901760
        %1139 = vmatpush1.msra.mxu0 %v1138
        %1140 = vmatprep.subr.mxu0 0.0
        %v1141 = vand.u32 %v557, 4294901760
        %1142 = vmatpush1.msra.mxu0 %v1141
        %1143 = vmatprep.subr.mxu0 0.0
        %v1144 = vand.u32 %v558, 4294901760
        %1145 = vmatpush1.msra.mxu0 %v1144
        %1146 = vmatprep.subr.mxu0 0.0
        %v1147 = vand.u32 %v559, 4294901760
        %1148 = vmatpush1.msra.mxu0 %v1147
        %1149 = vmatprep.subr.mxu0 0.0
        %v1150 = vand.u32 %v560, 4294901760
        %1151 = vmatpush1.msra.mxu0 %v1150
        %1152 = vmatprep.subr.mxu0 0.0
        %v1153 = vand.u32 %v561, 4294901760
        %1154 = vmatpush1.msra.mxu0 %v1153
        %1155 = vmatprep.subr.mxu0 0.0
        %v1156 = vand.u32 %v562, 4294901760
        %1157 = vmatpush1.msra.mxu0 %v1156
        %1158 = vmatprep.subr.mxu0 0.0
        %v1159 = vand.u32 %v563, 4294901760
        %1160 = vmatpush1.msra.mxu0 %v1159
        %1161 = vmatprep.subr.mxu0 0.0
        %v1162 = vand.u32 %v564, 4294901760
        %1163 = vmatpush1.msra.mxu0 %v1162
        %1164 = vmatprep.subr.mxu0 0.0
        %v1165 = vand.u32 %v565, 4294901760
        %1166 = vmatpush1.msra.mxu0 %v1165
        %1167 = vmatprep.subr.mxu0 0.0
        %v1168 = vand.u32 %v566, 4294901760
        %1169 = vmatpush1.msra.mxu0 %v1168
        %1170 = vmatprep.subr.mxu0 0.0
        %v1171 = vand.u32 %v567, 4294901760
        %1172 = vmatpush1.msra.mxu0 %v1171
        %1173 = vmatprep.subr.mxu0 0.0
        %v1174 = vand.u32 %v568, 4294901760
        %1175 = vmatpush1.msra.mxu0 %v1174
        %1176 = vmatprep.subr.mxu0 0.0
        %v1177 = vand.u32 %v569, 4294901760
        %1178 = vmatpush1.msra.mxu0 %v1177
        %1179 = vmatprep.subr.mxu0 0.0
        %1180 = vmatpush1.msra.mxu0 0.0
        %1181 = vmatprep.subr.mxu0 0.0
        %1182 = vmatpush1.msra.mxu0 0.0
        %1183 = vmatprep.subr.mxu0 0.0
        %1184 = vmatpush1.msra.mxu0 0.0
        %1185 = vmatprep.subr.mxu0 0.0
        %1186 = vmatpush1.msra.mxu0 0.0
        %1187 = vmatprep.subr.mxu0 0.0
        %1188 = vmatpush1.msra.mxu0 0.0
        %1189 = vmatprep.subr.mxu0 0.0
        %1190 = vmatpush1.msra.mxu0 0.0
        %1191 = vmatprep.subr.mxu0 0.0
        %1192 = vmatpush1.msra.mxu0 0.0
        %1193 = vmatprep.subr.mxu0 0.0
        %1194 = vmatpush1.msra.mxu0 0.0
        %1195 = vmatprep.subr.mxu0 0.0
        %1196 = vmatpush1.msra.mxu0 0.0
        %1197 = vmatprep.subr.mxu0 0.0
        %1198 = vmatpush1.msra.mxu0 0.0
        %1199 = vmatprep.subr.mxu0 0.0
        %1200 = vmatpush1.msra.mxu0 0.0
        %1201 = vmatprep.subr.mxu0 0.0
        %1202 = vmatpush1.msra.mxu0 0.0
        %1203 = vmatprep.subr.mxu0 0.0
        %1204 = vmatpush1.msra.mxu0 0.0
        %1205 = vmatprep.subr.mxu0 0.0
        %1206 = vmatpush1.msra.mxu0 0.0
        %1207 = vmatprep.subr.mxu0 0.0
        %1208 = vmatpush1.msra.mxu0 0.0
        %1209 = vmatprep.subr.mxu0 0.0
        %1210 = vmatpush1.msra.mxu0 0.0
        %1211 = vmatprep.mubr.f32.mxu0 0.0
        %v1212 = vand.u32 %v553, 4294901760
        %1213 = vmatmul.mubr.f32.gmra.mrb[0].mxu0 %v1212
        %v1214 = vpop.f32.mrb[0].mxu0
        %v1215 = vadd.f32 %v1128, %v1214
        %v1216 = vpop.f32.mrb[0].mxu0
        %1217 = vdwg.mxu0
        %v1218 = vld [vmem:[#allocation10] sm:$0xff]
        %v1219 = vld [vmem:[#allocation10 + $0x8] sm:$0xff]
        %v1220 = vld [vmem:[#allocation10 + $0x10] sm:$0xff]
        %v1221 = vld [vmem:[#allocation10 + $0x18] sm:$0xff]
        %v1222 = vld [vmem:[#allocation10 + $0x20] sm:$0xff]
        %v1223 = vld [vmem:[#allocation10 + $0x28] sm:$0xff]
        %v1224 = vld [vmem:[#allocation10 + $0x30] sm:$0xff]
        %v1225 = vld [vmem:[#allocation10 + $0x38] sm:$0xff]
        %v1226 = vld [vmem:[#allocation10 + $0x40] sm:$0xff]
        %v1227 = vld [vmem:[#allocation10 + $0x48] sm:$0xff]
        %v1228 = vld [vmem:[#allocation10 + $0x50] sm:$0xff]
        %v1229 = vld [vmem:[#allocation10 + $0x58] sm:$0xff]
        %v1230 = vld [vmem:[#allocation10 + $0x60] sm:$0xff]
        %v1231 = vld [vmem:[#allocation10 + $0x68] sm:$0xff]
        %v1232 = vld [vmem:[#allocation10 + $0x70] sm:$0xff]
        %v1233 = vld [vmem:[#allocation10 + $0x78] sm:$0xff]
        %v1234 = vld [vmem:[%s7] sm:$0x1]
        %v1236 = vlaneseq
        %v1237 = vshrl.u32 %v1236, 7
        %v1238 = vsub.s32 0, %v1237
        %v1239 = vrot.slane %v1234, %v1238
        %1241 = vmatprep.subr.mxu0 0.0
        %v1242 = vand.u32 %v1218, 4294901760
        %1243 = vmatpush1.msra.mxu0 %v1242
        %1244 = vmatprep.subr.mxu0 0.0
        %v1245 = vand.u32 %v1219, 4294901760
        %1246 = vmatpush1.msra.mxu0 %v1245
        %1247 = vmatprep.subr.mxu0 0.0
        %v1248 = vand.u32 %v1220, 4294901760
        %1249 = vmatpush1.msra.mxu0 %v1248
        %1250 = vmatprep.subr.mxu0 0.0
        %v1251 = vand.u32 %v1221, 4294901760
        %1252 = vmatpush1.msra.mxu0 %v1251
        %1253 = vmatprep.subr.mxu0 0.0
        %v1254 = vand.u32 %v1222, 4294901760
        %1255 = vmatpush1.msra.mxu0 %v1254
        %1256 = vmatprep.subr.mxu0 0.0
        %v1257 = vand.u32 %v1223, 4294901760
        %1258 = vmatpush1.msra.mxu0 %v1257
        %1259 = vmatprep.subr.mxu0 0.0
        %v1260 = vand.u32 %v1224, 4294901760
        %1261 = vmatpush1.msra.mxu0 %v1260
        %1262 = vmatprep.subr.mxu0 0.0
        %v1263 = vand.u32 %v1225, 4294901760
        %1264 = vmatpush1.msra.mxu0 %v1263
        %1265 = vmatprep.subr.mxu0 0.0
        %v1266 = vand.u32 %v1226, 4294901760
        %1267 = vmatpush1.msra.mxu0 %v1266
        %1268 = vmatprep.subr.mxu0 0.0
        %v1269 = vand.u32 %v1227, 4294901760
        %1270 = vmatpush1.msra.mxu0 %v1269
        %1271 = vmatprep.subr.mxu0 0.0
        %v1272 = vand.u32 %v1228, 4294901760
        %1273 = vmatpush1.msra.mxu0 %v1272
        %1274 = vmatprep.subr.mxu0 0.0
        %v1275 = vand.u32 %v1229, 4294901760
        %1276 = vmatpush1.msra.mxu0 %v1275
        %1277 = vmatprep.subr.mxu0 0.0
        %v1278 = vand.u32 %v1230, 4294901760
        %1279 = vmatpush1.msra.mxu0 %v1278
        %1280 = vmatprep.subr.mxu0 0.0
        %v1281 = vand.u32 %v1231, 4294901760
        %1282 = vmatpush1.msra.mxu0 %v1281
        %1283 = vmatprep.subr.mxu0 0.0
        %v1284 = vand.u32 %v1232, 4294901760
        %1285 = vmatpush1.msra.mxu0 %v1284
        %1286 = vmatprep.subr.mxu0 0.0
        %v1287 = vand.u32 %v1233, 4294901760
        %1288 = vmatpush1.msra.mxu0 %v1287
        %1289 = vmatprep.subr.mxu0 0.0
        %1290 = vmatpush1.msra.mxu0 0.0
        %1291 = vmatprep.subr.mxu0 0.0
        %1292 = vmatpush1.msra.mxu0 0.0
        %1293 = vmatprep.subr.mxu0 0.0
        %1294 = vmatpush1.msra.mxu0 0.0
        %1295 = vmatprep.subr.mxu0 0.0
        %1296 = vmatpush1.msra.mxu0 0.0
        %1297 = vmatprep.subr.mxu0 0.0
        %1298 = vmatpush1.msra.mxu0 0.0
        %1299 = vmatprep.subr.mxu0 0.0
        %1300 = vmatpush1.msra.mxu0 0.0
        %1301 = vmatprep.subr.mxu0 0.0
        %1302 = vmatpush1.msra.mxu0 0.0
        %1303 = vmatprep.subr.mxu0 0.0
        %1304 = vmatpush1.msra.mxu0 0.0
        %1305 = vmatprep.subr.mxu0 0.0
        %1306 = vmatpush1.msra.mxu0 0.0
        %1307 = vmatprep.subr.mxu0 0.0
        %1308 = vmatpush1.msra.mxu0 0.0
        %1309 = vmatprep.subr.mxu0 0.0
        %1310 = vmatpush1.msra.mxu0 0.0
        %1311 = vmatprep.subr.mxu0 0.0
        %1312 = vmatpush1.msra.mxu0 0.0
        %1313 = vmatprep.subr.mxu0 0.0
        %1314 = vmatpush1.msra.mxu0 0.0
        %1315 = vmatprep.subr.mxu0 0.0
        %1316 = vmatpush1.msra.mxu0 0.0
        %1317 = vmatprep.subr.mxu0 0.0
        %1318 = vmatpush1.msra.mxu0 0.0
        %1319 = vmatprep.subr.mxu0 0.0
        %1320 = vmatpush1.msra.mxu0 0.0
        %1321 = vmatprep.mubr.f32.mxu0 0.0
        %v1322 = vand.u32 %v553, 4294901760
        %v1323 = vsub.f32 %v553, %v1322
        %v1324 = vand.u32 %v1323, 4294901760
        %v1325 = vsub.f32 %v1323, %v1324
        %v1326 = vand.u32 %v1325, 4294901760
        %1327 = vmatmul.mubr.f32.gmra.mrb[0].mxu0 %v1326
        %v1328 = vpop.f32.mrb[0].mxu0
        %v1329 = vadd.f32 %v1239, %v1328
        %v1330 = vpop.f32.mrb[0].mxu0
        %1331 = vdwg.mxu0
        %1332 = vmatprep.subr.mxu0 0.0
        %v1333 = vand.u32 %v1218, 4294901760
        %v1334 = vsub.f32 %v1218, %v1333
        %v1335 = vand.u32 %v1334, 4294901760
        %v1336 = vsub.f32 %v1334, %v1335
        %v1337 = vand.u32 %v1336, 4294901760
        %1338 = vmatpush1.msra.mxu0 %v1337
        %1339 = vmatprep.subr.mxu0 0.0
        %v1340 = vand.u32 %v1219, 4294901760
        %v1341 = vsub.f32 %v1219, %v1340
        %v1342 = vand.u32 %v1341, 4294901760
        %v1343 = vsub.f32 %v1341, %v1342
        %v1344 = vand.u32 %v1343, 4294901760
        %1345 = vmatpush1.msra.mxu0 %v1344
        %1346 = vmatprep.subr.mxu0 0.0
        %v1347 = vand.u32 %v1220, 4294901760
        %v1348 = vsub.f32 %v1220, %v1347
        %v1349 = vand.u32 %v1348, 4294901760
        %v1350 = vsub.f32 %v1348, %v1349
        %v1351 = vand.u32 %v1350, 4294901760
        %1352 = vmatpush1.msra.mxu0 %v1351
        %1353 = vmatprep.subr.mxu0 0.0
        %v1354 = vand.u32 %v1221, 4294901760
        %v1355 = vsub.f32 %v1221, %v1354
        %v1356 = vand.u32 %v1355, 4294901760
        %v1357 = vsub.f32 %v1355, %v1356
        %v1358 = vand.u32 %v1357, 4294901760
        %1359 = vmatpush1.msra.mxu0 %v1358
        %1360 = vmatprep.subr.mxu0 0.0
        %v1361 = vand.u32 %v1222, 4294901760
        %v1362 = vsub.f32 %v1222, %v1361
        %v1363 = vand.u32 %v1362, 4294901760
        %v1364 = vsub.f32 %v1362, %v1363
        %v1365 = vand.u32 %v1364, 4294901760
        %1366 = vmatpush1.msra.mxu0 %v1365
        %1367 = vmatprep.subr.mxu0 0.0
        %v1368 = vand.u32 %v1223, 4294901760
        %v1369 = vsub.f32 %v1223, %v1368
        %v1370 = vand.u32 %v1369, 4294901760
        %v1371 = vsub.f32 %v1369, %v1370
        %v1372 = vand.u32 %v1371, 4294901760
        %1373 = vmatpush1.msra.mxu0 %v1372
        %1374 = vmatprep.subr.mxu0 0.0
        %v1375 = vand.u32 %v1224, 4294901760
        %v1376 = vsub.f32 %v1224, %v1375
        %v1377 = vand.u32 %v1376, 4294901760
        %v1378 = vsub.f32 %v1376, %v1377
        %v1379 = vand.u32 %v1378, 4294901760
        %1380 = vmatpush1.msra.mxu0 %v1379
        %1381 = vmatprep.subr.mxu0 0.0
        %v1382 = vand.u32 %v1225, 4294901760
        %v1383 = vsub.f32 %v1225, %v1382
        %v1384 = vand.u32 %v1383, 4294901760
        %v1385 = vsub.f32 %v1383, %v1384
        %v1386 = vand.u32 %v1385, 4294901760
        %1387 = vmatpush1.msra.mxu0 %v1386
        %1388 = vmatprep.subr.mxu0 0.0
        %v1389 = vand.u32 %v1226, 4294901760
        %v1390 = vsub.f32 %v1226, %v1389
        %v1391 = vand.u32 %v1390, 4294901760
        %v1392 = vsub.f32 %v1390, %v1391
        %v1393 = vand.u32 %v1392, 4294901760
        %1394 = vmatpush1.msra.mxu0 %v1393
        %1395 = vmatprep.subr.mxu0 0.0
        %v1396 = vand.u32 %v1227, 4294901760
        %v1397 = vsub.f32 %v1227, %v1396
        %v1398 = vand.u32 %v1397, 4294901760
        %v1399 = vsub.f32 %v1397, %v1398
        %v1400 = vand.u32 %v1399, 4294901760
        %1401 = vmatpush1.msra.mxu0 %v1400
        %1402 = vmatprep.subr.mxu0 0.0
        %v1403 = vand.u32 %v1228, 4294901760
        %v1404 = vsub.f32 %v1228, %v1403
        %v1405 = vand.u32 %v1404, 4294901760
        %v1406 = vsub.f32 %v1404, %v1405
        %v1407 = vand.u32 %v1406, 4294901760
        %1408 = vmatpush1.msra.mxu0 %v1407
        %1409 = vmatprep.subr.mxu0 0.0
        %v1410 = vand.u32 %v1229, 4294901760
        %v1411 = vsub.f32 %v1229, %v1410
        %v1412 = vand.u32 %v1411, 4294901760
        %v1413 = vsub.f32 %v1411, %v1412
        %v1414 = vand.u32 %v1413, 4294901760
        %1415 = vmatpush1.msra.mxu0 %v1414
        %1416 = vmatprep.subr.mxu0 0.0
        %v1417 = vand.u32 %v1230, 4294901760
        %v1418 = vsub.f32 %v1230, %v1417
        %v1419 = vand.u32 %v1418, 4294901760
        %v1420 = vsub.f32 %v1418, %v1419
        %v1421 = vand.u32 %v1420, 4294901760
        %1422 = vmatpush1.msra.mxu0 %v1421
        %1423 = vmatprep.subr.mxu0 0.0
        %v1424 = vand.u32 %v1231, 4294901760
        %v1425 = vsub.f32 %v1231, %v1424
        %v1426 = vand.u32 %v1425, 4294901760
        %v1427 = vsub.f32 %v1425, %v1426
        %v1428 = vand.u32 %v1427, 4294901760
        %1429 = vmatpush1.msra.mxu0 %v1428
        %1430 = vmatprep.subr.mxu0 0.0
        %v1431 = vand.u32 %v1232, 4294901760
        %v1432 = vsub.f32 %v1232, %v1431
        %v1433 = vand.u32 %v1432, 4294901760
        %v1434 = vsub.f32 %v1432, %v1433
        %v1435 = vand.u32 %v1434, 4294901760
        %1436 = vmatpush1.msra.mxu0 %v1435
        %1437 = vmatprep.subr.mxu0 0.0
        %v1438 = vand.u32 %v1233, 4294901760
        %v1439 = vsub.f32 %v1233, %v1438
        %v1440 = vand.u32 %v1439, 4294901760
        %v1441 = vsub.f32 %v1439, %v1440
        %v1442 = vand.u32 %v1441, 4294901760
        %1443 = vmatpush1.msra.mxu0 %v1442
        %1444 = vmatprep.subr.mxu0 0.0
        %1445 = vmatpush1.msra.mxu0 0.0
        %1446 = vmatprep.subr.mxu0 0.0
        %1447 = vmatpush1.msra.mxu0 0.0
        %1448 = vmatprep.subr.mxu0 0.0
        %1449 = vmatpush1.msra.mxu0 0.0
        %1450 = vmatprep.subr.mxu0 0.0
        %1451 = vmatpush1.msra.mxu0 0.0
        %1452 = vmatprep.subr.mxu0 0.0
        %1453 = vmatpush1.msra.mxu0 0.0
        %1454 = vmatprep.subr.mxu0 0.0
        %1455 = vmatpush1.msra.mxu0 0.0
        %1456 = vmatprep.subr.mxu0 0.0
        %1457 = vmatpush1.msra.mxu0 0.0
        %1458 = vmatprep.subr.mxu0 0.0
        %1459 = vmatpush1.msra.mxu0 0.0
        %1460 = vmatprep.subr.mxu0 0.0
        %1461 = vmatpush1.msra.mxu0 0.0
        %1462 = vmatprep.subr.mxu0 0.0
        %1463 = vmatpush1.msra.mxu0 0.0
        %1464 = vmatprep.subr.mxu0 0.0
        %1465 = vmatpush1.msra.mxu0 0.0
        %1466 = vmatprep.subr.mxu0 0.0
        %1467 = vmatpush1.msra.mxu0 0.0
        %1468 = vmatprep.subr.mxu0 0.0
        %1469 = vmatpush1.msra.mxu0 0.0
        %1470 = vmatprep.subr.mxu0 0.0
        %1471 = vmatpush1.msra.mxu0 0.0
        %1472 = vmatprep.subr.mxu0 0.0
        %1473 = vmatpush1.msra.mxu0 0.0
        %1474 = vmatprep.subr.mxu0 0.0
        %1475 = vmatpush1.msra.mxu0 0.0
        %1476 = vmatprep.mubr.f32.mxu0 0.0
        %v1477 = vand.u32 %v553, 4294901760
        %1478 = vmatmul.mubr.f32.gmra.mrb[0].mxu0 %v1477
        %v1479 = vpop.f32.mrb[0].mxu0
        %v1480 = vadd.f32 %v1329, %v1479
        %v1481 = vpop.f32.mrb[0].mxu0
        %1482 = vdwg.mxu0
        %1483 = vmatprep.subr.mxu0 0.0
        %v1484 = vand.u32 %v1218, 4294901760
        %v1485 = vsub.f32 %v1218, %v1484
        %1486 = vmatpush1.msra.mxu0 %v1485
        %1487 = vmatprep.subr.mxu0 0.0
        %v1488 = vand.u32 %v1219, 4294901760
        %v1489 = vsub.f32 %v1219, %v1488
        %1490 = vmatpush1.msra.mxu0 %v1489
        %1491 = vmatprep.subr.mxu0 0.0
        %v1492 = vand.u32 %v1220, 4294901760
        %v1493 = vsub.f32 %v1220, %v1492
        %1494 = vmatpush1.msra.mxu0 %v1493
        %1495 = vmatprep.subr.mxu0 0.0
        %v1496 = vand.u32 %v1221, 4294901760
        %v1497 = vsub.f32 %v1221, %v1496
        %1498 = vmatpush1.msra.mxu0 %v1497
        %1499 = vmatprep.subr.mxu0 0.0
        %v1500 = vand.u32 %v1222, 4294901760
        %v1501 = vsub.f32 %v1222, %v1500
        %1502 = vmatpush1.msra.mxu0 %v1501
        %1503 = vmatprep.subr.mxu0 0.0
        %v1504 = vand.u32 %v1223, 4294901760
        %v1505 = vsub.f32 %v1223, %v1504
        %1506 = vmatpush1.msra.mxu0 %v1505
        %1507 = vmatprep.subr.mxu0 0.0
        %v1508 = vand.u32 %v1224, 4294901760
        %v1509 = vsub.f32 %v1224, %v1508
        %1510 = vmatpush1.msra.mxu0 %v1509
        %1511 = vmatprep.subr.mxu0 0.0
        %v1512 = vand.u32 %v1225, 4294901760
        %v1513 = vsub.f32 %v1225, %v1512
        %1514 = vmatpush1.msra.mxu0 %v1513
        %1515 = vmatprep.subr.mxu0 0.0
        %v1516 = vand.u32 %v1226, 4294901760
        %v1517 = vsub.f32 %v1226, %v1516
        %1518 = vmatpush1.msra.mxu0 %v1517
        %1519 = vmatprep.subr.mxu0 0.0
        %v1520 = vand.u32 %v1227, 4294901760
        %v1521 = vsub.f32 %v1227, %v1520
        %1522 = vmatpush1.msra.mxu0 %v1521
        %1523 = vmatprep.subr.mxu0 0.0
        %v1524 = vand.u32 %v1228, 4294901760
        %v1525 = vsub.f32 %v1228, %v1524
        %1526 = vmatpush1.msra.mxu0 %v1525
        %1527 = vmatprep.subr.mxu0 0.0
        %v1528 = vand.u32 %v1229, 4294901760
        %v1529 = vsub.f32 %v1229, %v1528
        %1530 = vmatpush1.msra.mxu0 %v1529
        %1531 = vmatprep.subr.mxu0 0.0
        %v1532 = vand.u32 %v1230, 4294901760
        %v1533 = vsub.f32 %v1230, %v1532
        %1534 = vmatpush1.msra.mxu0 %v1533
        %1535 = vmatprep.subr.mxu0 0.0
        %v1536 = vand.u32 %v1231, 4294901760
        %v1537 = vsub.f32 %v1231, %v1536
        %1538 = vmatpush1.msra.mxu0 %v1537
        %1539 = vmatprep.subr.mxu0 0.0
        %v1540 = vand.u32 %v1232, 4294901760
        %v1541 = vsub.f32 %v1232, %v1540
        %1542 = vmatpush1.msra.mxu0 %v1541
        %1543 = vmatprep.subr.mxu0 0.0
        %v1544 = vand.u32 %v1233, 4294901760
        %v1545 = vsub.f32 %v1233, %v1544
        %1546 = vmatpush1.msra.mxu0 %v1545
        %1547 = vmatprep.subr.mxu0 0.0
        %1548 = vmatpush1.msra.mxu0 0.0
        %1549 = vmatprep.subr.mxu0 0.0
        %1550 = vmatpush1.msra.mxu0 0.0
        %1551 = vmatprep.subr.mxu0 0.0
        %1552 = vmatpush1.msra.mxu0 0.0
        %1553 = vmatprep.subr.mxu0 0.0
        %1554 = vmatpush1.msra.mxu0 0.0
        %1555 = vmatprep.subr.mxu0 0.0
        %1556 = vmatpush1.msra.mxu0 0.0
        %1557 = vmatprep.subr.mxu0 0.0
        %1558 = vmatpush1.msra.mxu0 0.0
        %1559 = vmatprep.subr.mxu0 0.0
        %1560 = vmatpush1.msra.mxu0 0.0
        %1561 = vmatprep.subr.mxu0 0.0
        %1562 = vmatpush1.msra.mxu0 0.0
        %1563 = vmatprep.subr.mxu0 0.0
        %1564 = vmatpush1.msra.mxu0 0.0
        %1565 = vmatprep.subr.mxu0 0.0
        %1566 = vmatpush1.msra.mxu0 0.0
        %1567 = vmatprep.subr.mxu0 0.0
        %1568 = vmatpush1.msra.mxu0 0.0
        %1569 = vmatprep.subr.mxu0 0.0
        %1570 = vmatpush1.msra.mxu0 0.0
        %1571 = vmatprep.subr.mxu0 0.0
        %1572 = vmatpush1.msra.mxu0 0.0
        %1573 = vmatprep.subr.mxu0 0.0
        %1574 = vmatpush1.msra.mxu0 0.0
        %1575 = vmatprep.subr.mxu0 0.0
        %1576 = vmatpush1.msra.mxu0 0.0
        %1577 = vmatprep.subr.mxu0 0.0
        %1578 = vmatpush1.msra.mxu0 0.0
        %1579 = vmatprep.mubr.f32.mxu0 0.0
        %v1580 = vand.u32 %v553, 4294901760
        %v1581 = vsub.f32 %v553, %v1580
        %1582 = vmatmul.mubr.f32.gmra.mrb[0].mxu0 %v1581
        %v1583 = vpop.f32.mrb[0].mxu0
        %v1584 = vadd.f32 %v1480, %v1583
        %v1585 = vpop.f32.mrb[0].mxu0
        %1586 = vdwg.mxu0
        %1587 = vmatprep.subr.mxu0 0.0
        %v1588 = vand.u32 %v1218, 4294901760
        %1589 = vmatpush1.msra.mxu0 %v1588
        %1590 = vmatprep.subr.mxu0 0.0
        %v1591 = vand.u32 %v1219, 4294901760
        %1592 = vmatpush1.msra.mxu0 %v1591
        %1593 = vmatprep.subr.mxu0 0.0
        %v1594 = vand.u32 %v1220, 4294901760
        %1595 = vmatpush1.msra.mxu0 %v1594
        %1596 = vmatprep.subr.mxu0 0.0
        %v1597 = vand.u32 %v1221, 4294901760
        %1598 = vmatpush1.msra.mxu0 %v1597
        %1599 = vmatprep.subr.mxu0 0.0
        %v1600 = vand.u32 %v1222, 4294901760
        %1601 = vmatpush1.msra.mxu0 %v1600
        %1602 = vmatprep.subr.mxu0 0.0
        %v1603 = vand.u32 %v1223, 4294901760
        %1604 = vmatpush1.msra.mxu0 %v1603
        %1605 = vmatprep.subr.mxu0 0.0
        %v1606 = vand.u32 %v1224, 4294901760
        %1607 = vmatpush1.msra.mxu0 %v1606
        %1608 = vmatprep.subr.mxu0 0.0
        %v1609 = vand.u32 %v1225, 4294901760
        %1610 = vmatpush1.msra.mxu0 %v1609
        %1611 = vmatprep.subr.mxu0 0.0
        %v1612 = vand.u32 %v1226, 4294901760
        %1613 = vmatpush1.msra.mxu0 %v1612
        %1614 = vmatprep.subr.mxu0 0.0
        %v1615 = vand.u32 %v1227, 4294901760
        %1616 = vmatpush1.msra.mxu0 %v1615
        %1617 = vmatprep.subr.mxu0 0.0
        %v1618 = vand.u32 %v1228, 4294901760
        %1619 = vmatpush1.msra.mxu0 %v1618
        %1620 = vmatprep.subr.mxu0 0.0
        %v1621 = vand.u32 %v1229, 4294901760
        %1622 = vmatpush1.msra.mxu0 %v1621
        %1623 = vmatprep.subr.mxu0 0.0
        %v1624 = vand.u32 %v1230, 4294901760
        %1625 = vmatpush1.msra.mxu0 %v1624
        %1626 = vmatprep.subr.mxu0 0.0
        %v1627 = vand.u32 %v1231, 4294901760
        %1628 = vmatpush1.msra.mxu0 %v1627
        %1629 = vmatprep.subr.mxu0 0.0
        %v1630 = vand.u32 %v1232, 4294901760
        %1631 = vmatpush1.msra.mxu0 %v1630
        %1632 = vmatprep.subr.mxu0 0.0
        %v1633 = vand.u32 %v1233, 4294901760
        %1634 = vmatpush1.msra.mxu0 %v1633
        %1635 = vmatprep.subr.mxu0 0.0
        %1636 = vmatpush1.msra.mxu0 0.0
        %1637 = vmatprep.subr.mxu0 0.0
        %1638 = vmatpush1.msra.mxu0 0.0
        %1639 = vmatprep.subr.mxu0 0.0
        %1640 = vmatpush1.msra.mxu0 0.0
        %1641 = vmatprep.subr.mxu0 0.0
        %1642 = vmatpush1.msra.mxu0 0.0
        %1643 = vmatprep.subr.mxu0 0.0
        %1644 = vmatpush1.msra.mxu0 0.0
        %1645 = vmatprep.subr.mxu0 0.0
        %1646 = vmatpush1.msra.mxu0 0.0
        %1647 = vmatprep.subr.mxu0 0.0
        %1648 = vmatpush1.msra.mxu0 0.0
        %1649 = vmatprep.subr.mxu0 0.0
        %1650 = vmatpush1.msra.mxu0 0.0
        %1651 = vmatprep.subr.mxu0 0.0
        %1652 = vmatpush1.msra.mxu0 0.0
        %1653 = vmatprep.subr.mxu0 0.0
        %1654 = vmatpush1.msra.mxu0 0.0
        %1655 = vmatprep.subr.mxu0 0.0
        %1656 = vmatpush1.msra.mxu0 0.0
        %1657 = vmatprep.subr.mxu0 0.0
        %1658 = vmatpush1.msra.mxu0 0.0
        %1659 = vmatprep.subr.mxu0 0.0
        %1660 = vmatpush1.msra.mxu0 0.0
        %1661 = vmatprep.subr.mxu0 0.0
        %1662 = vmatpush1.msra.mxu0 0.0
        %1663 = vmatprep.subr.mxu0 0.0
        %1664 = vmatpush1.msra.mxu0 0.0
        %1665 = vmatprep.subr.mxu0 0.0
        %1666 = vmatpush1.msra.mxu0 0.0
        %1667 = vmatprep.mubr.f32.mxu0 0.0
        %v1668 = vand.u32 %v553, 4294901760
        %v1669 = vsub.f32 %v553, %v1668
        %v1670 = vand.u32 %v1669, 4294901760
        %1671 = vmatmul.mubr.f32.gmra.mrb[0].mxu0 %v1670
        %v1672 = vpop.f32.mrb[0].mxu0
        %v1673 = vadd.f32 %v1584, %v1672
        %v1674 = vpop.f32.mrb[0].mxu0
        %1675 = vdwg.mxu0
        %1676 = vmatprep.subr.mxu0 0.0
        %v1677 = vand.u32 %v1218, 4294901760
        %v1678 = vsub.f32 %v1218, %v1677
        %v1679 = vand.u32 %v1678, 4294901760
        %1680 = vmatpush1.msra.mxu0 %v1679
        %1681 = vmatprep.subr.mxu0 0.0
        %v1682 = vand.u32 %v1219, 4294901760
        %v1683 = vsub.f32 %v1219, %v1682
        %v1684 = vand.u32 %v1683, 4294901760
        %1685 = vmatpush1.msra.mxu0 %v1684
        %1686 = vmatprep.subr.mxu0 0.0
        %v1687 = vand.u32 %v1220, 4294901760
        %v1688 = vsub.f32 %v1220, %v1687
        %v1689 = vand.u32 %v1688, 4294901760
        %1690 = vmatpush1.msra.mxu0 %v1689
        %1691 = vmatprep.subr.mxu0 0.0
        %v1692 = vand.u32 %v1221, 4294901760
        %v1693 = vsub.f32 %v1221, %v1692
        %v1694 = vand.u32 %v1693, 4294901760
        %1695 = vmatpush1.msra.mxu0 %v1694
        %1696 = vmatprep.subr.mxu0 0.0
        %v1697 = vand.u32 %v1222, 4294901760
        %v1698 = vsub.f32 %v1222, %v1697
        %v1699 = vand.u32 %v1698, 4294901760
        %1700 = vmatpush1.msra.mxu0 %v1699
        %1701 = vmatprep.subr.mxu0 0.0
        %v1702 = vand.u32 %v1223, 4294901760
        %v1703 = vsub.f32 %v1223, %v1702
        %v1704 = vand.u32 %v1703, 4294901760
        %1705 = vmatpush1.msra.mxu0 %v1704
        %1706 = vmatprep.subr.mxu0 0.0
        %v1707 = vand.u32 %v1224, 4294901760
        %v1708 = vsub.f32 %v1224, %v1707
        %v1709 = vand.u32 %v1708, 4294901760
        %1710 = vmatpush1.msra.mxu0 %v1709
        %1711 = vmatprep.subr.mxu0 0.0
        %v1712 = vand.u32 %v1225, 4294901760
        %v1713 = vsub.f32 %v1225, %v1712
        %v1714 = vand.u32 %v1713, 4294901760
        %1715 = vmatpush1.msra.mxu0 %v1714
        %1716 = vmatprep.subr.mxu0 0.0
        %v1717 = vand.u32 %v1226, 4294901760
        %v1718 = vsub.f32 %v1226, %v1717
        %v1719 = vand.u32 %v1718, 4294901760
        %1720 = vmatpush1.msra.mxu0 %v1719
        %1721 = vmatprep.subr.mxu0 0.0
        %v1722 = vand.u32 %v1227, 4294901760
        %v1723 = vsub.f32 %v1227, %v1722
        %v1724 = vand.u32 %v1723, 4294901760
        %1725 = vmatpush1.msra.mxu0 %v1724
        %1726 = vmatprep.subr.mxu0 0.0
        %v1727 = vand.u32 %v1228, 4294901760
        %v1728 = vsub.f32 %v1228, %v1727
        %v1729 = vand.u32 %v1728, 4294901760
        %1730 = vmatpush1.msra.mxu0 %v1729
        %1731 = vmatprep.subr.mxu0 0.0
        %v1732 = vand.u32 %v1229, 4294901760
        %v1733 = vsub.f32 %v1229, %v1732
        %v1734 = vand.u32 %v1733, 4294901760
        %1735 = vmatpush1.msra.mxu0 %v1734
        %1736 = vmatprep.subr.mxu0 0.0
        %v1737 = vand.u32 %v1230, 4294901760
        %v1738 = vsub.f32 %v1230, %v1737
        %v1739 = vand.u32 %v1738, 4294901760
        %1740 = vmatpush1.msra.mxu0 %v1739
        %1741 = vmatprep.subr.mxu0 0.0
        %v1742 = vand.u32 %v1231, 4294901760
        %v1743 = vsub.f32 %v1231, %v1742
        %v1744 = vand.u32 %v1743, 4294901760
        %1745 = vmatpush1.msra.mxu0 %v1744
        %1746 = vmatprep.subr.mxu0 0.0
        %v1747 = vand.u32 %v1232, 4294901760
        %v1748 = vsub.f32 %v1232, %v1747
        %v1749 = vand.u32 %v1748, 4294901760
        %1750 = vmatpush1.msra.mxu0 %v1749
        %1751 = vmatprep.subr.mxu0 0.0
        %v1752 = vand.u32 %v1233, 4294901760
        %v1753 = vsub.f32 %v1233, %v1752
        %v1754 = vand.u32 %v1753, 4294901760
        %1755 = vmatpush1.msra.mxu0 %v1754
        %1756 = vmatprep.subr.mxu0 0.0
        %1757 = vmatpush1.msra.mxu0 0.0
        %1758 = vmatprep.subr.mxu0 0.0
        %1759 = vmatpush1.msra.mxu0 0.0
        %1760 = vmatprep.subr.mxu0 0.0
        %1761 = vmatpush1.msra.mxu0 0.0
        %1762 = vmatprep.subr.mxu0 0.0
        %1763 = vmatpush1.msra.mxu0 0.0
        %1764 = vmatprep.subr.mxu0 0.0
        %1765 = vmatpush1.msra.mxu0 0.0
        %1766 = vmatprep.subr.mxu0 0.0
        %1767 = vmatpush1.msra.mxu0 0.0
        %1768 = vmatprep.subr.mxu0 0.0
        %1769 = vmatpush1.msra.mxu0 0.0
        %1770 = vmatprep.subr.mxu0 0.0
        %1771 = vmatpush1.msra.mxu0 0.0
        %1772 = vmatprep.subr.mxu0 0.0
        %1773 = vmatpush1.msra.mxu0 0.0
        %1774 = vmatprep.subr.mxu0 0.0
        %1775 = vmatpush1.msra.mxu0 0.0
        %1776 = vmatprep.subr.mxu0 0.0
        %1777 = vmatpush1.msra.mxu0 0.0
        %1778 = vmatprep.subr.mxu0 0.0
        %1779 = vmatpush1.msra.mxu0 0.0
        %1780 = vmatprep.subr.mxu0 0.0
        %1781 = vmatpush1.msra.mxu0 0.0
        %1782 = vmatprep.subr.mxu0 0.0
        %1783 = vmatpush1.msra.mxu0 0.0
        %1784 = vmatprep.subr.mxu0 0.0
        %1785 = vmatpush1.msra.mxu0 0.0
        %1786 = vmatprep.subr.mxu0 0.0
        %1787 = vmatpush1.msra.mxu0 0.0
        %1788 = vmatprep.mubr.f32.mxu0 0.0
        %v1789 = vand.u32 %v553, 4294901760
        %1790 = vmatmul.mubr.f32.gmra.mrb[0].mxu0 %v1789
        %v1791 = vpop.f32.mrb[0].mxu0
        %v1792 = vadd.f32 %v1673, %v1791
        %v1793 = vpop.f32.mrb[0].mxu0
        %1794 = vdwg.mxu0
        %1795 = vmatprep.subr.mxu0 0.0
        %v1796 = vand.u32 %v1218, 4294901760
        %1797 = vmatpush1.msra.mxu0 %v1796
        %1798 = vmatprep.subr.mxu0 0.0
        %v1799 = vand.u32 %v1219, 4294901760
        %1800 = vmatpush1.msra.mxu0 %v1799
        %1801 = vmatprep.subr.mxu0 0.0
        %v1802 = vand.u32 %v1220, 4294901760
        %1803 = vmatpush1.msra.mxu0 %v1802
        %1804 = vmatprep.subr.mxu0 0.0
        %v1805 = vand.u32 %v1221, 4294901760
        %1806 = vmatpush1.msra.mxu0 %v1805
        %1807 = vmatprep.subr.mxu0 0.0
        %v1808 = vand.u32 %v1222, 4294901760
        %1809 = vmatpush1.msra.mxu0 %v1808
        %1810 = vmatprep.subr.mxu0 0.0
        %v1811 = vand.u32 %v1223, 4294901760
        %1812 = vmatpush1.msra.mxu0 %v1811
        %1813 = vmatprep.subr.mxu0 0.0
        %v1814 = vand.u32 %v1224, 4294901760
        %1815 = vmatpush1.msra.mxu0 %v1814
        %1816 = vmatprep.subr.mxu0 0.0
        %v1817 = vand.u32 %v1225, 4294901760
        %1818 = vmatpush1.msra.mxu0 %v1817
        %1819 = vmatprep.subr.mxu0 0.0
        %v1820 = vand.u32 %v1226, 4294901760
        %1821 = vmatpush1.msra.mxu0 %v1820
        %1822 = vmatprep.subr.mxu0 0.0
        %v1823 = vand.u32 %v1227, 4294901760
        %1824 = vmatpush1.msra.mxu0 %v1823
        %1825 = vmatprep.subr.mxu0 0.0
        %v1826 = vand.u32 %v1228, 4294901760
        %1827 = vmatpush1.msra.mxu0 %v1826
        %1828 = vmatprep.subr.mxu0 0.0
        %v1829 = vand.u32 %v1229, 4294901760
        %1830 = vmatpush1.msra.mxu0 %v1829
        %1831 = vmatprep.subr.mxu0 0.0
        %v1832 = vand.u32 %v1230, 4294901760
        %1833 = vmatpush1.msra.mxu0 %v1832
        %1834 = vmatprep.subr.mxu0 0.0
        %v1835 = vand.u32 %v1231, 4294901760
        %1836 = vmatpush1.msra.mxu0 %v1835
        %1837 = vmatprep.subr.mxu0 0.0
        %v1838 = vand.u32 %v1232, 4294901760
        %1839 = vmatpush1.msra.mxu0 %v1838
        %1840 = vmatprep.subr.mxu0 0.0
        %v1841 = vand.u32 %v1233, 4294901760
        %1842 = vmatpush1.msra.mxu0 %v1841
        %1843 = vmatprep.subr.mxu0 0.0
        %1844 = vmatpush1.msra.mxu0 0.0
        %1845 = vmatprep.subr.mxu0 0.0
        %1846 = vmatpush1.msra.mxu0 0.0
        %1847 = vmatprep.subr.mxu0 0.0
        %1848 = vmatpush1.msra.mxu0 0.0
        %1849 = vmatprep.subr.mxu0 0.0
        %1850 = vmatpush1.msra.mxu0 0.0
        %1851 = vmatprep.subr.mxu0 0.0
        %1852 = vmatpush1.msra.mxu0 0.0
        %1853 = vmatprep.subr.mxu0 0.0
        %1854 = vmatpush1.msra.mxu0 0.0
        %1855 = vmatprep.subr.mxu0 0.0
        %1856 = vmatpush1.msra.mxu0 0.0
        %1857 = vmatprep.subr.mxu0 0.0
        %1858 = vmatpush1.msra.mxu0 0.0
        %1859 = vmatprep.subr.mxu0 0.0
        %1860 = vmatpush1.msra.mxu0 0.0
        %1861 = vmatprep.subr.mxu0 0.0
        %1862 = vmatpush1.msra.mxu0 0.0
        %1863 = vmatprep.subr.mxu0 0.0
        %1864 = vmatpush1.msra.mxu0 0.0
        %1865 = vmatprep.subr.mxu0 0.0
        %1866 = vmatpush1.msra.mxu0 0.0
        %1867 = vmatprep.subr.mxu0 0.0
        %1868 = vmatpush1.msra.mxu0 0.0
        %1869 = vmatprep.subr.mxu0 0.0
        %1870 = vmatpush1.msra.mxu0 0.0
        %1871 = vmatprep.subr.mxu0 0.0
        %1872 = vmatpush1.msra.mxu0 0.0
        %1873 = vmatprep.subr.mxu0 0.0
        %1874 = vmatpush1.msra.mxu0 0.0
        %1875 = vmatprep.mubr.f32.mxu0 0.0
        %v1876 = vand.u32 %v553, 4294901760
        %1877 = vmatmul.mubr.f32.gmra.mrb[0].mxu0 %v1876
        %v1878 = vpop.f32.mrb[0].mxu0
        %v1879 = vadd.f32 %v1792, %v1878
        %v1880 = vpop.f32.mrb[0].mxu0
        %1881 = vdwg.mxu0
        %v1882 = vld [vmem:[#allocation12] sm:$0xff]
        %v1883 = vld [vmem:[#allocation12 + $0x8] sm:$0xff]
        %v1884 = vld [vmem:[#allocation12 + $0x10] sm:$0xff]
        %v1885 = vld [vmem:[#allocation12 + $0x18] sm:$0xff]
        %v1886 = vld [vmem:[#allocation12 + $0x20] sm:$0xff]
        %v1887 = vld [vmem:[#allocation12 + $0x28] sm:$0xff]
        %v1888 = vld [vmem:[#allocation12 + $0x30] sm:$0xff]
        %v1889 = vld [vmem:[#allocation12 + $0x38] sm:$0xff]
        %v1890 = vld [vmem:[#allocation12 + $0x40] sm:$0xff]
        %v1891 = vld [vmem:[#allocation12 + $0x48] sm:$0xff]
        %v1892 = vld [vmem:[#allocation12 + $0x50] sm:$0xff]
        %v1893 = vld [vmem:[#allocation12 + $0x58] sm:$0xff]
        %v1894 = vld [vmem:[#allocation12 + $0x60] sm:$0xff]
        %v1895 = vld [vmem:[#allocation12 + $0x68] sm:$0xff]
        %v1896 = vld [vmem:[#allocation12 + $0x70] sm:$0xff]
        %v1897 = vld [vmem:[#allocation12 + $0x78] sm:$0xff]
        %v1898 = vld [vmem:[%s9] sm:$0x1]
        %v1900 = vlaneseq
        %v1901 = vshrl.u32 %v1900, 7
        %v1902 = vsub.s32 0, %v1901
        %v1903 = vrot.slane %v1898, %v1902
        %1905 = vmatprep.subr.mxu0 0.0
        %v1906 = vand.u32 %v1882, 4294901760
        %1907 = vmatpush1.msra.mxu0 %v1906
        %1908 = vmatprep.subr.mxu0 0.0
        %v1909 = vand.u32 %v1883, 4294901760
        %1910 = vmatpush1.msra.mxu0 %v1909
        %1911 = vmatprep.subr.mxu0 0.0
        %v1912 = vand.u32 %v1884, 4294901760
        %1913 = vmatpush1.msra.mxu0 %v1912
        %1914 = vmatprep.subr.mxu0 0.0
        %v1915 = vand.u32 %v1885, 4294901760
        %1916 = vmatpush1.msra.mxu0 %v1915
        %1917 = vmatprep.subr.mxu0 0.0
        %v1918 = vand.u32 %v1886, 4294901760
        %1919 = vmatpush1.msra.mxu0 %v1918
        %1920 = vmatprep.subr.mxu0 0.0
        %v1921 = vand.u32 %v1887, 4294901760
        %1922 = vmatpush1.msra.mxu0 %v1921
        %1923 = vmatprep.subr.mxu0 0.0
        %v1924 = vand.u32 %v1888, 4294901760
        %1925 = vmatpush1.msra.mxu0 %v1924
        %1926 = vmatprep.subr.mxu0 0.0
        %v1927 = vand.u32 %v1889, 4294901760
        %1928 = vmatpush1.msra.mxu0 %v1927
        %1929 = vmatprep.subr.mxu0 0.0
        %v1930 = vand.u32 %v1890, 4294901760
        %1931 = vmatpush1.msra.mxu0 %v1930
        %1932 = vmatprep.subr.mxu0 0.0
        %v1933 = vand.u32 %v1891, 4294901760
        %1934 = vmatpush1.msra.mxu0 %v1933
        %1935 = vmatprep.subr.mxu0 0.0
        %v1936 = vand.u32 %v1892, 4294901760
        %1937 = vmatpush1.msra.mxu0 %v1936
        %1938 = vmatprep.subr.mxu0 0.0
        %v1939 = vand.u32 %v1893, 4294901760
        %1940 = vmatpush1.msra.mxu0 %v1939
        %1941 = vmatprep.subr.mxu0 0.0
        %v1942 = vand.u32 %v1894, 4294901760
        %1943 = vmatpush1.msra.mxu0 %v1942
        %1944 = vmatprep.subr.mxu0 0.0
        %v1945 = vand.u32 %v1895, 4294901760
        %1946 = vmatpush1.msra.mxu0 %v1945
        %1947 = vmatprep.subr.mxu0 0.0
        %v1948 = vand.u32 %v1896, 4294901760
        %1949 = vmatpush1.msra.mxu0 %v1948
        %1950 = vmatprep.subr.mxu0 0.0
        %v1951 = vand.u32 %v1897, 4294901760
        %1952 = vmatpush1.msra.mxu0 %v1951
        %1953 = vmatprep.subr.mxu0 0.0
        %1954 = vmatpush1.msra.mxu0 0.0
        %1955 = vmatprep.subr.mxu0 0.0
        %1956 = vmatpush1.msra.mxu0 0.0
        %1957 = vmatprep.subr.mxu0 0.0
        %1958 = vmatpush1.msra.mxu0 0.0
        %1959 = vmatprep.subr.mxu0 0.0
        %1960 = vmatpush1.msra.mxu0 0.0
        %1961 = vmatprep.subr.mxu0 0.0
        %1962 = vmatpush1.msra.mxu0 0.0
        %1963 = vmatprep.subr.mxu0 0.0
        %1964 = vmatpush1.msra.mxu0 0.0
        %1965 = vmatprep.subr.mxu0 0.0
        %1966 = vmatpush1.msra.mxu0 0.0
        %1967 = vmatprep.subr.mxu0 0.0
        %1968 = vmatpush1.msra.mxu0 0.0
        %1969 = vmatprep.subr.mxu0 0.0
        %1970 = vmatpush1.msra.mxu0 0.0
        %1971 = vmatprep.subr.mxu0 0.0
        %1972 = vmatpush1.msra.mxu0 0.0
        %1973 = vmatprep.subr.mxu0 0.0
        %1974 = vmatpush1.msra.mxu0 0.0
        %1975 = vmatprep.subr.mxu0 0.0
        %1976 = vmatpush1.msra.mxu0 0.0
        %1977 = vmatprep.subr.mxu0 0.0
        %1978 = vmatpush1.msra.mxu0 0.0
        %1979 = vmatprep.subr.mxu0 0.0
        %1980 = vmatpush1.msra.mxu0 0.0
        %1981 = vmatprep.subr.mxu0 0.0
        %1982 = vmatpush1.msra.mxu0 0.0
        %1983 = vmatprep.subr.mxu0 0.0
        %1984 = vmatpush1.msra.mxu0 0.0
        %1985 = vmatprep.mubr.f32.mxu0 0.0
        %v1986 = vand.u32 %v553, 4294901760
        %v1987 = vsub.f32 %v553, %v1986
        %v1988 = vand.u32 %v1987, 4294901760
        %v1989 = vsub.f32 %v1987, %v1988
        %v1990 = vand.u32 %v1989, 4294901760
        %1991 = vmatmul.mubr.f32.gmra.mrb[0].mxu0 %v1990
        %v1992 = vpop.f32.mrb[0].mxu0
        %v1993 = vadd.f32 %v1903, %v1992
        %v1994 = vpop.f32.mrb[0].mxu0
        %1995 = vdwg.mxu0
        %1996 = vmatprep.subr.mxu0 0.0
        %v1997 = vand.u32 %v1882, 4294901760
        %v1998 = vsub.f32 %v1882, %v1997
        %v1999 = vand.u32 %v1998, 4294901760
        %v2000 = vsub.f32 %v1998, %v1999
        %v2001 = vand.u32 %v2000, 4294901760
        %2002 = vmatpush1.msra.mxu0 %v2001
        %2003 = vmatprep.subr.mxu0 0.0
        %v2004 = vand.u32 %v1883, 4294901760
        %v2005 = vsub.f32 %v1883, %v2004
        %v2006 = vand.u32 %v2005, 4294901760
        %v2007 = vsub.f32 %v2005, %v2006
        %v2008 = vand.u32 %v2007, 4294901760
        %2009 = vmatpush1.msra.mxu0 %v2008
        %2010 = vmatprep.subr.mxu0 0.0
        %v2011 = vand.u32 %v1884, 4294901760
        %v2012 = vsub.f32 %v1884, %v2011
        %v2013 = vand.u32 %v2012, 4294901760
        %v2014 = vsub.f32 %v2012, %v2013
        %v2015 = vand.u32 %v2014, 4294901760
        %2016 = vmatpush1.msra.mxu0 %v2015
        %2017 = vmatprep.subr.mxu0 0.0
        %v2018 = vand.u32 %v1885, 4294901760
        %v2019 = vsub.f32 %v1885, %v2018
        %v2020 = vand.u32 %v2019, 4294901760
        %v2021 = vsub.f32 %v2019, %v2020
        %v2022 = vand.u32 %v2021, 4294901760
        %2023 = vmatpush1.msra.mxu0 %v2022
        %2024 = vmatprep.subr.mxu0 0.0
        %v2025 = vand.u32 %v1886, 4294901760
        %v2026 = vsub.f32 %v1886, %v2025
        %v2027 = vand.u32 %v2026, 4294901760
        %v2028 = vsub.f32 %v2026, %v2027
        %v2029 = vand.u32 %v2028, 4294901760
        %2030 = vmatpush1.msra.mxu0 %v2029
        %2031 = vmatprep.subr.mxu0 0.0
        %v2032 = vand.u32 %v1887, 4294901760
        %v2033 = vsub.f32 %v1887, %v2032
        %v2034 = vand.u32 %v2033, 4294901760
        %v2035 = vsub.f32 %v2033, %v2034
        %v2036 = vand.u32 %v2035, 4294901760
        %2037 = vmatpush1.msra.mxu0 %v2036
        %2038 = vmatprep.subr.mxu0 0.0
        %v2039 = vand.u32 %v1888, 4294901760
        %v2040 = vsub.f32 %v1888, %v2039
        %v2041 = vand.u32 %v2040, 4294901760
        %v2042 = vsub.f32 %v2040, %v2041
        %v2043 = vand.u32 %v2042, 4294901760
        %2044 = vmatpush1.msra.mxu0 %v2043
        %2045 = vmatprep.subr.mxu0 0.0
        %v2046 = vand.u32 %v1889, 4294901760
        %v2047 = vsub.f32 %v1889, %v2046
        %v2048 = vand.u32 %v2047, 4294901760
        %v2049 = vsub.f32 %v2047, %v2048
        %v2050 = vand.u32 %v2049, 4294901760
        %2051 = vmatpush1.msra.mxu0 %v2050
        %2052 = vmatprep.subr.mxu0 0.0
        %v2053 = vand.u32 %v1890, 4294901760
        %v2054 = vsub.f32 %v1890, %v2053
        %v2055 = vand.u32 %v2054, 4294901760
        %v2056 = vsub.f32 %v2054, %v2055
        %v2057 = vand.u32 %v2056, 4294901760
        %2058 = vmatpush1.msra.mxu0 %v2057
        %2059 = vmatprep.subr.mxu0 0.0
        %v2060 = vand.u32 %v1891, 4294901760
        %v2061 = vsub.f32 %v1891, %v2060
        %v2062 = vand.u32 %v2061, 4294901760
        %v2063 = vsub.f32 %v2061, %v2062
        %v2064 = vand.u32 %v2063, 4294901760
        %2065 = vmatpush1.msra.mxu0 %v2064
        %2066 = vmatprep.subr.mxu0 0.0
        %v2067 = vand.u32 %v1892, 4294901760
        %v2068 = vsub.f32 %v1892, %v2067
        %v2069 = vand.u32 %v2068, 4294901760
        %v2070 = vsub.f32 %v2068, %v2069
        %v2071 = vand.u32 %v2070, 4294901760
        %2072 = vmatpush1.msra.mxu0 %v2071
        %2073 = vmatprep.subr.mxu0 0.0
        %v2074 = vand.u32 %v1893, 4294901760
        %v2075 = vsub.f32 %v1893, %v2074
        %v2076 = vand.u32 %v2075, 4294901760
        %v2077 = vsub.f32 %v2075, %v2076
        %v2078 = vand.u32 %v2077, 4294901760
        %2079 = vmatpush1.msra.mxu0 %v2078
        %2080 = vmatprep.subr.mxu0 0.0
        %v2081 = vand.u32 %v1894, 4294901760
        %v2082 = vsub.f32 %v1894, %v2081
        %v2083 = vand.u32 %v2082, 4294901760
        %v2084 = vsub.f32 %v2082, %v2083
        %v2085 = vand.u32 %v2084, 4294901760
        %2086 = vmatpush1.msra.mxu0 %v2085
        %2087 = vmatprep.subr.mxu0 0.0
        %v2088 = vand.u32 %v1895, 4294901760
        %v2089 = vsub.f32 %v1895, %v2088
        %v2090 = vand.u32 %v2089, 4294901760
        %v2091 = vsub.f32 %v2089, %v2090
        %v2092 = vand.u32 %v2091, 4294901760
        %2093 = vmatpush1.msra.mxu0 %v2092
        %2094 = vmatprep.subr.mxu0 0.0
        %v2095 = vand.u32 %v1896, 4294901760
        %v2096 = vsub.f32 %v1896, %v2095
        %v2097 = vand.u32 %v2096, 4294901760
        %v2098 = vsub.f32 %v2096, %v2097
        %v2099 = vand.u32 %v2098, 4294901760
        %2100 = vmatpush1.msra.mxu0 %v2099
        %2101 = vmatprep.subr.mxu0 0.0
        %v2102 = vand.u32 %v1897, 4294901760
        %v2103 = vsub.f32 %v1897, %v2102
        %v2104 = vand.u32 %v2103, 4294901760
        %v2105 = vsub.f32 %v2103, %v2104
        %v2106 = vand.u32 %v2105, 4294901760
        %2107 = vmatpush1.msra.mxu0 %v2106
        %2108 = vmatprep.subr.mxu0 0.0
        %2109 = vmatpush1.msra.mxu0 0.0
        %2110 = vmatprep.subr.mxu0 0.0
        %2111 = vmatpush1.msra.mxu0 0.0
        %2112 = vmatprep.subr.mxu0 0.0
        %2113 = vmatpush1.msra.mxu0 0.0
        %2114 = vmatprep.subr.mxu0 0.0
        %2115 = vmatpush1.msra.mxu0 0.0
        %2116 = vmatprep.subr.mxu0 0.0
        %2117 = vmatpush1.msra.mxu0 0.0
        %2118 = vmatprep.subr.mxu0 0.0
        %2119 = vmatpush1.msra.mxu0 0.0
        %2120 = vmatprep.subr.mxu0 0.0
        %2121 = vmatpush1.msra.mxu0 0.0
        %2122 = vmatprep.subr.mxu0 0.0
        %2123 = vmatpush1.msra.mxu0 0.0
        %2124 = vmatprep.subr.mxu0 0.0
        %2125 = vmatpush1.msra.mxu0 0.0
        %2126 = vmatprep.subr.mxu0 0.0
        %2127 = vmatpush1.msra.mxu0 0.0
        %2128 = vmatprep.subr.mxu0 0.0
        %2129 = vmatpush1.msra.mxu0 0.0
        %2130 = vmatprep.subr.mxu0 0.0
        %2131 = vmatpush1.msra.mxu0 0.0
        %2132 = vmatprep.subr.mxu0 0.0
        %2133 = vmatpush1.msra.mxu0 0.0
        %2134 = vmatprep.subr.mxu0 0.0
        %2135 = vmatpush1.msra.mxu0 0.0
        %2136 = vmatprep.subr.mxu0 0.0
        %2137 = vmatpush1.msra.mxu0 0.0
        %2138 = vmatprep.subr.mxu0 0.0
        %2139 = vmatpush1.msra.mxu0 0.0
        %2140 = vmatprep.mubr.f32.mxu0 0.0
        %v2141 = vand.u32 %v553, 4294901760
        %2142 = vmatmul.mubr.f32.gmra.mrb[0].mxu0 %v2141
        %v2143 = vpop.f32.mrb[0].mxu0
        %v2144 = vadd.f32 %v1993, %v2143
        %v2145 = vpop.f32.mrb[0].mxu0
        %2146 = vdwg.mxu0
        %2147 = vmatprep.subr.mxu0 0.0
        %v2148 = vand.u32 %v1882, 4294901760
        %v2149 = vsub.f32 %v1882, %v2148
        %2150 = vmatpush1.msra.mxu0 %v2149
        %2151 = vmatprep.subr.mxu0 0.0
        %v2152 = vand.u32 %v1883, 4294901760
        %v2153 = vsub.f32 %v1883, %v2152
        %2154 = vmatpush1.msra.mxu0 %v2153
        %2155 = vmatprep.subr.mxu0 0.0
        %v2156 = vand.u32 %v1884, 4294901760
        %v2157 = vsub.f32 %v1884, %v2156
        %2158 = vmatpush1.msra.mxu0 %v2157
        %2159 = vmatprep.subr.mxu0 0.0
        %v2160 = vand.u32 %v1885, 4294901760
        %v2161 = vsub.f32 %v1885, %v2160
        %2162 = vmatpush1.msra.mxu0 %v2161
        %2163 = vmatprep.subr.mxu0 0.0
        %v2164 = vand.u32 %v1886, 4294901760
        %v2165 = vsub.f32 %v1886, %v2164
        %2166 = vmatpush1.msra.mxu0 %v2165
        %2167 = vmatprep.subr.mxu0 0.0
        %v2168 = vand.u32 %v1887, 4294901760
        %v2169 = vsub.f32 %v1887, %v2168
        %2170 = vmatpush1.msra.mxu0 %v2169
        %2171 = vmatprep.subr.mxu0 0.0
        %v2172 = vand.u32 %v1888, 4294901760
        %v2173 = vsub.f32 %v1888, %v2172
        %2174 = vmatpush1.msra.mxu0 %v2173
        %2175 = vmatprep.subr.mxu0 0.0
        %v2176 = vand.u32 %v1889, 4294901760
        %v2177 = vsub.f32 %v1889, %v2176
        %2178 = vmatpush1.msra.mxu0 %v2177
        %2179 = vmatprep.subr.mxu0 0.0
        %v2180 = vand.u32 %v1890, 4294901760
        %v2181 = vsub.f32 %v1890, %v2180
        %2182 = vmatpush1.msra.mxu0 %v2181
        %2183 = vmatprep.subr.mxu0 0.0
        %v2184 = vand.u32 %v1891, 4294901760
        %v2185 = vsub.f32 %v1891, %v2184
        %2186 = vmatpush1.msra.mxu0 %v2185
        %2187 = vmatprep.subr.mxu0 0.0
        %v2188 = vand.u32 %v1892, 4294901760
        %v2189 = vsub.f32 %v1892, %v2188
        %2190 = vmatpush1.msra.mxu0 %v2189
        %2191 = vmatprep.subr.mxu0 0.0
        %v2192 = vand.u32 %v1893, 4294901760
        %v2193 = vsub.f32 %v1893, %v2192
        %2194 = vmatpush1.msra.mxu0 %v2193
        %2195 = vmatprep.subr.mxu0 0.0
        %v2196 = vand.u32 %v1894, 4294901760
        %v2197 = vsub.f32 %v1894, %v2196
        %2198 = vmatpush1.msra.mxu0 %v2197
        %2199 = vmatprep.subr.mxu0 0.0
        %v2200 = vand.u32 %v1895, 4294901760
        %v2201 = vsub.f32 %v1895, %v2200
        %2202 = vmatpush1.msra.mxu0 %v2201
        %2203 = vmatprep.subr.mxu0 0.0
        %v2204 = vand.u32 %v1896, 4294901760
        %v2205 = vsub.f32 %v1896, %v2204
        %2206 = vmatpush1.msra.mxu0 %v2205
        %2207 = vmatprep.subr.mxu0 0.0
        %v2208 = vand.u32 %v1897, 4294901760
        %v2209 = vsub.f32 %v1897, %v2208
        %2210 = vmatpush1.msra.mxu0 %v2209
        %2211 = vmatprep.subr.mxu0 0.0
        %2212 = vmatpush1.msra.mxu0 0.0
        %2213 = vmatprep.subr.mxu0 0.0
        %2214 = vmatpush1.msra.mxu0 0.0
        %2215 = vmatprep.subr.mxu0 0.0
        %2216 = vmatpush1.msra.mxu0 0.0
        %2217 = vmatprep.subr.mxu0 0.0
        %2218 = vmatpush1.msra.mxu0 0.0
        %2219 = vmatprep.subr.mxu0 0.0
        %2220 = vmatpush1.msra.mxu0 0.0
        %2221 = vmatprep.subr.mxu0 0.0
        %2222 = vmatpush1.msra.mxu0 0.0
        %2223 = vmatprep.subr.mxu0 0.0
        %2224 = vmatpush1.msra.mxu0 0.0
        %2225 = vmatprep.subr.mxu0 0.0
        %2226 = vmatpush1.msra.mxu0 0.0
        %2227 = vmatprep.subr.mxu0 0.0
        %2228 = vmatpush1.msra.mxu0 0.0
        %2229 = vmatprep.subr.mxu0 0.0
        %2230 = vmatpush1.msra.mxu0 0.0
        %2231 = vmatprep.subr.mxu0 0.0
        %2232 = vmatpush1.msra.mxu0 0.0
        %2233 = vmatprep.subr.mxu0 0.0
        %2234 = vmatpush1.msra.mxu0 0.0
        %2235 = vmatprep.subr.mxu0 0.0
        %2236 = vmatpush1.msra.mxu0 0.0
        %2237 = vmatprep.subr.mxu0 0.0
        %2238 = vmatpush1.msra.mxu0 0.0
        %2239 = vmatprep.subr.mxu0 0.0
        %2240 = vmatpush1.msra.mxu0 0.0
        %2241 = vmatprep.subr.mxu0 0.0
        %2242 = vmatpush1.msra.mxu0 0.0
        %2243 = vmatprep.mubr.f32.mxu0 0.0
        %v2244 = vand.u32 %v553, 4294901760
        %v2245 = vsub.f32 %v553, %v2244
        %2246 = vmatmul.mubr.f32.gmra.mrb[0].mxu0 %v2245
        %v2247 = vpop.f32.mrb[0].mxu0
        %v2248 = vadd.f32 %v2144, %v2247
        %v2249 = vpop.f32.mrb[0].mxu0
        %2250 = vdwg.mxu0
        %2251 = vmatprep.subr.mxu0 0.0
        %v2252 = vand.u32 %v1882, 4294901760
        %2253 = vmatpush1.msra.mxu0 %v2252
        %2254 = vmatprep.subr.mxu0 0.0
        %v2255 = vand.u32 %v1883, 4294901760
        %2256 = vmatpush1.msra.mxu0 %v2255
        %2257 = vmatprep.subr.mxu0 0.0
        %v2258 = vand.u32 %v1884, 4294901760
        %2259 = vmatpush1.msra.mxu0 %v2258
        %2260 = vmatprep.subr.mxu0 0.0
        %v2261 = vand.u32 %v1885, 4294901760
        %2262 = vmatpush1.msra.mxu0 %v2261
        %2263 = vmatprep.subr.mxu0 0.0
        %v2264 = vand.u32 %v1886, 4294901760
        %2265 = vmatpush1.msra.mxu0 %v2264
        %2266 = vmatprep.subr.mxu0 0.0
        %v2267 = vand.u32 %v1887, 4294901760
        %2268 = vmatpush1.msra.mxu0 %v2267
        %2269 = vmatprep.subr.mxu0 0.0
        %v2270 = vand.u32 %v1888, 4294901760
        %2271 = vmatpush1.msra.mxu0 %v2270
        %2272 = vmatprep.subr.mxu0 0.0
        %v2273 = vand.u32 %v1889, 4294901760
        %2274 = vmatpush1.msra.mxu0 %v2273
        %2275 = vmatprep.subr.mxu0 0.0
        %v2276 = vand.u32 %v1890, 4294901760
        %2277 = vmatpush1.msra.mxu0 %v2276
        %2278 = vmatprep.subr.mxu0 0.0
        %v2279 = vand.u32 %v1891, 4294901760
        %2280 = vmatpush1.msra.mxu0 %v2279
        %2281 = vmatprep.subr.mxu0 0.0
        %v2282 = vand.u32 %v1892, 4294901760
        %2283 = vmatpush1.msra.mxu0 %v2282
        %2284 = vmatprep.subr.mxu0 0.0
        %v2285 = vand.u32 %v1893, 4294901760
        %2286 = vmatpush1.msra.mxu0 %v2285
        %2287 = vmatprep.subr.mxu0 0.0
        %v2288 = vand.u32 %v1894, 4294901760
        %2289 = vmatpush1.msra.mxu0 %v2288
        %2290 = vmatprep.subr.mxu0 0.0
        %v2291 = vand.u32 %v1895, 4294901760
        %2292 = vmatpush1.msra.mxu0 %v2291
        %2293 = vmatprep.subr.mxu0 0.0
        %v2294 = vand.u32 %v1896, 4294901760
        %2295 = vmatpush1.msra.mxu0 %v2294
        %2296 = vmatprep.subr.mxu0 0.0
        %v2297 = vand.u32 %v1897, 4294901760
        %2298 = vmatpush1.msra.mxu0 %v2297
        %2299 = vmatprep.subr.mxu0 0.0
        %2300 = vmatpush1.msra.mxu0 0.0
        %2301 = vmatprep.subr.mxu0 0.0
        %2302 = vmatpush1.msra.mxu0 0.0
        %2303 = vmatprep.subr.mxu0 0.0
        %2304 = vmatpush1.msra.mxu0 0.0
        %2305 = vmatprep.subr.mxu0 0.0
        %2306 = vmatpush1.msra.mxu0 0.0
        %2307 = vmatprep.subr.mxu0 0.0
        %2308 = vmatpush1.msra.mxu0 0.0
        %2309 = vmatprep.subr.mxu0 0.0
        %2310 = vmatpush1.msra.mxu0 0.0
        %2311 = vmatprep.subr.mxu0 0.0
        %2312 = vmatpush1.msra.mxu0 0.0
        %2313 = vmatprep.subr.mxu0 0.0
        %2314 = vmatpush1.msra.mxu0 0.0
        %2315 = vmatprep.subr.mxu0 0.0
        %2316 = vmatpush1.msra.mxu0 0.0
        %2317 = vmatprep.subr.mxu0 0.0
        %2318 = vmatpush1.msra.mxu0 0.0
        %2319 = vmatprep.subr.mxu0 0.0
        %2320 = vmatpush1.msra.mxu0 0.0
        %2321 = vmatprep.subr.mxu0 0.0
        %2322 = vmatpush1.msra.mxu0 0.0
        %2323 = vmatprep.subr.mxu0 0.0
        %2324 = vmatpush1.msra.mxu0 0.0
        %2325 = vmatprep.subr.mxu0 0.0
        %2326 = vmatpush1.msra.mxu0 0.0
        %2327 = vmatprep.subr.mxu0 0.0
        %2328 = vmatpush1.msra.mxu0 0.0
        %2329 = vmatprep.subr.mxu0 0.0
        %2330 = vmatpush1.msra.mxu0 0.0
        %2331 = vmatprep.mubr.f32.mxu0 0.0
        %v2332 = vand.u32 %v553, 4294901760
        %v2333 = vsub.f32 %v553, %v2332
        %v2334 = vand.u32 %v2333, 4294901760
        %2335 = vmatmul.mubr.f32.gmra.mrb[0].mxu0 %v2334
        %v2336 = vpop.f32.mrb[0].mxu0
        %v2337 = vadd.f32 %v2248, %v2336
        %v2338 = vpop.f32.mrb[0].mxu0
        %2339 = vdwg.mxu0
        %2340 = vmatprep.subr.mxu0 0.0
        %v2341 = vand.u32 %v1882, 4294901760
        %v2342 = vsub.f32 %v1882, %v2341
        %v2343 = vand.u32 %v2342, 4294901760
        %2344 = vmatpush1.msra.mxu0 %v2343
        %2345 = vmatprep.subr.mxu0 0.0
        %v2346 = vand.u32 %v1883, 4294901760
        %v2347 = vsub.f32 %v1883, %v2346
        %v2348 = vand.u32 %v2347, 4294901760
        %2349 = vmatpush1.msra.mxu0 %v2348
        %2350 = vmatprep.subr.mxu0 0.0
        %v2351 = vand.u32 %v1884, 4294901760
        %v2352 = vsub.f32 %v1884, %v2351
        %v2353 = vand.u32 %v2352, 4294901760
        %2354 = vmatpush1.msra.mxu0 %v2353
        %2355 = vmatprep.subr.mxu0 0.0
        %v2356 = vand.u32 %v1885, 4294901760
        %v2357 = vsub.f32 %v1885, %v2356
        %v2358 = vand.u32 %v2357, 4294901760
        %2359 = vmatpush1.msra.mxu0 %v2358
        %2360 = vmatprep.subr.mxu0 0.0
        %v2361 = vand.u32 %v1886, 4294901760
        %v2362 = vsub.f32 %v1886, %v2361
        %v2363 = vand.u32 %v2362, 4294901760
        %2364 = vmatpush1.msra.mxu0 %v2363
        %2365 = vmatprep.subr.mxu0 0.0
        %v2366 = vand.u32 %v1887, 4294901760
        %v2367 = vsub.f32 %v1887, %v2366
        %v2368 = vand.u32 %v2367, 4294901760
        %2369 = vmatpush1.msra.mxu0 %v2368
        %2370 = vmatprep.subr.mxu0 0.0
        %v2371 = vand.u32 %v1888, 4294901760
        %v2372 = vsub.f32 %v1888, %v2371
        %v2373 = vand.u32 %v2372, 4294901760
        %2374 = vmatpush1.msra.mxu0 %v2373
        %2375 = vmatprep.subr.mxu0 0.0
        %v2376 = vand.u32 %v1889, 4294901760
        %v2377 = vsub.f32 %v1889, %v2376
        %v2378 = vand.u32 %v2377, 4294901760
        %2379 = vmatpush1.msra.mxu0 %v2378
        %2380 = vmatprep.subr.mxu0 0.0
        %v2381 = vand.u32 %v1890, 4294901760
        %v2382 = vsub.f32 %v1890, %v2381
        %v2383 = vand.u32 %v2382, 4294901760
        %2384 = vmatpush1.msra.mxu0 %v2383
        %2385 = vmatprep.subr.mxu0 0.0
        %v2386 = vand.u32 %v1891, 4294901760
        %v2387 = vsub.f32 %v1891, %v2386
        %v2388 = vand.u32 %v2387, 4294901760
        %2389 = vmatpush1.msra.mxu0 %v2388
        %2390 = vmatprep.subr.mxu0 0.0
        %v2391 = vand.u32 %v1892, 4294901760
        %v2392 = vsub.f32 %v1892, %v2391
        %v2393 = vand.u32 %v2392, 4294901760
        %2394 = vmatpush1.msra.mxu0 %v2393
        %2395 = vmatprep.subr.mxu0 0.0
        %v2396 = vand.u32 %v1893, 4294901760
        %v2397 = vsub.f32 %v1893, %v2396
        %v2398 = vand.u32 %v2397, 4294901760
        %2399 = vmatpush1.msra.mxu0 %v2398
        %2400 = vmatprep.subr.mxu0 0.0
        %v2401 = vand.u32 %v1894, 4294901760
        %v2402 = vsub.f32 %v1894, %v2401
        %v2403 = vand.u32 %v2402, 4294901760
        %2404 = vmatpush1.msra.mxu0 %v2403
        %2405 = vmatprep.subr.mxu0 0.0
        %v2406 = vand.u32 %v1895, 4294901760
        %v2407 = vsub.f32 %v1895, %v2406
        %v2408 = vand.u32 %v2407, 4294901760
        %2409 = vmatpush1.msra.mxu0 %v2408
        %2410 = vmatprep.subr.mxu0 0.0
        %v2411 = vand.u32 %v1896, 4294901760
        %v2412 = vsub.f32 %v1896, %v2411
        %v2413 = vand.u32 %v2412, 4294901760
        %2414 = vmatpush1.msra.mxu0 %v2413
        %2415 = vmatprep.subr.mxu0 0.0
        %v2416 = vand.u32 %v1897, 4294901760
        %v2417 = vsub.f32 %v1897, %v2416
        %v2418 = vand.u32 %v2417, 4294901760
        %2419 = vmatpush1.msra.mxu0 %v2418
        %2420 = vmatprep.subr.mxu0 0.0
        %2421 = vmatpush1.msra.mxu0 0.0
        %2422 = vmatprep.subr.mxu0 0.0
        %2423 = vmatpush1.msra.mxu0 0.0
        %2424 = vmatprep.subr.mxu0 0.0
        %2425 = vmatpush1.msra.mxu0 0.0
        %2426 = vmatprep.subr.mxu0 0.0
        %2427 = vmatpush1.msra.mxu0 0.0
        %2428 = vmatprep.subr.mxu0 0.0
        %2429 = vmatpush1.msra.mxu0 0.0
        %2430 = vmatprep.subr.mxu0 0.0
        %2431 = vmatpush1.msra.mxu0 0.0
        %2432 = vmatprep.subr.mxu0 0.0
        %2433 = vmatpush1.msra.mxu0 0.0
        %2434 = vmatprep.subr.mxu0 0.0
        %2435 = vmatpush1.msra.mxu0 0.0
        %2436 = vmatprep.subr.mxu0 0.0
        %2437 = vmatpush1.msra.mxu0 0.0
        %2438 = vmatprep.subr.mxu0 0.0
        %2439 = vmatpush1.msra.mxu0 0.0
        %2440 = vmatprep.subr.mxu0 0.0
        %2441 = vmatpush1.msra.mxu0 0.0
        %2442 = vmatprep.subr.mxu0 0.0
        %2443 = vmatpush1.msra.mxu0 0.0
        %2444 = vmatprep.subr.mxu0 0.0
        %2445 = vmatpush1.msra.mxu0 0.0
        %2446 = vmatprep.subr.mxu0 0.0
        %2447 = vmatpush1.msra.mxu0 0.0
        %2448 = vmatprep.subr.mxu0 0.0
        %2449 = vmatpush1.msra.mxu0 0.0
        %2450 = vmatprep.subr.mxu0 0.0
        %2451 = vmatpush1.msra.mxu0 0.0
        %2452 = vmatprep.mubr.f32.mxu0 0.0
        %v2453 = vand.u32 %v553, 4294901760
        %2454 = vmatmul.mubr.f32.gmra.mrb[0].mxu0 %v2453
        %v2455 = vpop.f32.mrb[0].mxu0
        %v2456 = vadd.f32 %v2337, %v2455
        %v2457 = vpop.f32.mrb[0].mxu0
        %2458 = vdwg.mxu0
        %2459 = vmatprep.subr.mxu0 0.0
        %v2460 = vand.u32 %v1882, 4294901760
        %2461 = vmatpush1.msra.mxu0 %v2460
        %2462 = vmatprep.subr.mxu0 0.0
        %v2463 = vand.u32 %v1883, 4294901760
        %2464 = vmatpush1.msra.mxu0 %v2463
        %2465 = vmatprep.subr.mxu0 0.0
        %v2466 = vand.u32 %v1884, 4294901760
        %2467 = vmatpush1.msra.mxu0 %v2466
        %2468 = vmatprep.subr.mxu0 0.0
        %v2469 = vand.u32 %v1885, 4294901760
        %2470 = vmatpush1.msra.mxu0 %v2469
        %2471 = vmatprep.subr.mxu0 0.0
        %v2472 = vand.u32 %v1886, 4294901760
        %2473 = vmatpush1.msra.mxu0 %v2472
        %2474 = vmatprep.subr.mxu0 0.0
        %v2475 = vand.u32 %v1887, 4294901760
        %2476 = vmatpush1.msra.mxu0 %v2475
        %2477 = vmatprep.subr.mxu0 0.0
        %v2478 = vand.u32 %v1888, 4294901760
        %2479 = vmatpush1.msra.mxu0 %v2478
        %2480 = vmatprep.subr.mxu0 0.0
        %v2481 = vand.u32 %v1889, 4294901760
        %2482 = vmatpush1.msra.mxu0 %v2481
        %2483 = vmatprep.subr.mxu0 0.0
        %v2484 = vand.u32 %v1890, 4294901760
        %2485 = vmatpush1.msra.mxu0 %v2484
        %2486 = vmatprep.subr.mxu0 0.0
        %v2487 = vand.u32 %v1891, 4294901760
        %2488 = vmatpush1.msra.mxu0 %v2487
        %2489 = vmatprep.subr.mxu0 0.0
        %v2490 = vand.u32 %v1892, 4294901760
        %2491 = vmatpush1.msra.mxu0 %v2490
        %2492 = vmatprep.subr.mxu0 0.0
        %v2493 = vand.u32 %v1893, 4294901760
        %2494 = vmatpush1.msra.mxu0 %v2493
        %2495 = vmatprep.subr.mxu0 0.0
        %v2496 = vand.u32 %v1894, 4294901760
        %2497 = vmatpush1.msra.mxu0 %v2496
        %2498 = vmatprep.subr.mxu0 0.0
        %v2499 = vand.u32 %v1895, 4294901760
        %2500 = vmatpush1.msra.mxu0 %v2499
        %2501 = vmatprep.subr.mxu0 0.0
        %v2502 = vand.u32 %v1896, 4294901760
        %2503 = vmatpush1.msra.mxu0 %v2502
        %2504 = vmatprep.subr.mxu0 0.0
        %v2505 = vand.u32 %v1897, 4294901760
        %2506 = vmatpush1.msra.mxu0 %v2505
        %2507 = vmatprep.subr.mxu0 0.0
        %2508 = vmatpush1.msra.mxu0 0.0
        %2509 = vmatprep.subr.mxu0 0.0
        %2510 = vmatpush1.msra.mxu0 0.0
        %2511 = vmatprep.subr.mxu0 0.0
        %2512 = vmatpush1.msra.mxu0 0.0
        %2513 = vmatprep.subr.mxu0 0.0
        %2514 = vmatpush1.msra.mxu0 0.0
        %2515 = vmatprep.subr.mxu0 0.0
        %2516 = vmatpush1.msra.mxu0 0.0
        %2517 = vmatprep.subr.mxu0 0.0
        %2518 = vmatpush1.msra.mxu0 0.0
        %2519 = vmatprep.subr.mxu0 0.0
        %2520 = vmatpush1.msra.mxu0 0.0
        %2521 = vmatprep.subr.mxu0 0.0
        %2522 = vmatpush1.msra.mxu0 0.0
        %2523 = vmatprep.subr.mxu0 0.0
        %2524 = vmatpush1.msra.mxu0 0.0
        %2525 = vmatprep.subr.mxu0 0.0
        %2526 = vmatpush1.msra.mxu0 0.0
        %2527 = vmatprep.subr.mxu0 0.0
        %2528 = vmatpush1.msra.mxu0 0.0
        %2529 = vmatprep.subr.mxu0 0.0
        %2530 = vmatpush1.msra.mxu0 0.0
        %2531 = vmatprep.subr.mxu0 0.0
        %2532 = vmatpush1.msra.mxu0 0.0
        %2533 = vmatprep.subr.mxu0 0.0
        %2534 = vmatpush1.msra.mxu0 0.0
        %2535 = vmatprep.subr.mxu0 0.0
        %2536 = vmatpush1.msra.mxu0 0.0
        %2537 = vmatprep.subr.mxu0 0.0
        %2538 = vmatpush1.msra.mxu0 0.0
        %2539 = vmatprep.mubr.f32.mxu0 0.0
        %v2540 = vand.u32 %v553, 4294901760
        %2541 = vmatmul.mubr.f32.gmra.mrb[0].mxu0 %v2540
        %v2542 = vpop.f32.mrb[0].mxu0
        %v2543 = vadd.f32 %v2456, %v2542
        %v2544 = vpop.f32.mrb[0].mxu0
        %2545 = vdwg.mxu0
        %v2546 = vld [vmem:[%s464] sm:$0xff]
        %vm2547 = vcmp.eq.f32.partialorder %v2546, 0.0
        %v2548 = vsel %vm2547, -1e+30, 0.0
        %vm2549 = vcmask 261120
        %v2551 = vsel %vm2549, %v1215, 0
        %v2554 = vsel %vm2549, %v1879, 0
        %2556 = vmatprep.subr.mxu0 0.0
        %v2557 = vand.u32 %v2554, 4294901760
        %2558 = vmatpush1.xpose.msra.mxu0 %v2557
        %2559 = vmatprep.subr.mxu0 0.0
        %2560 = vmatpush1.xpose.msra.mxu0 0.0
        %2561 = vmatprep.subr.mxu0 0.0
        %2562 = vmatpush1.xpose.msra.mxu0 0.0
        %2563 = vmatprep.subr.mxu0 0.0
        %2564 = vmatpush1.xpose.msra.mxu0 0.0
        %2565 = vmatprep.subr.mxu0 0.0
        %2566 = vmatpush1.xpose.msra.mxu0 0.0
        %2567 = vmatprep.subr.mxu0 0.0
        %2568 = vmatpush1.xpose.msra.mxu0 0.0
        %2569 = vmatprep.subr.mxu0 0.0
        %2570 = vmatpush1.xpose.msra.mxu0 0.0
        %2571 = vmatprep.subr.mxu0 0.0
        %2572 = vmatpush1.xpose.msra.mxu0 0.0
        %2573 = vmatprep.subr.mxu0 0.0
        %2574 = vmatpush1.xpose.msra.mxu0 0.0
        %2575 = vmatprep.subr.mxu0 0.0
        %2576 = vmatpush1.xpose.msra.mxu0 0.0
        %2577 = vmatprep.subr.mxu0 0.0
        %2578 = vmatpush1.xpose.msra.mxu0 0.0
        %2579 = vmatprep.subr.mxu0 0.0
        %2580 = vmatpush1.xpose.msra.mxu0 0.0
        %2581 = vmatprep.subr.mxu0 0.0
        %2582 = vmatpush1.xpose.msra.mxu0 0.0
        %2583 = vmatprep.subr.mxu0 0.0
        %2584 = vmatpush1.xpose.msra.mxu0 0.0
        %2585 = vmatprep.subr.mxu0 0.0
        %2586 = vmatpush1.xpose.msra.mxu0 0.0
        %2587 = vmatprep.subr.mxu0 0.0
        %2588 = vmatpush1.xpose.msra.mxu0 0.0
        %2589 = vmatprep.subr.mxu0 0.0
        %2590 = vmatpush1.xpose.msra.mxu0 0.0
        %2591 = vmatprep.subr.mxu0 0.0
        %2592 = vmatpush1.xpose.msra.mxu0 0.0
        %2593 = vmatprep.subr.mxu0 0.0
        %2594 = vmatpush1.xpose.msra.mxu0 0.0
        %2595 = vmatprep.subr.mxu0 0.0
        %2596 = vmatpush1.xpose.msra.mxu0 0.0
        %2597 = vmatprep.subr.mxu0 0.0
        %2598 = vmatpush1.xpose.msra.mxu0 0.0
        %2599 = vmatprep.subr.mxu0 0.0
        %2600 = vmatpush1.xpose.msra.mxu0 0.0
        %2601 = vmatprep.subr.mxu0 0.0
        %2602 = vmatpush1.xpose.msra.mxu0 0.0
        %2603 = vmatprep.subr.mxu0 0.0
        %2604 = vmatpush1.xpose.msra.mxu0 0.0
        %2605 = vmatprep.subr.mxu0 0.0
        %2606 = vmatpush1.xpose.msra.mxu0 0.0
        %2607 = vmatprep.subr.mxu0 0.0
        %2608 = vmatpush1.xpose.msra.mxu0 0.0
        %2609 = vmatprep.subr.mxu0 0.0
        %2610 = vmatpush1.xpose.msra.mxu0 0.0
        %2611 = vmatprep.subr.mxu0 0.0
        %2612 = vmatpush1.xpose.msra.mxu0 0.0
        %2613 = vmatprep.subr.mxu0 0.0
        %2614 = vmatpush1.xpose.msra.mxu0 0.0
        %2615 = vmatprep.subr.mxu0 0.0
        %2616 = vmatpush1.xpose.msra.mxu0 0.0
        %2617 = vmatprep.subr.mxu0 0.0
        %2618 = vmatpush1.xpose.msra.mxu0 0.0
        %2619 = vmatprep.subr.mxu0 0.0
        %2620 = vmatpush1.xpose.msra.mxu0 0.0
        %2621 = vmatprep.mubr.f32.mxu0 0.0
        %v2622 = vand.u32 %v2551, 4294901760
        %v2623 = vsub.f32 %v2551, %v2622
        %v2624 = vand.u32 %v2623, 4294901760
        %v2625 = vsub.f32 %v2623, %v2624
        %v2626 = vand.u32 %v2625, 4294901760
        %2627 = vmatmul.mubr.f32.gmra.mrb[0].mxu0 %v2626
        %v2628 = vpop.f32.mrb[0].mxu0
        %v2629 = vadd.f32 0.0, %v2628
        %v2630 = vpop.f32.mrb[0].mxu0
        %2631 = vdwg.mxu0
        %2632 = vmatprep.subr.mxu0 0.0
        %v2633 = vand.u32 %v2554, 4294901760
        %v2634 = vsub.f32 %v2554, %v2633
        %v2635 = vand.u32 %v2634, 4294901760
        %v2636 = vsub.f32 %v2634, %v2635
        %v2637 = vand.u32 %v2636, 4294901760
        %2638 = vmatpush1.xpose.msra.mxu0 %v2637
        %2639 = vmatprep.subr.mxu0 0.0
        %2640 = vmatpush1.xpose.msra.mxu0 0.0
        %2641 = vmatprep.subr.mxu0 0.0
        %2642 = vmatpush1.xpose.msra.mxu0 0.0
        %2643 = vmatprep.subr.mxu0 0.0
        %2644 = vmatpush1.xpose.msra.mxu0 0.0
        %2645 = vmatprep.subr.mxu0 0.0
        %2646 = vmatpush1.xpose.msra.mxu0 0.0
        %2647 = vmatprep.subr.mxu0 0.0
        %2648 = vmatpush1.xpose.msra.mxu0 0.0
        %2649 = vmatprep.subr.mxu0 0.0
        %2650 = vmatpush1.xpose.msra.mxu0 0.0
        %2651 = vmatprep.subr.mxu0 0.0
        %2652 = vmatpush1.xpose.msra.mxu0 0.0
        %2653 = vmatprep.subr.mxu0 0.0
        %2654 = vmatpush1.xpose.msra.mxu0 0.0
        %2655 = vmatprep.subr.mxu0 0.0
        %2656 = vmatpush1.xpose.msra.mxu0 0.0
        %2657 = vmatprep.subr.mxu0 0.0
        %2658 = vmatpush1.xpose.msra.mxu0 0.0
        %2659 = vmatprep.subr.mxu0 0.0
        %2660 = vmatpush1.xpose.msra.mxu0 0.0
        %2661 = vmatprep.subr.mxu0 0.0
        %2662 = vmatpush1.xpose.msra.mxu0 0.0
        %2663 = vmatprep.subr.mxu0 0.0
        %2664 = vmatpush1.xpose.msra.mxu0 0.0
        %2665 = vmatprep.subr.mxu0 0.0
        %2666 = vmatpush1.xpose.msra.mxu0 0.0
        %2667 = vmatprep.subr.mxu0 0.0
        %2668 = vmatpush1.xpose.msra.mxu0 0.0
        %2669 = vmatprep.subr.mxu0 0.0
        %2670 = vmatpush1.xpose.msra.mxu0 0.0
        %2671 = vmatprep.subr.mxu0 0.0
        %2672 = vmatpush1.xpose.msra.mxu0 0.0
        %2673 = vmatprep.subr.mxu0 0.0
        %2674 = vmatpush1.xpose.msra.mxu0 0.0
        %2675 = vmatprep.subr.mxu0 0.0
        %2676 = vmatpush1.xpose.msra.mxu0 0.0
        %2677 = vmatprep.subr.mxu0 0.0
        %2678 = vmatpush1.xpose.msra.mxu0 0.0
        %2679 = vmatprep.subr.mxu0 0.0
        %2680 = vmatpush1.xpose.msra.mxu0 0.0
        %2681 = vmatprep.subr.mxu0 0.0
        %2682 = vmatpush1.xpose.msra.mxu0 0.0
        %2683 = vmatprep.subr.mxu0 0.0
        %2684 = vmatpush1.xpose.msra.mxu0 0.0
        %2685 = vmatprep.subr.mxu0 0.0
        %2686 = vmatpush1.xpose.msra.mxu0 0.0
        %2687 = vmatprep.subr.mxu0 0.0
        %2688 = vmatpush1.xpose.msra.mxu0 0.0
        %2689 = vmatprep.subr.mxu0 0.0
        %2690 = vmatpush1.xpose.msra.mxu0 0.0
        %2691 = vmatprep.subr.mxu0 0.0
        %2692 = vmatpush1.xpose.msra.mxu0 0.0
        %2693 = vmatprep.subr.mxu0 0.0
        %2694 = vmatpush1.xpose.msra.mxu0 0.0
        %2695 = vmatprep.subr.mxu0 0.0
        %2696 = vmatpush1.xpose.msra.mxu0 0.0
        %2697 = vmatprep.subr.mxu0 0.0
        %2698 = vmatpush1.xpose.msra.mxu0 0.0
        %2699 = vmatprep.subr.mxu0 0.0
        %2700 = vmatpush1.xpose.msra.mxu0 0.0
        %2701 = vmatprep.mubr.f32.mxu0 0.0
        %v2702 = vand.u32 %v2551, 4294901760
        %2703 = vmatmul.mubr.f32.gmra.mrb[0].mxu0 %v2702
        %v2704 = vpop.f32.mrb[0].mxu0
        %v2705 = vadd.f32 %v2629, %v2704
        %v2706 = vpop.f32.mrb[0].mxu0
        %2707 = vdwg.mxu0
        %2708 = vmatprep.subr.mxu0 0.0
        %v2709 = vand.u32 %v2554, 4294901760
        %v2710 = vsub.f32 %v2554, %v2709
        %2711 = vmatpush1.xpose.msra.mxu0 %v2710
        %2712 = vmatprep.subr.mxu0 0.0
        %2713 = vmatpush1.xpose.msra.mxu0 0.0
        %2714 = vmatprep.subr.mxu0 0.0
        %2715 = vmatpush1.xpose.msra.mxu0 0.0
        %2716 = vmatprep.subr.mxu0 0.0
        %2717 = vmatpush1.xpose.msra.mxu0 0.0
        %2718 = vmatprep.subr.mxu0 0.0
        %2719 = vmatpush1.xpose.msra.mxu0 0.0
        %2720 = vmatprep.subr.mxu0 0.0
        %2721 = vmatpush1.xpose.msra.mxu0 0.0
        %2722 = vmatprep.subr.mxu0 0.0
        %2723 = vmatpush1.xpose.msra.mxu0 0.0
        %2724 = vmatprep.subr.mxu0 0.0
        %2725 = vmatpush1.xpose.msra.mxu0 0.0
        %2726 = vmatprep.subr.mxu0 0.0
        %2727 = vmatpush1.xpose.msra.mxu0 0.0
        %2728 = vmatprep.subr.mxu0 0.0
        %2729 = vmatpush1.xpose.msra.mxu0 0.0
        %2730 = vmatprep.subr.mxu0 0.0
        %2731 = vmatpush1.xpose.msra.mxu0 0.0
        %2732 = vmatprep.subr.mxu0 0.0
        %2733 = vmatpush1.xpose.msra.mxu0 0.0
        %2734 = vmatprep.subr.mxu0 0.0
        %2735 = vmatpush1.xpose.msra.mxu0 0.0
        %2736 = vmatprep.subr.mxu0 0.0
        %2737 = vmatpush1.xpose.msra.mxu0 0.0
        %2738 = vmatprep.subr.mxu0 0.0
        %2739 = vmatpush1.xpose.msra.mxu0 0.0
        %2740 = vmatprep.subr.mxu0 0.0
        %2741 = vmatpush1.xpose.msra.mxu0 0.0
        %2742 = vmatprep.subr.mxu0 0.0
        %2743 = vmatpush1.xpose.msra.mxu0 0.0
        %2744 = vmatprep.subr.mxu0 0.0
        %2745 = vmatpush1.xpose.msra.mxu0 0.0
        %2746 = vmatprep.subr.mxu0 0.0
        %2747 = vmatpush1.xpose.msra.mxu0 0.0
        %2748 = vmatprep.subr.mxu0 0.0
        %2749 = vmatpush1.xpose.msra.mxu0 0.0
        %2750 = vmatprep.subr.mxu0 0.0
        %2751 = vmatpush1.xpose.msra.mxu0 0.0
        %2752 = vmatprep.subr.mxu0 0.0
        %2753 = vmatpush1.xpose.msra.mxu0 0.0
        %2754 = vmatprep.subr.mxu0 0.0
        %2755 = vmatpush1.xpose.msra.mxu0 0.0
        %2756 = vmatprep.subr.mxu0 0.0
        %2757 = vmatpush1.xpose.msra.mxu0 0.0
        %2758 = vmatprep.subr.mxu0 0.0
        %2759 = vmatpush1.xpose.msra.mxu0 0.0
        %2760 = vmatprep.subr.mxu0 0.0
        %2761 = vmatpush1.xpose.msra.mxu0 0.0
        %2762 = vmatprep.subr.mxu0 0.0
        %2763 = vmatpush1.xpose.msra.mxu0 0.0
        %2764 = vmatprep.subr.mxu0 0.0
        %2765 = vmatpush1.xpose.msra.mxu0 0.0
        %2766 = vmatprep.subr.mxu0 0.0
        %2767 = vmatpush1.xpose.msra.mxu0 0.0
        %2768 = vmatprep.subr.mxu0 0.0
        %2769 = vmatpush1.xpose.msra.mxu0 0.0
        %2770 = vmatprep.subr.mxu0 0.0
        %2771 = vmatpush1.xpose.msra.mxu0 0.0
        %2772 = vmatprep.subr.mxu0 0.0
        %2773 = vmatpush1.xpose.msra.mxu0 0.0
        %2774 = vmatprep.mubr.f32.mxu0 0.0
        %v2775 = vand.u32 %v2551, 4294901760
        %v2776 = vsub.f32 %v2551, %v2775
        %2777 = vmatmul.mubr.f32.gmra.mrb[0].mxu0 %v2776
        %v2778 = vpop.f32.mrb[0].mxu0
        %v2779 = vadd.f32 %v2705, %v2778
        %v2780 = vpop.f32.mrb[0].mxu0
        %2781 = vdwg.mxu0
        %2782 = vmatprep.subr.mxu0 0.0
        %v2783 = vand.u32 %v2554, 4294901760
        %2784 = vmatpush1.xpose.msra.mxu0 %v2783
        %2785 = vmatprep.subr.mxu0 0.0
        %2786 = vmatpush1.xpose.msra.mxu0 0.0
        %2787 = vmatprep.subr.mxu0 0.0
        %2788 = vmatpush1.xpose.msra.mxu0 0.0
        %2789 = vmatprep.subr.mxu0 0.0
        %2790 = vmatpush1.xpose.msra.mxu0 0.0
        %2791 = vmatprep.subr.mxu0 0.0
        %2792 = vmatpush1.xpose.msra.mxu0 0.0
        %2793 = vmatprep.subr.mxu0 0.0
        %2794 = vmatpush1.xpose.msra.mxu0 0.0
        %2795 = vmatprep.subr.mxu0 0.0
        %2796 = vmatpush1.xpose.msra.mxu0 0.0
        %2797 = vmatprep.subr.mxu0 0.0
        %2798 = vmatpush1.xpose.msra.mxu0 0.0
        %2799 = vmatprep.subr.mxu0 0.0
        %2800 = vmatpush1.xpose.msra.mxu0 0.0
        %2801 = vmatprep.subr.mxu0 0.0
        %2802 = vmatpush1.xpose.msra.mxu0 0.0
        %2803 = vmatprep.subr.mxu0 0.0
        %2804 = vmatpush1.xpose.msra.mxu0 0.0
        %2805 = vmatprep.subr.mxu0 0.0
        %2806 = vmatpush1.xpose.msra.mxu0 0.0
        %2807 = vmatprep.subr.mxu0 0.0
        %2808 = vmatpush1.xpose.msra.mxu0 0.0
        %2809 = vmatprep.subr.mxu0 0.0
        %2810 = vmatpush1.xpose.msra.mxu0 0.0
        %2811 = vmatprep.subr.mxu0 0.0
        %2812 = vmatpush1.xpose.msra.mxu0 0.0
        %2813 = vmatprep.subr.mxu0 0.0
        %2814 = vmatpush1.xpose.msra.mxu0 0.0
        %2815 = vmatprep.subr.mxu0 0.0
        %2816 = vmatpush1.xpose.msra.mxu0 0.0
        %2817 = vmatprep.subr.mxu0 0.0
        %2818 = vmatpush1.xpose.msra.mxu0 0.0
        %2819 = vmatprep.subr.mxu0 0.0
        %2820 = vmatpush1.xpose.msra.mxu0 0.0
        %2821 = vmatprep.subr.mxu0 0.0
        %2822 = vmatpush1.xpose.msra.mxu0 0.0
        %2823 = vmatprep.subr.mxu0 0.0
        %2824 = vmatpush1.xpose.msra.mxu0 0.0
        %2825 = vmatprep.subr.mxu0 0.0
        %2826 = vmatpush1.xpose.msra.mxu0 0.0
        %2827 = vmatprep.subr.mxu0 0.0
        %2828 = vmatpush1.xpose.msra.mxu0 0.0
        %2829 = vmatprep.subr.mxu0 0.0
        %2830 = vmatpush1.xpose.msra.mxu0 0.0
        %2831 = vmatprep.subr.mxu0 0.0
        %2832 = vmatpush1.xpose.msra.mxu0 0.0
        %2833 = vmatprep.subr.mxu0 0.0
        %2834 = vmatpush1.xpose.msra.mxu0 0.0
        %2835 = vmatprep.subr.mxu0 0.0
        %2836 = vmatpush1.xpose.msra.mxu0 0.0
        %2837 = vmatprep.subr.mxu0 0.0
        %2838 = vmatpush1.xpose.msra.mxu0 0.0
        %2839 = vmatprep.subr.mxu0 0.0
        %2840 = vmatpush1.xpose.msra.mxu0 0.0
        %2841 = vmatprep.subr.mxu0 0.0
        %2842 = vmatpush1.xpose.msra.mxu0 0.0
        %2843 = vmatprep.subr.mxu0 0.0
        %2844 = vmatpush1.xpose.msra.mxu0 0.0
        %2845 = vmatprep.subr.mxu0 0.0
        %2846 = vmatpush1.xpose.msra.mxu0 0.0
        %2847 = vmatprep.mubr.f32.mxu0 0.0
        %v2848 = vand.u32 %v2551, 4294901760
        %v2849 = vsub.f32 %v2551, %v2848
        %v2850 = vand.u32 %v2849, 4294901760
        %2851 = vmatmul.mubr.f32.gmra.mrb[0].mxu0 %v2850
        %v2852 = vpop.f32.mrb[0].mxu0
        %v2853 = vadd.f32 %v2779, %v2852
        %v2854 = vpop.f32.mrb[0].mxu0
        %2855 = vdwg.mxu0
        %2856 = vmatprep.subr.mxu0 0.0
        %v2857 = vand.u32 %v2554, 4294901760
        %v2858 = vsub.f32 %v2554, %v2857
        %v2859 = vand.u32 %v2858, 4294901760
        %2860 = vmatpush1.xpose.msra.mxu0 %v2859
        %2861 = vmatprep.subr.mxu0 0.0
        %2862 = vmatpush1.xpose.msra.mxu0 0.0
        %2863 = vmatprep.subr.mxu0 0.0
        %2864 = vmatpush1.xpose.msra.mxu0 0.0
        %2865 = vmatprep.subr.mxu0 0.0
        %2866 = vmatpush1.xpose.msra.mxu0 0.0
        %2867 = vmatprep.subr.mxu0 0.0
        %2868 = vmatpush1.xpose.msra.mxu0 0.0
        %2869 = vmatprep.subr.mxu0 0.0
        %2870 = vmatpush1.xpose.msra.mxu0 0.0
        %2871 = vmatprep.subr.mxu0 0.0
        %2872 = vmatpush1.xpose.msra.mxu0 0.0
        %2873 = vmatprep.subr.mxu0 0.0
        %2874 = vmatpush1.xpose.msra.mxu0 0.0
        %2875 = vmatprep.subr.mxu0 0.0
        %2876 = vmatpush1.xpose.msra.mxu0 0.0
        %2877 = vmatprep.subr.mxu0 0.0
        %2878 = vmatpush1.xpose.msra.mxu0 0.0
        %2879 = vmatprep.subr.mxu0 0.0
        %2880 = vmatpush1.xpose.msra.mxu0 0.0
        %2881 = vmatprep.subr.mxu0 0.0
        %2882 = vmatpush1.xpose.msra.mxu0 0.0
        %2883 = vmatprep.subr.mxu0 0.0
        %2884 = vmatpush1.xpose.msra.mxu0 0.0
        %2885 = vmatprep.subr.mxu0 0.0
        %2886 = vmatpush1.xpose.msra.mxu0 0.0
        %2887 = vmatprep.subr.mxu0 0.0
        %2888 = vmatpush1.xpose.msra.mxu0 0.0
        %2889 = vmatprep.subr.mxu0 0.0
        %2890 = vmatpush1.xpose.msra.mxu0 0.0
        %2891 = vmatprep.subr.mxu0 0.0
        %2892 = vmatpush1.xpose.msra.mxu0 0.0
        %2893 = vmatprep.subr.mxu0 0.0
        %2894 = vmatpush1.xpose.msra.mxu0 0.0
        %2895 = vmatprep.subr.mxu0 0.0
        %2896 = vmatpush1.xpose.msra.mxu0 0.0
        %2897 = vmatprep.subr.mxu0 0.0
        %2898 = vmatpush1.xpose.msra.mxu0 0.0
        %2899 = vmatprep.subr.mxu0 0.0
        %2900 = vmatpush1.xpose.msra.mxu0 0.0
        %2901 = vmatprep.subr.mxu0 0.0
        %2902 = vmatpush1.xpose.msra.mxu0 0.0
        %2903 = vmatprep.subr.mxu0 0.0
        %2904 = vmatpush1.xpose.msra.mxu0 0.0
        %2905 = vmatprep.subr.mxu0 0.0
        %2906 = vmatpush1.xpose.msra.mxu0 0.0
        %2907 = vmatprep.subr.mxu0 0.0
        %2908 = vmatpush1.xpose.msra.mxu0 0.0
        %2909 = vmatprep.subr.mxu0 0.0
        %2910 = vmatpush1.xpose.msra.mxu0 0.0
        %2911 = vmatprep.subr.mxu0 0.0
        %2912 = vmatpush1.xpose.msra.mxu0 0.0
        %2913 = vmatprep.subr.mxu0 0.0
        %2914 = vmatpush1.xpose.msra.mxu0 0.0
        %2915 = vmatprep.subr.mxu0 0.0
        %2916 = vmatpush1.xpose.msra.mxu0 0.0
        %2917 = vmatprep.subr.mxu0 0.0
        %2918 = vmatpush1.xpose.msra.mxu0 0.0
        %2919 = vmatprep.subr.mxu0 0.0
        %2920 = vmatpush1.xpose.msra.mxu0 0.0
        %2921 = vmatprep.subr.mxu0 0.0
        %2922 = vmatpush1.xpose.msra.mxu0 0.0
        %2923 = vmatprep.mubr.f32.mxu0 0.0
        %v2924 = vand.u32 %v2551, 4294901760
        %2925 = vmatmul.mubr.f32.gmra.mrb[0].mxu0 %v2924
        %v2926 = vpop.f32.mrb[0].mxu0
        %v2927 = vadd.f32 %v2853, %v2926
        %v2928 = vpop.f32.mrb[0].mxu0
        %2929 = vdwg.mxu0
        %2930 = vmatprep.subr.mxu0 0.0
        %v2931 = vand.u32 %v2554, 4294901760
        %2932 = vmatpush1.xpose.msra.mxu0 %v2931
        %2933 = vmatprep.subr.mxu0 0.0
        %2934 = vmatpush1.xpose.msra.mxu0 0.0
        %2935 = vmatprep.subr.mxu0 0.0
        %2936 = vmatpush1.xpose.msra.mxu0 0.0
        %2937 = vmatprep.subr.mxu0 0.0
        %2938 = vmatpush1.xpose.msra.mxu0 0.0
        %2939 = vmatprep.subr.mxu0 0.0
        %2940 = vmatpush1.xpose.msra.mxu0 0.0
        %2941 = vmatprep.subr.mxu0 0.0
        %2942 = vmatpush1.xpose.msra.mxu0 0.0
        %2943 = vmatprep.subr.mxu0 0.0
        %2944 = vmatpush1.xpose.msra.mxu0 0.0
        %2945 = vmatprep.subr.mxu0 0.0
        %2946 = vmatpush1.xpose.msra.mxu0 0.0
        %2947 = vmatprep.subr.mxu0 0.0
        %2948 = vmatpush1.xpose.msra.mxu0 0.0
        %2949 = vmatprep.subr.mxu0 0.0
        %2950 = vmatpush1.xpose.msra.mxu0 0.0
        %2951 = vmatprep.subr.mxu0 0.0
        %2952 = vmatpush1.xpose.msra.mxu0 0.0
        %2953 = vmatprep.subr.mxu0 0.0
        %2954 = vmatpush1.xpose.msra.mxu0 0.0
        %2955 = vmatprep.subr.mxu0 0.0
        %2956 = vmatpush1.xpose.msra.mxu0 0.0
        %2957 = vmatprep.subr.mxu0 0.0
        %2958 = vmatpush1.xpose.msra.mxu0 0.0
        %2959 = vmatprep.subr.mxu0 0.0
        %2960 = vmatpush1.xpose.msra.mxu0 0.0
        %2961 = vmatprep.subr.mxu0 0.0
        %2962 = vmatpush1.xpose.msra.mxu0 0.0
        %2963 = vmatprep.subr.mxu0 0.0
        %2964 = vmatpush1.xpose.msra.mxu0 0.0
        %2965 = vmatprep.subr.mxu0 0.0
        %2966 = vmatpush1.xpose.msra.mxu0 0.0
        %2967 = vmatprep.subr.mxu0 0.0
        %2968 = vmatpush1.xpose.msra.mxu0 0.0
        %2969 = vmatprep.subr.mxu0 0.0
        %2970 = vmatpush1.xpose.msra.mxu0 0.0
        %2971 = vmatprep.subr.mxu0 0.0
        %2972 = vmatpush1.xpose.msra.mxu0 0.0
        %2973 = vmatprep.subr.mxu0 0.0
        %2974 = vmatpush1.xpose.msra.mxu0 0.0
        %2975 = vmatprep.subr.mxu0 0.0
        %2976 = vmatpush1.xpose.msra.mxu0 0.0
        %2977 = vmatprep.subr.mxu0 0.0
        %2978 = vmatpush1.xpose.msra.mxu0 0.0
        %2979 = vmatprep.subr.mxu0 0.0
        %2980 = vmatpush1.xpose.msra.mxu0 0.0
        %2981 = vmatprep.subr.mxu0 0.0
        %2982 = vmatpush1.xpose.msra.mxu0 0.0
        %2983 = vmatprep.subr.mxu0 0.0
        %2984 = vmatpush1.xpose.msra.mxu0 0.0
        %2985 = vmatprep.subr.mxu0 0.0
        %2986 = vmatpush1.xpose.msra.mxu0 0.0
        %2987 = vmatprep.subr.mxu0 0.0
        %2988 = vmatpush1.xpose.msra.mxu0 0.0
        %2989 = vmatprep.subr.mxu0 0.0
        %2990 = vmatpush1.xpose.msra.mxu0 0.0
        %2991 = vmatprep.subr.mxu0 0.0
        %2992 = vmatpush1.xpose.msra.mxu0 0.0
        %2993 = vmatprep.subr.mxu0 0.0
        %2994 = vmatpush1.xpose.msra.mxu0 0.0
        %2995 = vmatprep.mubr.f32.mxu0 0.0
        %v2996 = vand.u32 %v2551, 4294901760
        %2997 = vmatmul.mubr.f32.gmra.mrb[0].mxu0 %v2996
        %v2998 = vpop.f32.mrb[0].mxu0
        %v2999 = vadd.f32 %v2927, %v2998
        %v3000 = vpop.f32.mrb[0].mxu0
        %3001 = vdwg.mxu0
        %v3002 = vmul.f32 %v2999, 0.17677669
        %v3003 = vadd.f32 %v3002, %v2548
        %vm3004 = vcmask 64512
        %v3005 = vsel %vm3004, %v3003, -inf
        %3006 = vmax.xlane.f32.xlu0 %v3005
        %v3007 = vpop.xlane.xlu0 %3006
        %v3008 = vsub.f32 %v3003, %v3007
        %v3009 = vmul.f32 %v3008, 1.442695
        %v3010 = vpow.pop %v3009
        %v3011 = vsel %vm3004, %v3010, 0.0
        %3012 = vadd.xlane.f32.xlu0 %v3011
        %v3013 = vpop.xlane.xlu0 %3012
        %v3014 = vrcp.pop %v3013
        %v3015 = vmul.f32 1.0, %v3014
        %v3016 = vmul.f32 %v3010, %v3015
        %v3018 = vsel %vm3004, %v3016, 0
        %3020 = vmatprep.subr.mxu0 0.0
        %v3021 = vand.u32 %v2543, 4294901760
        %3022 = vmatpush1.msra.mxu0 %v3021
        %3023 = vmatprep.subr.mxu0 0.0
        %3024 = vmatpush1.msra.mxu0 0.0
        %3025 = vmatprep.subr.mxu0 0.0
        %3026 = vmatpush1.msra.mxu0 0.0
        %3027 = vmatprep.subr.mxu0 0.0
        %3028 = vmatpush1.msra.mxu0 0.0
        %3029 = vmatprep.subr.mxu0 0.0
        %3030 = vmatpush1.msra.mxu0 0.0
        %3031 = vmatprep.subr.mxu0 0.0
        %3032 = vmatpush1.msra.mxu0 0.0
        %3033 = vmatprep.subr.mxu0 0.0
        %3034 = vmatpush1.msra.mxu0 0.0
        %3035 = vmatprep.subr.mxu0 0.0
        %3036 = vmatpush1.msra.mxu0 0.0
        %3037 = vmatprep.subr.mxu0 0.0
        %3038 = vmatpush1.msra.mxu0 0.0
        %3039 = vmatprep.subr.mxu0 0.0
        %3040 = vmatpush1.msra.mxu0 0.0
        %3041 = vmatprep.subr.mxu0 0.0
        %3042 = vmatpush1.msra.mxu0 0.0
        %3043 = vmatprep.subr.mxu0 0.0
        %3044 = vmatpush1.msra.mxu0 0.0
        %3045 = vmatprep.subr.mxu0 0.0
        %3046 = vmatpush1.msra.mxu0 0.0
        %3047 = vmatprep.subr.mxu0 0.0
        %3048 = vmatpush1.msra.mxu0 0.0
        %3049 = vmatprep.subr.mxu0 0.0
        %3050 = vmatpush1.msra.mxu0 0.0
        %3051 = vmatprep.subr.mxu0 0.0
        %3052 = vmatpush1.msra.mxu0 0.0
        %3053 = vmatprep.subr.mxu0 0.0
        %3054 = vmatpush1.msra.mxu0 0.0
        %3055 = vmatprep.subr.mxu0 0.0
        %3056 = vmatpush1.msra.mxu0 0.0
        %3057 = vmatprep.subr.mxu0 0.0
        %3058 = vmatpush1.msra.mxu0 0.0
        %3059 = vmatprep.subr.mxu0 0.0
        %3060 = vmatpush1.msra.mxu0 0.0
        %3061 = vmatprep.subr.mxu0 0.0
        %3062 = vmatpush1.msra.mxu0 0.0
        %3063 = vmatprep.subr.mxu0 0.0
        %3064 = vmatpush1.msra.mxu0 0.0
        %3065 = vmatprep.subr.mxu0 0.0
        %3066 = vmatpush1.msra.mxu0 0.0
        %3067 = vmatprep.subr.mxu0 0.0
        %3068 = vmatpush1.msra.mxu0 0.0
        %3069 = vmatprep.subr.mxu0 0.0
        %3070 = vmatpush1.msra.mxu0 0.0
        %3071 = vmatprep.subr.mxu0 0.0
        %3072 = vmatpush1.msra.mxu0 0.0
        %3073 = vmatprep.subr.mxu0 0.0
        %3074 = vmatpush1.msra.mxu0 0.0
        %3075 = vmatprep.subr.mxu0 0.0
        %3076 = vmatpush1.msra.mxu0 0.0
        %3077 = vmatprep.subr.mxu0 0.0
        %3078 = vmatpush1.msra.mxu0 0.0
        %3079 = vmatprep.subr.mxu0 0.0
        %3080 = vmatpush1.msra.mxu0 0.0
        %3081 = vmatprep.subr.mxu0 0.0
        %3082 = vmatpush1.msra.mxu0 0.0
        %3083 = vmatprep.subr.mxu0 0.0
        %3084 = vmatpush1.msra.mxu0 0.0
        %3085 = vmatprep.mubr.f32.mxu0 0.0
        %v3086 = vand.u32 %v3018, 4294901760
        %v3087 = vsub.f32 %v3018, %v3086
        %v3088 = vand.u32 %v3087, 4294901760
        %v3089 = vsub.f32 %v3087, %v3088
        %v3090 = vand.u32 %v3089, 4294901760
        %3091 = vmatmul.mubr.f32.gmra.mrb[0].mxu0 %v3090
        %v3092 = vpop.f32.mrb[0].mxu0
        %v3093 = vadd.f32 0.0, %v3092
        %v3094 = vpop.f32.mrb[0].mxu0
        %3095 = vdwg.mxu0
        %3096 = vmatprep.subr.mxu0 0.0
        %v3097 = vand.u32 %v2543, 4294901760
        %v3098 = vsub.f32 %v2543, %v3097
        %v3099 = vand.u32 %v3098, 4294901760
        %v3100 = vsub.f32 %v3098, %v3099
        %v3101 = vand.u32 %v3100, 4294901760
        %3102 = vmatpush1.msra.mxu0 %v3101
        %3103 = vmatprep.subr.mxu0 0.0
        %3104 = vmatpush1.msra.mxu0 0.0
        %3105 = vmatprep.subr.mxu0 0.0
        %3106 = vmatpush1.msra.mxu0 0.0
        %3107 = vmatprep.subr.mxu0 0.0
        %3108 = vmatpush1.msra.mxu0 0.0
        %3109 = vmatprep.subr.mxu0 0.0
        %3110 = vmatpush1.msra.mxu0 0.0
        %3111 = vmatprep.subr.mxu0 0.0
        %3112 = vmatpush1.msra.mxu0 0.0
        %3113 = vmatprep.subr.mxu0 0.0
        %3114 = vmatpush1.msra.mxu0 0.0
        %3115 = vmatprep.subr.mxu0 0.0
        %3116 = vmatpush1.msra.mxu0 0.0
        %3117 = vmatprep.subr.mxu0 0.0
        %3118 = vmatpush1.msra.mxu0 0.0
        %3119 = vmatprep.subr.mxu0 0.0
        %3120 = vmatpush1.msra.mxu0 0.0
        %3121 = vmatprep.subr.mxu0 0.0
        %3122 = vmatpush1.msra.mxu0 0.0
        %3123 = vmatprep.subr.mxu0 0.0
        %3124 = vmatpush1.msra.mxu0 0.0
        %3125 = vmatprep.subr.mxu0 0.0
        %3126 = vmatpush1.msra.mxu0 0.0
        %3127 = vmatprep.subr.mxu0 0.0
        %3128 = vmatpush1.msra.mxu0 0.0
        %3129 = vmatprep.subr.mxu0 0.0
        %3130 = vmatpush1.msra.mxu0 0.0
        %3131 = vmatprep.subr.mxu0 0.0
        %3132 = vmatpush1.msra.mxu0 0.0
        %3133 = vmatprep.subr.mxu0 0.0
        %3134 = vmatpush1.msra.mxu0 0.0
        %3135 = vmatprep.subr.mxu0 0.0
        %3136 = vmatpush1.msra.mxu0 0.0
        %3137 = vmatprep.subr.mxu0 0.0
        %3138 = vmatpush1.msra.mxu0 0.0
        %3139 = vmatprep.subr.mxu0 0.0
        %3140 = vmatpush1.msra.mxu0 0.0
        %3141 = vmatprep.subr.mxu0 0.0
        %3142 = vmatpush1.msra.mxu0 0.0
        %3143 = vmatprep.subr.mxu0 0.0
        %3144 = vmatpush1.msra.mxu0 0.0
        %3145 = vmatprep.subr.mxu0 0.0
        %3146 = vmatpush1.msra.mxu0 0.0
        %3147 = vmatprep.subr.mxu0 0.0
        %3148 = vmatpush1.msra.mxu0 0.0
        %3149 = vmatprep.subr.mxu0 0.0
        %3150 = vmatpush1.msra.mxu0 0.0
        %3151 = vmatprep.subr.mxu0 0.0
        %3152 = vmatpush1.msra.mxu0 0.0
        %3153 = vmatprep.subr.mxu0 0.0
        %3154 = vmatpush1.msra.mxu0 0.0
        %3155 = vmatprep.subr.mxu0 0.0
        %3156 = vmatpush1.msra.mxu0 0.0
        %3157 = vmatprep.subr.mxu0 0.0
        %3158 = vmatpush1.msra.mxu0 0.0
        %3159 = vmatprep.subr.mxu0 0.0
        %3160 = vmatpush1.msra.mxu0 0.0
        %3161 = vmatprep.subr.mxu0 0.0
        %3162 = vmatpush1.msra.mxu0 0.0
        %3163 = vmatprep.subr.mxu0 0.0
        %3164 = vmatpush1.msra.mxu0 0.0
        %3165 = vmatprep.mubr.f32.mxu0 0.0
        %v3166 = vand.u32 %v3018, 4294901760
        %3167 = vmatmul.mubr.f32.gmra.mrb[0].mxu0 %v3166
        %v3168 = vpop.f32.mrb[0].mxu0
        %v3169 = vadd.f32 %v3093, %v3168
        %v3170 = vpop.f32.mrb[0].mxu0
        %3171 = vdwg.mxu0
        %3172 = vmatprep.subr.mxu0 0.0
        %v3173 = vand.u32 %v2543, 4294901760
        %v3174 = vsub.f32 %v2543, %v3173
        %3175 = vmatpush1.msra.mxu0 %v3174
        %3176 = vmatprep.subr.mxu0 0.0
        %3177 = vmatpush1.msra.mxu0 0.0
        %3178 = vmatprep.subr.mxu0 0.0
        %3179 = vmatpush1.msra.mxu0 0.0
        %3180 = vmatprep.subr.mxu0 0.0
        %3181 = vmatpush1.msra.mxu0 0.0
        %3182 = vmatprep.subr.mxu0 0.0
        %3183 = vmatpush1.msra.mxu0 0.0
        %3184 = vmatprep.subr.mxu0 0.0
        %3185 = vmatpush1.msra.mxu0 0.0
        %3186 = vmatprep.subr.mxu0 0.0
        %3187 = vmatpush1.msra.mxu0 0.0
        %3188 = vmatprep.subr.mxu0 0.0
        %3189 = vmatpush1.msra.mxu0 0.0
        %3190 = vmatprep.subr.mxu0 0.0
        %3191 = vmatpush1.msra.mxu0 0.0
        %3192 = vmatprep.subr.mxu0 0.0
        %3193 = vmatpush1.msra.mxu0 0.0
        %3194 = vmatprep.subr.mxu0 0.0
        %3195 = vmatpush1.msra.mxu0 0.0
        %3196 = vmatprep.subr.mxu0 0.0
        %3197 = vmatpush1.msra.mxu0 0.0
        %3198 = vmatprep.subr.mxu0 0.0
        %3199 = vmatpush1.msra.mxu0 0.0
        %3200 = vmatprep.subr.mxu0 0.0
        %3201 = vmatpush1.msra.mxu0 0.0
        %3202 = vmatprep.subr.mxu0 0.0
        %3203 = vmatpush1.msra.mxu0 0.0
        %3204 = vmatprep.subr.mxu0 0.0
        %3205 = vmatpush1.msra.mxu0 0.0
        %3206 = vmatprep.subr.mxu0 0.0
        %3207 = vmatpush1.msra.mxu0 0.0
        %3208 = vmatprep.subr.mxu0 0.0
        %3209 = vmatpush1.msra.mxu0 0.0
        %3210 = vmatprep.subr.mxu0 0.0
        %3211 = vmatpush1.msra.mxu0 0.0
        %3212 = vmatprep.subr.mxu0 0.0
        %3213 = vmatpush1.msra.mxu0 0.0
        %3214 = vmatprep.subr.mxu0 0.0
        %3215 = vmatpush1.msra.mxu0 0.0
        %3216 = vmatprep.subr.mxu0 0.0
        %3217 = vmatpush1.msra.mxu0 0.0
        %3218 = vmatprep.subr.mxu0 0.0
        %3219 = vmatpush1.msra.mxu0 0.0
        %3220 = vmatprep.subr.mxu0 0.0
        %3221 = vmatpush1.msra.mxu0 0.0
        %3222 = vmatprep.subr.mxu0 0.0
        %3223 = vmatpush1.msra.mxu0 0.0
        %3224 = vmatprep.subr.mxu0 0.0
        %3225 = vmatpush1.msra.mxu0 0.0
        %3226 = vmatprep.subr.mxu0 0.0
        %3227 = vmatpush1.msra.mxu0 0.0
        %3228 = vmatprep.subr.mxu0 0.0
        %3229 = vmatpush1.msra.mxu0 0.0
        %3230 = vmatprep.subr.mxu0 0.0
        %3231 = vmatpush1.msra.mxu0 0.0
        %3232 = vmatprep.subr.mxu0 0.0
        %3233 = vmatpush1.msra.mxu0 0.0
        %3234 = vmatprep.subr.mxu0 0.0
        %3235 = vmatpush1.msra.mxu0 0.0
        %3236 = vmatprep.subr.mxu0 0.0
        %3237 = vmatpush1.msra.mxu0 0.0
        %3238 = vmatprep.mubr.f32.mxu0 0.0
        %v3239 = vand.u32 %v3018, 4294901760
        %v3240 = vsub.f32 %v3018, %v3239
        %3241 = vmatmul.mubr.f32.gmra.mrb[0].mxu0 %v3240
        %v3242 = vpop.f32.mrb[0].mxu0
        %v3243 = vadd.f32 %v3169, %v3242
        %v3244 = vpop.f32.mrb[0].mxu0
        %3245 = vdwg.mxu0
        %3246 = vmatprep.subr.mxu0 0.0
        %v3247 = vand.u32 %v2543, 4294901760
        %3248 = vmatpush1.msra.mxu0 %v3247
        %3249 = vmatprep.subr.mxu0 0.0
        %3250 = vmatpush1.msra.mxu0 0.0
        %3251 = vmatprep.subr.mxu0 0.0
        %3252 = vmatpush1.msra.mxu0 0.0
        %3253 = vmatprep.subr.mxu0 0.0
        %3254 = vmatpush1.msra.mxu0 0.0
        %3255 = vmatprep.subr.mxu0 0.0
        %3256 = vmatpush1.msra.mxu0 0.0
        %3257 = vmatprep.subr.mxu0 0.0
        %3258 = vmatpush1.msra.mxu0 0.0
        %3259 = vmatprep.subr.mxu0 0.0
        %3260 = vmatpush1.msra.mxu0 0.0
        %3261 = vmatprep.subr.mxu0 0.0
        %3262 = vmatpush1.msra.mxu0 0.0
        %3263 = vmatprep.subr.mxu0 0.0
        %3264 = vmatpush1.msra.mxu0 0.0
        %3265 = vmatprep.subr.mxu0 0.0
        %3266 = vmatpush1.msra.mxu0 0.0
        %3267 = vmatprep.subr.mxu0 0.0
        %3268 = vmatpush1.msra.mxu0 0.0
        %3269 = vmatprep.subr.mxu0 0.0
        %3270 = vmatpush1.msra.mxu0 0.0
        %3271 = vmatprep.subr.mxu0 0.0
        %3272 = vmatpush1.msra.mxu0 0.0
        %3273 = vmatprep.subr.mxu0 0.0
        %3274 = vmatpush1.msra.mxu0 0.0
        %3275 = vmatprep.subr.mxu0 0.0
        %3276 = vmatpush1.msra.mxu0 0.0
        %3277 = vmatprep.subr.mxu0 0.0
        %3278 = vmatpush1.msra.mxu0 0.0
        %3279 = vmatprep.subr.mxu0 0.0
        %3280 = vmatpush1.msra.mxu0 0.0
        %3281 = vmatprep.subr.mxu0 0.0
        %3282 = vmatpush1.msra.mxu0 0.0
        %3283 = vmatprep.subr.mxu0 0.0
        %3284 = vmatpush1.msra.mxu0 0.0
        %3285 = vmatprep.subr.mxu0 0.0
        %3286 = vmatpush1.msra.mxu0 0.0
        %3287 = vmatprep.subr.mxu0 0.0
        %3288 = vmatpush1.msra.mxu0 0.0
        %3289 = vmatprep.subr.mxu0 0.0
        %3290 = vmatpush1.msra.mxu0 0.0
        %3291 = vmatprep.subr.mxu0 0.0
        %3292 = vmatpush1.msra.mxu0 0.0
        %3293 = vmatprep.subr.mxu0 0.0
        %3294 = vmatpush1.msra.mxu0 0.0
        %3295 = vmatprep.subr.mxu0 0.0
        %3296 = vmatpush1.msra.mxu0 0.0
        %3297 = vmatprep.subr.mxu0 0.0
        %3298 = vmatpush1.msra.mxu0 0.0
        %3299 = vmatprep.subr.mxu0 0.0
        %3300 = vmatpush1.msra.mxu0 0.0
        %3301 = vmatprep.subr.mxu0 0.0
        %3302 = vmatpush1.msra.mxu0 0.0
        %3303 = vmatprep.subr.mxu0 0.0
        %3304 = vmatpush1.msra.mxu0 0.0
        %3305 = vmatprep.subr.mxu0 0.0
        %3306 = vmatpush1.msra.mxu0 0.0
        %3307 = vmatprep.subr.mxu0 0.0
        %3308 = vmatpush1.msra.mxu0 0.0
        %3309 = vmatprep.subr.mxu0 0.0
        %3310 = vmatpush1.msra.mxu0 0.0
        %3311 = vmatprep.mubr.f32.mxu0 0.0
        %v3312 = vand.u32 %v3018, 4294901760
        %v3313 = vsub.f32 %v3018, %v3312
        %v3314 = vand.u32 %v3313, 4294901760
        %3315 = vmatmul.mubr.f32.gmra.mrb[0].mxu0 %v3314
        %v3316 = vpop.f32.mrb[0].mxu0
        %v3317 = vadd.f32 %v3243, %v3316
        %v3318 = vpop.f32.mrb[0].mxu0
        %3319 = vdwg.mxu0
        %3320 = vmatprep.subr.mxu0 0.0
        %v3321 = vand.u32 %v2543, 4294901760
        %v3322 = vsub.f32 %v2543, %v3321
        %v3323 = vand.u32 %v3322, 4294901760
        %3324 = vmatpush1.msra.mxu0 %v3323
        %3325 = vmatprep.subr.mxu0 0.0
        %3326 = vmatpush1.msra.mxu0 0.0
        %3327 = vmatprep.subr.mxu0 0.0
        %3328 = vmatpush1.msra.mxu0 0.0
        %3329 = vmatprep.subr.mxu0 0.0
        %3330 = vmatpush1.msra.mxu0 0.0
        %3331 = vmatprep.subr.mxu0 0.0
        %3332 = vmatpush1.msra.mxu0 0.0
        %3333 = vmatprep.subr.mxu0 0.0
        %3334 = vmatpush1.msra.mxu0 0.0
        %3335 = vmatprep.subr.mxu0 0.0
        %3336 = vmatpush1.msra.mxu0 0.0
        %3337 = vmatprep.subr.mxu0 0.0
        %3338 = vmatpush1.msra.mxu0 0.0
        %3339 = vmatprep.subr.mxu0 0.0
        %3340 = vmatpush1.msra.mxu0 0.0
        %3341 = vmatprep.subr.mxu0 0.0
        %3342 = vmatpush1.msra.mxu0 0.0
        %3343 = vmatprep.subr.mxu0 0.0
        %3344 = vmatpush1.msra.mxu0 0.0
        %3345 = vmatprep.subr.mxu0 0.0
        %3346 = vmatpush1.msra.mxu0 0.0
        %3347 = vmatprep.subr.mxu0 0.0
        %3348 = vmatpush1.msra.mxu0 0.0
        %3349 = vmatprep.subr.mxu0 0.0
        %3350 = vmatpush1.msra.mxu0 0.0
        %3351 = vmatprep.subr.mxu0 0.0
        %3352 = vmatpush1.msra.mxu0 0.0
        %3353 = vmatprep.subr.mxu0 0.0
        %3354 = vmatpush1.msra.mxu0 0.0
        %3355 = vmatprep.subr.mxu0 0.0
        %3356 = vmatpush1.msra.mxu0 0.0
        %3357 = vmatprep.subr.mxu0 0.0
        %3358 = vmatpush1.msra.mxu0 0.0
        %3359 = vmatprep.subr.mxu0 0.0
        %3360 = vmatpush1.msra.mxu0 0.0
        %3361 = vmatprep.subr.mxu0 0.0
        %3362 = vmatpush1.msra.mxu0 0.0
        %3363 = vmatprep.subr.mxu0 0.0
        %3364 = vmatpush1.msra.mxu0 0.0
        %3365 = vmatprep.subr.mxu0 0.0
        %3366 = vmatpush1.msra.mxu0 0.0
        %3367 = vmatprep.subr.mxu0 0.0
        %3368 = vmatpush1.msra.mxu0 0.0
        %3369 = vmatprep.subr.mxu0 0.0
        %3370 = vmatpush1.msra.mxu0 0.0
        %3371 = vmatprep.subr.mxu0 0.0
        %3372 = vmatpush1.msra.mxu0 0.0
        %3373 = vmatprep.subr.mxu0 0.0
        %3374 = vmatpush1.msra.mxu0 0.0
        %3375 = vmatprep.subr.mxu0 0.0
        %3376 = vmatpush1.msra.mxu0 0.0
        %3377 = vmatprep.subr.mxu0 0.0
        %3378 = vmatpush1.msra.mxu0 0.0
        %3379 = vmatprep.subr.mxu0 0.0
        %3380 = vmatpush1.msra.mxu0 0.0
        %3381 = vmatprep.subr.mxu0 0.0
        %3382 = vmatpush1.msra.mxu0 0.0
        %3383 = vmatprep.subr.mxu0 0.0
        %3384 = vmatpush1.msra.mxu0 0.0
        %3385 = vmatprep.subr.mxu0 0.0
        %3386 = vmatpush1.msra.mxu0 0.0
        %3387 = vmatprep.mubr.f32.mxu0 0.0
        %v3388 = vand.u32 %v3018, 4294901760
        %3389 = vmatmul.mubr.f32.gmra.mrb[0].mxu0 %v3388
        %v3390 = vpop.f32.mrb[0].mxu0
        %v3391 = vadd.f32 %v3317, %v3390
        %v3392 = vpop.f32.mrb[0].mxu0
        %3393 = vdwg.mxu0
        %3394 = vmatprep.subr.mxu0 0.0
        %v3395 = vand.u32 %v2543, 4294901760
        %3396 = vmatpush1.msra.mxu0 %v3395
        %3397 = vmatprep.subr.mxu0 0.0
        %3398 = vmatpush1.msra.mxu0 0.0
        %3399 = vmatprep.subr.mxu0 0.0
        %3400 = vmatpush1.msra.mxu0 0.0
        %3401 = vmatprep.subr.mxu0 0.0
        %3402 = vmatpush1.msra.mxu0 0.0
        %3403 = vmatprep.subr.mxu0 0.0
        %3404 = vmatpush1.msra.mxu0 0.0
        %3405 = vmatprep.subr.mxu0 0.0
        %3406 = vmatpush1.msra.mxu0 0.0
        %3407 = vmatprep.subr.mxu0 0.0
        %3408 = vmatpush1.msra.mxu0 0.0
        %3409 = vmatprep.subr.mxu0 0.0
        %3410 = vmatpush1.msra.mxu0 0.0
        %3411 = vmatprep.subr.mxu0 0.0
        %3412 = vmatpush1.msra.mxu0 0.0
        %3413 = vmatprep.subr.mxu0 0.0
        %3414 = vmatpush1.msra.mxu0 0.0
        %3415 = vmatprep.subr.mxu0 0.0
        %3416 = vmatpush1.msra.mxu0 0.0
        %3417 = vmatprep.subr.mxu0 0.0
        %3418 = vmatpush1.msra.mxu0 0.0
        %3419 = vmatprep.subr.mxu0 0.0
        %3420 = vmatpush1.msra.mxu0 0.0
        %3421 = vmatprep.subr.mxu0 0.0
        %3422 = vmatpush1.msra.mxu0 0.0
        %3423 = vmatprep.subr.mxu0 0.0
        %3424 = vmatpush1.msra.mxu0 0.0
        %3425 = vmatprep.subr.mxu0 0.0
        %3426 = vmatpush1.msra.mxu0 0.0
        %3427 = vmatprep.subr.mxu0 0.0
        %3428 = vmatpush1.msra.mxu0 0.0
        %3429 = vmatprep.subr.mxu0 0.0
        %3430 = vmatpush1.msra.mxu0 0.0
        %3431 = vmatprep.subr.mxu0 0.0
        %3432 = vmatpush1.msra.mxu0 0.0
        %3433 = vmatprep.subr.mxu0 0.0
        %3434 = vmatpush1.msra.mxu0 0.0
        %3435 = vmatprep.subr.mxu0 0.0
        %3436 = vmatpush1.msra.mxu0 0.0
        %3437 = vmatprep.subr.mxu0 0.0
        %3438 = vmatpush1.msra.mxu0 0.0
        %3439 = vmatprep.subr.mxu0 0.0
        %3440 = vmatpush1.msra.mxu0 0.0
        %3441 = vmatprep.subr.mxu0 0.0
        %3442 = vmatpush1.msra.mxu0 0.0
        %3443 = vmatprep.subr.mxu0 0.0
        %3444 = vmatpush1.msra.mxu0 0.0
        %3445 = vmatprep.subr.mxu0 0.0
        %3446 = vmatpush1.msra.mxu0 0.0
        %3447 = vmatprep.subr.mxu0 0.0
        %3448 = vmatpush1.msra.mxu0 0.0
        %3449 = vmatprep.subr.mxu0 0.0
        %3450 = vmatpush1.msra.mxu0 0.0
        %3451 = vmatprep.subr.mxu0 0.0
        %3452 = vmatpush1.msra.mxu0 0.0
        %3453 = vmatprep.subr.mxu0 0.0
        %3454 = vmatpush1.msra.mxu0 0.0
        %3455 = vmatprep.subr.mxu0 0.0
        %3456 = vmatpush1.msra.mxu0 0.0
        %3457 = vmatprep.subr.mxu0 0.0
        %3458 = vmatpush1.msra.mxu0 0.0
        %3459 = vmatprep.mubr.f32.mxu0 0.0
        %v3460 = vand.u32 %v3018, 4294901760
        %3461 = vmatmul.mubr.f32.gmra.mrb[0].mxu0 %v3460
        %v3462 = vpop.f32.mrb[0].mxu0
        %v3463 = vadd.f32 %v3391, %v3462
        %v3464 = vpop.f32.mrb[0].mxu0
        %3465 = vdwg.mxu0
        %v3466 = vld [vmem:[#allocation13] sm:$0xff]
        %v3467 = vld [vmem:[#allocation13 + $0x8] sm:$0xff]
        %v3468 = vld [vmem:[#allocation13 + $0x10] sm:$0xff]
        %v3469 = vld [vmem:[#allocation13 + $0x18] sm:$0xff]
        %3470 = vrot.lane.b32.xlu0 %v1215, 96
        %v3471 = vpop.permute.xlu0 %3470
        %3472 = vrot.lane.b32.xlu0 %v1879, 96
        %v3473 = vpop.permute.xlu0 %3472
        %v3474 = vsel %vm2549, %v3471, 0
        %v3476 = vsel %vm2549, %v3473, 0
        %3478 = vmatprep.subr.mxu0 0.0
        %v3479 = vand.u32 %v3476, 4294901760
        %3480 = vmatpush1.xpose.msra.mxu0 %v3479
        %3481 = vmatprep.subr.mxu0 0.0
        %3482 = vmatpush1.xpose.msra.mxu0 0.0
        %3483 = vmatprep.subr.mxu0 0.0
        %3484 = vmatpush1.xpose.msra.mxu0 0.0
        %3485 = vmatprep.subr.mxu0 0.0
        %3486 = vmatpush1.xpose.msra.mxu0 0.0
        %3487 = vmatprep.subr.mxu0 0.0
        %3488 = vmatpush1.xpose.msra.mxu0 0.0
        %3489 = vmatprep.subr.mxu0 0.0
        %3490 = vmatpush1.xpose.msra.mxu0 0.0
        %3491 = vmatprep.subr.mxu0 0.0
        %3492 = vmatpush1.xpose.msra.mxu0 0.0
        %3493 = vmatprep.subr.mxu0 0.0
        %3494 = vmatpush1.xpose.msra.mxu0 0.0
        %3495 = vmatprep.subr.mxu0 0.0
        %3496 = vmatpush1.xpose.msra.mxu0 0.0
        %3497 = vmatprep.subr.mxu0 0.0
        %3498 = vmatpush1.xpose.msra.mxu0 0.0
        %3499 = vmatprep.subr.mxu0 0.0
        %3500 = vmatpush1.xpose.msra.mxu0 0.0
        %3501 = vmatprep.subr.mxu0 0.0
        %3502 = vmatpush1.xpose.msra.mxu0 0.0
        %3503 = vmatprep.subr.mxu0 0.0
        %3504 = vmatpush1.xpose.msra.mxu0 0.0
        %3505 = vmatprep.subr.mxu0 0.0
        %3506 = vmatpush1.xpose.msra.mxu0 0.0
        %3507 = vmatprep.subr.mxu0 0.0
        %3508 = vmatpush1.xpose.msra.mxu0 0.0
        %3509 = vmatprep.subr.mxu0 0.0
        %3510 = vmatpush1.xpose.msra.mxu0 0.0
        %3511 = vmatprep.subr.mxu0 0.0
        %3512 = vmatpush1.xpose.msra.mxu0 0.0
        %3513 = vmatprep.subr.mxu0 0.0
        %3514 = vmatpush1.xpose.msra.mxu0 0.0
        %3515 = vmatprep.subr.mxu0 0.0
        %3516 = vmatpush1.xpose.msra.mxu0 0.0
        %3517 = vmatprep.subr.mxu0 0.0
        %3518 = vmatpush1.xpose.msra.mxu0 0.0
        %3519 = vmatprep.subr.mxu0 0.0
        %3520 = vmatpush1.xpose.msra.mxu0 0.0
        %3521 = vmatprep.subr.mxu0 0.0
        %3522 = vmatpush1.xpose.msra.mxu0 0.0
        %3523 = vmatprep.subr.mxu0 0.0
        %3524 = vmatpush1.xpose.msra.mxu0 0.0
        %3525 = vmatprep.subr.mxu0 0.0
        %3526 = vmatpush1.xpose.msra.mxu0 0.0
        %3527 = vmatprep.subr.mxu0 0.0
        %3528 = vmatpush1.xpose.msra.mxu0 0.0
        %3529 = vmatprep.subr.mxu0 0.0
        %3530 = vmatpush1.xpose.msra.mxu0 0.0
        %3531 = vmatprep.subr.mxu0 0.0
        %3532 = vmatpush1.xpose.msra.mxu0 0.0
        %3533 = vmatprep.subr.mxu0 0.0
        %3534 = vmatpush1.xpose.msra.mxu0 0.0
        %3535 = vmatprep.subr.mxu0 0.0
        %3536 = vmatpush1.xpose.msra.mxu0 0.0
        %3537 = vmatprep.subr.mxu0 0.0
        %3538 = vmatpush1.xpose.msra.mxu0 0.0
        %3539 = vmatprep.subr.mxu0 0.0
        %3540 = vmatpush1.xpose.msra.mxu0 0.0
        %3541 = vmatprep.subr.mxu0 0.0
        %3542 = vmatpush1.xpose.msra.mxu0 0.0
        %3543 = vmatprep.mubr.f32.mxu0 0.0
        %v3544 = vand.u32 %v3474, 4294901760
        %v3545 = vsub.f32 %v3474, %v3544
        %v3546 = vand.u32 %v3545, 4294901760
        %v3547 = vsub.f32 %v3545, %v3546
        %v3548 = vand.u32 %v3547, 4294901760
        %3549 = vmatmul.mubr.f32.gmra.mrb[0].mxu0 %v3548
        %v3550 = vpop.f32.mrb[0].mxu0
        %v3551 = vadd.f32 0.0, %v3550
        %v3552 = vpop.f32.mrb[0].mxu0
        %3553 = vdwg.mxu0
        %3554 = vmatprep.subr.mxu0 0.0
        %v3555 = vand.u32 %v3476, 4294901760
        %v3556 = vsub.f32 %v3476, %v3555
        %v3557 = vand.u32 %v3556, 4294901760
        %v3558 = vsub.f32 %v3556, %v3557
        %v3559 = vand.u32 %v3558, 4294901760
        %3560 = vmatpush1.xpose.msra.mxu0 %v3559
        %3561 = vmatprep.subr.mxu0 0.0
        %3562 = vmatpush1.xpose.msra.mxu0 0.0
        %3563 = vmatprep.subr.mxu0 0.0
        %3564 = vmatpush1.xpose.msra.mxu0 0.0
        %3565 = vmatprep.subr.mxu0 0.0
        %3566 = vmatpush1.xpose.msra.mxu0 0.0
        %3567 = vmatprep.subr.mxu0 0.0
        %3568 = vmatpush1.xpose.msra.mxu0 0.0
        %3569 = vmatprep.subr.mxu0 0.0
        %3570 = vmatpush1.xpose.msra.mxu0 0.0
        %3571 = vmatprep.subr.mxu0 0.0
        %3572 = vmatpush1.xpose.msra.mxu0 0.0
        %3573 = vmatprep.subr.mxu0 0.0
        %3574 = vmatpush1.xpose.msra.mxu0 0.0
        %3575 = vmatprep.subr.mxu0 0.0
        %3576 = vmatpush1.xpose.msra.mxu0 0.0
        %3577 = vmatprep.subr.mxu0 0.0
        %3578 = vmatpush1.xpose.msra.mxu0 0.0
        %3579 = vmatprep.subr.mxu0 0.0
        %3580 = vmatpush1.xpose.msra.mxu0 0.0
        %3581 = vmatprep.subr.mxu0 0.0
        %3582 = vmatpush1.xpose.msra.mxu0 0.0
        %3583 = vmatprep.subr.mxu0 0.0
        %3584 = vmatpush1.xpose.msra.mxu0 0.0
        %3585 = vmatprep.subr.mxu0 0.0
        %3586 = vmatpush1.xpose.msra.mxu0 0.0
        %3587 = vmatprep.subr.mxu0 0.0
        %3588 = vmatpush1.xpose.msra.mxu0 0.0
        %3589 = vmatprep.subr.mxu0 0.0
        %3590 = vmatpush1.xpose.msra.mxu0 0.0
        %3591 = vmatprep.subr.mxu0 0.0
        %3592 = vmatpush1.xpose.msra.mxu0 0.0
        %3593 = vmatprep.subr.mxu0 0.0
        %3594 = vmatpush1.xpose.msra.mxu0 0.0
        %3595 = vmatprep.subr.mxu0 0.0
        %3596 = vmatpush1.xpose.msra.mxu0 0.0
        %3597 = vmatprep.subr.mxu0 0.0
        %3598 = vmatpush1.xpose.msra.mxu0 0.0
        %3599 = vmatprep.subr.mxu0 0.0
        %3600 = vmatpush1.xpose.msra.mxu0 0.0
        %3601 = vmatprep.subr.mxu0 0.0
        %3602 = vmatpush1.xpose.msra.mxu0 0.0
        %3603 = vmatprep.subr.mxu0 0.0
        %3604 = vmatpush1.xpose.msra.mxu0 0.0
        %3605 = vmatprep.subr.mxu0 0.0
        %3606 = vmatpush1.xpose.msra.mxu0 0.0
        %3607 = vmatprep.subr.mxu0 0.0
        %3608 = vmatpush1.xpose.msra.mxu0 0.0
        %3609 = vmatprep.subr.mxu0 0.0
        %3610 = vmatpush1.xpose.msra.mxu0 0.0
        %3611 = vmatprep.subr.mxu0 0.0
        %3612 = vmatpush1.xpose.msra.mxu0 0.0
        %3613 = vmatprep.subr.mxu0 0.0
        %3614 = vmatpush1.xpose.msra.mxu0 0.0
        %3615 = vmatprep.subr.mxu0 0.0
        %3616 = vmatpush1.xpose.msra.mxu0 0.0
        %3617 = vmatprep.subr.mxu0 0.0
        %3618 = vmatpush1.xpose.msra.mxu0 0.0
        %3619 = vmatprep.subr.mxu0 0.0
        %3620 = vmatpush1.xpose.msra.mxu0 0.0
        %3621 = vmatprep.subr.mxu0 0.0
        %3622 = vmatpush1.xpose.msra.mxu0 0.0
        %3623 = vmatprep.mubr.f32.mxu0 0.0
        %v3624 = vand.u32 %v3474, 4294901760
        %3625 = vmatmul.mubr.f32.gmra.mrb[0].mxu0 %v3624
        %v3626 = vpop.f32.mrb[0].mxu0
        %v3627 = vadd.f32 %v3551, %v3626
        %v3628 = vpop.f32.mrb[0].mxu0
        %3629 = vdwg.mxu0
        %3630 = vmatprep.subr.mxu0 0.0
        %v3631 = vand.u32 %v3476, 4294901760
        %v3632 = vsub.f32 %v3476, %v3631
        %3633 = vmatpush1.xpose.msra.mxu0 %v3632
        %3634 = vmatprep.subr.mxu0 0.0
        %3635 = vmatpush1.xpose.msra.mxu0 0.0
        %3636 = vmatprep.subr.mxu0 0.0
        %3637 = vmatpush1.xpose.msra.mxu0 0.0
        %3638 = vmatprep.subr.mxu0 0.0
        %3639 = vmatpush1.xpose.msra.mxu0 0.0
        %3640 = vmatprep.subr.mxu0 0.0
        %3641 = vmatpush1.xpose.msra.mxu0 0.0
        %3642 = vmatprep.subr.mxu0 0.0
        %3643 = vmatpush1.xpose.msra.mxu0 0.0
        %3644 = vmatprep.subr.mxu0 0.0
        %3645 = vmatpush1.xpose.msra.mxu0 0.0
        %3646 = vmatprep.subr.mxu0 0.0
        %3647 = vmatpush1.xpose.msra.mxu0 0.0
        %3648 = vmatprep.subr.mxu0 0.0
        %3649 = vmatpush1.xpose.msra.mxu0 0.0
        %3650 = vmatprep.subr.mxu0 0.0
        %3651 = vmatpush1.xpose.msra.mxu0 0.0
        %3652 = vmatprep.subr.mxu0 0.0
        %3653 = vmatpush1.xpose.msra.mxu0 0.0
        %3654 = vmatprep.subr.mxu0 0.0
        %3655 = vmatpush1.xpose.msra.mxu0 0.0
        %3656 = vmatprep.subr.mxu0 0.0
        %3657 = vmatpush1.xpose.msra.mxu0 0.0
        %3658 = vmatprep.subr.mxu0 0.0
        %3659 = vmatpush1.xpose.msra.mxu0 0.0
        %3660 = vmatprep.subr.mxu0 0.0
        %3661 = vmatpush1.xpose.msra.mxu0 0.0
        %3662 = vmatprep.subr.mxu0 0.0
        %3663 = vmatpush1.xpose.msra.mxu0 0.0
        %3664 = vmatprep.subr.mxu0 0.0
        %3665 = vmatpush1.xpose.msra.mxu0 0.0
        %3666 = vmatprep.subr.mxu0 0.0
        %3667 = vmatpush1.xpose.msra.mxu0 0.0
        %3668 = vmatprep.subr.mxu0 0.0
        %3669 = vmatpush1.xpose.msra.mxu0 0.0
        %3670 = vmatprep.subr.mxu0 0.0
        %3671 = vmatpush1.xpose.msra.mxu0 0.0
        %3672 = vmatprep.subr.mxu0 0.0
        %3673 = vmatpush1.xpose.msra.mxu0 0.0
        %3674 = vmatprep.subr.mxu0 0.0
        %3675 = vmatpush1.xpose.msra.mxu0 0.0
        %3676 = vmatprep.subr.mxu0 0.0
        %3677 = vmatpush1.xpose.msra.mxu0 0.0
        %3678 = vmatprep.subr.mxu0 0.0
        %3679 = vmatpush1.xpose.msra.mxu0 0.0
        %3680 = vmatprep.subr.mxu0 0.0
        %3681 = vmatpush1.xpose.msra.mxu0 0.0
        %3682 = vmatprep.subr.mxu0 0.0
        %3683 = vmatpush1.xpose.msra.mxu0 0.0
        %3684 = vmatprep.subr.mxu0 0.0
        %3685 = vmatpush1.xpose.msra.mxu0 0.0
        %3686 = vmatprep.subr.mxu0 0.0
        %3687 = vmatpush1.xpose.msra.mxu0 0.0
        %3688 = vmatprep.subr.mxu0 0.0
        %3689 = vmatpush1.xpose.msra.mxu0 0.0
        %3690 = vmatprep.subr.mxu0 0.0
        %3691 = vmatpush1.xpose.msra.mxu0 0.0
        %3692 = vmatprep.subr.mxu0 0.0
        %3693 = vmatpush1.xpose.msra.mxu0 0.0
        %3694 = vmatprep.subr.mxu0 0.0
        %3695 = vmatpush1.xpose.msra.mxu0 0.0
        %3696 = vmatprep.mubr.f32.mxu0 0.0
        %v3697 = vand.u32 %v3474, 4294901760
        %v3698 = vsub.f32 %v3474, %v3697
        %3699 = vmatmul.mubr.f32.gmra.mrb[0].mxu0 %v3698
        %v3700 = vpop.f32.mrb[0].mxu0
        %v3701 = vadd.f32 %v3627, %v3700
        %v3702 = vpop.f32.mrb[0].mxu0
        %3703 = vdwg.mxu0
        %3704 = vmatprep.subr.mxu0 0.0
        %v3705 = vand.u32 %v3476, 4294901760
        %3706 = vmatpush1.xpose.msra.mxu0 %v3705
        %3707 = vmatprep.subr.mxu0 0.0
        %3708 = vmatpush1.xpose.msra.mxu0 0.0
        %3709 = vmatprep.subr.mxu0 0.0
        %3710 = vmatpush1.xpose.msra.mxu0 0.0
        %3711 = vmatprep.subr.mxu0 0.0
        %3712 = vmatpush1.xpose.msra.mxu0 0.0
        %3713 = vmatprep.subr.mxu0 0.0
        %3714 = vmatpush1.xpose.msra.mxu0 0.0
        %3715 = vmatprep.subr.mxu0 0.0
        %3716 = vmatpush1.xpose.msra.mxu0 0.0
        %3717 = vmatprep.subr.mxu0 0.0
        %3718 = vmatpush1.xpose.msra.mxu0 0.0
        %3719 = vmatprep.subr.mxu0 0.0
        %3720 = vmatpush1.xpose.msra.mxu0 0.0
        %3721 = vmatprep.subr.mxu0 0.0
        %3722 = vmatpush1.xpose.msra.mxu0 0.0
        %3723 = vmatprep.subr.mxu0 0.0
        %3724 = vmatpush1.xpose.msra.mxu0 0.0
        %3725 = vmatprep.subr.mxu0 0.0
        %3726 = vmatpush1.xpose.msra.mxu0 0.0
        %3727 = vmatprep.subr.mxu0 0.0
        %3728 = vmatpush1.xpose.msra.mxu0 0.0
        %3729 = vmatprep.subr.mxu0 0.0
        %3730 = vmatpush1.xpose.msra.mxu0 0.0
        %3731 = vmatprep.subr.mxu0 0.0
        %3732 = vmatpush1.xpose.msra.mxu0 0.0
        %3733 = vmatprep.subr.mxu0 0.0
        %3734 = vmatpush1.xpose.msra.mxu0 0.0
        %3735 = vmatprep.subr.mxu0 0.0
        %3736 = vmatpush1.xpose.msra.mxu0 0.0
        %3737 = vmatprep.subr.mxu0 0.0
        %3738 = vmatpush1.xpose.msra.mxu0 0.0
        %3739 = vmatprep.subr.mxu0 0.0
        %3740 = vmatpush1.xpose.msra.mxu0 0.0
        %3741 = vmatprep.subr.mxu0 0.0
        %3742 = vmatpush1.xpose.msra.mxu0 0.0
        %3743 = vmatprep.subr.mxu0 0.0
        %3744 = vmatpush1.xpose.msra.mxu0 0.0
        %3745 = vmatprep.subr.mxu0 0.0
        %3746 = vmatpush1.xpose.msra.mxu0 0.0
        %3747 = vmatprep.subr.mxu0 0.0
        %3748 = vmatpush1.xpose.msra.mxu0 0.0
        %3749 = vmatprep.subr.mxu0 0.0
        %3750 = vmatpush1.xpose.msra.mxu0 0.0
        %3751 = vmatprep.subr.mxu0 0.0
        %3752 = vmatpush1.xpose.msra.mxu0 0.0
        %3753 = vmatprep.subr.mxu0 0.0
        %3754 = vmatpush1.xpose.msra.mxu0 0.0
        %3755 = vmatprep.subr.mxu0 0.0
        %3756 = vmatpush1.xpose.msra.mxu0 0.0
        %3757 = vmatprep.subr.mxu0 0.0
        %3758 = vmatpush1.xpose.msra.mxu0 0.0
        %3759 = vmatprep.subr.mxu0 0.0
        %3760 = vmatpush1.xpose.msra.mxu0 0.0
        %3761 = vmatprep.subr.mxu0 0.0
        %3762 = vmatpush1.xpose.msra.mxu0 0.0
        %3763 = vmatprep.subr.mxu0 0.0
        %3764 = vmatpush1.xpose.msra.mxu0 0.0
        %3765 = vmatprep.subr.mxu0 0.0
        %3766 = vmatpush1.xpose.msra.mxu0 0.0
        %3767 = vmatprep.subr.mxu0 0.0
        %3768 = vmatpush1.xpose.msra.mxu0 0.0
        %3769 = vmatprep.mubr.f32.mxu0 0.0
        %v3770 = vand.u32 %v3474, 4294901760
        %v3771 = vsub.f32 %v3474, %v3770
        %v3772 = vand.u32 %v3771, 4294901760
        %3773 = vmatmul.mubr.f32.gmra.mrb[0].mxu0 %v3772
        %v3774 = vpop.f32.mrb[0].mxu0
        %v3775 = vadd.f32 %v3701, %v3774
        %v3776 = vpop.f32.mrb[0].mxu0
        %3777 = vdwg.mxu0
        %3778 = vmatprep.subr.mxu0 0.0
        %v3779 = vand.u32 %v3476, 4294901760
        %v3780 = vsub.f32 %v3476, %v3779
        %v3781 = vand.u32 %v3780, 4294901760
        %3782 = vmatpush1.xpose.msra.mxu0 %v3781
        %3783 = vmatprep.subr.mxu0 0.0
        %3784 = vmatpush1.xpose.msra.mxu0 0.0
        %3785 = vmatprep.subr.mxu0 0.0
        %3786 = vmatpush1.xpose.msra.mxu0 0.0
        %3787 = vmatprep.subr.mxu0 0.0
        %3788 = vmatpush1.xpose.msra.mxu0 0.0
        %3789 = vmatprep.subr.mxu0 0.0
        %3790 = vmatpush1.xpose.msra.mxu0 0.0
        %3791 = vmatprep.subr.mxu0 0.0
        %3792 = vmatpush1.xpose.msra.mxu0 0.0
        %3793 = vmatprep.subr.mxu0 0.0
        %3794 = vmatpush1.xpose.msra.mxu0 0.0
        %3795 = vmatprep.subr.mxu0 0.0
        %3796 = vmatpush1.xpose.msra.mxu0 0.0
        %3797 = vmatprep.subr.mxu0 0.0
        %3798 = vmatpush1.xpose.msra.mxu0 0.0
        %3799 = vmatprep.subr.mxu0 0.0
        %3800 = vmatpush1.xpose.msra.mxu0 0.0
        %3801 = vmatprep.subr.mxu0 0.0
        %3802 = vmatpush1.xpose.msra.mxu0 0.0
        %3803 = vmatprep.subr.mxu0 0.0
        %3804 = vmatpush1.xpose.msra.mxu0 0.0
        %3805 = vmatprep.subr.mxu0 0.0
        %3806 = vmatpush1.xpose.msra.mxu0 0.0
        %3807 = vmatprep.subr.mxu0 0.0
        %3808 = vmatpush1.xpose.msra.mxu0 0.0
        %3809 = vmatprep.subr.mxu0 0.0
        %3810 = vmatpush1.xpose.msra.mxu0 0.0
        %3811 = vmatprep.subr.mxu0 0.0
        %3812 = vmatpush1.xpose.msra.mxu0 0.0
        %3813 = vmatprep.subr.mxu0 0.0
        %3814 = vmatpush1.xpose.msra.mxu0 0.0
        %3815 = vmatprep.subr.mxu0 0.0
        %3816 = vmatpush1.xpose.msra.mxu0 0.0
        %3817 = vmatprep.subr.mxu0 0.0
        %3818 = vmatpush1.xpose.msra.mxu0 0.0
        %3819 = vmatprep.subr.mxu0 0.0
        %3820 = vmatpush1.xpose.msra.mxu0 0.0
        %3821 = vmatprep.subr.mxu0 0.0
        %3822 = vmatpush1.xpose.msra.mxu0 0.0
        %3823 = vmatprep.subr.mxu0 0.0
        %3824 = vmatpush1.xpose.msra.mxu0 0.0
        %3825 = vmatprep.subr.mxu0 0.0
        %3826 = vmatpush1.xpose.msra.mxu0 0.0
        %3827 = vmatprep.subr.mxu0 0.0
        %3828 = vmatpush1.xpose.msra.mxu0 0.0
        %3829 = vmatprep.subr.mxu0 0.0
        %3830 = vmatpush1.xpose.msra.mxu0 0.0
        %3831 = vmatprep.subr.mxu0 0.0
        %3832 = vmatpush1.xpose.msra.mxu0 0.0
        %3833 = vmatprep.subr.mxu0 0.0
        %3834 = vmatpush1.xpose.msra.mxu0 0.0
        %3835 = vmatprep.subr.mxu0 0.0
        %3836 = vmatpush1.xpose.msra.mxu0 0.0
        %3837 = vmatprep.subr.mxu0 0.0
        %3838 = vmatpush1.xpose.msra.mxu0 0.0
        %3839 = vmatprep.subr.mxu0 0.0
        %3840 = vmatpush1.xpose.msra.mxu0 0.0
        %3841 = vmatprep.subr.mxu0 0.0
        %3842 = vmatpush1.xpose.msra.mxu0 0.0
        %3843 = vmatprep.subr.mxu0 0.0
        %3844 = vmatpush1.xpose.msra.mxu0 0.0
        %3845 = vmatprep.mubr.f32.mxu0 0.0
        %v3846 = vand.u32 %v3474, 4294901760
        %3847 = vmatmul.mubr.f32.gmra.mrb[0].mxu0 %v3846
        %v3848 = vpop.f32.mrb[0].mxu0
        %v3849 = vadd.f32 %v3775, %v3848
        %v3850 = vpop.f32.mrb[0].mxu0
        %3851 = vdwg.mxu0
        %3852 = vmatprep.subr.mxu0 0.0
        %v3853 = vand.u32 %v3476, 4294901760
        %3854 = vmatpush1.xpose.msra.mxu0 %v3853
        %3855 = vmatprep.subr.mxu0 0.0
        %3856 = vmatpush1.xpose.msra.mxu0 0.0
        %3857 = vmatprep.subr.mxu0 0.0
        %3858 = vmatpush1.xpose.msra.mxu0 0.0
        %3859 = vmatprep.subr.mxu0 0.0
        %3860 = vmatpush1.xpose.msra.mxu0 0.0
        %3861 = vmatprep.subr.mxu0 0.0
        %3862 = vmatpush1.xpose.msra.mxu0 0.0
        %3863 = vmatprep.subr.mxu0 0.0
        %3864 = vmatpush1.xpose.msra.mxu0 0.0
        %3865 = vmatprep.subr.mxu0 0.0
        %3866 = vmatpush1.xpose.msra.mxu0 0.0
        %3867 = vmatprep.subr.mxu0 0.0
        %3868 = vmatpush1.xpose.msra.mxu0 0.0
        %3869 = vmatprep.subr.mxu0 0.0
        %3870 = vmatpush1.xpose.msra.mxu0 0.0
        %3871 = vmatprep.subr.mxu0 0.0
        %3872 = vmatpush1.xpose.msra.mxu0 0.0
        %3873 = vmatprep.subr.mxu0 0.0
        %3874 = vmatpush1.xpose.msra.mxu0 0.0
        %3875 = vmatprep.subr.mxu0 0.0
        %3876 = vmatpush1.xpose.msra.mxu0 0.0
        %3877 = vmatprep.subr.mxu0 0.0
        %3878 = vmatpush1.xpose.msra.mxu0 0.0
        %3879 = vmatprep.subr.mxu0 0.0
        %3880 = vmatpush1.xpose.msra.mxu0 0.0
        %3881 = vmatprep.subr.mxu0 0.0
        %3882 = vmatpush1.xpose.msra.mxu0 0.0
        %3883 = vmatprep.subr.mxu0 0.0
        %3884 = vmatpush1.xpose.msra.mxu0 0.0
        %3885 = vmatprep.subr.mxu0 0.0
        %3886 = vmatpush1.xpose.msra.mxu0 0.0
        %3887 = vmatprep.subr.mxu0 0.0
        %3888 = vmatpush1.xpose.msra.mxu0 0.0
        %3889 = vmatprep.subr.mxu0 0.0
        %3890 = vmatpush1.xpose.msra.mxu0 0.0
        %3891 = vmatprep.subr.mxu0 0.0
        %3892 = vmatpush1.xpose.msra.mxu0 0.0
        %3893 = vmatprep.subr.mxu0 0.0
        %3894 = vmatpush1.xpose.msra.mxu0 0.0
        %3895 = vmatprep.subr.mxu0 0.0
        %3896 = vmatpush1.xpose.msra.mxu0 0.0
        %3897 = vmatprep.subr.mxu0 0.0
        %3898 = vmatpush1.xpose.msra.mxu0 0.0
        %3899 = vmatprep.subr.mxu0 0.0
        %3900 = vmatpush1.xpose.msra.mxu0 0.0
        %3901 = vmatprep.subr.mxu0 0.0
        %3902 = vmatpush1.xpose.msra.mxu0 0.0
        %3903 = vmatprep.subr.mxu0 0.0
        %3904 = vmatpush1.xpose.msra.mxu0 0.0
        %3905 = vmatprep.subr.mxu0 0.0
        %3906 = vmatpush1.xpose.msra.mxu0 0.0
        %3907 = vmatprep.subr.mxu0 0.0
        %3908 = vmatpush1.xpose.msra.mxu0 0.0
        %3909 = vmatprep.subr.mxu0 0.0
        %3910 = vmatpush1.xpose.msra.mxu0 0.0
        %3911 = vmatprep.subr.mxu0 0.0
        %3912 = vmatpush1.xpose.msra.mxu0 0.0
        %3913 = vmatprep.subr.mxu0 0.0
        %3914 = vmatpush1.xpose.msra.mxu0 0.0
        %3915 = vmatprep.subr.mxu0 0.0
        %3916 = vmatpush1.xpose.msra.mxu0 0.0
        %3917 = vmatprep.mubr.f32.mxu0 0.0
        %v3918 = vand.u32 %v3474, 4294901760
        %3919 = vmatmul.mubr.f32.gmra.mrb[0].mxu0 %v3918
        %v3920 = vpop.f32.mrb[0].mxu0
        %v3921 = vadd.f32 %v3849, %v3920
        %v3922 = vpop.f32.mrb[0].mxu0
        %3923 = vdwg.mxu0
        %v3924 = vmul.f32 %v3921, 0.17677669
        %v3925 = vadd.f32 %v3924, %v2548
        %v3926 = vsel %vm3004, %v3925, -inf
        %3927 = vmax.xlane.f32.xlu0 %v3926
        %v3928 = vpop.xlane.xlu0 %3927
        %v3929 = vsub.f32 %v3925, %v3928
        %v3930 = vmul.f32 %v3929, 1.442695
        %v3931 = vpow.pop %v3930
        %v3932 = vsel %vm3004, %v3931, 0.0
        %3933 = vadd.xlane.f32.xlu0 %v3932
        %v3934 = vpop.xlane.xlu0 %3933
        %v3935 = vrcp.pop %v3934
        %v3936 = vmul.f32 1.0, %v3935
        %v3937 = vmul.f32 %v3931, %v3936
        %3939 = vrot.lane.b32.xlu0 %v2543, 96
        %v3940 = vpop.permute.xlu0 %3939
        %v3943 = vsel %vm3004, %v3937, 0
        %3945 = vmatprep.subr.mxu0 0.0
        %v3946 = vand.u32 %v3940, 4294901760
        %3947 = vmatpush1.msra.mxu0 %v3946
        %3948 = vmatprep.subr.mxu0 0.0
        %3949 = vmatpush1.msra.mxu0 0.0
        %3950 = vmatprep.subr.mxu0 0.0
        %3951 = vmatpush1.msra.mxu0 0.0
        %3952 = vmatprep.subr.mxu0 0.0
        %3953 = vmatpush1.msra.mxu0 0.0
        %3954 = vmatprep.subr.mxu0 0.0
        %3955 = vmatpush1.msra.mxu0 0.0
        %3956 = vmatprep.subr.mxu0 0.0
        %3957 = vmatpush1.msra.mxu0 0.0
        %3958 = vmatprep.subr.mxu0 0.0
        %3959 = vmatpush1.msra.mxu0 0.0
        %3960 = vmatprep.subr.mxu0 0.0
        %3961 = vmatpush1.msra.mxu0 0.0
        %3962 = vmatprep.subr.mxu0 0.0
        %3963 = vmatpush1.msra.mxu0 0.0
        %3964 = vmatprep.subr.mxu0 0.0
        %3965 = vmatpush1.msra.mxu0 0.0
        %3966 = vmatprep.subr.mxu0 0.0
        %3967 = vmatpush1.msra.mxu0 0.0
        %3968 = vmatprep.subr.mxu0 0.0
        %3969 = vmatpush1.msra.mxu0 0.0
        %3970 = vmatprep.subr.mxu0 0.0
        %3971 = vmatpush1.msra.mxu0 0.0
        %3972 = vmatprep.subr.mxu0 0.0
        %3973 = vmatpush1.msra.mxu0 0.0
        %3974 = vmatprep.subr.mxu0 0.0
        %3975 = vmatpush1.msra.mxu0 0.0
        %3976 = vmatprep.subr.mxu0 0.0
        %3977 = vmatpush1.msra.mxu0 0.0
        %3978 = vmatprep.subr.mxu0 0.0
        %3979 = vmatpush1.msra.mxu0 0.0
        %3980 = vmatprep.subr.mxu0 0.0
        %3981 = vmatpush1.msra.mxu0 0.0
        %3982 = vmatprep.subr.mxu0 0.0
        %3983 = vmatpush1.msra.mxu0 0.0
        %3984 = vmatprep.subr.mxu0 0.0
        %3985 = vmatpush1.msra.mxu0 0.0
        %3986 = vmatprep.subr.mxu0 0.0
        %3987 = vmatpush1.msra.mxu0 0.0
        %3988 = vmatprep.subr.mxu0 0.0
        %3989 = vmatpush1.msra.mxu0 0.0
        %3990 = vmatprep.subr.mxu0 0.0
        %3991 = vmatpush1.msra.mxu0 0.0
        %3992 = vmatprep.subr.mxu0 0.0
        %3993 = vmatpush1.msra.mxu0 0.0
        %3994 = vmatprep.subr.mxu0 0.0
        %3995 = vmatpush1.msra.mxu0 0.0
        %3996 = vmatprep.subr.mxu0 0.0
        %3997 = vmatpush1.msra.mxu0 0.0
        %3998 = vmatprep.subr.mxu0 0.0
        %3999 = vmatpush1.msra.mxu0 0.0
        %4000 = vmatprep.subr.mxu0 0.0
        %4001 = vmatpush1.msra.mxu0 0.0
        %4002 = vmatprep.subr.mxu0 0.0
        %4003 = vmatpush1.msra.mxu0 0.0
        %4004 = vmatprep.subr.mxu0 0.0
        %4005 = vmatpush1.msra.mxu0 0.0
        %4006 = vmatprep.subr.mxu0 0.0
        %4007 = vmatpush1.msra.mxu0 0.0
        %4008 = vmatprep.subr.mxu0 0.0
        %4009 = vmatpush1.msra.mxu0 0.0
        %4010 = vmatprep.mubr.f32.mxu0 0.0
        %v4011 = vand.u32 %v3943, 4294901760
        %v4012 = vsub.f32 %v3943, %v4011
        %v4013 = vand.u32 %v4012, 4294901760
        %v4014 = vsub.f32 %v4012, %v4013
        %v4015 = vand.u32 %v4014, 4294901760
        %4016 = vmatmul.mubr.f32.gmra.mrb[0].mxu0 %v4015
        %v4017 = vpop.f32.mrb[0].mxu0
        %v4018 = vadd.f32 0.0, %v4017
        %v4019 = vpop.f32.mrb[0].mxu0
        %4020 = vdwg.mxu0
        %4021 = vmatprep.subr.mxu0 0.0
        %v4022 = vand.u32 %v3940, 4294901760
        %v4023 = vsub.f32 %v3940, %v4022
        %v4024 = vand.u32 %v4023, 4294901760
        %v4025 = vsub.f32 %v4023, %v4024
        %v4026 = vand.u32 %v4025, 4294901760
        %4027 = vmatpush1.msra.mxu0 %v4026
        %4028 = vmatprep.subr.mxu0 0.0
        %4029 = vmatpush1.msra.mxu0 0.0
        %4030 = vmatprep.subr.mxu0 0.0
        %4031 = vmatpush1.msra.mxu0 0.0
        %4032 = vmatprep.subr.mxu0 0.0
        %4033 = vmatpush1.msra.mxu0 0.0
        %4034 = vmatprep.subr.mxu0 0.0
        %4035 = vmatpush1.msra.mxu0 0.0
        %4036 = vmatprep.subr.mxu0 0.0
        %4037 = vmatpush1.msra.mxu0 0.0
        %4038 = vmatprep.subr.mxu0 0.0
        %4039 = vmatpush1.msra.mxu0 0.0
        %4040 = vmatprep.subr.mxu0 0.0
        %4041 = vmatpush1.msra.mxu0 0.0
        %4042 = vmatprep.subr.mxu0 0.0
        %4043 = vmatpush1.msra.mxu0 0.0
        %4044 = vmatprep.subr.mxu0 0.0
        %4045 = vmatpush1.msra.mxu0 0.0
        %4046 = vmatprep.subr.mxu0 0.0
        %4047 = vmatpush1.msra.mxu0 0.0
        %4048 = vmatprep.subr.mxu0 0.0
        %4049 = vmatpush1.msra.mxu0 0.0
        %4050 = vmatprep.subr.mxu0 0.0
        %4051 = vmatpush1.msra.mxu0 0.0
        %4052 = vmatprep.subr.mxu0 0.0
        %4053 = vmatpush1.msra.mxu0 0.0
        %4054 = vmatprep.subr.mxu0 0.0
        %4055 = vmatpush1.msra.mxu0 0.0
        %4056 = vmatprep.subr.mxu0 0.0
        %4057 = vmatpush1.msra.mxu0 0.0
        %4058 = vmatprep.subr.mxu0 0.0
        %4059 = vmatpush1.msra.mxu0 0.0
        %4060 = vmatprep.subr.mxu0 0.0
        %4061 = vmatpush1.msra.mxu0 0.0
        %4062 = vmatprep.subr.mxu0 0.0
        %4063 = vmatpush1.msra.mxu0 0.0
        %4064 = vmatprep.subr.mxu0 0.0
        %4065 = vmatpush1.msra.mxu0 0.0
        %4066 = vmatprep.subr.mxu0 0.0
        %4067 = vmatpush1.msra.mxu0 0.0
        %4068 = vmatprep.subr.mxu0 0.0
        %4069 = vmatpush1.msra.mxu0 0.0
        %4070 = vmatprep.subr.mxu0 0.0
        %4071 = vmatpush1.msra.mxu0 0.0
        %4072 = vmatprep.subr.mxu0 0.0
        %4073 = vmatpush1.msra.mxu0 0.0
        %4074 = vmatprep.subr.mxu0 0.0
        %4075 = vmatpush1.msra.mxu0 0.0
        %4076 = vmatprep.subr.mxu0 0.0
        %4077 = vmatpush1.msra.mxu0 0.0
        %4078 = vmatprep.subr.mxu0 0.0
        %4079 = vmatpush1.msra.mxu0 0.0
        %4080 = vmatprep.subr.mxu0 0.0
        %4081 = vmatpush1.msra.mxu0 0.0
        %4082 = vmatprep.subr.mxu0 0.0
        %4083 = vmatpush1.msra.mxu0 0.0
        %4084 = vmatprep.subr.mxu0 0.0
        %4085 = vmatpush1.msra.mxu0 0.0
        %4086 = vmatprep.subr.mxu0 0.0
        %4087 = vmatpush1.msra.mxu0 0.0
        %4088 = vmatprep.subr.mxu0 0.0
        %4089 = vmatpush1.msra.mxu0 0.0
        %4090 = vmatprep.mubr.f32.mxu0 0.0
        %v4091 = vand.u32 %v3943, 4294901760
        %4092 = vmatmul.mubr.f32.gmra.mrb[0].mxu0 %v4091
        %v4093 = vpop.f32.mrb[0].mxu0
        %v4094 = vadd.f32 %v4018, %v4093
        %v4095 = vpop.f32.mrb[0].mxu0
        %4096 = vdwg.mxu0
        %4097 = vmatprep.subr.mxu0 0.0
        %v4098 = vand.u32 %v3940, 4294901760
        %v4099 = vsub.f32 %v3940, %v4098
        %4100 = vmatpush1.msra.mxu0 %v4099
        %4101 = vmatprep.subr.mxu0 0.0
        %4102 = vmatpush1.msra.mxu0 0.0
        %4103 = vmatprep.subr.mxu0 0.0
        %4104 = vmatpush1.msra.mxu0 0.0
        %4105 = vmatprep.subr.mxu0 0.0
        %4106 = vmatpush1.msra.mxu0 0.0
        %4107 = vmatprep.subr.mxu0 0.0
        %4108 = vmatpush1.msra.mxu0 0.0
        %4109 = vmatprep.subr.mxu0 0.0
        %4110 = vmatpush1.msra.mxu0 0.0
        %4111 = vmatprep.subr.mxu0 0.0
        %4112 = vmatpush1.msra.mxu0 0.0
        %4113 = vmatprep.subr.mxu0 0.0
        %4114 = vmatpush1.msra.mxu0 0.0
        %4115 = vmatprep.subr.mxu0 0.0
        %4116 = vmatpush1.msra.mxu0 0.0
        %4117 = vmatprep.subr.mxu0 0.0
        %4118 = vmatpush1.msra.mxu0 0.0
        %4119 = vmatprep.subr.mxu0 0.0
        %4120 = vmatpush1.msra.mxu0 0.0
        %4121 = vmatprep.subr.mxu0 0.0
        %4122 = vmatpush1.msra.mxu0 0.0
        %4123 = vmatprep.subr.mxu0 0.0
        %4124 = vmatpush1.msra.mxu0 0.0
        %4125 = vmatprep.subr.mxu0 0.0
        %4126 = vmatpush1.msra.mxu0 0.0
        %4127 = vmatprep.subr.mxu0 0.0
        %4128 = vmatpush1.msra.mxu0 0.0
        %4129 = vmatprep.subr.mxu0 0.0
        %4130 = vmatpush1.msra.mxu0 0.0
        %4131 = vmatprep.subr.mxu0 0.0
        %4132 = vmatpush1.msra.mxu0 0.0
        %4133 = vmatprep.subr.mxu0 0.0
        %4134 = vmatpush1.msra.mxu0 0.0
        %4135 = vmatprep.subr.mxu0 0.0
        %4136 = vmatpush1.msra.mxu0 0.0
        %4137 = vmatprep.subr.mxu0 0.0
        %4138 = vmatpush1.msra.mxu0 0.0
        %4139 = vmatprep.subr.mxu0 0.0
        %4140 = vmatpush1.msra.mxu0 0.0
        %4141 = vmatprep.subr.mxu0 0.0
        %4142 = vmatpush1.msra.mxu0 0.0
        %4143 = vmatprep.subr.mxu0 0.0
        %4144 = vmatpush1.msra.mxu0 0.0
        %4145 = vmatprep.subr.mxu0 0.0
        %4146 = vmatpush1.msra.mxu0 0.0
        %4147 = vmatprep.subr.mxu0 0.0
        %4148 = vmatpush1.msra.mxu0 0.0
        %4149 = vmatprep.subr.mxu0 0.0
        %4150 = vmatpush1.msra.mxu0 0.0
        %4151 = vmatprep.subr.mxu0 0.0
        %4152 = vmatpush1.msra.mxu0 0.0
        %4153 = vmatprep.subr.mxu0 0.0
        %4154 = vmatpush1.msra.mxu0 0.0
        %4155 = vmatprep.subr.mxu0 0.0
        %4156 = vmatpush1.msra.mxu0 0.0
        %4157 = vmatprep.subr.mxu0 0.0
        %4158 = vmatpush1.msra.mxu0 0.0
        %4159 = vmatprep.subr.mxu0 0.0
        %4160 = vmatpush1.msra.mxu0 0.0
        %4161 = vmatprep.subr.mxu0 0.0
        %4162 = vmatpush1.msra.mxu0 0.0
        %4163 = vmatprep.mubr.f32.mxu0 0.0
        %v4164 = vand.u32 %v3943, 4294901760
        %v4165 = vsub.f32 %v3943, %v4164
        %4166 = vmatmul.mubr.f32.gmra.mrb[0].mxu0 %v4165
        %v4167 = vpop.f32.mrb[0].mxu0
        %v4168 = vadd.f32 %v4094, %v4167
        %v4169 = vpop.f32.mrb[0].mxu0
        %4170 = vdwg.mxu0
        %4171 = vmatprep.subr.mxu0 0.0
        %v4172 = vand.u32 %v3940, 4294901760
        %4173 = vmatpush1.msra.mxu0 %v4172
        %4174 = vmatprep.subr.mxu0 0.0
        %4175 = vmatpush1.msra.mxu0 0.0
        %4176 = vmatprep.subr.mxu0 0.0
        %4177 = vmatpush1.msra.mxu0 0.0
        %4178 = vmatprep.subr.mxu0 0.0
        %4179 = vmatpush1.msra.mxu0 0.0
        %4180 = vmatprep.subr.mxu0 0.0
        %4181 = vmatpush1.msra.mxu0 0.0
        %4182 = vmatprep.subr.mxu0 0.0
        %4183 = vmatpush1.msra.mxu0 0.0
        %4184 = vmatprep.subr.mxu0 0.0
        %4185 = vmatpush1.msra.mxu0 0.0
        %4186 = vmatprep.subr.mxu0 0.0
        %4187 = vmatpush1.msra.mxu0 0.0
        %4188 = vmatprep.subr.mxu0 0.0
        %4189 = vmatpush1.msra.mxu0 0.0
        %4190 = vmatprep.subr.mxu0 0.0
        %4191 = vmatpush1.msra.mxu0 0.0
        %4192 = vmatprep.subr.mxu0 0.0
        %4193 = vmatpush1.msra.mxu0 0.0
        %4194 = vmatprep.subr.mxu0 0.0
        %4195 = vmatpush1.msra.mxu0 0.0
        %4196 = vmatprep.subr.mxu0 0.0
        %4197 = vmatpush1.msra.mxu0 0.0
        %4198 = vmatprep.subr.mxu0 0.0
        %4199 = vmatpush1.msra.mxu0 0.0
        %4200 = vmatprep.subr.mxu0 0.0
        %4201 = vmatpush1.msra.mxu0 0.0
        %4202 = vmatprep.subr.mxu0 0.0
        %4203 = vmatpush1.msra.mxu0 0.0
        %4204 = vmatprep.subr.mxu0 0.0
        %4205 = vmatpush1.msra.mxu0 0.0
        %4206 = vmatprep.subr.mxu0 0.0
        %4207 = vmatpush1.msra.mxu0 0.0
        %4208 = vmatprep.subr.mxu0 0.0
        %4209 = vmatpush1.msra.mxu0 0.0
        %4210 = vmatprep.subr.mxu0 0.0
        %4211 = vmatpush1.msra.mxu0 0.0
        %4212 = vmatprep.subr.mxu0 0.0
        %4213 = vmatpush1.msra.mxu0 0.0
        %4214 = vmatprep.subr.mxu0 0.0
        %4215 = vmatpush1.msra.mxu0 0.0
        %4216 = vmatprep.subr.mxu0 0.0
        %4217 = vmatpush1.msra.mxu0 0.0
        %4218 = vmatprep.subr.mxu0 0.0
        %4219 = vmatpush1.msra.mxu0 0.0
        %4220 = vmatprep.subr.mxu0 0.0
        %4221 = vmatpush1.msra.mxu0 0.0
        %4222 = vmatprep.subr.mxu0 0.0
        %4223 = vmatpush1.msra.mxu0 0.0
        %4224 = vmatprep.subr.mxu0 0.0
        %4225 = vmatpush1.msra.mxu0 0.0
        %4226 = vmatprep.subr.mxu0 0.0
        %4227 = vmatpush1.msra.mxu0 0.0
        %4228 = vmatprep.subr.mxu0 0.0
        %4229 = vmatpush1.msra.mxu0 0.0
        %4230 = vmatprep.subr.mxu0 0.0
        %4231 = vmatpush1.msra.mxu0 0.0
        %4232 = vmatprep.subr.mxu0 0.0
        %4233 = vmatpush1.msra.mxu0 0.0
        %4234 = vmatprep.subr.mxu0 0.0
        %4235 = vmatpush1.msra.mxu0 0.0
        %4236 = vmatprep.mubr.f32.mxu0 0.0
        %v4237 = vand.u32 %v3943, 4294901760
        %v4238 = vsub.f32 %v3943, %v4237
        %v4239 = vand.u32 %v4238, 4294901760
        %4240 = vmatmul.mubr.f32.gmra.mrb[0].mxu0 %v4239
        %v4241 = vpop.f32.mrb[0].mxu0
        %v4242 = vadd.f32 %v4168, %v4241
        %v4243 = vpop.f32.mrb[0].mxu0
        %4244 = vdwg.mxu0
        %4245 = vmatprep.subr.mxu0 0.0
        %v4246 = vand.u32 %v3940, 4294901760
        %v4247 = vsub.f32 %v3940, %v4246
        %v4248 = vand.u32 %v4247, 4294901760
        %4249 = vmatpush1.msra.mxu0 %v4248
        %4250 = vmatprep.subr.mxu0 0.0
        %4251 = vmatpush1.msra.mxu0 0.0
        %4252 = vmatprep.subr.mxu0 0.0
        %4253 = vmatpush1.msra.mxu0 0.0
        %4254 = vmatprep.subr.mxu0 0.0
        %4255 = vmatpush1.msra.mxu0 0.0
        %4256 = vmatprep.subr.mxu0 0.0
        %4257 = vmatpush1.msra.mxu0 0.0
        %4258 = vmatprep.subr.mxu0 0.0
        %4259 = vmatpush1.msra.mxu0 0.0
        %4260 = vmatprep.subr.mxu0 0.0
        %4261 = vmatpush1.msra.mxu0 0.0
        %4262 = vmatprep.subr.mxu0 0.0
        %4263 = vmatpush1.msra.mxu0 0.0
        %4264 = vmatprep.subr.mxu0 0.0
        %4265 = vmatpush1.msra.mxu0 0.0
        %4266 = vmatprep.subr.mxu0 0.0
        %4267 = vmatpush1.msra.mxu0 0.0
        %4268 = vmatprep.subr.mxu0 0.0
        %4269 = vmatpush1.msra.mxu0 0.0
        %4270 = vmatprep.subr.mxu0 0.0
        %4271 = vmatpush1.msra.mxu0 0.0
        %4272 = vmatprep.subr.mxu0 0.0
        %4273 = vmatpush1.msra.mxu0 0.0
        %4274 = vmatprep.subr.mxu0 0.0
        %4275 = vmatpush1.msra.mxu0 0.0
        %4276 = vmatprep.subr.mxu0 0.0
        %4277 = vmatpush1.msra.mxu0 0.0
        %4278 = vmatprep.subr.mxu0 0.0
        %4279 = vmatpush1.msra.mxu0 0.0
        %4280 = vmatprep.subr.mxu0 0.0
        %4281 = vmatpush1.msra.mxu0 0.0
        %4282 = vmatprep.subr.mxu0 0.0
        %4283 = vmatpush1.msra.mxu0 0.0
        %4284 = vmatprep.subr.mxu0 0.0
        %4285 = vmatpush1.msra.mxu0 0.0
        %4286 = vmatprep.subr.mxu0 0.0
        %4287 = vmatpush1.msra.mxu0 0.0
        %4288 = vmatprep.subr.mxu0 0.0
        %4289 = vmatpush1.msra.mxu0 0.0
        %4290 = vmatprep.subr.mxu0 0.0
        %4291 = vmatpush1.msra.mxu0 0.0
        %4292 = vmatprep.subr.mxu0 0.0
        %4293 = vmatpush1.msra.mxu0 0.0
        %4294 = vmatprep.subr.mxu0 0.0
        %4295 = vmatpush1.msra.mxu0 0.0
        %4296 = vmatprep.subr.mxu0 0.0
        %4297 = vmatpush1.msra.mxu0 0.0
        %4298 = vmatprep.subr.mxu0 0.0
        %4299 = vmatpush1.msra.mxu0 0.0
        %4300 = vmatprep.subr.mxu0 0.0
        %4301 = vmatpush1.msra.mxu0 0.0
        %4302 = vmatprep.subr.mxu0 0.0
        %4303 = vmatpush1.msra.mxu0 0.0
        %4304 = vmatprep.subr.mxu0 0.0
        %4305 = vmatpush1.msra.mxu0 0.0
        %4306 = vmatprep.subr.mxu0 0.0
        %4307 = vmatpush1.msra.mxu0 0.0
        %4308 = vmatprep.subr.mxu0 0.0
        %4309 = vmatpush1.msra.mxu0 0.0
        %4310 = vmatprep.subr.mxu0 0.0
        %4311 = vmatpush1.msra.mxu0 0.0
        %4312 = vmatprep.mubr.f32.mxu0 0.0
        %v4313 = vand.u32 %v3943, 4294901760
        %4314 = vmatmul.mubr.f32.gmra.mrb[0].mxu0 %v4313
        %v4315 = vpop.f32.mrb[0].mxu0
        %v4316 = vadd.f32 %v4242, %v4315
        %v4317 = vpop.f32.mrb[0].mxu0
        %4318 = vdwg.mxu0
        %4319 = vmatprep.subr.mxu0 0.0
        %v4320 = vand.u32 %v3940, 4294901760
        %4321 = vmatpush1.msra.mxu0 %v4320
        %4322 = vmatprep.subr.mxu0 0.0
        %4323 = vmatpush1.msra.mxu0 0.0
        %4324 = vmatprep.subr.mxu0 0.0
        %4325 = vmatpush1.msra.mxu0 0.0
        %4326 = vmatprep.subr.mxu0 0.0
        %4327 = vmatpush1.msra.mxu0 0.0
        %4328 = vmatprep.subr.mxu0 0.0
        %4329 = vmatpush1.msra.mxu0 0.0
        %4330 = vmatprep.subr.mxu0 0.0
        %4331 = vmatpush1.msra.mxu0 0.0
        %4332 = vmatprep.subr.mxu0 0.0
        %4333 = vmatpush1.msra.mxu0 0.0
        %4334 = vmatprep.subr.mxu0 0.0
        %4335 = vmatpush1.msra.mxu0 0.0
        %4336 = vmatprep.subr.mxu0 0.0
        %4337 = vmatpush1.msra.mxu0 0.0
        %4338 = vmatprep.subr.mxu0 0.0
        %4339 = vmatpush1.msra.mxu0 0.0
        %4340 = vmatprep.subr.mxu0 0.0
        %4341 = vmatpush1.msra.mxu0 0.0
        %4342 = vmatprep.subr.mxu0 0.0
        %4343 = vmatpush1.msra.mxu0 0.0
        %4344 = vmatprep.subr.mxu0 0.0
        %4345 = vmatpush1.msra.mxu0 0.0
        %4346 = vmatprep.subr.mxu0 0.0
        %4347 = vmatpush1.msra.mxu0 0.0
        %4348 = vmatprep.subr.mxu0 0.0
        %4349 = vmatpush1.msra.mxu0 0.0
        %4350 = vmatprep.subr.mxu0 0.0
        %4351 = vmatpush1.msra.mxu0 0.0
        %4352 = vmatprep.subr.mxu0 0.0
        %4353 = vmatpush1.msra.mxu0 0.0
        %4354 = vmatprep.subr.mxu0 0.0
        %4355 = vmatpush1.msra.mxu0 0.0
        %4356 = vmatprep.subr.mxu0 0.0
        %4357 = vmatpush1.msra.mxu0 0.0
        %4358 = vmatprep.subr.mxu0 0.0
        %4359 = vmatpush1.msra.mxu0 0.0
        %4360 = vmatprep.subr.mxu0 0.0
        %4361 = vmatpush1.msra.mxu0 0.0
        %4362 = vmatprep.subr.mxu0 0.0
        %4363 = vmatpush1.msra.mxu0 0.0
        %4364 = vmatprep.subr.mxu0 0.0
        %4365 = vmatpush1.msra.mxu0 0.0
        %4366 = vmatprep.subr.mxu0 0.0
        %4367 = vmatpush1.msra.mxu0 0.0
        %4368 = vmatprep.subr.mxu0 0.0
        %4369 = vmatpush1.msra.mxu0 0.0
        %4370 = vmatprep.subr.mxu0 0.0
        %4371 = vmatpush1.msra.mxu0 0.0
        %4372 = vmatprep.subr.mxu0 0.0
        %4373 = vmatpush1.msra.mxu0 0.0
        %4374 = vmatprep.subr.mxu0 0.0
        %4375 = vmatpush1.msra.mxu0 0.0
        %4376 = vmatprep.subr.mxu0 0.0
        %4377 = vmatpush1.msra.mxu0 0.0
        %4378 = vmatprep.subr.mxu0 0.0
        %4379 = vmatpush1.msra.mxu0 0.0
        %4380 = vmatprep.subr.mxu0 0.0
        %4381 = vmatpush1.msra.mxu0 0.0
        %4382 = vmatprep.subr.mxu0 0.0
        %4383 = vmatpush1.msra.mxu0 0.0
        %4384 = vmatprep.mubr.f32.mxu0 0.0
        %v4385 = vand.u32 %v3943, 4294901760
        %4386 = vmatmul.mubr.f32.gmra.mrb[0].mxu0 %v4385
        %v4387 = vpop.f32.mrb[0].mxu0
        %v4388 = vadd.f32 %v4316, %v4387
        %v4389 = vpop.f32.mrb[0].mxu0
        %4390 = vdwg.mxu0
        %v4391 = vld [vmem:[#allocation13 + $0x20] sm:$0xff]
        %v4392 = vld [vmem:[#allocation13 + $0x28] sm:$0xff]
        %v4393 = vld [vmem:[#allocation13 + $0x30] sm:$0xff]
        %v4394 = vld [vmem:[#allocation13 + $0x38] sm:$0xff]
        %v4396 = vsel %vm2549, %v4388, 0
        %4398 = vmatprep.subr.mxu0 0.0
        %v4399 = vand.u32 %v4391, 4294901760
        %4400 = vmatpush1.msra.mxu0 %v4399
        %4401 = vmatprep.subr.mxu0 0.0
        %v4402 = vand.u32 %v4392, 4294901760
        %4403 = vmatpush1.msra.mxu0 %v4402
        %4404 = vmatprep.subr.mxu0 0.0
        %v4405 = vand.u32 %v4393, 4294901760
        %4406 = vmatpush1.msra.mxu0 %v4405
        %4407 = vmatprep.subr.mxu0 0.0
        %v4408 = vand.u32 %v4394, 4294901760
        %4409 = vmatpush1.msra.mxu0 %v4408
        %4410 = vmatprep.subr.mxu0 0.0
        %4411 = vmatpush1.msra.mxu0 0.0
        %4412 = vmatprep.subr.mxu0 0.0
        %4413 = vmatpush1.msra.mxu0 0.0
        %4414 = vmatprep.subr.mxu0 0.0
        %4415 = vmatpush1.msra.mxu0 0.0
        %4416 = vmatprep.subr.mxu0 0.0
        %4417 = vmatpush1.msra.mxu0 0.0
        %4418 = vmatprep.subr.mxu0 0.0
        %4419 = vmatpush1.msra.mxu0 0.0
        %4420 = vmatprep.subr.mxu0 0.0
        %4421 = vmatpush1.msra.mxu0 0.0
        %4422 = vmatprep.subr.mxu0 0.0
        %4423 = vmatpush1.msra.mxu0 0.0
        %4424 = vmatprep.subr.mxu0 0.0
        %4425 = vmatpush1.msra.mxu0 0.0
        %4426 = vmatprep.subr.mxu0 0.0
        %4427 = vmatpush1.msra.mxu0 0.0
        %4428 = vmatprep.subr.mxu0 0.0
        %4429 = vmatpush1.msra.mxu0 0.0
        %4430 = vmatprep.subr.mxu0 0.0
        %4431 = vmatpush1.msra.mxu0 0.0
        %4432 = vmatprep.subr.mxu0 0.0
        %4433 = vmatpush1.msra.mxu0 0.0
        %4434 = vmatprep.subr.mxu0 0.0
        %4435 = vmatpush1.msra.mxu0 0.0
        %4436 = vmatprep.subr.mxu0 0.0
        %4437 = vmatpush1.msra.mxu0 0.0
        %4438 = vmatprep.subr.mxu0 0.0
        %4439 = vmatpush1.msra.mxu0 0.0
        %4440 = vmatprep.subr.mxu0 0.0
        %4441 = vmatpush1.msra.mxu0 0.0
        %4442 = vmatprep.subr.mxu0 0.0
        %4443 = vmatpush1.msra.mxu0 0.0
        %4444 = vmatprep.subr.mxu0 0.0
        %4445 = vmatpush1.msra.mxu0 0.0
        %4446 = vmatprep.subr.mxu0 0.0
        %4447 = vmatpush1.msra.mxu0 0.0
        %4448 = vmatprep.subr.mxu0 0.0
        %4449 = vmatpush1.msra.mxu0 0.0
        %4450 = vmatprep.subr.mxu0 0.0
        %4451 = vmatpush1.msra.mxu0 0.0
        %4452 = vmatprep.subr.mxu0 0.0
        %4453 = vmatpush1.msra.mxu0 0.0
        %4454 = vmatprep.subr.mxu0 0.0
        %4455 = vmatpush1.msra.mxu0 0.0
        %4456 = vmatprep.subr.mxu0 0.0
        %4457 = vmatpush1.msra.mxu0 0.0
        %4458 = vmatprep.subr.mxu0 0.0
        %4459 = vmatpush1.msra.mxu0 0.0
        %4460 = vmatprep.subr.mxu0 0.0
        %4461 = vmatpush1.msra.mxu0 0.0
        %4462 = vmatprep.subr.mxu0 0.0
        %4463 = vmatpush1.msra.mxu0 0.0
        %4464 = vmatprep.subr.mxu0 0.0
        %4465 = vmatpush1.msra.mxu0 0.0
        %4466 = vmatprep.mubr.f32.mxu0 0.0
        %v4467 = vand.u32 %v4396, 4294901760
        %v4468 = vsub.f32 %v4396, %v4467
        %v4469 = vand.u32 %v4468, 4294901760
        %v4470 = vsub.f32 %v4468, %v4469
        %v4471 = vand.u32 %v4470, 4294901760
        %4472 = vmatmul.mubr.f32.gmra.mrb[0].mxu0 %v4471
        %v4473 = vpop.f32.mrb[0].mxu0
        %v4474 = vadd.f32 0.0, %v4473
        %v4475 = vpop.f32.mrb[0].mxu0
        %4476 = vdwg.mxu0
        %4477 = vmatprep.subr.mxu0 0.0
        %v4478 = vand.u32 %v4391, 4294901760
        %v4479 = vsub.f32 %v4391, %v4478
        %v4480 = vand.u32 %v4479, 4294901760
        %v4481 = vsub.f32 %v4479, %v4480
        %v4482 = vand.u32 %v4481, 4294901760
        %4483 = vmatpush1.msra.mxu0 %v4482
        %4484 = vmatprep.subr.mxu0 0.0
        %v4485 = vand.u32 %v4392, 4294901760
        %v4486 = vsub.f32 %v4392, %v4485
        %v4487 = vand.u32 %v4486, 4294901760
        %v4488 = vsub.f32 %v4486, %v4487
        %v4489 = vand.u32 %v4488, 4294901760
        %4490 = vmatpush1.msra.mxu0 %v4489
        %4491 = vmatprep.subr.mxu0 0.0
        %v4492 = vand.u32 %v4393, 4294901760
        %v4493 = vsub.f32 %v4393, %v4492
        %v4494 = vand.u32 %v4493, 4294901760
        %v4495 = vsub.f32 %v4493, %v4494
        %v4496 = vand.u32 %v4495, 4294901760
        %4497 = vmatpush1.msra.mxu0 %v4496
        %4498 = vmatprep.subr.mxu0 0.0
        %v4499 = vand.u32 %v4394, 4294901760
        %v4500 = vsub.f32 %v4394, %v4499
        %v4501 = vand.u32 %v4500, 4294901760
        %v4502 = vsub.f32 %v4500, %v4501
        %v4503 = vand.u32 %v4502, 4294901760
        %4504 = vmatpush1.msra.mxu0 %v4503
        %4505 = vmatprep.subr.mxu0 0.0
        %4506 = vmatpush1.msra.mxu0 0.0
        %4507 = vmatprep.subr.mxu0 0.0
        %4508 = vmatpush1.msra.mxu0 0.0
        %4509 = vmatprep.subr.mxu0 0.0
        %4510 = vmatpush1.msra.mxu0 0.0
        %4511 = vmatprep.subr.mxu0 0.0
        %4512 = vmatpush1.msra.mxu0 0.0
        %4513 = vmatprep.subr.mxu0 0.0
        %4514 = vmatpush1.msra.mxu0 0.0
        %4515 = vmatprep.subr.mxu0 0.0
        %4516 = vmatpush1.msra.mxu0 0.0
        %4517 = vmatprep.subr.mxu0 0.0
        %4518 = vmatpush1.msra.mxu0 0.0
        %4519 = vmatprep.subr.mxu0 0.0
        %4520 = vmatpush1.msra.mxu0 0.0
        %4521 = vmatprep.subr.mxu0 0.0
        %4522 = vmatpush1.msra.mxu0 0.0
        %4523 = vmatprep.subr.mxu0 0.0
        %4524 = vmatpush1.msra.mxu0 0.0
        %4525 = vmatprep.subr.mxu0 0.0
        %4526 = vmatpush1.msra.mxu0 0.0
        %4527 = vmatprep.subr.mxu0 0.0
        %4528 = vmatpush1.msra.mxu0 0.0
        %4529 = vmatprep.subr.mxu0 0.0
        %4530 = vmatpush1.msra.mxu0 0.0
        %4531 = vmatprep.subr.mxu0 0.0
        %4532 = vmatpush1.msra.mxu0 0.0
        %4533 = vmatprep.subr.mxu0 0.0
        %4534 = vmatpush1.msra.mxu0 0.0
        %4535 = vmatprep.subr.mxu0 0.0
        %4536 = vmatpush1.msra.mxu0 0.0
        %4537 = vmatprep.subr.mxu0 0.0
        %4538 = vmatpush1.msra.mxu0 0.0
        %4539 = vmatprep.subr.mxu0 0.0
        %4540 = vmatpush1.msra.mxu0 0.0
        %4541 = vmatprep.subr.mxu0 0.0
        %4542 = vmatpush1.msra.mxu0 0.0
        %4543 = vmatprep.subr.mxu0 0.0
        %4544 = vmatpush1.msra.mxu0 0.0
        %4545 = vmatprep.subr.mxu0 0.0
        %4546 = vmatpush1.msra.mxu0 0.0
        %4547 = vmatprep.subr.mxu0 0.0
        %4548 = vmatpush1.msra.mxu0 0.0
        %4549 = vmatprep.subr.mxu0 0.0
        %4550 = vmatpush1.msra.mxu0 0.0
        %4551 = vmatprep.subr.mxu0 0.0
        %4552 = vmatpush1.msra.mxu0 0.0
        %4553 = vmatprep.subr.mxu0 0.0
        %4554 = vmatpush1.msra.mxu0 0.0
        %4555 = vmatprep.subr.mxu0 0.0
        %4556 = vmatpush1.msra.mxu0 0.0
        %4557 = vmatprep.subr.mxu0 0.0
        %4558 = vmatpush1.msra.mxu0 0.0
        %4559 = vmatprep.subr.mxu0 0.0
        %4560 = vmatpush1.msra.mxu0 0.0
        %4561 = vmatprep.mubr.f32.mxu0 0.0
        %v4562 = vand.u32 %v4396, 4294901760
        %4563 = vmatmul.mubr.f32.gmra.mrb[0].mxu0 %v4562
        %v4564 = vpop.f32.mrb[0].mxu0
        %v4565 = vadd.f32 %v4474, %v4564
        %v4566 = vpop.f32.mrb[0].mxu0
        %4567 = vdwg.mxu0
        %4568 = vmatprep.subr.mxu0 0.0
        %v4569 = vand.u32 %v4391, 4294901760
        %v4570 = vsub.f32 %v4391, %v4569
        %4571 = vmatpush1.msra.mxu0 %v4570
        %4572 = vmatprep.subr.mxu0 0.0
        %v4573 = vand.u32 %v4392, 4294901760
        %v4574 = vsub.f32 %v4392, %v4573
        %4575 = vmatpush1.msra.mxu0 %v4574
        %4576 = vmatprep.subr.mxu0 0.0
        %v4577 = vand.u32 %v4393, 4294901760
        %v4578 = vsub.f32 %v4393, %v4577
        %4579 = vmatpush1.msra.mxu0 %v4578
        %4580 = vmatprep.subr.mxu0 0.0
        %v4581 = vand.u32 %v4394, 4294901760
        %v4582 = vsub.f32 %v4394, %v4581
        %4583 = vmatpush1.msra.mxu0 %v4582
        %4584 = vmatprep.subr.mxu0 0.0
        %4585 = vmatpush1.msra.mxu0 0.0
        %4586 = vmatprep.subr.mxu0 0.0
        %4587 = vmatpush1.msra.mxu0 0.0
        %4588 = vmatprep.subr.mxu0 0.0
        %4589 = vmatpush1.msra.mxu0 0.0
        %4590 = vmatprep.subr.mxu0 0.0
        %4591 = vmatpush1.msra.mxu0 0.0
        %4592 = vmatprep.subr.mxu0 0.0
        %4593 = vmatpush1.msra.mxu0 0.0
        %4594 = vmatprep.subr.mxu0 0.0
        %4595 = vmatpush1.msra.mxu0 0.0
        %4596 = vmatprep.subr.mxu0 0.0
        %4597 = vmatpush1.msra.mxu0 0.0
        %4598 = vmatprep.subr.mxu0 0.0
        %4599 = vmatpush1.msra.mxu0 0.0
        %4600 = vmatprep.subr.mxu0 0.0
        %4601 = vmatpush1.msra.mxu0 0.0
        %4602 = vmatprep.subr.mxu0 0.0
        %4603 = vmatpush1.msra.mxu0 0.0
        %4604 = vmatprep.subr.mxu0 0.0
        %4605 = vmatpush1.msra.mxu0 0.0
        %4606 = vmatprep.subr.mxu0 0.0
        %4607 = vmatpush1.msra.mxu0 0.0
        %4608 = vmatprep.subr.mxu0 0.0
        %4609 = vmatpush1.msra.mxu0 0.0
        %4610 = vmatprep.subr.mxu0 0.0
        %4611 = vmatpush1.msra.mxu0 0.0
        %4612 = vmatprep.subr.mxu0 0.0
        %4613 = vmatpush1.msra.mxu0 0.0
        %4614 = vmatprep.subr.mxu0 0.0
        %4615 = vmatpush1.msra.mxu0 0.0
        %4616 = vmatprep.subr.mxu0 0.0
        %4617 = vmatpush1.msra.mxu0 0.0
        %4618 = vmatprep.subr.mxu0 0.0
        %4619 = vmatpush1.msra.mxu0 0.0
        %4620 = vmatprep.subr.mxu0 0.0
        %4621 = vmatpush1.msra.mxu0 0.0
        %4622 = vmatprep.subr.mxu0 0.0
        %4623 = vmatpush1.msra.mxu0 0.0
        %4624 = vmatprep.subr.mxu0 0.0
        %4625 = vmatpush1.msra.mxu0 0.0
        %4626 = vmatprep.subr.mxu0 0.0
        %4627 = vmatpush1.msra.mxu0 0.0
        %4628 = vmatprep.subr.mxu0 0.0
        %4629 = vmatpush1.msra.mxu0 0.0
        %4630 = vmatprep.subr.mxu0 0.0
        %4631 = vmatpush1.msra.mxu0 0.0
        %4632 = vmatprep.subr.mxu0 0.0
        %4633 = vmatpush1.msra.mxu0 0.0
        %4634 = vmatprep.subr.mxu0 0.0
        %4635 = vmatpush1.msra.mxu0 0.0
        %4636 = vmatprep.subr.mxu0 0.0
        %4637 = vmatpush1.msra.mxu0 0.0
        %4638 = vmatprep.subr.mxu0 0.0
        %4639 = vmatpush1.msra.mxu0 0.0
        %4640 = vmatprep.mubr.f32.mxu0 0.0
        %v4641 = vand.u32 %v4396, 4294901760
        %v4642 = vsub.f32 %v4396, %v4641
        %4643 = vmatmul.mubr.f32.gmra.mrb[0].mxu0 %v4642
        %v4644 = vpop.f32.mrb[0].mxu0
        %v4645 = vadd.f32 %v4565, %v4644
        %v4646 = vpop.f32.mrb[0].mxu0
        %4647 = vdwg.mxu0
        %4648 = vmatprep.subr.mxu0 0.0
        %v4649 = vand.u32 %v4391, 4294901760
        %4650 = vmatpush1.msra.mxu0 %v4649
        %4651 = vmatprep.subr.mxu0 0.0
        %v4652 = vand.u32 %v4392, 4294901760
        %4653 = vmatpush1.msra.mxu0 %v4652
        %4654 = vmatprep.subr.mxu0 0.0
        %v4655 = vand.u32 %v4393, 4294901760
        %4656 = vmatpush1.msra.mxu0 %v4655
        %4657 = vmatprep.subr.mxu0 0.0
        %v4658 = vand.u32 %v4394, 4294901760
        %4659 = vmatpush1.msra.mxu0 %v4658
        %4660 = vmatprep.subr.mxu0 0.0
        %4661 = vmatpush1.msra.mxu0 0.0
        %4662 = vmatprep.subr.mxu0 0.0
        %4663 = vmatpush1.msra.mxu0 0.0
        %4664 = vmatprep.subr.mxu0 0.0
        %4665 = vmatpush1.msra.mxu0 0.0
        %4666 = vmatprep.subr.mxu0 0.0
        %4667 = vmatpush1.msra.mxu0 0.0
        %4668 = vmatprep.subr.mxu0 0.0
        %4669 = vmatpush1.msra.mxu0 0.0
        %4670 = vmatprep.subr.mxu0 0.0
        %4671 = vmatpush1.msra.mxu0 0.0
        %4672 = vmatprep.subr.mxu0 0.0
        %4673 = vmatpush1.msra.mxu0 0.0
        %4674 = vmatprep.subr.mxu0 0.0
        %4675 = vmatpush1.msra.mxu0 0.0
        %4676 = vmatprep.subr.mxu0 0.0
        %4677 = vmatpush1.msra.mxu0 0.0
        %4678 = vmatprep.subr.mxu0 0.0
        %4679 = vmatpush1.msra.mxu0 0.0
        %4680 = vmatprep.subr.mxu0 0.0
        %4681 = vmatpush1.msra.mxu0 0.0
        %4682 = vmatprep.subr.mxu0 0.0
        %4683 = vmatpush1.msra.mxu0 0.0
        %4684 = vmatprep.subr.mxu0 0.0
        %4685 = vmatpush1.msra.mxu0 0.0
        %4686 = vmatprep.subr.mxu0 0.0
        %4687 = vmatpush1.msra.mxu0 0.0
        %4688 = vmatprep.subr.mxu0 0.0
        %4689 = vmatpush1.msra.mxu0 0.0
        %4690 = vmatprep.subr.mxu0 0.0
        %4691 = vmatpush1.msra.mxu0 0.0
        %4692 = vmatprep.subr.mxu0 0.0
        %4693 = vmatpush1.msra.mxu0 0.0
        %4694 = vmatprep.subr.mxu0 0.0
        %4695 = vmatpush1.msra.mxu0 0.0
        %4696 = vmatprep.subr.mxu0 0.0
        %4697 = vmatpush1.msra.mxu0 0.0
        %4698 = vmatprep.subr.mxu0 0.0
        %4699 = vmatpush1.msra.mxu0 0.0
        %4700 = vmatprep.subr.mxu0 0.0
        %4701 = vmatpush1.msra.mxu0 0.0
        %4702 = vmatprep.subr.mxu0 0.0
        %4703 = vmatpush1.msra.mxu0 0.0
        %4704 = vmatprep.subr.mxu0 0.0
        %4705 = vmatpush1.msra.mxu0 0.0
        %4706 = vmatprep.subr.mxu0 0.0
        %4707 = vmatpush1.msra.mxu0 0.0
        %4708 = vmatprep.subr.mxu0 0.0
        %4709 = vmatpush1.msra.mxu0 0.0
        %4710 = vmatprep.subr.mxu0 0.0
        %4711 = vmatpush1.msra.mxu0 0.0
        %4712 = vmatprep.subr.mxu0 0.0
        %4713 = vmatpush1.msra.mxu0 0.0
        %4714 = vmatprep.subr.mxu0 0.0
        %4715 = vmatpush1.msra.mxu0 0.0
        %4716 = vmatprep.mubr.f32.mxu0 0.0
        %v4717 = vand.u32 %v4396, 4294901760
        %v4718 = vsub.f32 %v4396, %v4717
        %v4719 = vand.u32 %v4718, 4294901760
        %4720 = vmatmul.mubr.f32.gmra.mrb[0].mxu0 %v4719
        %v4721 = vpop.f32.mrb[0].mxu0
        %v4722 = vadd.f32 %v4645, %v4721
        %v4723 = vpop.f32.mrb[0].mxu0
        %4724 = vdwg.mxu0
        %4725 = vmatprep.subr.mxu0 0.0
        %v4726 = vand.u32 %v4391, 4294901760
        %v4727 = vsub.f32 %v4391, %v4726
        %v4728 = vand.u32 %v4727, 4294901760
        %4729 = vmatpush1.msra.mxu0 %v4728
        %4730 = vmatprep.subr.mxu0 0.0
        %v4731 = vand.u32 %v4392, 4294901760
        %v4732 = vsub.f32 %v4392, %v4731
        %v4733 = vand.u32 %v4732, 4294901760
        %4734 = vmatpush1.msra.mxu0 %v4733
        %4735 = vmatprep.subr.mxu0 0.0
        %v4736 = vand.u32 %v4393, 4294901760
        %v4737 = vsub.f32 %v4393, %v4736
        %v4738 = vand.u32 %v4737, 4294901760
        %4739 = vmatpush1.msra.mxu0 %v4738
        %4740 = vmatprep.subr.mxu0 0.0
        %v4741 = vand.u32 %v4394, 4294901760
        %v4742 = vsub.f32 %v4394, %v4741
        %v4743 = vand.u32 %v4742, 4294901760
        %4744 = vmatpush1.msra.mxu0 %v4743
        %4745 = vmatprep.subr.mxu0 0.0
        %4746 = vmatpush1.msra.mxu0 0.0
        %4747 = vmatprep.subr.mxu0 0.0
        %4748 = vmatpush1.msra.mxu0 0.0
        %4749 = vmatprep.subr.mxu0 0.0
        %4750 = vmatpush1.msra.mxu0 0.0
        %4751 = vmatprep.subr.mxu0 0.0
        %4752 = vmatpush1.msra.mxu0 0.0
        %4753 = vmatprep.subr.mxu0 0.0
        %4754 = vmatpush1.msra.mxu0 0.0
        %4755 = vmatprep.subr.mxu0 0.0
        %4756 = vmatpush1.msra.mxu0 0.0
        %4757 = vmatprep.subr.mxu0 0.0
        %4758 = vmatpush1.msra.mxu0 0.0
        %4759 = vmatprep.subr.mxu0 0.0
        %4760 = vmatpush1.msra.mxu0 0.0
        %4761 = vmatprep.subr.mxu0 0.0
        %4762 = vmatpush1.msra.mxu0 0.0
        %4763 = vmatprep.subr.mxu0 0.0
        %4764 = vmatpush1.msra.mxu0 0.0
        %4765 = vmatprep.subr.mxu0 0.0
        %4766 = vmatpush1.msra.mxu0 0.0
        %4767 = vmatprep.subr.mxu0 0.0
        %4768 = vmatpush1.msra.mxu0 0.0
        %4769 = vmatprep.subr.mxu0 0.0
        %4770 = vmatpush1.msra.mxu0 0.0
        %4771 = vmatprep.subr.mxu0 0.0
        %4772 = vmatpush1.msra.mxu0 0.0
        %4773 = vmatprep.subr.mxu0 0.0
        %4774 = vmatpush1.msra.mxu0 0.0
        %4775 = vmatprep.subr.mxu0 0.0
        %4776 = vmatpush1.msra.mxu0 0.0
        %4777 = vmatprep.subr.mxu0 0.0
        %4778 = vmatpush1.msra.mxu0 0.0
        %4779 = vmatprep.subr.mxu0 0.0
        %4780 = vmatpush1.msra.mxu0 0.0
        %4781 = vmatprep.subr.mxu0 0.0
        %4782 = vmatpush1.msra.mxu0 0.0
        %4783 = vmatprep.subr.mxu0 0.0
        %4784 = vmatpush1.msra.mxu0 0.0
        %4785 = vmatprep.subr.mxu0 0.0
        %4786 = vmatpush1.msra.mxu0 0.0
        %4787 = vmatprep.subr.mxu0 0.0
        %4788 = vmatpush1.msra.mxu0 0.0
        %4789 = vmatprep.subr.mxu0 0.0
        %4790 = vmatpush1.msra.mxu0 0.0
        %4791 = vmatprep.subr.mxu0 0.0
        %4792 = vmatpush1.msra.mxu0 0.0
        %4793 = vmatprep.subr.mxu0 0.0
        %4794 = vmatpush1.msra.mxu0 0.0
        %4795 = vmatprep.subr.mxu0 0.0
        %4796 = vmatpush1.msra.mxu0 0.0
        %4797 = vmatprep.subr.mxu0 0.0
        %4798 = vmatpush1.msra.mxu0 0.0
        %4799 = vmatprep.subr.mxu0 0.0
        %4800 = vmatpush1.msra.mxu0 0.0
        %4801 = vmatprep.mubr.f32.mxu0 0.0
        %v4802 = vand.u32 %v4396, 4294901760
        %4803 = vmatmul.mubr.f32.gmra.mrb[0].mxu0 %v4802
        %v4804 = vpop.f32.mrb[0].mxu0
        %v4805 = vadd.f32 %v4722, %v4804
        %v4806 = vpop.f32.mrb[0].mxu0
        %4807 = vdwg.mxu0
        %4808 = vmatprep.subr.mxu0 0.0
        %v4809 = vand.u32 %v4391, 4294901760
        %4810 = vmatpush1.msra.mxu0 %v4809
        %4811 = vmatprep.subr.mxu0 0.0
        %v4812 = vand.u32 %v4392, 4294901760
        %4813 = vmatpush1.msra.mxu0 %v4812
        %4814 = vmatprep.subr.mxu0 0.0
        %v4815 = vand.u32 %v4393, 4294901760
        %4816 = vmatpush1.msra.mxu0 %v4815
        %4817 = vmatprep.subr.mxu0 0.0
        %v4818 = vand.u32 %v4394, 4294901760
        %4819 = vmatpush1.msra.mxu0 %v4818
        %4820 = vmatprep.subr.mxu0 0.0
        %4821 = vmatpush1.msra.mxu0 0.0
        %4822 = vmatprep.subr.mxu0 0.0
        %4823 = vmatpush1.msra.mxu0 0.0
        %4824 = vmatprep.subr.mxu0 0.0
        %4825 = vmatpush1.msra.mxu0 0.0
        %4826 = vmatprep.subr.mxu0 0.0
        %4827 = vmatpush1.msra.mxu0 0.0
        %4828 = vmatprep.subr.mxu0 0.0
        %4829 = vmatpush1.msra.mxu0 0.0
        %4830 = vmatprep.subr.mxu0 0.0
        %4831 = vmatpush1.msra.mxu0 0.0
        %4832 = vmatprep.subr.mxu0 0.0
        %4833 = vmatpush1.msra.mxu0 0.0
        %4834 = vmatprep.subr.mxu0 0.0
        %4835 = vmatpush1.msra.mxu0 0.0
        %4836 = vmatprep.subr.mxu0 0.0
        %4837 = vmatpush1.msra.mxu0 0.0
        %4838 = vmatprep.subr.mxu0 0.0
        %4839 = vmatpush1.msra.mxu0 0.0
        %4840 = vmatprep.subr.mxu0 0.0
        %4841 = vmatpush1.msra.mxu0 0.0
        %4842 = vmatprep.subr.mxu0 0.0
        %4843 = vmatpush1.msra.mxu0 0.0
        %4844 = vmatprep.subr.mxu0 0.0
        %4845 = vmatpush1.msra.mxu0 0.0
        %4846 = vmatprep.subr.mxu0 0.0
        %4847 = vmatpush1.msra.mxu0 0.0
        %4848 = vmatprep.subr.mxu0 0.0
        %4849 = vmatpush1.msra.mxu0 0.0
        %4850 = vmatprep.subr.mxu0 0.0
        %4851 = vmatpush1.msra.mxu0 0.0
        %4852 = vmatprep.subr.mxu0 0.0
        %4853 = vmatpush1.msra.mxu0 0.0
        %4854 = vmatprep.subr.mxu0 0.0
        %4855 = vmatpush1.msra.mxu0 0.0
        %4856 = vmatprep.subr.mxu0 0.0
        %4857 = vmatpush1.msra.mxu0 0.0
        %4858 = vmatprep.subr.mxu0 0.0
        %4859 = vmatpush1.msra.mxu0 0.0
        %4860 = vmatprep.subr.mxu0 0.0
        %4861 = vmatpush1.msra.mxu0 0.0
        %4862 = vmatprep.subr.mxu0 0.0
        %4863 = vmatpush1.msra.mxu0 0.0
        %4864 = vmatprep.subr.mxu0 0.0
        %4865 = vmatpush1.msra.mxu0 0.0
        %4866 = vmatprep.subr.mxu0 0.0
        %4867 = vmatpush1.msra.mxu0 0.0
        %4868 = vmatprep.subr.mxu0 0.0
        %4869 = vmatpush1.msra.mxu0 0.0
        %4870 = vmatprep.subr.mxu0 0.0
        %4871 = vmatpush1.msra.mxu0 0.0
        %4872 = vmatprep.subr.mxu0 0.0
        %4873 = vmatpush1.msra.mxu0 0.0
        %4874 = vmatprep.subr.mxu0 0.0
        %4875 = vmatpush1.msra.mxu0 0.0
        %4876 = vmatprep.mubr.f32.mxu0 0.0
        %v4877 = vand.u32 %v4396, 4294901760
        %4878 = vmatmul.mubr.f32.gmra.mrb[0].mxu0 %v4877
        %v4879 = vpop.f32.mrb[0].mxu0
        %v4880 = vadd.f32 %v4805, %v4879
        %v4881 = vpop.f32.mrb[0].mxu0
        %4882 = vdwg.mxu0
        %v4884 = vsel %vm2549, %v3463, 0
        %4886 = vmatprep.subr.mxu0 0.0
        %v4887 = vand.u32 %v3466, 4294901760
        %4888 = vmatpush1.msra.mxu0 %v4887
        %4889 = vmatprep.subr.mxu0 0.0
        %v4890 = vand.u32 %v3467, 4294901760
        %4891 = vmatpush1.msra.mxu0 %v4890
        %4892 = vmatprep.subr.mxu0 0.0
        %v4893 = vand.u32 %v3468, 4294901760
        %4894 = vmatpush1.msra.mxu0 %v4893
        %4895 = vmatprep.subr.mxu0 0.0
        %v4896 = vand.u32 %v3469, 4294901760
        %4897 = vmatpush1.msra.mxu0 %v4896
        %4898 = vmatprep.subr.mxu0 0.0
        %4899 = vmatpush1.msra.mxu0 0.0
        %4900 = vmatprep.subr.mxu0 0.0
        %4901 = vmatpush1.msra.mxu0 0.0
        %4902 = vmatprep.subr.mxu0 0.0
        %4903 = vmatpush1.msra.mxu0 0.0
        %4904 = vmatprep.subr.mxu0 0.0
        %4905 = vmatpush1.msra.mxu0 0.0
        %4906 = vmatprep.subr.mxu0 0.0
        %4907 = vmatpush1.msra.mxu0 0.0
        %4908 = vmatprep.subr.mxu0 0.0
        %4909 = vmatpush1.msra.mxu0 0.0
        %4910 = vmatprep.subr.mxu0 0.0
        %4911 = vmatpush1.msra.mxu0 0.0
        %4912 = vmatprep.subr.mxu0 0.0
        %4913 = vmatpush1.msra.mxu0 0.0
        %4914 = vmatprep.subr.mxu0 0.0
        %4915 = vmatpush1.msra.mxu0 0.0
        %4916 = vmatprep.subr.mxu0 0.0
        %4917 = vmatpush1.msra.mxu0 0.0
        %4918 = vmatprep.subr.mxu0 0.0
        %4919 = vmatpush1.msra.mxu0 0.0
        %4920 = vmatprep.subr.mxu0 0.0
        %4921 = vmatpush1.msra.mxu0 0.0
        %4922 = vmatprep.subr.mxu0 0.0
        %4923 = vmatpush1.msra.mxu0 0.0
        %4924 = vmatprep.subr.mxu0 0.0
        %4925 = vmatpush1.msra.mxu0 0.0
        %4926 = vmatprep.subr.mxu0 0.0
        %4927 = vmatpush1.msra.mxu0 0.0
        %4928 = vmatprep.subr.mxu0 0.0
        %4929 = vmatpush1.msra.mxu0 0.0
        %4930 = vmatprep.subr.mxu0 0.0
        %4931 = vmatpush1.msra.mxu0 0.0
        %4932 = vmatprep.subr.mxu0 0.0
        %4933 = vmatpush1.msra.mxu0 0.0
        %4934 = vmatprep.subr.mxu0 0.0
        %4935 = vmatpush1.msra.mxu0 0.0
        %4936 = vmatprep.subr.mxu0 0.0
        %4937 = vmatpush1.msra.mxu0 0.0
        %4938 = vmatprep.subr.mxu0 0.0
        %4939 = vmatpush1.msra.mxu0 0.0
        %4940 = vmatprep.subr.mxu0 0.0
        %4941 = vmatpush1.msra.mxu0 0.0
        %4942 = vmatprep.subr.mxu0 0.0
        %4943 = vmatpush1.msra.mxu0 0.0
        %4944 = vmatprep.subr.mxu0 0.0
        %4945 = vmatpush1.msra.mxu0 0.0
        %4946 = vmatprep.subr.mxu0 0.0
        %4947 = vmatpush1.msra.mxu0 0.0
        %4948 = vmatprep.subr.mxu0 0.0
        %4949 = vmatpush1.msra.mxu0 0.0
        %4950 = vmatprep.subr.mxu0 0.0
        %4951 = vmatpush1.msra.mxu0 0.0
        %4952 = vmatprep.subr.mxu0 0.0
        %4953 = vmatpush1.msra.mxu0 0.0
        %4954 = vmatprep.mubr.f32.mxu0 0.0
        %v4955 = vand.u32 %v4884, 4294901760
        %v4956 = vsub.f32 %v4884, %v4955
        %v4957 = vand.u32 %v4956, 4294901760
        %v4958 = vsub.f32 %v4956, %v4957
        %v4959 = vand.u32 %v4958, 4294901760
        %4960 = vmatmul.mubr.f32.gmra.mrb[0].mxu0 %v4959
        %v4961 = vpop.f32.mrb[0].mxu0
        %v4962 = vadd.f32 %v4880, %v4961
        %v4963 = vpop.f32.mrb[0].mxu0
        %4964 = vdwg.mxu0
        %4965 = vmatprep.subr.mxu0 0.0
        %v4966 = vand.u32 %v3466, 4294901760
        %v4967 = vsub.f32 %v3466, %v4966
        %v4968 = vand.u32 %v4967, 4294901760
        %v4969 = vsub.f32 %v4967, %v4968
        %v4970 = vand.u32 %v4969, 4294901760
        %4971 = vmatpush1.msra.mxu0 %v4970
        %4972 = vmatprep.subr.mxu0 0.0
        %v4973 = vand.u32 %v3467, 4294901760
        %v4974 = vsub.f32 %v3467, %v4973
        %v4975 = vand.u32 %v4974, 4294901760
        %v4976 = vsub.f32 %v4974, %v4975
        %v4977 = vand.u32 %v4976, 4294901760
        %4978 = vmatpush1.msra.mxu0 %v4977
        %4979 = vmatprep.subr.mxu0 0.0
        %v4980 = vand.u32 %v3468, 4294901760
        %v4981 = vsub.f32 %v3468, %v4980
        %v4982 = vand.u32 %v4981, 4294901760
        %v4983 = vsub.f32 %v4981, %v4982
        %v4984 = vand.u32 %v4983, 4294901760
        %4985 = vmatpush1.msra.mxu0 %v4984
        %4986 = vmatprep.subr.mxu0 0.0
        %v4987 = vand.u32 %v3469, 4294901760
        %v4988 = vsub.f32 %v3469, %v4987
        %v4989 = vand.u32 %v4988, 4294901760
        %v4990 = vsub.f32 %v4988, %v4989
        %v4991 = vand.u32 %v4990, 4294901760
        %4992 = vmatpush1.msra.mxu0 %v4991
        %4993 = vmatprep.subr.mxu0 0.0
        %4994 = vmatpush1.msra.mxu0 0.0
        %4995 = vmatprep.subr.mxu0 0.0
        %4996 = vmatpush1.msra.mxu0 0.0
        %4997 = vmatprep.subr.mxu0 0.0
        %4998 = vmatpush1.msra.mxu0 0.0
        %4999 = vmatprep.subr.mxu0 0.0
        %5000 = vmatpush1.msra.mxu0 0.0
        %5001 = vmatprep.subr.mxu0 0.0
        %5002 = vmatpush1.msra.mxu0 0.0
        %5003 = vmatprep.subr.mxu0 0.0
        %5004 = vmatpush1.msra.mxu0 0.0
        %5005 = vmatprep.subr.mxu0 0.0
        %5006 = vmatpush1.msra.mxu0 0.0
        %5007 = vmatprep.subr.mxu0 0.0
        %5008 = vmatpush1.msra.mxu0 0.0
        %5009 = vmatprep.subr.mxu0 0.0
        %5010 = vmatpush1.msra.mxu0 0.0
        %5011 = vmatprep.subr.mxu0 0.0
        %5012 = vmatpush1.msra.mxu0 0.0
        %5013 = vmatprep.subr.mxu0 0.0
        %5014 = vmatpush1.msra.mxu0 0.0
        %5015 = vmatprep.subr.mxu0 0.0
        %5016 = vmatpush1.msra.mxu0 0.0
        %5017 = vmatprep.subr.mxu0 0.0
        %5018 = vmatpush1.msra.mxu0 0.0
        %5019 = vmatprep.subr.mxu0 0.0
        %5020 = vmatpush1.msra.mxu0 0.0
        %5021 = vmatprep.subr.mxu0 0.0
        %5022 = vmatpush1.msra.mxu0 0.0
        %5023 = vmatprep.subr.mxu0 0.0
        %5024 = vmatpush1.msra.mxu0 0.0
        %5025 = vmatprep.subr.mxu0 0.0
        %5026 = vmatpush1.msra.mxu0 0.0
        %5027 = vmatprep.subr.mxu0 0.0
        %5028 = vmatpush1.msra.mxu0 0.0
        %5029 = vmatprep.subr.mxu0 0.0
        %5030 = vmatpush1.msra.mxu0 0.0
        %5031 = vmatprep.subr.mxu0 0.0
        %5032 = vmatpush1.msra.mxu0 0.0
        %5033 = vmatprep.subr.mxu0 0.0
        %5034 = vmatpush1.msra.mxu0 0.0
        %5035 = vmatprep.subr.mxu0 0.0
        %5036 = vmatpush1.msra.mxu0 0.0
        %5037 = vmatprep.subr.mxu0 0.0
        %5038 = vmatpush1.msra.mxu0 0.0
        %5039 = vmatprep.subr.mxu0 0.0
        %5040 = vmatpush1.msra.mxu0 0.0
        %5041 = vmatprep.subr.mxu0 0.0
        %5042 = vmatpush1.msra.mxu0 0.0
        %5043 = vmatprep.subr.mxu0 0.0
        %5044 = vmatpush1.msra.mxu0 0.0
        %5045 = vmatprep.subr.mxu0 0.0
        %5046 = vmatpush1.msra.mxu0 0.0
        %5047 = vmatprep.subr.mxu0 0.0
        %5048 = vmatpush1.msra.mxu0 0.0
        %5049 = vmatprep.mubr.f32.mxu0 0.0
        %v5050 = vand.u32 %v4884, 4294901760
        %5051 = vmatmul.mubr.f32.gmra.mrb[0].mxu0 %v5050
        %v5052 = vpop.f32.mrb[0].mxu0
        %v5053 = vadd.f32 %v4962, %v5052
        %v5054 = vpop.f32.mrb[0].mxu0
        %5055 = vdwg.mxu0
        %5056 = vmatprep.subr.mxu0 0.0
        %v5057 = vand.u32 %v3466, 4294901760
        %v5058 = vsub.f32 %v3466, %v5057
        %5059 = vmatpush1.msra.mxu0 %v5058
        %5060 = vmatprep.subr.mxu0 0.0
        %v5061 = vand.u32 %v3467, 4294901760
        %v5062 = vsub.f32 %v3467, %v5061
        %5063 = vmatpush1.msra.mxu0 %v5062
        %5064 = vmatprep.subr.mxu0 0.0
        %v5065 = vand.u32 %v3468, 4294901760
        %v5066 = vsub.f32 %v3468, %v5065
        %5067 = vmatpush1.msra.mxu0 %v5066
        %5068 = vmatprep.subr.mxu0 0.0
        %v5069 = vand.u32 %v3469, 4294901760
        %v5070 = vsub.f32 %v3469, %v5069
        %5071 = vmatpush1.msra.mxu0 %v5070
        %5072 = vmatprep.subr.mxu0 0.0
        %5073 = vmatpush1.msra.mxu0 0.0
        %5074 = vmatprep.subr.mxu0 0.0
        %5075 = vmatpush1.msra.mxu0 0.0
        %5076 = vmatprep.subr.mxu0 0.0
        %5077 = vmatpush1.msra.mxu0 0.0
        %5078 = vmatprep.subr.mxu0 0.0
        %5079 = vmatpush1.msra.mxu0 0.0
        %5080 = vmatprep.subr.mxu0 0.0
        %5081 = vmatpush1.msra.mxu0 0.0
        %5082 = vmatprep.subr.mxu0 0.0
        %5083 = vmatpush1.msra.mxu0 0.0
        %5084 = vmatprep.subr.mxu0 0.0
        %5085 = vmatpush1.msra.mxu0 0.0
        %5086 = vmatprep.subr.mxu0 0.0
        %5087 = vmatpush1.msra.mxu0 0.0
        %5088 = vmatprep.subr.mxu0 0.0
        %5089 = vmatpush1.msra.mxu0 0.0
        %5090 = vmatprep.subr.mxu0 0.0
        %5091 = vmatpush1.msra.mxu0 0.0
        %5092 = vmatprep.subr.mxu0 0.0
        %5093 = vmatpush1.msra.mxu0 0.0
        %5094 = vmatprep.subr.mxu0 0.0
        %5095 = vmatpush1.msra.mxu0 0.0
        %5096 = vmatprep.subr.mxu0 0.0
        %5097 = vmatpush1.msra.mxu0 0.0
        %5098 = vmatprep.subr.mxu0 0.0
        %5099 = vmatpush1.msra.mxu0 0.0
        %5100 = vmatprep.subr.mxu0 0.0
        %5101 = vmatpush1.msra.mxu0 0.0
        %5102 = vmatprep.subr.mxu0 0.0
        %5103 = vmatpush1.msra.mxu0 0.0
        %5104 = vmatprep.subr.mxu0 0.0
        %5105 = vmatpush1.msra.mxu0 0.0
        %5106 = vmatprep.subr.mxu0 0.0
        %5107 = vmatpush1.msra.mxu0 0.0
        %5108 = vmatprep.subr.mxu0 0.0
        %5109 = vmatpush1.msra.mxu0 0.0
        %5110 = vmatprep.subr.mxu0 0.0
        %5111 = vmatpush1.msra.mxu0 0.0
        %5112 = vmatprep.subr.mxu0 0.0
        %5113 = vmatpush1.msra.mxu0 0.0
        %5114 = vmatprep.subr.mxu0 0.0
        %5115 = vmatpush1.msra.mxu0 0.0
        %5116 = vmatprep.subr.mxu0 0.0
        %5117 = vmatpush1.msra.mxu0 0.0
        %5118 = vmatprep.subr.mxu0 0.0
        %5119 = vmatpush1.msra.mxu0 0.0
        %5120 = vmatprep.subr.mxu0 0.0
        %5121 = vmatpush1.msra.mxu0 0.0
        %5122 = vmatprep.subr.mxu0 0.0
        %5123 = vmatpush1.msra.mxu0 0.0
        %5124 = vmatprep.subr.mxu0 0.0
        %5125 = vmatpush1.msra.mxu0 0.0
        %5126 = vmatprep.subr.mxu0 0.0
        %5127 = vmatpush1.msra.mxu0 0.0
        %5128 = vmatprep.mubr.f32.mxu0 0.0
        %v5129 = vand.u32 %v4884, 4294901760
        %v5130 = vsub.f32 %v4884, %v5129
        %5131 = vmatmul.mubr.f32.gmra.mrb[0].mxu0 %v5130
        %v5132 = vpop.f32.mrb[0].mxu0
        %v5133 = vadd.f32 %v5053, %v5132
        %v5134 = vpop.f32.mrb[0].mxu0
        %5135 = vdwg.mxu0
        %5136 = vmatprep.subr.mxu0 0.0
        %v5137 = vand.u32 %v3466, 4294901760
        %5138 = vmatpush1.msra.mxu0 %v5137
        %5139 = vmatprep.subr.mxu0 0.0
        %v5140 = vand.u32 %v3467, 4294901760
        %5141 = vmatpush1.msra.mxu0 %v5140
        %5142 = vmatprep.subr.mxu0 0.0
        %v5143 = vand.u32 %v3468, 4294901760
        %5144 = vmatpush1.msra.mxu0 %v5143
        %5145 = vmatprep.subr.mxu0 0.0
        %v5146 = vand.u32 %v3469, 4294901760
        %5147 = vmatpush1.msra.mxu0 %v5146
        %5148 = vmatprep.subr.mxu0 0.0
        %5149 = vmatpush1.msra.mxu0 0.0
        %5150 = vmatprep.subr.mxu0 0.0
        %5151 = vmatpush1.msra.mxu0 0.0
        %5152 = vmatprep.subr.mxu0 0.0
        %5153 = vmatpush1.msra.mxu0 0.0
        %5154 = vmatprep.subr.mxu0 0.0
        %5155 = vmatpush1.msra.mxu0 0.0
        %5156 = vmatprep.subr.mxu0 0.0
        %5157 = vmatpush1.msra.mxu0 0.0
        %5158 = vmatprep.subr.mxu0 0.0
        %5159 = vmatpush1.msra.mxu0 0.0
        %5160 = vmatprep.subr.mxu0 0.0
        %5161 = vmatpush1.msra.mxu0 0.0
        %5162 = vmatprep.subr.mxu0 0.0
        %5163 = vmatpush1.msra.mxu0 0.0
        %5164 = vmatprep.subr.mxu0 0.0
        %5165 = vmatpush1.msra.mxu0 0.0
        %5166 = vmatprep.subr.mxu0 0.0
        %5167 = vmatpush1.msra.mxu0 0.0
        %5168 = vmatprep.subr.mxu0 0.0
        %5169 = vmatpush1.msra.mxu0 0.0
        %5170 = vmatprep.subr.mxu0 0.0
        %5171 = vmatpush1.msra.mxu0 0.0
        %5172 = vmatprep.subr.mxu0 0.0
        %5173 = vmatpush1.msra.mxu0 0.0
        %5174 = vmatprep.subr.mxu0 0.0
        %5175 = vmatpush1.msra.mxu0 0.0
        %5176 = vmatprep.subr.mxu0 0.0
        %5177 = vmatpush1.msra.mxu0 0.0
        %5178 = vmatprep.subr.mxu0 0.0
        %5179 = vmatpush1.msra.mxu0 0.0
        %5180 = vmatprep.subr.mxu0 0.0
        %5181 = vmatpush1.msra.mxu0 0.0
        %5182 = vmatprep.subr.mxu0 0.0
        %5183 = vmatpush1.msra.mxu0 0.0
        %5184 = vmatprep.subr.mxu0 0.0
        %5185 = vmatpush1.msra.mxu0 0.0
        %5186 = vmatprep.subr.mxu0 0.0
        %5187 = vmatpush1.msra.mxu0 0.0
        %5188 = vmatprep.subr.mxu0 0.0
        %5189 = vmatpush1.msra.mxu0 0.0
        %5190 = vmatprep.subr.mxu0 0.0
        %5191 = vmatpush1.msra.mxu0 0.0
        %5192 = vmatprep.subr.mxu0 0.0
        %5193 = vmatpush1.msra.mxu0 0.0
        %5194 = vmatprep.subr.mxu0 0.0
        %5195 = vmatpush1.msra.mxu0 0.0
        %5196 = vmatprep.subr.mxu0 0.0
        %5197 = vmatpush1.msra.mxu0 0.0
        %5198 = vmatprep.subr.mxu0 0.0
        %5199 = vmatpush1.msra.mxu0 0.0
        %5200 = vmatprep.subr.mxu0 0.0
        %5201 = vmatpush1.msra.mxu0 0.0
        %5202 = vmatprep.subr.mxu0 0.0
        %5203 = vmatpush1.msra.mxu0 0.0
        %5204 = vmatprep.mubr.f32.mxu0 0.0
        %v5205 = vand.u32 %v4884, 4294901760
        %v5206 = vsub.f32 %v4884, %v5205
        %v5207 = vand.u32 %v5206, 4294901760
        %5208 = vmatmul.mubr.f32.gmra.mrb[0].mxu0 %v5207
        %v5209 = vpop.f32.mrb[0].mxu0
        %v5210 = vadd.f32 %v5133, %v5209
        %v5211 = vpop.f32.mrb[0].mxu0
        %5212 = vdwg.mxu0
        %5213 = vmatprep.subr.mxu0 0.0
        %v5214 = vand.u32 %v3466, 4294901760
        %v5215 = vsub.f32 %v3466, %v5214
        %v5216 = vand.u32 %v5215, 4294901760
        %5217 = vmatpush1.msra.mxu0 %v5216
        %5218 = vmatprep.subr.mxu0 0.0
        %v5219 = vand.u32 %v3467, 4294901760
        %v5220 = vsub.f32 %v3467, %v5219
        %v5221 = vand.u32 %v5220, 4294901760
        %5222 = vmatpush1.msra.mxu0 %v5221
        %5223 = vmatprep.subr.mxu0 0.0
        %v5224 = vand.u32 %v3468, 4294901760
        %v5225 = vsub.f32 %v3468, %v5224
        %v5226 = vand.u32 %v5225, 4294901760
        %5227 = vmatpush1.msra.mxu0 %v5226
        %5228 = vmatprep.subr.mxu0 0.0
        %v5229 = vand.u32 %v3469, 4294901760
        %v5230 = vsub.f32 %v3469, %v5229
        %v5231 = vand.u32 %v5230, 4294901760
        %5232 = vmatpush1.msra.mxu0 %v5231
        %5233 = vmatprep.subr.mxu0 0.0
        %5234 = vmatpush1.msra.mxu0 0.0
        %5235 = vmatprep.subr.mxu0 0.0
        %5236 = vmatpush1.msra.mxu0 0.0
        %5237 = vmatprep.subr.mxu0 0.0
        %5238 = vmatpush1.msra.mxu0 0.0
        %5239 = vmatprep.subr.mxu0 0.0
        %5240 = vmatpush1.msra.mxu0 0.0
        %5241 = vmatprep.subr.mxu0 0.0
        %5242 = vmatpush1.msra.mxu0 0.0
        %5243 = vmatprep.subr.mxu0 0.0
        %5244 = vmatpush1.msra.mxu0 0.0
        %5245 = vmatprep.subr.mxu0 0.0
        %5246 = vmatpush1.msra.mxu0 0.0
        %5247 = vmatprep.subr.mxu0 0.0
        %5248 = vmatpush1.msra.mxu0 0.0
        %5249 = vmatprep.subr.mxu0 0.0
        %5250 = vmatpush1.msra.mxu0 0.0
        %5251 = vmatprep.subr.mxu0 0.0
        %5252 = vmatpush1.msra.mxu0 0.0
        %5253 = vmatprep.subr.mxu0 0.0
        %5254 = vmatpush1.msra.mxu0 0.0
        %5255 = vmatprep.subr.mxu0 0.0
        %5256 = vmatpush1.msra.mxu0 0.0
        %5257 = vmatprep.subr.mxu0 0.0
        %5258 = vmatpush1.msra.mxu0 0.0
        %5259 = vmatprep.subr.mxu0 0.0
        %5260 = vmatpush1.msra.mxu0 0.0
        %5261 = vmatprep.subr.mxu0 0.0
        %5262 = vmatpush1.msra.mxu0 0.0
        %5263 = vmatprep.subr.mxu0 0.0
        %5264 = vmatpush1.msra.mxu0 0.0
        %5265 = vmatprep.subr.mxu0 0.0
        %5266 = vmatpush1.msra.mxu0 0.0
        %5267 = vmatprep.subr.mxu0 0.0
        %5268 = vmatpush1.msra.mxu0 0.0
        %5269 = vmatprep.subr.mxu0 0.0
        %5270 = vmatpush1.msra.mxu0 0.0
        %5271 = vmatprep.subr.mxu0 0.0
        %5272 = vmatpush1.msra.mxu0 0.0
        %5273 = vmatprep.subr.mxu0 0.0
        %5274 = vmatpush1.msra.mxu0 0.0
        %5275 = vmatprep.subr.mxu0 0.0
        %5276 = vmatpush1.msra.mxu0 0.0
        %5277 = vmatprep.subr.mxu0 0.0
        %5278 = vmatpush1.msra.mxu0 0.0
        %5279 = vmatprep.subr.mxu0 0.0
        %5280 = vmatpush1.msra.mxu0 0.0
        %5281 = vmatprep.subr.mxu0 0.0
        %5282 = vmatpush1.msra.mxu0 0.0
        %5283 = vmatprep.subr.mxu0 0.0
        %5284 = vmatpush1.msra.mxu0 0.0
        %5285 = vmatprep.subr.mxu0 0.0
        %5286 = vmatpush1.msra.mxu0 0.0
        %5287 = vmatprep.subr.mxu0 0.0
        %5288 = vmatpush1.msra.mxu0 0.0
        %5289 = vmatprep.mubr.f32.mxu0 0.0
        %v5290 = vand.u32 %v4884, 4294901760
        %5291 = vmatmul.mubr.f32.gmra.mrb[0].mxu0 %v5290
        %v5292 = vpop.f32.mrb[0].mxu0
        %v5293 = vadd.f32 %v5210, %v5292
        %v5294 = vpop.f32.mrb[0].mxu0
        %5295 = vdwg.mxu0
        %5296 = vmatprep.subr.mxu0 0.0
        %v5297 = vand.u32 %v3466, 4294901760
        %5298 = vmatpush1.msra.mxu0 %v5297
        %5299 = vmatprep.subr.mxu0 0.0
        %v5300 = vand.u32 %v3467, 4294901760
        %5301 = vmatpush1.msra.mxu0 %v5300
        %5302 = vmatprep.subr.mxu0 0.0
        %v5303 = vand.u32 %v3468, 4294901760
        %5304 = vmatpush1.msra.mxu0 %v5303
        %5305 = vmatprep.subr.mxu0 0.0
        %v5306 = vand.u32 %v3469, 4294901760
        %5307 = vmatpush1.msra.mxu0 %v5306
        %5308 = vmatprep.subr.mxu0 0.0
        %5309 = vmatpush1.msra.mxu0 0.0
        %5310 = vmatprep.subr.mxu0 0.0
        %5311 = vmatpush1.msra.mxu0 0.0
        %5312 = vmatprep.subr.mxu0 0.0
        %5313 = vmatpush1.msra.mxu0 0.0
        %5314 = vmatprep.subr.mxu0 0.0
        %5315 = vmatpush1.msra.mxu0 0.0
        %5316 = vmatprep.subr.mxu0 0.0
        %5317 = vmatpush1.msra.mxu0 0.0
        %5318 = vmatprep.subr.mxu0 0.0
        %5319 = vmatpush1.msra.mxu0 0.0
        %5320 = vmatprep.subr.mxu0 0.0
        %5321 = vmatpush1.msra.mxu0 0.0
        %5322 = vmatprep.subr.mxu0 0.0
        %5323 = vmatpush1.msra.mxu0 0.0
        %5324 = vmatprep.subr.mxu0 0.0
        %5325 = vmatpush1.msra.mxu0 0.0
        %5326 = vmatprep.subr.mxu0 0.0
        %5327 = vmatpush1.msra.mxu0 0.0
        %5328 = vmatprep.subr.mxu0 0.0
        %5329 = vmatpush1.msra.mxu0 0.0
        %5330 = vmatprep.subr.mxu0 0.0
        %5331 = vmatpush1.msra.mxu0 0.0
        %5332 = vmatprep.subr.mxu0 0.0
        %5333 = vmatpush1.msra.mxu0 0.0
        %5334 = vmatprep.subr.mxu0 0.0
        %5335 = vmatpush1.msra.mxu0 0.0
        %5336 = vmatprep.subr.mxu0 0.0
        %5337 = vmatpush1.msra.mxu0 0.0
        %5338 = vmatprep.subr.mxu0 0.0
        %5339 = vmatpush1.msra.mxu0 0.0
        %5340 = vmatprep.subr.mxu0 0.0
        %5341 = vmatpush1.msra.mxu0 0.0
        %5342 = vmatprep.subr.mxu0 0.0
        %5343 = vmatpush1.msra.mxu0 0.0
        %5344 = vmatprep.subr.mxu0 0.0
        %5345 = vmatpush1.msra.mxu0 0.0
        %5346 = vmatprep.subr.mxu0 0.0
        %5347 = vmatpush1.msra.mxu0 0.0
        %5348 = vmatprep.subr.mxu0 0.0
        %5349 = vmatpush1.msra.mxu0 0.0
        %5350 = vmatprep.subr.mxu0 0.0
        %5351 = vmatpush1.msra.mxu0 0.0
        %5352 = vmatprep.subr.mxu0 0.0
        %5353 = vmatpush1.msra.mxu0 0.0
        %5354 = vmatprep.subr.mxu0 0.0
        %5355 = vmatpush1.msra.mxu0 0.0
        %5356 = vmatprep.subr.mxu0 0.0
        %5357 = vmatpush1.msra.mxu0 0.0
        %5358 = vmatprep.subr.mxu0 0.0
        %5359 = vmatpush1.msra.mxu0 0.0
        %5360 = vmatprep.subr.mxu0 0.0
        %5361 = vmatpush1.msra.mxu0 0.0
        %5362 = vmatprep.subr.mxu0 0.0
        %5363 = vmatpush1.msra.mxu0 0.0
        %5364 = vmatprep.mubr.f32.mxu0 0.0
        %v5365 = vand.u32 %v4884, 4294901760
        %5366 = vmatmul.mubr.f32.gmra.mrb[0].mxu0 %v5365
        %v5367 = vpop.f32.mrb[0].mxu0
        %v5368 = vadd.f32 %v5293, %v5367
        %v5369 = vpop.f32.mrb[0].mxu0
        %5370 = vdwg.mxu0
        %5371 = vrot.lane.b32.xlu0 %v1215, 64
        %v5372 = vpop.permute.xlu0 %5371
        %5373 = vrot.lane.b32.xlu0 %v1879, 64
        %v5374 = vpop.permute.xlu0 %5373
        %v5375 = vsel %vm2549, %v5372, 0
        %v5377 = vsel %vm2549, %v5374, 0
        %5379 = vmatprep.subr.mxu0 0.0
        %v5380 = vand.u32 %v5377, 4294901760
        %5381 = vmatpush1.xpose.msra.mxu0 %v5380
        %5382 = vmatprep.subr.mxu0 0.0
        %5383 = vmatpush1.xpose.msra.mxu0 0.0
        %5384 = vmatprep.subr.mxu0 0.0
        %5385 = vmatpush1.xpose.msra.mxu0 0.0
        %5386 = vmatprep.subr.mxu0 0.0
        %5387 = vmatpush1.xpose.msra.mxu0 0.0
        %5388 = vmatprep.subr.mxu0 0.0
        %5389 = vmatpush1.xpose.msra.mxu0 0.0
        %5390 = vmatprep.subr.mxu0 0.0
        %5391 = vmatpush1.xpose.msra.mxu0 0.0
        %5392 = vmatprep.subr.mxu0 0.0
        %5393 = vmatpush1.xpose.msra.mxu0 0.0
        %5394 = vmatprep.subr.mxu0 0.0
        %5395 = vmatpush1.xpose.msra.mxu0 0.0
        %5396 = vmatprep.subr.mxu0 0.0
        %5397 = vmatpush1.xpose.msra.mxu0 0.0
        %5398 = vmatprep.subr.mxu0 0.0
        %5399 = vmatpush1.xpose.msra.mxu0 0.0
        %5400 = vmatprep.subr.mxu0 0.0
        %5401 = vmatpush1.xpose.msra.mxu0 0.0
        %5402 = vmatprep.subr.mxu0 0.0
        %5403 = vmatpush1.xpose.msra.mxu0 0.0
        %5404 = vmatprep.subr.mxu0 0.0
        %5405 = vmatpush1.xpose.msra.mxu0 0.0
        %5406 = vmatprep.subr.mxu0 0.0
        %5407 = vmatpush1.xpose.msra.mxu0 0.0
        %5408 = vmatprep.subr.mxu0 0.0
        %5409 = vmatpush1.xpose.msra.mxu0 0.0
        %5410 = vmatprep.subr.mxu0 0.0
        %5411 = vmatpush1.xpose.msra.mxu0 0.0
        %5412 = vmatprep.subr.mxu0 0.0
        %5413 = vmatpush1.xpose.msra.mxu0 0.0
        %5414 = vmatprep.subr.mxu0 0.0
        %5415 = vmatpush1.xpose.msra.mxu0 0.0
        %5416 = vmatprep.subr.mxu0 0.0
        %5417 = vmatpush1.xpose.msra.mxu0 0.0
        %5418 = vmatprep.subr.mxu0 0.0
        %5419 = vmatpush1.xpose.msra.mxu0 0.0
        %5420 = vmatprep.subr.mxu0 0.0
        %5421 = vmatpush1.xpose.msra.mxu0 0.0
        %5422 = vmatprep.subr.mxu0 0.0
        %5423 = vmatpush1.xpose.msra.mxu0 0.0
        %5424 = vmatprep.subr.mxu0 0.0
        %5425 = vmatpush1.xpose.msra.mxu0 0.0
        %5426 = vmatprep.subr.mxu0 0.0
        %5427 = vmatpush1.xpose.msra.mxu0 0.0
        %5428 = vmatprep.subr.mxu0 0.0
        %5429 = vmatpush1.xpose.msra.mxu0 0.0
        %5430 = vmatprep.subr.mxu0 0.0
        %5431 = vmatpush1.xpose.msra.mxu0 0.0
        %5432 = vmatprep.subr.mxu0 0.0
        %5433 = vmatpush1.xpose.msra.mxu0 0.0
        %5434 = vmatprep.subr.mxu0 0.0
        %5435 = vmatpush1.xpose.msra.mxu0 0.0
        %5436 = vmatprep.subr.mxu0 0.0
        %5437 = vmatpush1.xpose.msra.mxu0 0.0
        %5438 = vmatprep.subr.mxu0 0.0
        %5439 = vmatpush1.xpose.msra.mxu0 0.0
        %5440 = vmatprep.subr.mxu0 0.0
        %5441 = vmatpush1.xpose.msra.mxu0 0.0
        %5442 = vmatprep.subr.mxu0 0.0
        %5443 = vmatpush1.xpose.msra.mxu0 0.0
        %5444 = vmatprep.mubr.f32.mxu0 0.0
        %v5445 = vand.u32 %v5375, 4294901760
        %v5446 = vsub.f32 %v5375, %v5445
        %v5447 = vand.u32 %v5446, 4294901760
        %v5448 = vsub.f32 %v5446, %v5447
        %v5449 = vand.u32 %v5448, 4294901760
        %5450 = vmatmul.mubr.f32.gmra.mrb[0].mxu0 %v5449
        %v5451 = vpop.f32.mrb[0].mxu0
        %v5452 = vadd.f32 0.0, %v5451
        %v5453 = vpop.f32.mrb[0].mxu0
        %5454 = vdwg.mxu0
        %5455 = vmatprep.subr.mxu0 0.0
        %v5456 = vand.u32 %v5377, 4294901760
        %v5457 = vsub.f32 %v5377, %v5456
        %v5458 = vand.u32 %v5457, 4294901760
        %v5459 = vsub.f32 %v5457, %v5458
        %v5460 = vand.u32 %v5459, 4294901760
        %5461 = vmatpush1.xpose.msra.mxu0 %v5460
        %5462 = vmatprep.subr.mxu0 0.0
        %5463 = vmatpush1.xpose.msra.mxu0 0.0
        %5464 = vmatprep.subr.mxu0 0.0
        %5465 = vmatpush1.xpose.msra.mxu0 0.0
        %5466 = vmatprep.subr.mxu0 0.0
        %5467 = vmatpush1.xpose.msra.mxu0 0.0
        %5468 = vmatprep.subr.mxu0 0.0
        %5469 = vmatpush1.xpose.msra.mxu0 0.0
        %5470 = vmatprep.subr.mxu0 0.0
        %5471 = vmatpush1.xpose.msra.mxu0 0.0
        %5472 = vmatprep.subr.mxu0 0.0
        %5473 = vmatpush1.xpose.msra.mxu0 0.0
        %5474 = vmatprep.subr.mxu0 0.0
        %5475 = vmatpush1.xpose.msra.mxu0 0.0
        %5476 = vmatprep.subr.mxu0 0.0
        %5477 = vmatpush1.xpose.msra.mxu0 0.0
        %5478 = vmatprep.subr.mxu0 0.0
        %5479 = vmatpush1.xpose.msra.mxu0 0.0
        %5480 = vmatprep.subr.mxu0 0.0
        %5481 = vmatpush1.xpose.msra.mxu0 0.0
        %5482 = vmatprep.subr.mxu0 0.0
        %5483 = vmatpush1.xpose.msra.mxu0 0.0
        %5484 = vmatprep.subr.mxu0 0.0
        %5485 = vmatpush1.xpose.msra.mxu0 0.0
        %5486 = vmatprep.subr.mxu0 0.0
        %5487 = vmatpush1.xpose.msra.mxu0 0.0
        %5488 = vmatprep.subr.mxu0 0.0
        %5489 = vmatpush1.xpose.msra.mxu0 0.0
        %5490 = vmatprep.subr.mxu0 0.0
        %5491 = vmatpush1.xpose.msra.mxu0 0.0
        %5492 = vmatprep.subr.mxu0 0.0
        %5493 = vmatpush1.xpose.msra.mxu0 0.0
        %5494 = vmatprep.subr.mxu0 0.0
        %5495 = vmatpush1.xpose.msra.mxu0 0.0
        %5496 = vmatprep.subr.mxu0 0.0
        %5497 = vmatpush1.xpose.msra.mxu0 0.0
        %5498 = vmatprep.subr.mxu0 0.0
        %5499 = vmatpush1.xpose.msra.mxu0 0.0
        %5500 = vmatprep.subr.mxu0 0.0
        %5501 = vmatpush1.xpose.msra.mxu0 0.0
        %5502 = vmatprep.subr.mxu0 0.0
        %5503 = vmatpush1.xpose.msra.mxu0 0.0
        %5504 = vmatprep.subr.mxu0 0.0
        %5505 = vmatpush1.xpose.msra.mxu0 0.0
        %5506 = vmatprep.subr.mxu0 0.0
        %5507 = vmatpush1.xpose.msra.mxu0 0.0
        %5508 = vmatprep.subr.mxu0 0.0
        %5509 = vmatpush1.xpose.msra.mxu0 0.0
        %5510 = vmatprep.subr.mxu0 0.0
        %5511 = vmatpush1.xpose.msra.mxu0 0.0
        %5512 = vmatprep.subr.mxu0 0.0
        %5513 = vmatpush1.xpose.msra.mxu0 0.0
        %5514 = vmatprep.subr.mxu0 0.0
        %5515 = vmatpush1.xpose.msra.mxu0 0.0
        %5516 = vmatprep.subr.mxu0 0.0
        %5517 = vmatpush1.xpose.msra.mxu0 0.0
        %5518 = vmatprep.subr.mxu0 0.0
        %5519 = vmatpush1.xpose.msra.mxu0 0.0
        %5520 = vmatprep.subr.mxu0 0.0
        %5521 = vmatpush1.xpose.msra.mxu0 0.0
        %5522 = vmatprep.subr.mxu0 0.0
        %5523 = vmatpush1.xpose.msra.mxu0 0.0
        %5524 = vmatprep.mubr.f32.mxu0 0.0
        %v5525 = vand.u32 %v5375, 4294901760
        %5526 = vmatmul.mubr.f32.gmra.mrb[0].mxu0 %v5525
        %v5527 = vpop.f32.mrb[0].mxu0
        %v5528 = vadd.f32 %v5452, %v5527
        %v5529 = vpop.f32.mrb[0].mxu0
        %5530 = vdwg.mxu0
        %5531 = vmatprep.subr.mxu0 0.0
        %v5532 = vand.u32 %v5377, 4294901760
        %v5533 = vsub.f32 %v5377, %v5532
        %5534 = vmatpush1.xpose.msra.mxu0 %v5533
        %5535 = vmatprep.subr.mxu0 0.0
        %5536 = vmatpush1.xpose.msra.mxu0 0.0
        %5537 = vmatprep.subr.mxu0 0.0
        %5538 = vmatpush1.xpose.msra.mxu0 0.0
        %5539 = vmatprep.subr.mxu0 0.0
        %5540 = vmatpush1.xpose.msra.mxu0 0.0
        %5541 = vmatprep.subr.mxu0 0.0
        %5542 = vmatpush1.xpose.msra.mxu0 0.0
        %5543 = vmatprep.subr.mxu0 0.0
        %5544 = vmatpush1.xpose.msra.mxu0 0.0
        %5545 = vmatprep.subr.mxu0 0.0
        %5546 = vmatpush1.xpose.msra.mxu0 0.0
        %5547 = vmatprep.subr.mxu0 0.0
        %5548 = vmatpush1.xpose.msra.mxu0 0.0
        %5549 = vmatprep.subr.mxu0 0.0
        %5550 = vmatpush1.xpose.msra.mxu0 0.0
        %5551 = vmatprep.subr.mxu0 0.0
        %5552 = vmatpush1.xpose.msra.mxu0 0.0
        %5553 = vmatprep.subr.mxu0 0.0
        %5554 = vmatpush1.xpose.msra.mxu0 0.0
        %5555 = vmatprep.subr.mxu0 0.0
        %5556 = vmatpush1.xpose.msra.mxu0 0.0
        %5557 = vmatprep.subr.mxu0 0.0
        %5558 = vmatpush1.xpose.msra.mxu0 0.0
        %5559 = vmatprep.subr.mxu0 0.0
        %5560 = vmatpush1.xpose.msra.mxu0 0.0
        %5561 = vmatprep.subr.mxu0 0.0
        %5562 = vmatpush1.xpose.msra.mxu0 0.0
        %5563 = vmatprep.subr.mxu0 0.0
        %5564 = vmatpush1.xpose.msra.mxu0 0.0
        %5565 = vmatprep.subr.mxu0 0.0
        %5566 = vmatpush1.xpose.msra.mxu0 0.0
        %5567 = vmatprep.subr.mxu0 0.0
        %5568 = vmatpush1.xpose.msra.mxu0 0.0
        %5569 = vmatprep.subr.mxu0 0.0
        %5570 = vmatpush1.xpose.msra.mxu0 0.0
        %5571 = vmatprep.subr.mxu0 0.0
        %5572 = vmatpush1.xpose.msra.mxu0 0.0
        %5573 = vmatprep.subr.mxu0 0.0
        %5574 = vmatpush1.xpose.msra.mxu0 0.0
        %5575 = vmatprep.subr.mxu0 0.0
        %5576 = vmatpush1.xpose.msra.mxu0 0.0
        %5577 = vmatprep.subr.mxu0 0.0
        %5578 = vmatpush1.xpose.msra.mxu0 0.0
        %5579 = vmatprep.subr.mxu0 0.0
        %5580 = vmatpush1.xpose.msra.mxu0 0.0
        %5581 = vmatprep.subr.mxu0 0.0
        %5582 = vmatpush1.xpose.msra.mxu0 0.0
        %5583 = vmatprep.subr.mxu0 0.0
        %5584 = vmatpush1.xpose.msra.mxu0 0.0
        %5585 = vmatprep.subr.mxu0 0.0
        %5586 = vmatpush1.xpose.msra.mxu0 0.0
        %5587 = vmatprep.subr.mxu0 0.0
        %5588 = vmatpush1.xpose.msra.mxu0 0.0
        %5589 = vmatprep.subr.mxu0 0.0
        %5590 = vmatpush1.xpose.msra.mxu0 0.0
        %5591 = vmatprep.subr.mxu0 0.0
        %5592 = vmatpush1.xpose.msra.mxu0 0.0
        %5593 = vmatprep.subr.mxu0 0.0
        %5594 = vmatpush1.xpose.msra.mxu0 0.0
        %5595 = vmatprep.subr.mxu0 0.0
        %5596 = vmatpush1.xpose.msra.mxu0 0.0
        %5597 = vmatprep.mubr.f32.mxu0 0.0
        %v5598 = vand.u32 %v5375, 4294901760
        %v5599 = vsub.f32 %v5375, %v5598
        %5600 = vmatmul.mubr.f32.gmra.mrb[0].mxu0 %v5599
        %v5601 = vpop.f32.mrb[0].mxu0
        %v5602 = vadd.f32 %v5528, %v5601
        %v5603 = vpop.f32.mrb[0].mxu0
        %5604 = vdwg.mxu0
        %5605 = vmatprep.subr.mxu0 0.0
        %v5606 = vand.u32 %v5377, 4294901760
        %5607 = vmatpush1.xpose.msra.mxu0 %v5606
        %5608 = vmatprep.subr.mxu0 0.0
        %5609 = vmatpush1.xpose.msra.mxu0 0.0
        %5610 = vmatprep.subr.mxu0 0.0
        %5611 = vmatpush1.xpose.msra.mxu0 0.0
        %5612 = vmatprep.subr.mxu0 0.0
        %5613 = vmatpush1.xpose.msra.mxu0 0.0
        %5614 = vmatprep.subr.mxu0 0.0
        %5615 = vmatpush1.xpose.msra.mxu0 0.0
        %5616 = vmatprep.subr.mxu0 0.0
        %5617 = vmatpush1.xpose.msra.mxu0 0.0
        %5618 = vmatprep.subr.mxu0 0.0
        %5619 = vmatpush1.xpose.msra.mxu0 0.0
        %5620 = vmatprep.subr.mxu0 0.0
        %5621 = vmatpush1.xpose.msra.mxu0 0.0
        %5622 = vmatprep.subr.mxu0 0.0
        %5623 = vmatpush1.xpose.msra.mxu0 0.0
        %5624 = vmatprep.subr.mxu0 0.0
        %5625 = vmatpush1.xpose.msra.mxu0 0.0
        %5626 = vmatprep.subr.mxu0 0.0
        %5627 = vmatpush1.xpose.msra.mxu0 0.0
        %5628 = vmatprep.subr.mxu0 0.0
        %5629 = vmatpush1.xpose.msra.mxu0 0.0
        %5630 = vmatprep.subr.mxu0 0.0
        %5631 = vmatpush1.xpose.msra.mxu0 0.0
        %5632 = vmatprep.subr.mxu0 0.0
        %5633 = vmatpush1.xpose.msra.mxu0 0.0
        %5634 = vmatprep.subr.mxu0 0.0
        %5635 = vmatpush1.xpose.msra.mxu0 0.0
        %5636 = vmatprep.subr.mxu0 0.0
        %5637 = vmatpush1.xpose.msra.mxu0 0.0
        %5638 = vmatprep.subr.mxu0 0.0
        %5639 = vmatpush1.xpose.msra.mxu0 0.0
        %5640 = vmatprep.subr.mxu0 0.0
        %5641 = vmatpush1.xpose.msra.mxu0 0.0
        %5642 = vmatprep.subr.mxu0 0.0
        %5643 = vmatpush1.xpose.msra.mxu0 0.0
        %5644 = vmatprep.subr.mxu0 0.0
        %5645 = vmatpush1.xpose.msra.mxu0 0.0
        %5646 = vmatprep.subr.mxu0 0.0
        %5647 = vmatpush1.xpose.msra.mxu0 0.0
        %5648 = vmatprep.subr.mxu0 0.0
        %5649 = vmatpush1.xpose.msra.mxu0 0.0
        %5650 = vmatprep.subr.mxu0 0.0
        %5651 = vmatpush1.xpose.msra.mxu0 0.0
        %5652 = vmatprep.subr.mxu0 0.0
        %5653 = vmatpush1.xpose.msra.mxu0 0.0
        %5654 = vmatprep.subr.mxu0 0.0
        %5655 = vmatpush1.xpose.msra.mxu0 0.0
        %5656 = vmatprep.subr.mxu0 0.0
        %5657 = vmatpush1.xpose.msra.mxu0 0.0
        %5658 = vmatprep.subr.mxu0 0.0
        %5659 = vmatpush1.xpose.msra.mxu0 0.0
        %5660 = vmatprep.subr.mxu0 0.0
        %5661 = vmatpush1.xpose.msra.mxu0 0.0
        %5662 = vmatprep.subr.mxu0 0.0
        %5663 = vmatpush1.xpose.msra.mxu0 0.0
        %5664 = vmatprep.subr.mxu0 0.0
        %5665 = vmatpush1.xpose.msra.mxu0 0.0
        %5666 = vmatprep.subr.mxu0 0.0
        %5667 = vmatpush1.xpose.msra.mxu0 0.0
        %5668 = vmatprep.subr.mxu0 0.0
        %5669 = vmatpush1.xpose.msra.mxu0 0.0
        %5670 = vmatprep.mubr.f32.mxu0 0.0
        %v5671 = vand.u32 %v5375, 4294901760
        %v5672 = vsub.f32 %v5375, %v5671
        %v5673 = vand.u32 %v5672, 4294901760
        %5674 = vmatmul.mubr.f32.gmra.mrb[0].mxu0 %v5673
        %v5675 = vpop.f32.mrb[0].mxu0
        %v5676 = vadd.f32 %v5602, %v5675
        %v5677 = vpop.f32.mrb[0].mxu0
        %5678 = vdwg.mxu0
        %5679 = vmatprep.subr.mxu0 0.0
        %v5680 = vand.u32 %v5377, 4294901760
        %v5681 = vsub.f32 %v5377, %v5680
        %v5682 = vand.u32 %v5681, 4294901760
        %5683 = vmatpush1.xpose.msra.mxu0 %v5682
        %5684 = vmatprep.subr.mxu0 0.0
        %5685 = vmatpush1.xpose.msra.mxu0 0.0
        %5686 = vmatprep.subr.mxu0 0.0
        %5687 = vmatpush1.xpose.msra.mxu0 0.0
        %5688 = vmatprep.subr.mxu0 0.0
        %5689 = vmatpush1.xpose.msra.mxu0 0.0
        %5690 = vmatprep.subr.mxu0 0.0
        %5691 = vmatpush1.xpose.msra.mxu0 0.0
        %5692 = vmatprep.subr.mxu0 0.0
        %5693 = vmatpush1.xpose.msra.mxu0 0.0
        %5694 = vmatprep.subr.mxu0 0.0
        %5695 = vmatpush1.xpose.msra.mxu0 0.0
        %5696 = vmatprep.subr.mxu0 0.0
        %5697 = vmatpush1.xpose.msra.mxu0 0.0
        %5698 = vmatprep.subr.mxu0 0.0
        %5699 = vmatpush1.xpose.msra.mxu0 0.0
        %5700 = vmatprep.subr.mxu0 0.0
        %5701 = vmatpush1.xpose.msra.mxu0 0.0
        %5702 = vmatprep.subr.mxu0 0.0
        %5703 = vmatpush1.xpose.msra.mxu0 0.0
        %5704 = vmatprep.subr.mxu0 0.0
        %5705 = vmatpush1.xpose.msra.mxu0 0.0
        %5706 = vmatprep.subr.mxu0 0.0
        %5707 = vmatpush1.xpose.msra.mxu0 0.0
        %5708 = vmatprep.subr.mxu0 0.0
        %5709 = vmatpush1.xpose.msra.mxu0 0.0
        %5710 = vmatprep.subr.mxu0 0.0
        %5711 = vmatpush1.xpose.msra.mxu0 0.0
        %5712 = vmatprep.subr.mxu0 0.0
        %5713 = vmatpush1.xpose.msra.mxu0 0.0
        %5714 = vmatprep.subr.mxu0 0.0
        %5715 = vmatpush1.xpose.msra.mxu0 0.0
        %5716 = vmatprep.subr.mxu0 0.0
        %5717 = vmatpush1.xpose.msra.mxu0 0.0
        %5718 = vmatprep.subr.mxu0 0.0
        %5719 = vmatpush1.xpose.msra.mxu0 0.0
        %5720 = vmatprep.subr.mxu0 0.0
        %5721 = vmatpush1.xpose.msra.mxu0 0.0
        %5722 = vmatprep.subr.mxu0 0.0
        %5723 = vmatpush1.xpose.msra.mxu0 0.0
        %5724 = vmatprep.subr.mxu0 0.0
        %5725 = vmatpush1.xpose.msra.mxu0 0.0
        %5726 = vmatprep.subr.mxu0 0.0
        %5727 = vmatpush1.xpose.msra.mxu0 0.0
        %5728 = vmatprep.subr.mxu0 0.0
        %5729 = vmatpush1.xpose.msra.mxu0 0.0
        %5730 = vmatprep.subr.mxu0 0.0
        %5731 = vmatpush1.xpose.msra.mxu0 0.0
        %5732 = vmatprep.subr.mxu0 0.0
        %5733 = vmatpush1.xpose.msra.mxu0 0.0
        %5734 = vmatprep.subr.mxu0 0.0
        %5735 = vmatpush1.xpose.msra.mxu0 0.0
        %5736 = vmatprep.subr.mxu0 0.0
        %5737 = vmatpush1.xpose.msra.mxu0 0.0
        %5738 = vmatprep.subr.mxu0 0.0
        %5739 = vmatpush1.xpose.msra.mxu0 0.0
        %5740 = vmatprep.subr.mxu0 0.0
        %5741 = vmatpush1.xpose.msra.mxu0 0.0
        %5742 = vmatprep.subr.mxu0 0.0
        %5743 = vmatpush1.xpose.msra.mxu0 0.0
        %5744 = vmatprep.subr.mxu0 0.0
        %5745 = vmatpush1.xpose.msra.mxu0 0.0
        %5746 = vmatprep.mubr.f32.mxu0 0.0
        %v5747 = vand.u32 %v5375, 4294901760
        %5748 = vmatmul.mubr.f32.gmra.mrb[0].mxu0 %v5747
        %v5749 = vpop.f32.mrb[0].mxu0
        %v5750 = vadd.f32 %v5676, %v5749
        %v5751 = vpop.f32.mrb[0].mxu0
        %5752 = vdwg.mxu0
        %5753 = vmatprep.subr.mxu0 0.0
        %v5754 = vand.u32 %v5377, 4294901760
        %5755 = vmatpush1.xpose.msra.mxu0 %v5754
        %5756 = vmatprep.subr.mxu0 0.0
        %5757 = vmatpush1.xpose.msra.mxu0 0.0
        %5758 = vmatprep.subr.mxu0 0.0
        %5759 = vmatpush1.xpose.msra.mxu0 0.0
        %5760 = vmatprep.subr.mxu0 0.0
        %5761 = vmatpush1.xpose.msra.mxu0 0.0
        %5762 = vmatprep.subr.mxu0 0.0
        %5763 = vmatpush1.xpose.msra.mxu0 0.0
        %5764 = vmatprep.subr.mxu0 0.0
        %5765 = vmatpush1.xpose.msra.mxu0 0.0
        %5766 = vmatprep.subr.mxu0 0.0
        %5767 = vmatpush1.xpose.msra.mxu0 0.0
        %5768 = vmatprep.subr.mxu0 0.0
        %5769 = vmatpush1.xpose.msra.mxu0 0.0
        %5770 = vmatprep.subr.mxu0 0.0
        %5771 = vmatpush1.xpose.msra.mxu0 0.0
        %5772 = vmatprep.subr.mxu0 0.0
        %5773 = vmatpush1.xpose.msra.mxu0 0.0
        %5774 = vmatprep.subr.mxu0 0.0
        %5775 = vmatpush1.xpose.msra.mxu0 0.0
        %5776 = vmatprep.subr.mxu0 0.0
        %5777 = vmatpush1.xpose.msra.mxu0 0.0
        %5778 = vmatprep.subr.mxu0 0.0
        %5779 = vmatpush1.xpose.msra.mxu0 0.0
        %5780 = vmatprep.subr.mxu0 0.0
        %5781 = vmatpush1.xpose.msra.mxu0 0.0
        %5782 = vmatprep.subr.mxu0 0.0
        %5783 = vmatpush1.xpose.msra.mxu0 0.0
        %5784 = vmatprep.subr.mxu0 0.0
        %5785 = vmatpush1.xpose.msra.mxu0 0.0
        %5786 = vmatprep.subr.mxu0 0.0
        %5787 = vmatpush1.xpose.msra.mxu0 0.0
        %5788 = vmatprep.subr.mxu0 0.0
        %5789 = vmatpush1.xpose.msra.mxu0 0.0
        %5790 = vmatprep.subr.mxu0 0.0
        %5791 = vmatpush1.xpose.msra.mxu0 0.0
        %5792 = vmatprep.subr.mxu0 0.0
        %5793 = vmatpush1.xpose.msra.mxu0 0.0
        %5794 = vmatprep.subr.mxu0 0.0
        %5795 = vmatpush1.xpose.msra.mxu0 0.0
        %5796 = vmatprep.subr.mxu0 0.0
        %5797 = vmatpush1.xpose.msra.mxu0 0.0
        %5798 = vmatprep.subr.mxu0 0.0
        %5799 = vmatpush1.xpose.msra.mxu0 0.0
        %5800 = vmatprep.subr.mxu0 0.0
        %5801 = vmatpush1.xpose.msra.mxu0 0.0
        %5802 = vmatprep.subr.mxu0 0.0
        %5803 = vmatpush1.xpose.msra.mxu0 0.0
        %5804 = vmatprep.subr.mxu0 0.0
        %5805 = vmatpush1.xpose.msra.mxu0 0.0
        %5806 = vmatprep.subr.mxu0 0.0
        %5807 = vmatpush1.xpose.msra.mxu0 0.0
        %5808 = vmatprep.subr.mxu0 0.0
        %5809 = vmatpush1.xpose.msra.mxu0 0.0
        %5810 = vmatprep.subr.mxu0 0.0
        %5811 = vmatpush1.xpose.msra.mxu0 0.0
        %5812 = vmatprep.subr.mxu0 0.0
        %5813 = vmatpush1.xpose.msra.mxu0 0.0
        %5814 = vmatprep.subr.mxu0 0.0
        %5815 = vmatpush1.xpose.msra.mxu0 0.0
        %5816 = vmatprep.subr.mxu0 0.0
        %5817 = vmatpush1.xpose.msra.mxu0 0.0
        %5818 = vmatprep.mubr.f32.mxu0 0.0
        %v5819 = vand.u32 %v5375, 4294901760
        %5820 = vmatmul.mubr.f32.gmra.mrb[0].mxu0 %v5819
        %v5821 = vpop.f32.mrb[0].mxu0
        %v5822 = vadd.f32 %v5750, %v5821
        %v5823 = vpop.f32.mrb[0].mxu0
        %5824 = vdwg.mxu0
        %v5825 = vmul.f32 %v5822, 0.17677669
        %v5826 = vadd.f32 %v5825, %v2548
        %v5827 = vsel %vm3004, %v5826, -inf
        %5828 = vmax.xlane.f32.xlu0 %v5827
        %v5829 = vpop.xlane.xlu0 %5828
        %v5830 = vsub.f32 %v5826, %v5829
        %v5831 = vmul.f32 %v5830, 1.442695
        %v5832 = vpow.pop %v5831
        %v5833 = vsel %vm3004, %v5832, 0.0
        %5834 = vadd.xlane.f32.xlu0 %v5833
        %v5835 = vpop.xlane.xlu0 %5834
        %v5836 = vrcp.pop %v5835
        %v5837 = vmul.f32 1.0, %v5836
        %v5838 = vmul.f32 %v5832, %v5837
        %5839 = vrot.lane.b32.xlu0 %v2543, 64
        %v5840 = vpop.permute.xlu0 %5839
        %v5843 = vsel %vm3004, %v5838, 0
        %5845 = vmatprep.subr.mxu0 0.0
        %v5846 = vand.u32 %v5840, 4294901760
        %5847 = vmatpush1.msra.mxu0 %v5846
        %5848 = vmatprep.subr.mxu0 0.0
        %5849 = vmatpush1.msra.mxu0 0.0
        %5850 = vmatprep.subr.mxu0 0.0
        %5851 = vmatpush1.msra.mxu0 0.0
        %5852 = vmatprep.subr.mxu0 0.0
        %5853 = vmatpush1.msra.mxu0 0.0
        %5854 = vmatprep.subr.mxu0 0.0
        %5855 = vmatpush1.msra.mxu0 0.0
        %5856 = vmatprep.subr.mxu0 0.0
        %5857 = vmatpush1.msra.mxu0 0.0
        %5858 = vmatprep.subr.mxu0 0.0
        %5859 = vmatpush1.msra.mxu0 0.0
        %5860 = vmatprep.subr.mxu0 0.0
        %5861 = vmatpush1.msra.mxu0 0.0
        %5862 = vmatprep.subr.mxu0 0.0
        %5863 = vmatpush1.msra.mxu0 0.0
        %5864 = vmatprep.subr.mxu0 0.0
        %5865 = vmatpush1.msra.mxu0 0.0
        %5866 = vmatprep.subr.mxu0 0.0
        %5867 = vmatpush1.msra.mxu0 0.0
        %5868 = vmatprep.subr.mxu0 0.0
        %5869 = vmatpush1.msra.mxu0 0.0
        %5870 = vmatprep.subr.mxu0 0.0
        %5871 = vmatpush1.msra.mxu0 0.0
        %5872 = vmatprep.subr.mxu0 0.0
        %5873 = vmatpush1.msra.mxu0 0.0
        %5874 = vmatprep.subr.mxu0 0.0
        %5875 = vmatpush1.msra.mxu0 0.0
        %5876 = vmatprep.subr.mxu0 0.0
        %5877 = vmatpush1.msra.mxu0 0.0
        %5878 = vmatprep.subr.mxu0 0.0
        %5879 = vmatpush1.msra.mxu0 0.0
        %5880 = vmatprep.subr.mxu0 0.0
        %5881 = vmatpush1.msra.mxu0 0.0
        %5882 = vmatprep.subr.mxu0 0.0
        %5883 = vmatpush1.msra.mxu0 0.0
        %5884 = vmatprep.subr.mxu0 0.0
        %5885 = vmatpush1.msra.mxu0 0.0
        %5886 = vmatprep.subr.mxu0 0.0
        %5887 = vmatpush1.msra.mxu0 0.0
        %5888 = vmatprep.subr.mxu0 0.0
        %5889 = vmatpush1.msra.mxu0 0.0
        %5890 = vmatprep.subr.mxu0 0.0
        %5891 = vmatpush1.msra.mxu0 0.0
        %5892 = vmatprep.subr.mxu0 0.0
        %5893 = vmatpush1.msra.mxu0 0.0
        %5894 = vmatprep.subr.mxu0 0.0
        %5895 = vmatpush1.msra.mxu0 0.0
        %5896 = vmatprep.subr.mxu0 0.0
        %5897 = vmatpush1.msra.mxu0 0.0
        %5898 = vmatprep.subr.mxu0 0.0
        %5899 = vmatpush1.msra.mxu0 0.0
        %5900 = vmatprep.subr.mxu0 0.0
        %5901 = vmatpush1.msra.mxu0 0.0
        %5902 = vmatprep.subr.mxu0 0.0
        %5903 = vmatpush1.msra.mxu0 0.0
        %5904 = vmatprep.subr.mxu0 0.0
        %5905 = vmatpush1.msra.mxu0 0.0
        %5906 = vmatprep.subr.mxu0 0.0
        %5907 = vmatpush1.msra.mxu0 0.0
        %5908 = vmatprep.subr.mxu0 0.0
        %5909 = vmatpush1.msra.mxu0 0.0
        %5910 = vmatprep.mubr.f32.mxu0 0.0
        %v5911 = vand.u32 %v5843, 4294901760
        %v5912 = vsub.f32 %v5843, %v5911
        %v5913 = vand.u32 %v5912, 4294901760
        %v5914 = vsub.f32 %v5912, %v5913
        %v5915 = vand.u32 %v5914, 4294901760
        %5916 = vmatmul.mubr.f32.gmra.mrb[0].mxu0 %v5915
        %v5917 = vpop.f32.mrb[0].mxu0
        %v5918 = vadd.f32 0.0, %v5917
        %v5919 = vpop.f32.mrb[0].mxu0
        %5920 = vdwg.mxu0
        %5921 = vmatprep.subr.mxu0 0.0
        %v5922 = vand.u32 %v5840, 4294901760
        %v5923 = vsub.f32 %v5840, %v5922
        %v5924 = vand.u32 %v5923, 4294901760
        %v5925 = vsub.f32 %v5923, %v5924
        %v5926 = vand.u32 %v5925, 4294901760
        %5927 = vmatpush1.msra.mxu0 %v5926
        %5928 = vmatprep.subr.mxu0 0.0
        %5929 = vmatpush1.msra.mxu0 0.0
        %5930 = vmatprep.subr.mxu0 0.0
        %5931 = vmatpush1.msra.mxu0 0.0
        %5932 = vmatprep.subr.mxu0 0.0
        %5933 = vmatpush1.msra.mxu0 0.0
        %5934 = vmatprep.subr.mxu0 0.0
        %5935 = vmatpush1.msra.mxu0 0.0
        %5936 = vmatprep.subr.mxu0 0.0
        %5937 = vmatpush1.msra.mxu0 0.0
        %5938 = vmatprep.subr.mxu0 0.0
        %5939 = vmatpush1.msra.mxu0 0.0
        %5940 = vmatprep.subr.mxu0 0.0
        %5941 = vmatpush1.msra.mxu0 0.0
        %5942 = vmatprep.subr.mxu0 0.0
        %5943 = vmatpush1.msra.mxu0 0.0
        %5944 = vmatprep.subr.mxu0 0.0
        %5945 = vmatpush1.msra.mxu0 0.0
        %5946 = vmatprep.subr.mxu0 0.0
        %5947 = vmatpush1.msra.mxu0 0.0
        %5948 = vmatprep.subr.mxu0 0.0
        %5949 = vmatpush1.msra.mxu0 0.0
        %5950 = vmatprep.subr.mxu0 0.0
        %5951 = vmatpush1.msra.mxu0 0.0
        %5952 = vmatprep.subr.mxu0 0.0
        %5953 = vmatpush1.msra.mxu0 0.0
        %5954 = vmatprep.subr.mxu0 0.0
        %5955 = vmatpush1.msra.mxu0 0.0
        %5956 = vmatprep.subr.mxu0 0.0
        %5957 = vmatpush1.msra.mxu0 0.0
        %5958 = vmatprep.subr.mxu0 0.0
        %5959 = vmatpush1.msra.mxu0 0.0
        %5960 = vmatprep.subr.mxu0 0.0
        %5961 = vmatpush1.msra.mxu0 0.0
        %5962 = vmatprep.subr.mxu0 0.0
        %5963 = vmatpush1.msra.mxu0 0.0
        %5964 = vmatprep.subr.mxu0 0.0
        %5965 = vmatpush1.msra.mxu0 0.0
        %5966 = vmatprep.subr.mxu0 0.0
        %5967 = vmatpush1.msra.mxu0 0.0
        %5968 = vmatprep.subr.mxu0 0.0
        %5969 = vmatpush1.msra.mxu0 0.0
        %5970 = vmatprep.subr.mxu0 0.0
        %5971 = vmatpush1.msra.mxu0 0.0
        %5972 = vmatprep.subr.mxu0 0.0
        %5973 = vmatpush1.msra.mxu0 0.0
        %5974 = vmatprep.subr.mxu0 0.0
        %5975 = vmatpush1.msra.mxu0 0.0
        %5976 = vmatprep.subr.mxu0 0.0
        %5977 = vmatpush1.msra.mxu0 0.0
        %5978 = vmatprep.subr.mxu0 0.0
        %5979 = vmatpush1.msra.mxu0 0.0
        %5980 = vmatprep.subr.mxu0 0.0
        %5981 = vmatpush1.msra.mxu0 0.0
        %5982 = vmatprep.subr.mxu0 0.0
        %5983 = vmatpush1.msra.mxu0 0.0
        %5984 = vmatprep.subr.mxu0 0.0
        %5985 = vmatpush1.msra.mxu0 0.0
        %5986 = vmatprep.subr.mxu0 0.0
        %5987 = vmatpush1.msra.mxu0 0.0
        %5988 = vmatprep.subr.mxu0 0.0
        %5989 = vmatpush1.msra.mxu0 0.0
        %5990 = vmatprep.mubr.f32.mxu0 0.0
        %v5991 = vand.u32 %v5843, 4294901760
        %5992 = vmatmul.mubr.f32.gmra.mrb[0].mxu0 %v5991
        %v5993 = vpop.f32.mrb[0].mxu0
        %v5994 = vadd.f32 %v5918, %v5993
        %v5995 = vpop.f32.mrb[0].mxu0
        %5996 = vdwg.mxu0
        %5997 = vmatprep.subr.mxu0 0.0
        %v5998 = vand.u32 %v5840, 4294901760
        %v5999 = vsub.f32 %v5840, %v5998
        %6000 = vmatpush1.msra.mxu0 %v5999
        %6001 = vmatprep.subr.mxu0 0.0
        %6002 = vmatpush1.msra.mxu0 0.0
        %6003 = vmatprep.subr.mxu0 0.0
        %6004 = vmatpush1.msra.mxu0 0.0
        %6005 = vmatprep.subr.mxu0 0.0
        %6006 = vmatpush1.msra.mxu0 0.0
        %6007 = vmatprep.subr.mxu0 0.0
        %6008 = vmatpush1.msra.mxu0 0.0
        %6009 = vmatprep.subr.mxu0 0.0
        %6010 = vmatpush1.msra.mxu0 0.0
        %6011 = vmatprep.subr.mxu0 0.0
        %6012 = vmatpush1.msra.mxu0 0.0
        %6013 = vmatprep.subr.mxu0 0.0
        %6014 = vmatpush1.msra.mxu0 0.0
        %6015 = vmatprep.subr.mxu0 0.0
        %6016 = vmatpush1.msra.mxu0 0.0
        %6017 = vmatprep.subr.mxu0 0.0
        %6018 = vmatpush1.msra.mxu0 0.0
        %6019 = vmatprep.subr.mxu0 0.0
        %6020 = vmatpush1.msra.mxu0 0.0
        %6021 = vmatprep.subr.mxu0 0.0
        %6022 = vmatpush1.msra.mxu0 0.0
        %6023 = vmatprep.subr.mxu0 0.0
        %6024 = vmatpush1.msra.mxu0 0.0
        %6025 = vmatprep.subr.mxu0 0.0
        %6026 = vmatpush1.msra.mxu0 0.0
        %6027 = vmatprep.subr.mxu0 0.0
        %6028 = vmatpush1.msra.mxu0 0.0
        %6029 = vmatprep.subr.mxu0 0.0
        %6030 = vmatpush1.msra.mxu0 0.0
        %6031 = vmatprep.subr.mxu0 0.0
        %6032 = vmatpush1.msra.mxu0 0.0
        %6033 = vmatprep.subr.mxu0 0.0
        %6034 = vmatpush1.msra.mxu0 0.0
        %6035 = vmatprep.subr.mxu0 0.0
        %6036 = vmatpush1.msra.mxu0 0.0
        %6037 = vmatprep.subr.mxu0 0.0
        %6038 = vmatpush1.msra.mxu0 0.0
        %6039 = vmatprep.subr.mxu0 0.0
        %6040 = vmatpush1.msra.mxu0 0.0
        %6041 = vmatprep.subr.mxu0 0.0
        %6042 = vmatpush1.msra.mxu0 0.0
        %6043 = vmatprep.subr.mxu0 0.0
        %6044 = vmatpush1.msra.mxu0 0.0
        %6045 = vmatprep.subr.mxu0 0.0
        %6046 = vmatpush1.msra.mxu0 0.0
        %6047 = vmatprep.subr.mxu0 0.0
        %6048 = vmatpush1.msra.mxu0 0.0
        %6049 = vmatprep.subr.mxu0 0.0
        %6050 = vmatpush1.msra.mxu0 0.0
        %6051 = vmatprep.subr.mxu0 0.0
        %6052 = vmatpush1.msra.mxu0 0.0
        %6053 = vmatprep.subr.mxu0 0.0
        %6054 = vmatpush1.msra.mxu0 0.0
        %6055 = vmatprep.subr.mxu0 0.0
        %6056 = vmatpush1.msra.mxu0 0.0
        %6057 = vmatprep.subr.mxu0 0.0
        %6058 = vmatpush1.msra.mxu0 0.0
        %6059 = vmatprep.subr.mxu0 0.0
        %6060 = vmatpush1.msra.mxu0 0.0
        %6061 = vmatprep.subr.mxu0 0.0
        %6062 = vmatpush1.msra.mxu0 0.0
        %6063 = vmatprep.mubr.f32.mxu0 0.0
        %v6064 = vand.u32 %v5843, 4294901760
        %v6065 = vsub.f32 %v5843, %v6064
        %6066 = vmatmul.mubr.f32.gmra.mrb[0].mxu0 %v6065
        %v6067 = vpop.f32.mrb[0].mxu0
        %v6068 = vadd.f32 %v5994, %v6067
        %v6069 = vpop.f32.mrb[0].mxu0
        %6070 = vdwg.mxu0
        %6071 = vmatprep.subr.mxu0 0.0
        %v6072 = vand.u32 %v5840, 4294901760
        %6073 = vmatpush1.msra.mxu0 %v6072
        %6074 = vmatprep.subr.mxu0 0.0
        %6075 = vmatpush1.msra.mxu0 0.0
        %6076 = vmatprep.subr.mxu0 0.0
        %6077 = vmatpush1.msra.mxu0 0.0
        %6078 = vmatprep.subr.mxu0 0.0
        %6079 = vmatpush1.msra.mxu0 0.0
        %6080 = vmatprep.subr.mxu0 0.0
        %6081 = vmatpush1.msra.mxu0 0.0
        %6082 = vmatprep.subr.mxu0 0.0
        %6083 = vmatpush1.msra.mxu0 0.0
        %6084 = vmatprep.subr.mxu0 0.0
        %6085 = vmatpush1.msra.mxu0 0.0
        %6086 = vmatprep.subr.mxu0 0.0
        %6087 = vmatpush1.msra.mxu0 0.0
        %6088 = vmatprep.subr.mxu0 0.0
        %6089 = vmatpush1.msra.mxu0 0.0
        %6090 = vmatprep.subr.mxu0 0.0
        %6091 = vmatpush1.msra.mxu0 0.0
        %6092 = vmatprep.subr.mxu0 0.0
        %6093 = vmatpush1.msra.mxu0 0.0
        %6094 = vmatprep.subr.mxu0 0.0
        %6095 = vmatpush1.msra.mxu0 0.0
        %6096 = vmatprep.subr.mxu0 0.0
        %6097 = vmatpush1.msra.mxu0 0.0
        %6098 = vmatprep.subr.mxu0 0.0
        %6099 = vmatpush1.msra.mxu0 0.0
        %6100 = vmatprep.subr.mxu0 0.0
        %6101 = vmatpush1.msra.mxu0 0.0
        %6102 = vmatprep.subr.mxu0 0.0
        %6103 = vmatpush1.msra.mxu0 0.0
        %6104 = vmatprep.subr.mxu0 0.0
        %6105 = vmatpush1.msra.mxu0 0.0
        %6106 = vmatprep.subr.mxu0 0.0
        %6107 = vmatpush1.msra.mxu0 0.0
        %6108 = vmatprep.subr.mxu0 0.0
        %6109 = vmatpush1.msra.mxu0 0.0
        %6110 = vmatprep.subr.mxu0 0.0
        %6111 = vmatpush1.msra.mxu0 0.0
        %6112 = vmatprep.subr.mxu0 0.0
        %6113 = vmatpush1.msra.mxu0 0.0
        %6114 = vmatprep.subr.mxu0 0.0
        %6115 = vmatpush1.msra.mxu0 0.0
        %6116 = vmatprep.subr.mxu0 0.0
        %6117 = vmatpush1.msra.mxu0 0.0
        %6118 = vmatprep.subr.mxu0 0.0
        %6119 = vmatpush1.msra.mxu0 0.0
        %6120 = vmatprep.subr.mxu0 0.0
        %6121 = vmatpush1.msra.mxu0 0.0
        %6122 = vmatprep.subr.mxu0 0.0
        %6123 = vmatpush1.msra.mxu0 0.0
        %6124 = vmatprep.subr.mxu0 0.0
        %6125 = vmatpush1.msra.mxu0 0.0
        %6126 = vmatprep.subr.mxu0 0.0
        %6127 = vmatpush1.msra.mxu0 0.0
        %6128 = vmatprep.subr.mxu0 0.0
        %6129 = vmatpush1.msra.mxu0 0.0
        %6130 = vmatprep.subr.mxu0 0.0
        %6131 = vmatpush1.msra.mxu0 0.0
        %6132 = vmatprep.subr.mxu0 0.0
        %6133 = vmatpush1.msra.mxu0 0.0
        %6134 = vmatprep.subr.mxu0 0.0
        %6135 = vmatpush1.msra.mxu0 0.0
        %6136 = vmatprep.mubr.f32.mxu0 0.0
        %v6137 = vand.u32 %v5843, 4294901760
        %v6138 = vsub.f32 %v5843, %v6137
        %v6139 = vand.u32 %v6138, 4294901760
        %6140 = vmatmul.mubr.f32.gmra.mrb[0].mxu0 %v6139
        %v6141 = vpop.f32.mrb[0].mxu0
        %v6142 = vadd.f32 %v6068, %v6141
        %v6143 = vpop.f32.mrb[0].mxu0
        %6144 = vdwg.mxu0
        %6145 = vmatprep.subr.mxu0 0.0
        %v6146 = vand.u32 %v5840, 4294901760
        %v6147 = vsub.f32 %v5840, %v6146
        %v6148 = vand.u32 %v6147, 4294901760
        %6149 = vmatpush1.msra.mxu0 %v6148
        %6150 = vmatprep.subr.mxu0 0.0
        %6151 = vmatpush1.msra.mxu0 0.0
        %6152 = vmatprep.subr.mxu0 0.0
        %6153 = vmatpush1.msra.mxu0 0.0
        %6154 = vmatprep.subr.mxu0 0.0
        %6155 = vmatpush1.msra.mxu0 0.0
        %6156 = vmatprep.subr.mxu0 0.0
        %6157 = vmatpush1.msra.mxu0 0.0
        %6158 = vmatprep.subr.mxu0 0.0
        %6159 = vmatpush1.msra.mxu0 0.0
        %6160 = vmatprep.subr.mxu0 0.0
        %6161 = vmatpush1.msra.mxu0 0.0
        %6162 = vmatprep.subr.mxu0 0.0
        %6163 = vmatpush1.msra.mxu0 0.0
        %6164 = vmatprep.subr.mxu0 0.0
        %6165 = vmatpush1.msra.mxu0 0.0
        %6166 = vmatprep.subr.mxu0 0.0
        %6167 = vmatpush1.msra.mxu0 0.0
        %6168 = vmatprep.subr.mxu0 0.0
        %6169 = vmatpush1.msra.mxu0 0.0
        %6170 = vmatprep.subr.mxu0 0.0
        %6171 = vmatpush1.msra.mxu0 0.0
        %6172 = vmatprep.subr.mxu0 0.0
        %6173 = vmatpush1.msra.mxu0 0.0
        %6174 = vmatprep.subr.mxu0 0.0
        %6175 = vmatpush1.msra.mxu0 0.0
        %6176 = vmatprep.subr.mxu0 0.0
        %6177 = vmatpush1.msra.mxu0 0.0
        %6178 = vmatprep.subr.mxu0 0.0
        %6179 = vmatpush1.msra.mxu0 0.0
        %6180 = vmatprep.subr.mxu0 0.0
        %6181 = vmatpush1.msra.mxu0 0.0
        %6182 = vmatprep.subr.mxu0 0.0
        %6183 = vmatpush1.msra.mxu0 0.0
        %6184 = vmatprep.subr.mxu0 0.0
        %6185 = vmatpush1.msra.mxu0 0.0
        %6186 = vmatprep.subr.mxu0 0.0
        %6187 = vmatpush1.msra.mxu0 0.0
        %6188 = vmatprep.subr.mxu0 0.0
        %6189 = vmatpush1.msra.mxu0 0.0
        %6190 = vmatprep.subr.mxu0 0.0
        %6191 = vmatpush1.msra.mxu0 0.0
        %6192 = vmatprep.subr.mxu0 0.0
        %6193 = vmatpush1.msra.mxu0 0.0
        %6194 = vmatprep.subr.mxu0 0.0
        %6195 = vmatpush1.msra.mxu0 0.0
        %6196 = vmatprep.subr.mxu0 0.0
        %6197 = vmatpush1.msra.mxu0 0.0
        %6198 = vmatprep.subr.mxu0 0.0
        %6199 = vmatpush1.msra.mxu0 0.0
        %6200 = vmatprep.subr.mxu0 0.0
        %6201 = vmatpush1.msra.mxu0 0.0
        %6202 = vmatprep.subr.mxu0 0.0
        %6203 = vmatpush1.msra.mxu0 0.0
        %6204 = vmatprep.subr.mxu0 0.0
        %6205 = vmatpush1.msra.mxu0 0.0
        %6206 = vmatprep.subr.mxu0 0.0
        %6207 = vmatpush1.msra.mxu0 0.0
        %6208 = vmatprep.subr.mxu0 0.0
        %6209 = vmatpush1.msra.mxu0 0.0
        %6210 = vmatprep.subr.mxu0 0.0
        %6211 = vmatpush1.msra.mxu0 0.0
        %6212 = vmatprep.mubr.f32.mxu0 0.0
        %v6213 = vand.u32 %v5843, 4294901760
        %6214 = vmatmul.mubr.f32.gmra.mrb[0].mxu0 %v6213
        %v6215 = vpop.f32.mrb[0].mxu0
        %v6216 = vadd.f32 %v6142, %v6215
        %v6217 = vpop.f32.mrb[0].mxu0
        %6218 = vdwg.mxu0
        %6219 = vmatprep.subr.mxu0 0.0
        %v6220 = vand.u32 %v5840, 4294901760
        %6221 = vmatpush1.msra.mxu0 %v6220
        %6222 = vmatprep.subr.mxu0 0.0
        %6223 = vmatpush1.msra.mxu0 0.0
        %6224 = vmatprep.subr.mxu0 0.0
        %6225 = vmatpush1.msra.mxu0 0.0
        %6226 = vmatprep.subr.mxu0 0.0
        %6227 = vmatpush1.msra.mxu0 0.0
        %6228 = vmatprep.subr.mxu0 0.0
        %6229 = vmatpush1.msra.mxu0 0.0
        %6230 = vmatprep.subr.mxu0 0.0
        %6231 = vmatpush1.msra.mxu0 0.0
        %6232 = vmatprep.subr.mxu0 0.0
        %6233 = vmatpush1.msra.mxu0 0.0
        %6234 = vmatprep.subr.mxu0 0.0
        %6235 = vmatpush1.msra.mxu0 0.0
        %6236 = vmatprep.subr.mxu0 0.0
        %6237 = vmatpush1.msra.mxu0 0.0
        %6238 = vmatprep.subr.mxu0 0.0
        %6239 = vmatpush1.msra.mxu0 0.0
        %6240 = vmatprep.subr.mxu0 0.0
        %6241 = vmatpush1.msra.mxu0 0.0
        %6242 = vmatprep.subr.mxu0 0.0
        %6243 = vmatpush1.msra.mxu0 0.0
        %6244 = vmatprep.subr.mxu0 0.0
        %6245 = vmatpush1.msra.mxu0 0.0
        %6246 = vmatprep.subr.mxu0 0.0
        %6247 = vmatpush1.msra.mxu0 0.0
        %6248 = vmatprep.subr.mxu0 0.0
        %6249 = vmatpush1.msra.mxu0 0.0
        %6250 = vmatprep.subr.mxu0 0.0
        %6251 = vmatpush1.msra.mxu0 0.0
        %6252 = vmatprep.subr.mxu0 0.0
        %6253 = vmatpush1.msra.mxu0 0.0
        %6254 = vmatprep.subr.mxu0 0.0
        %6255 = vmatpush1.msra.mxu0 0.0
        %6256 = vmatprep.subr.mxu0 0.0
        %6257 = vmatpush1.msra.mxu0 0.0
        %6258 = vmatprep.subr.mxu0 0.0
        %6259 = vmatpush1.msra.mxu0 0.0
        %6260 = vmatprep.subr.mxu0 0.0
        %6261 = vmatpush1.msra.mxu0 0.0
        %6262 = vmatprep.subr.mxu0 0.0
        %6263 = vmatpush1.msra.mxu0 0.0
        %6264 = vmatprep.subr.mxu0 0.0
        %6265 = vmatpush1.msra.mxu0 0.0
        %6266 = vmatprep.subr.mxu0 0.0
        %6267 = vmatpush1.msra.mxu0 0.0
        %6268 = vmatprep.subr.mxu0 0.0
        %6269 = vmatpush1.msra.mxu0 0.0
        %6270 = vmatprep.subr.mxu0 0.0
        %6271 = vmatpush1.msra.mxu0 0.0
        %6272 = vmatprep.subr.mxu0 0.0
        %6273 = vmatpush1.msra.mxu0 0.0
        %6274 = vmatprep.subr.mxu0 0.0
        %6275 = vmatpush1.msra.mxu0 0.0
        %6276 = vmatprep.subr.mxu0 0.0
        %6277 = vmatpush1.msra.mxu0 0.0
        %6278 = vmatprep.subr.mxu0 0.0
        %6279 = vmatpush1.msra.mxu0 0.0
        %6280 = vmatprep.subr.mxu0 0.0
        %6281 = vmatpush1.msra.mxu0 0.0
        %6282 = vmatprep.subr.mxu0 0.0
        %6283 = vmatpush1.msra.mxu0 0.0
        %6284 = vmatprep.mubr.f32.mxu0 0.0
        %v6285 = vand.u32 %v5843, 4294901760
        %6286 = vmatmul.mubr.f32.gmra.mrb[0].mxu0 %v6285
        %v6287 = vpop.f32.mrb[0].mxu0
        %v6288 = vadd.f32 %v6216, %v6287
        %v6289 = vpop.f32.mrb[0].mxu0
        %6290 = vdwg.mxu0
        %v6291 = vld [vmem:[#allocation13 + $0x40] sm:$0xff]
        %v6292 = vld [vmem:[#allocation13 + $0x48] sm:$0xff]
        %v6293 = vld [vmem:[#allocation13 + $0x50] sm:$0xff]
        %v6294 = vld [vmem:[#allocation13 + $0x58] sm:$0xff]
        %v6296 = vsel %vm2549, %v6288, 0
        %6298 = vmatprep.subr.mxu0 0.0
        %v6299 = vand.u32 %v6291, 4294901760
        %6300 = vmatpush1.msra.mxu0 %v6299
        %6301 = vmatprep.subr.mxu0 0.0
        %v6302 = vand.u32 %v6292, 4294901760
        %6303 = vmatpush1.msra.mxu0 %v6302
        %6304 = vmatprep.subr.mxu0 0.0
        %v6305 = vand.u32 %v6293, 4294901760
        %6306 = vmatpush1.msra.mxu0 %v6305
        %6307 = vmatprep.subr.mxu0 0.0
        %v6308 = vand.u32 %v6294, 4294901760
        %6309 = vmatpush1.msra.mxu0 %v6308
        %6310 = vmatprep.subr.mxu0 0.0
        %6311 = vmatpush1.msra.mxu0 0.0
        %6312 = vmatprep.subr.mxu0 0.0
        %6313 = vmatpush1.msra.mxu0 0.0
        %6314 = vmatprep.subr.mxu0 0.0
        %6315 = vmatpush1.msra.mxu0 0.0
        %6316 = vmatprep.subr.mxu0 0.0
        %6317 = vmatpush1.msra.mxu0 0.0
        %6318 = vmatprep.subr.mxu0 0.0
        %6319 = vmatpush1.msra.mxu0 0.0
        %6320 = vmatprep.subr.mxu0 0.0
        %6321 = vmatpush1.msra.mxu0 0.0
        %6322 = vmatprep.subr.mxu0 0.0
        %6323 = vmatpush1.msra.mxu0 0.0
        %6324 = vmatprep.subr.mxu0 0.0
        %6325 = vmatpush1.msra.mxu0 0.0
        %6326 = vmatprep.subr.mxu0 0.0
        %6327 = vmatpush1.msra.mxu0 0.0
        %6328 = vmatprep.subr.mxu0 0.0
        %6329 = vmatpush1.msra.mxu0 0.0
        %6330 = vmatprep.subr.mxu0 0.0
        %6331 = vmatpush1.msra.mxu0 0.0
        %6332 = vmatprep.subr.mxu0 0.0
        %6333 = vmatpush1.msra.mxu0 0.0
        %6334 = vmatprep.subr.mxu0 0.0
        %6335 = vmatpush1.msra.mxu0 0.0
        %6336 = vmatprep.subr.mxu0 0.0
        %6337 = vmatpush1.msra.mxu0 0.0
        %6338 = vmatprep.subr.mxu0 0.0
        %6339 = vmatpush1.msra.mxu0 0.0
        %6340 = vmatprep.subr.mxu0 0.0
        %6341 = vmatpush1.msra.mxu0 0.0
        %6342 = vmatprep.subr.mxu0 0.0
        %6343 = vmatpush1.msra.mxu0 0.0
        %6344 = vmatprep.subr.mxu0 0.0
        %6345 = vmatpush1.msra.mxu0 0.0
        %6346 = vmatprep.subr.mxu0 0.0
        %6347 = vmatpush1.msra.mxu0 0.0
        %6348 = vmatprep.subr.mxu0 0.0
        %6349 = vmatpush1.msra.mxu0 0.0
        %6350 = vmatprep.subr.mxu0 0.0
        %6351 = vmatpush1.msra.mxu0 0.0
        %6352 = vmatprep.subr.mxu0 0.0
        %6353 = vmatpush1.msra.mxu0 0.0
        %6354 = vmatprep.subr.mxu0 0.0
        %6355 = vmatpush1.msra.mxu0 0.0
        %6356 = vmatprep.subr.mxu0 0.0
        %6357 = vmatpush1.msra.mxu0 0.0
        %6358 = vmatprep.subr.mxu0 0.0
        %6359 = vmatpush1.msra.mxu0 0.0
        %6360 = vmatprep.subr.mxu0 0.0
        %6361 = vmatpush1.msra.mxu0 0.0
        %6362 = vmatprep.subr.mxu0 0.0
        %6363 = vmatpush1.msra.mxu0 0.0
        %6364 = vmatprep.subr.mxu0 0.0
        %6365 = vmatpush1.msra.mxu0 0.0
        %6366 = vmatprep.mubr.f32.mxu0 0.0
        %v6367 = vand.u32 %v6296, 4294901760
        %v6368 = vsub.f32 %v6296, %v6367
        %v6369 = vand.u32 %v6368, 4294901760
        %v6370 = vsub.f32 %v6368, %v6369
        %v6371 = vand.u32 %v6370, 4294901760
        %6372 = vmatmul.mubr.f32.gmra.mrb[0].mxu0 %v6371
        %v6373 = vpop.f32.mrb[0].mxu0
        %v6374 = vadd.f32 0.0, %v6373
        %v6375 = vpop.f32.mrb[0].mxu0
        %6376 = vdwg.mxu0
        %6377 = vmatprep.subr.mxu0 0.0
        %v6378 = vand.u32 %v6291, 4294901760
        %v6379 = vsub.f32 %v6291, %v6378
        %v6380 = vand.u32 %v6379, 4294901760
        %v6381 = vsub.f32 %v6379, %v6380
        %v6382 = vand.u32 %v6381, 4294901760
        %6383 = vmatpush1.msra.mxu0 %v6382
        %6384 = vmatprep.subr.mxu0 0.0
        %v6385 = vand.u32 %v6292, 4294901760
        %v6386 = vsub.f32 %v6292, %v6385
        %v6387 = vand.u32 %v6386, 4294901760
        %v6388 = vsub.f32 %v6386, %v6387
        %v6389 = vand.u32 %v6388, 4294901760
        %6390 = vmatpush1.msra.mxu0 %v6389
        %6391 = vmatprep.subr.mxu0 0.0
        %v6392 = vand.u32 %v6293, 4294901760
        %v6393 = vsub.f32 %v6293, %v6392
        %v6394 = vand.u32 %v6393, 4294901760
        %v6395 = vsub.f32 %v6393, %v6394
        %v6396 = vand.u32 %v6395, 4294901760
        %6397 = vmatpush1.msra.mxu0 %v6396
        %6398 = vmatprep.subr.mxu0 0.0
        %v6399 = vand.u32 %v6294, 4294901760
        %v6400 = vsub.f32 %v6294, %v6399
        %v6401 = vand.u32 %v6400, 4294901760
        %v6402 = vsub.f32 %v6400, %v6401
        %v6403 = vand.u32 %v6402, 4294901760
        %6404 = vmatpush1.msra.mxu0 %v6403
        %6405 = vmatprep.subr.mxu0 0.0
        %6406 = vmatpush1.msra.mxu0 0.0
        %6407 = vmatprep.subr.mxu0 0.0
        %6408 = vmatpush1.msra.mxu0 0.0
        %6409 = vmatprep.subr.mxu0 0.0
        %6410 = vmatpush1.msra.mxu0 0.0
        %6411 = vmatprep.subr.mxu0 0.0
        %6412 = vmatpush1.msra.mxu0 0.0
        %6413 = vmatprep.subr.mxu0 0.0
        %6414 = vmatpush1.msra.mxu0 0.0
        %6415 = vmatprep.subr.mxu0 0.0
        %6416 = vmatpush1.msra.mxu0 0.0
        %6417 = vmatprep.subr.mxu0 0.0
        %6418 = vmatpush1.msra.mxu0 0.0
        %6419 = vmatprep.subr.mxu0 0.0
        %6420 = vmatpush1.msra.mxu0 0.0
        %6421 = vmatprep.subr.mxu0 0.0
        %6422 = vmatpush1.msra.mxu0 0.0
        %6423 = vmatprep.subr.mxu0 0.0
        %6424 = vmatpush1.msra.mxu0 0.0
        %6425 = vmatprep.subr.mxu0 0.0
        %6426 = vmatpush1.msra.mxu0 0.0
        %6427 = vmatprep.subr.mxu0 0.0
        %6428 = vmatpush1.msra.mxu0 0.0
        %6429 = vmatprep.subr.mxu0 0.0
        %6430 = vmatpush1.msra.mxu0 0.0
        %6431 = vmatprep.subr.mxu0 0.0
        %6432 = vmatpush1.msra.mxu0 0.0
        %6433 = vmatprep.subr.mxu0 0.0
        %6434 = vmatpush1.msra.mxu0 0.0
        %6435 = vmatprep.subr.mxu0 0.0
        %6436 = vmatpush1.msra.mxu0 0.0
        %6437 = vmatprep.subr.mxu0 0.0
        %6438 = vmatpush1.msra.mxu0 0.0
        %6439 = vmatprep.subr.mxu0 0.0
        %6440 = vmatpush1.msra.mxu0 0.0
        %6441 = vmatprep.subr.mxu0 0.0
        %6442 = vmatpush1.msra.mxu0 0.0
        %6443 = vmatprep.subr.mxu0 0.0
        %6444 = vmatpush1.msra.mxu0 0.0
        %6445 = vmatprep.subr.mxu0 0.0
        %6446 = vmatpush1.msra.mxu0 0.0
        %6447 = vmatprep.subr.mxu0 0.0
        %6448 = vmatpush1.msra.mxu0 0.0
        %6449 = vmatprep.subr.mxu0 0.0
        %6450 = vmatpush1.msra.mxu0 0.0
        %6451 = vmatprep.subr.mxu0 0.0
        %6452 = vmatpush1.msra.mxu0 0.0
        %6453 = vmatprep.subr.mxu0 0.0
        %6454 = vmatpush1.msra.mxu0 0.0
        %6455 = vmatprep.subr.mxu0 0.0
        %6456 = vmatpush1.msra.mxu0 0.0
        %6457 = vmatprep.subr.mxu0 0.0
        %6458 = vmatpush1.msra.mxu0 0.0
        %6459 = vmatprep.subr.mxu0 0.0
        %6460 = vmatpush1.msra.mxu0 0.0
        %6461 = vmatprep.mubr.f32.mxu0 0.0
        %v6462 = vand.u32 %v6296, 4294901760
        %6463 = vmatmul.mubr.f32.gmra.mrb[0].mxu0 %v6462
        %v6464 = vpop.f32.mrb[0].mxu0
        %v6465 = vadd.f32 %v6374, %v6464
        %v6466 = vpop.f32.mrb[0].mxu0
        %6467 = vdwg.mxu0
        %6468 = vmatprep.subr.mxu0 0.0
        %v6469 = vand.u32 %v6291, 4294901760
        %v6470 = vsub.f32 %v6291, %v6469
        %6471 = vmatpush1.msra.mxu0 %v6470
        %6472 = vmatprep.subr.mxu0 0.0
        %v6473 = vand.u32 %v6292, 4294901760
        %v6474 = vsub.f32 %v6292, %v6473
        %6475 = vmatpush1.msra.mxu0 %v6474
        %6476 = vmatprep.subr.mxu0 0.0
        %v6477 = vand.u32 %v6293, 4294901760
        %v6478 = vsub.f32 %v6293, %v6477
        %6479 = vmatpush1.msra.mxu0 %v6478
        %6480 = vmatprep.subr.mxu0 0.0
        %v6481 = vand.u32 %v6294, 4294901760
        %v6482 = vsub.f32 %v6294, %v6481
        %6483 = vmatpush1.msra.mxu0 %v6482
        %6484 = vmatprep.subr.mxu0 0.0
        %6485 = vmatpush1.msra.mxu0 0.0
        %6486 = vmatprep.subr.mxu0 0.0
        %6487 = vmatpush1.msra.mxu0 0.0
        %6488 = vmatprep.subr.mxu0 0.0
        %6489 = vmatpush1.msra.mxu0 0.0
        %6490 = vmatprep.subr.mxu0 0.0
        %6491 = vmatpush1.msra.mxu0 0.0
        %6492 = vmatprep.subr.mxu0 0.0
        %6493 = vmatpush1.msra.mxu0 0.0
        %6494 = vmatprep.subr.mxu0 0.0
        %6495 = vmatpush1.msra.mxu0 0.0
        %6496 = vmatprep.subr.mxu0 0.0
        %6497 = vmatpush1.msra.mxu0 0.0
        %6498 = vmatprep.subr.mxu0 0.0
        %6499 = vmatpush1.msra.mxu0 0.0
        %6500 = vmatprep.subr.mxu0 0.0
        %6501 = vmatpush1.msra.mxu0 0.0
        %6502 = vmatprep.subr.mxu0 0.0
        %6503 = vmatpush1.msra.mxu0 0.0
        %6504 = vmatprep.subr.mxu0 0.0
        %6505 = vmatpush1.msra.mxu0 0.0
        %6506 = vmatprep.subr.mxu0 0.0
        %6507 = vmatpush1.msra.mxu0 0.0
        %6508 = vmatprep.subr.mxu0 0.0
        %6509 = vmatpush1.msra.mxu0 0.0
        %6510 = vmatprep.subr.mxu0 0.0
        %6511 = vmatpush1.msra.mxu0 0.0
        %6512 = vmatprep.subr.mxu0 0.0
        %6513 = vmatpush1.msra.mxu0 0.0
        %6514 = vmatprep.subr.mxu0 0.0
        %6515 = vmatpush1.msra.mxu0 0.0
        %6516 = vmatprep.subr.mxu0 0.0
        %6517 = vmatpush1.msra.mxu0 0.0
        %6518 = vmatprep.subr.mxu0 0.0
        %6519 = vmatpush1.msra.mxu0 0.0
        %6520 = vmatprep.subr.mxu0 0.0
        %6521 = vmatpush1.msra.mxu0 0.0
        %6522 = vmatprep.subr.mxu0 0.0
        %6523 = vmatpush1.msra.mxu0 0.0
        %6524 = vmatprep.subr.mxu0 0.0
        %6525 = vmatpush1.msra.mxu0 0.0
        %6526 = vmatprep.subr.mxu0 0.0
        %6527 = vmatpush1.msra.mxu0 0.0
        %6528 = vmatprep.subr.mxu0 0.0
        %6529 = vmatpush1.msra.mxu0 0.0
        %6530 = vmatprep.subr.mxu0 0.0
        %6531 = vmatpush1.msra.mxu0 0.0
        %6532 = vmatprep.subr.mxu0 0.0
        %6533 = vmatpush1.msra.mxu0 0.0
        %6534 = vmatprep.subr.mxu0 0.0
        %6535 = vmatpush1.msra.mxu0 0.0
        %6536 = vmatprep.subr.mxu0 0.0
        %6537 = vmatpush1.msra.mxu0 0.0
        %6538 = vmatprep.subr.mxu0 0.0
        %6539 = vmatpush1.msra.mxu0 0.0
        %6540 = vmatprep.mubr.f32.mxu0 0.0
        %v6541 = vand.u32 %v6296, 4294901760
        %v6542 = vsub.f32 %v6296, %v6541
        %6543 = vmatmul.mubr.f32.gmra.mrb[0].mxu0 %v6542
        %v6544 = vpop.f32.mrb[0].mxu0
        %v6545 = vadd.f32 %v6465, %v6544
        %v6546 = vpop.f32.mrb[0].mxu0
        %6547 = vdwg.mxu0
        %6548 = vmatprep.subr.mxu0 0.0
        %v6549 = vand.u32 %v6291, 4294901760
        %6550 = vmatpush1.msra.mxu0 %v6549
        %6551 = vmatprep.subr.mxu0 0.0
        %v6552 = vand.u32 %v6292, 4294901760
        %6553 = vmatpush1.msra.mxu0 %v6552
        %6554 = vmatprep.subr.mxu0 0.0
        %v6555 = vand.u32 %v6293, 4294901760
        %6556 = vmatpush1.msra.mxu0 %v6555
        %6557 = vmatprep.subr.mxu0 0.0
        %v6558 = vand.u32 %v6294, 4294901760
        %6559 = vmatpush1.msra.mxu0 %v6558
        %6560 = vmatprep.subr.mxu0 0.0
        %6561 = vmatpush1.msra.mxu0 0.0
        %6562 = vmatprep.subr.mxu0 0.0
        %6563 = vmatpush1.msra.mxu0 0.0
        %6564 = vmatprep.subr.mxu0 0.0
        %6565 = vmatpush1.msra.mxu0 0.0
        %6566 = vmatprep.subr.mxu0 0.0
        %6567 = vmatpush1.msra.mxu0 0.0
        %6568 = vmatprep.subr.mxu0 0.0
        %6569 = vmatpush1.msra.mxu0 0.0
        %6570 = vmatprep.subr.mxu0 0.0
        %6571 = vmatpush1.msra.mxu0 0.0
        %6572 = vmatprep.subr.mxu0 0.0
        %6573 = vmatpush1.msra.mxu0 0.0
        %6574 = vmatprep.subr.mxu0 0.0
        %6575 = vmatpush1.msra.mxu0 0.0
        %6576 = vmatprep.subr.mxu0 0.0
        %6577 = vmatpush1.msra.mxu0 0.0
        %6578 = vmatprep.subr.mxu0 0.0
        %6579 = vmatpush1.msra.mxu0 0.0
        %6580 = vmatprep.subr.mxu0 0.0
        %6581 = vmatpush1.msra.mxu0 0.0
        %6582 = vmatprep.subr.mxu0 0.0
        %6583 = vmatpush1.msra.mxu0 0.0
        %6584 = vmatprep.subr.mxu0 0.0
        %6585 = vmatpush1.msra.mxu0 0.0
        %6586 = vmatprep.subr.mxu0 0.0
        %6587 = vmatpush1.msra.mxu0 0.0
        %6588 = vmatprep.subr.mxu0 0.0
        %6589 = vmatpush1.msra.mxu0 0.0
        %6590 = vmatprep.subr.mxu0 0.0
        %6591 = vmatpush1.msra.mxu0 0.0
        %6592 = vmatprep.subr.mxu0 0.0
        %6593 = vmatpush1.msra.mxu0 0.0
        %6594 = vmatprep.subr.mxu0 0.0
        %6595 = vmatpush1.msra.mxu0 0.0
        %6596 = vmatprep.subr.mxu0 0.0
        %6597 = vmatpush1.msra.mxu0 0.0
        %6598 = vmatprep.subr.mxu0 0.0
        %6599 = vmatpush1.msra.mxu0 0.0
        %6600 = vmatprep.subr.mxu0 0.0
        %6601 = vmatpush1.msra.mxu0 0.0
        %6602 = vmatprep.subr.mxu0 0.0
        %6603 = vmatpush1.msra.mxu0 0.0
        %6604 = vmatprep.subr.mxu0 0.0
        %6605 = vmatpush1.msra.mxu0 0.0
        %6606 = vmatprep.subr.mxu0 0.0
        %6607 = vmatpush1.msra.mxu0 0.0
        %6608 = vmatprep.subr.mxu0 0.0
        %6609 = vmatpush1.msra.mxu0 0.0
        %6610 = vmatprep.subr.mxu0 0.0
        %6611 = vmatpush1.msra.mxu0 0.0
        %6612 = vmatprep.subr.mxu0 0.0
        %6613 = vmatpush1.msra.mxu0 0.0
        %6614 = vmatprep.subr.mxu0 0.0
        %6615 = vmatpush1.msra.mxu0 0.0
        %6616 = vmatprep.mubr.f32.mxu0 0.0
        %v6617 = vand.u32 %v6296, 4294901760
        %v6618 = vsub.f32 %v6296, %v6617
        %v6619 = vand.u32 %v6618, 4294901760
        %6620 = vmatmul.mubr.f32.gmra.mrb[0].mxu0 %v6619
        %v6621 = vpop.f32.mrb[0].mxu0
        %v6622 = vadd.f32 %v6545, %v6621
        %v6623 = vpop.f32.mrb[0].mxu0
        %6624 = vdwg.mxu0
        %6625 = vmatprep.subr.mxu0 0.0
        %v6626 = vand.u32 %v6291, 4294901760
        %v6627 = vsub.f32 %v6291, %v6626
        %v6628 = vand.u32 %v6627, 4294901760
        %6629 = vmatpush1.msra.mxu0 %v6628
        %6630 = vmatprep.subr.mxu0 0.0
        %v6631 = vand.u32 %v6292, 4294901760
        %v6632 = vsub.f32 %v6292, %v6631
        %v6633 = vand.u32 %v6632, 4294901760
        %6634 = vmatpush1.msra.mxu0 %v6633
        %6635 = vmatprep.subr.mxu0 0.0
        %v6636 = vand.u32 %v6293, 4294901760
        %v6637 = vsub.f32 %v6293, %v6636
        %v6638 = vand.u32 %v6637, 4294901760
        %6639 = vmatpush1.msra.mxu0 %v6638
        %6640 = vmatprep.subr.mxu0 0.0
        %v6641 = vand.u32 %v6294, 4294901760
        %v6642 = vsub.f32 %v6294, %v6641
        %v6643 = vand.u32 %v6642, 4294901760
        %6644 = vmatpush1.msra.mxu0 %v6643
        %6645 = vmatprep.subr.mxu0 0.0
        %6646 = vmatpush1.msra.mxu0 0.0
        %6647 = vmatprep.subr.mxu0 0.0
        %6648 = vmatpush1.msra.mxu0 0.0
        %6649 = vmatprep.subr.mxu0 0.0
        %6650 = vmatpush1.msra.mxu0 0.0
        %6651 = vmatprep.subr.mxu0 0.0
        %6652 = vmatpush1.msra.mxu0 0.0
        %6653 = vmatprep.subr.mxu0 0.0
        %6654 = vmatpush1.msra.mxu0 0.0
        %6655 = vmatprep.subr.mxu0 0.0
        %6656 = vmatpush1.msra.mxu0 0.0
        %6657 = vmatprep.subr.mxu0 0.0
        %6658 = vmatpush1.msra.mxu0 0.0
        %6659 = vmatprep.subr.mxu0 0.0
        %6660 = vmatpush1.msra.mxu0 0.0
        %6661 = vmatprep.subr.mxu0 0.0
        %6662 = vmatpush1.msra.mxu0 0.0
        %6663 = vmatprep.subr.mxu0 0.0
        %6664 = vmatpush1.msra.mxu0 0.0
        %6665 = vmatprep.subr.mxu0 0.0
        %6666 = vmatpush1.msra.mxu0 0.0
        %6667 = vmatprep.subr.mxu0 0.0
        %6668 = vmatpush1.msra.mxu0 0.0
        %6669 = vmatprep.subr.mxu0 0.0
        %6670 = vmatpush1.msra.mxu0 0.0
        %6671 = vmatprep.subr.mxu0 0.0
        %6672 = vmatpush1.msra.mxu0 0.0
        %6673 = vmatprep.subr.mxu0 0.0
        %6674 = vmatpush1.msra.mxu0 0.0
        %6675 = vmatprep.subr.mxu0 0.0
        %6676 = vmatpush1.msra.mxu0 0.0
        %6677 = vmatprep.subr.mxu0 0.0
        %6678 = vmatpush1.msra.mxu0 0.0
        %6679 = vmatprep.subr.mxu0 0.0
        %6680 = vmatpush1.msra.mxu0 0.0
        %6681 = vmatprep.subr.mxu0 0.0
        %6682 = vmatpush1.msra.mxu0 0.0
        %6683 = vmatprep.subr.mxu0 0.0
        %6684 = vmatpush1.msra.mxu0 0.0
        %6685 = vmatprep.subr.mxu0 0.0
        %6686 = vmatpush1.msra.mxu0 0.0
        %6687 = vmatprep.subr.mxu0 0.0
        %6688 = vmatpush1.msra.mxu0 0.0
        %6689 = vmatprep.subr.mxu0 0.0
        %6690 = vmatpush1.msra.mxu0 0.0
        %6691 = vmatprep.subr.mxu0 0.0
        %6692 = vmatpush1.msra.mxu0 0.0
        %6693 = vmatprep.subr.mxu0 0.0
        %6694 = vmatpush1.msra.mxu0 0.0
        %6695 = vmatprep.subr.mxu0 0.0
        %6696 = vmatpush1.msra.mxu0 0.0
        %6697 = vmatprep.subr.mxu0 0.0
        %6698 = vmatpush1.msra.mxu0 0.0
        %6699 = vmatprep.subr.mxu0 0.0
        %6700 = vmatpush1.msra.mxu0 0.0
        %6701 = vmatprep.mubr.f32.mxu0 0.0
        %v6702 = vand.u32 %v6296, 4294901760
        %6703 = vmatmul.mubr.f32.gmra.mrb[0].mxu0 %v6702
        %v6704 = vpop.f32.mrb[0].mxu0
        %v6705 = vadd.f32 %v6622, %v6704
        %v6706 = vpop.f32.mrb[0].mxu0
        %6707 = vdwg.mxu0
        %6708 = vmatprep.subr.mxu0 0.0
        %v6709 = vand.u32 %v6291, 4294901760
        %6710 = vmatpush1.msra.mxu0 %v6709
        %6711 = vmatprep.subr.mxu0 0.0
        %v6712 = vand.u32 %v6292, 4294901760
        %6713 = vmatpush1.msra.mxu0 %v6712
        %6714 = vmatprep.subr.mxu0 0.0
        %v6715 = vand.u32 %v6293, 4294901760
        %6716 = vmatpush1.msra.mxu0 %v6715
        %6717 = vmatprep.subr.mxu0 0.0
        %v6718 = vand.u32 %v6294, 4294901760
        %6719 = vmatpush1.msra.mxu0 %v6718
        %6720 = vmatprep.subr.mxu0 0.0
        %6721 = vmatpush1.msra.mxu0 0.0
        %6722 = vmatprep.subr.mxu0 0.0
        %6723 = vmatpush1.msra.mxu0 0.0
        %6724 = vmatprep.subr.mxu0 0.0
        %6725 = vmatpush1.msra.mxu0 0.0
        %6726 = vmatprep.subr.mxu0 0.0
        %6727 = vmatpush1.msra.mxu0 0.0
        %6728 = vmatprep.subr.mxu0 0.0
        %6729 = vmatpush1.msra.mxu0 0.0
        %6730 = vmatprep.subr.mxu0 0.0
        %6731 = vmatpush1.msra.mxu0 0.0
        %6732 = vmatprep.subr.mxu0 0.0
        %6733 = vmatpush1.msra.mxu0 0.0
        %6734 = vmatprep.subr.mxu0 0.0
        %6735 = vmatpush1.msra.mxu0 0.0
        %6736 = vmatprep.subr.mxu0 0.0
        %6737 = vmatpush1.msra.mxu0 0.0
        %6738 = vmatprep.subr.mxu0 0.0
        %6739 = vmatpush1.msra.mxu0 0.0
        %6740 = vmatprep.subr.mxu0 0.0
        %6741 = vmatpush1.msra.mxu0 0.0
        %6742 = vmatprep.subr.mxu0 0.0
        %6743 = vmatpush1.msra.mxu0 0.0
        %6744 = vmatprep.subr.mxu0 0.0
        %6745 = vmatpush1.msra.mxu0 0.0
        %6746 = vmatprep.subr.mxu0 0.0
        %6747 = vmatpush1.msra.mxu0 0.0
        %6748 = vmatprep.subr.mxu0 0.0
        %6749 = vmatpush1.msra.mxu0 0.0
        %6750 = vmatprep.subr.mxu0 0.0
        %6751 = vmatpush1.msra.mxu0 0.0
        %6752 = vmatprep.subr.mxu0 0.0
        %6753 = vmatpush1.msra.mxu0 0.0
        %6754 = vmatprep.subr.mxu0 0.0
        %6755 = vmatpush1.msra.mxu0 0.0
        %6756 = vmatprep.subr.mxu0 0.0
        %6757 = vmatpush1.msra.mxu0 0.0
        %6758 = vmatprep.subr.mxu0 0.0
        %6759 = vmatpush1.msra.mxu0 0.0
        %6760 = vmatprep.subr.mxu0 0.0
        %6761 = vmatpush1.msra.mxu0 0.0
        %6762 = vmatprep.subr.mxu0 0.0
        %6763 = vmatpush1.msra.mxu0 0.0
        %6764 = vmatprep.subr.mxu0 0.0
        %6765 = vmatpush1.msra.mxu0 0.0
        %6766 = vmatprep.subr.mxu0 0.0
        %6767 = vmatpush1.msra.mxu0 0.0
        %6768 = vmatprep.subr.mxu0 0.0
        %6769 = vmatpush1.msra.mxu0 0.0
        %6770 = vmatprep.subr.mxu0 0.0
        %6771 = vmatpush1.msra.mxu0 0.0
        %6772 = vmatprep.subr.mxu0 0.0
        %6773 = vmatpush1.msra.mxu0 0.0
        %6774 = vmatprep.subr.mxu0 0.0
        %6775 = vmatpush1.msra.mxu0 0.0
        %6776 = vmatprep.mubr.f32.mxu0 0.0
        %v6777 = vand.u32 %v6296, 4294901760
        %6778 = vmatmul.mubr.f32.gmra.mrb[0].mxu0 %v6777
        %v6779 = vpop.f32.mrb[0].mxu0
        %v6780 = vadd.f32 %v6705, %v6779
        %v6781 = vpop.f32.mrb[0].mxu0
        %6782 = vdwg.mxu0
        %v6783 = vadd.f32 %v5368, %v6780
        %6784 = vrot.lane.b32.xlu0 %v1215, 32
        %v6785 = vpop.permute.xlu0 %6784
        %6786 = vrot.lane.b32.xlu0 %v1879, 32
        %v6787 = vpop.permute.xlu0 %6786
        %v6788 = vsel %vm2549, %v6785, 0
        %v6790 = vsel %vm2549, %v6787, 0
        %6792 = vmatprep.subr.mxu0 0.0
        %v6793 = vand.u32 %v6790, 4294901760
        %6794 = vmatpush1.xpose.msra.mxu0 %v6793
        %6795 = vmatprep.subr.mxu0 0.0
        %6796 = vmatpush1.xpose.msra.mxu0 0.0
        %6797 = vmatprep.subr.mxu0 0.0
        %6798 = vmatpush1.xpose.msra.mxu0 0.0
        %6799 = vmatprep.subr.mxu0 0.0
        %6800 = vmatpush1.xpose.msra.mxu0 0.0
        %6801 = vmatprep.subr.mxu0 0.0
        %6802 = vmatpush1.xpose.msra.mxu0 0.0
        %6803 = vmatprep.subr.mxu0 0.0
        %6804 = vmatpush1.xpose.msra.mxu0 0.0
        %6805 = vmatprep.subr.mxu0 0.0
        %6806 = vmatpush1.xpose.msra.mxu0 0.0
        %6807 = vmatprep.subr.mxu0 0.0
        %6808 = vmatpush1.xpose.msra.mxu0 0.0
        %6809 = vmatprep.subr.mxu0 0.0
        %6810 = vmatpush1.xpose.msra.mxu0 0.0
        %6811 = vmatprep.subr.mxu0 0.0
        %6812 = vmatpush1.xpose.msra.mxu0 0.0
        %6813 = vmatprep.subr.mxu0 0.0
        %6814 = vmatpush1.xpose.msra.mxu0 0.0
        %6815 = vmatprep.subr.mxu0 0.0
        %6816 = vmatpush1.xpose.msra.mxu0 0.0
        %6817 = vmatprep.subr.mxu0 0.0
        %6818 = vmatpush1.xpose.msra.mxu0 0.0
        %6819 = vmatprep.subr.mxu0 0.0
        %6820 = vmatpush1.xpose.msra.mxu0 0.0
        %6821 = vmatprep.subr.mxu0 0.0
        %6822 = vmatpush1.xpose.msra.mxu0 0.0
        %6823 = vmatprep.subr.mxu0 0.0
        %6824 = vmatpush1.xpose.msra.mxu0 0.0
        %6825 = vmatprep.subr.mxu0 0.0
        %6826 = vmatpush1.xpose.msra.mxu0 0.0
        %6827 = vmatprep.subr.mxu0 0.0
        %6828 = vmatpush1.xpose.msra.mxu0 0.0
        %6829 = vmatprep.subr.mxu0 0.0
        %6830 = vmatpush1.xpose.msra.mxu0 0.0
        %6831 = vmatprep.subr.mxu0 0.0
        %6832 = vmatpush1.xpose.msra.mxu0 0.0
        %6833 = vmatprep.subr.mxu0 0.0
        %6834 = vmatpush1.xpose.msra.mxu0 0.0
        %6835 = vmatprep.subr.mxu0 0.0
        %6836 = vmatpush1.xpose.msra.mxu0 0.0
        %6837 = vmatprep.subr.mxu0 0.0
        %6838 = vmatpush1.xpose.msra.mxu0 0.0
        %6839 = vmatprep.subr.mxu0 0.0
        %6840 = vmatpush1.xpose.msra.mxu0 0.0
        %6841 = vmatprep.subr.mxu0 0.0
        %6842 = vmatpush1.xpose.msra.mxu0 0.0
        %6843 = vmatprep.subr.mxu0 0.0
        %6844 = vmatpush1.xpose.msra.mxu0 0.0
        %6845 = vmatprep.subr.mxu0 0.0
        %6846 = vmatpush1.xpose.msra.mxu0 0.0
        %6847 = vmatprep.subr.mxu0 0.0
        %6848 = vmatpush1.xpose.msra.mxu0 0.0
        %6849 = vmatprep.subr.mxu0 0.0
        %6850 = vmatpush1.xpose.msra.mxu0 0.0
        %6851 = vmatprep.subr.mxu0 0.0
        %6852 = vmatpush1.xpose.msra.mxu0 0.0
        %6853 = vmatprep.subr.mxu0 0.0
        %6854 = vmatpush1.xpose.msra.mxu0 0.0
        %6855 = vmatprep.subr.mxu0 0.0
        %6856 = vmatpush1.xpose.msra.mxu0 0.0
        %6857 = vmatprep.mubr.f32.mxu0 0.0
        %v6858 = vand.u32 %v6788, 4294901760
        %v6859 = vsub.f32 %v6788, %v6858
        %v6860 = vand.u32 %v6859, 4294901760
        %v6861 = vsub.f32 %v6859, %v6860
        %v6862 = vand.u32 %v6861, 4294901760
        %6863 = vmatmul.mubr.f32.gmra.mrb[0].mxu0 %v6862
        %v6864 = vpop.f32.mrb[0].mxu0
        %v6865 = vadd.f32 0.0, %v6864
        %v6866 = vpop.f32.mrb[0].mxu0
        %6867 = vdwg.mxu0
        %6868 = vmatprep.subr.mxu0 0.0
        %v6869 = vand.u32 %v6790, 4294901760
        %v6870 = vsub.f32 %v6790, %v6869
        %v6871 = vand.u32 %v6870, 4294901760
        %v6872 = vsub.f32 %v6870, %v6871
        %v6873 = vand.u32 %v6872, 4294901760
        %6874 = vmatpush1.xpose.msra.mxu0 %v6873
        %6875 = vmatprep.subr.mxu0 0.0
        %6876 = vmatpush1.xpose.msra.mxu0 0.0
        %6877 = vmatprep.subr.mxu0 0.0
        %6878 = vmatpush1.xpose.msra.mxu0 0.0
        %6879 = vmatprep.subr.mxu0 0.0
        %6880 = vmatpush1.xpose.msra.mxu0 0.0
        %6881 = vmatprep.subr.mxu0 0.0
        %6882 = vmatpush1.xpose.msra.mxu0 0.0
        %6883 = vmatprep.subr.mxu0 0.0
        %6884 = vmatpush1.xpose.msra.mxu0 0.0
        %6885 = vmatprep.subr.mxu0 0.0
        %6886 = vmatpush1.xpose.msra.mxu0 0.0
        %6887 = vmatprep.subr.mxu0 0.0
        %6888 = vmatpush1.xpose.msra.mxu0 0.0
        %6889 = vmatprep.subr.mxu0 0.0
        %6890 = vmatpush1.xpose.msra.mxu0 0.0
        %6891 = vmatprep.subr.mxu0 0.0
        %6892 = vmatpush1.xpose.msra.mxu0 0.0
        %6893 = vmatprep.subr.mxu0 0.0
        %6894 = vmatpush1.xpose.msra.mxu0 0.0
        %6895 = vmatprep.subr.mxu0 0.0
        %6896 = vmatpush1.xpose.msra.mxu0 0.0
        %6897 = vmatprep.subr.mxu0 0.0
        %6898 = vmatpush1.xpose.msra.mxu0 0.0
        %6899 = vmatprep.subr.mxu0 0.0
        %6900 = vmatpush1.xpose.msra.mxu0 0.0
        %6901 = vmatprep.subr.mxu0 0.0
        %6902 = vmatpush1.xpose.msra.mxu0 0.0
        %6903 = vmatprep.subr.mxu0 0.0
        %6904 = vmatpush1.xpose.msra.mxu0 0.0
        %6905 = vmatprep.subr.mxu0 0.0
        %6906 = vmatpush1.xpose.msra.mxu0 0.0
        %6907 = vmatprep.subr.mxu0 0.0
        %6908 = vmatpush1.xpose.msra.mxu0 0.0
        %6909 = vmatprep.subr.mxu0 0.0
        %6910 = vmatpush1.xpose.msra.mxu0 0.0
        %6911 = vmatprep.subr.mxu0 0.0
        %6912 = vmatpush1.xpose.msra.mxu0 0.0
        %6913 = vmatprep.subr.mxu0 0.0
        %6914 = vmatpush1.xpose.msra.mxu0 0.0
        %6915 = vmatprep.subr.mxu0 0.0
        %6916 = vmatpush1.xpose.msra.mxu0 0.0
        %6917 = vmatprep.subr.mxu0 0.0
        %6918 = vmatpush1.xpose.msra.mxu0 0.0
        %6919 = vmatprep.subr.mxu0 0.0
        %6920 = vmatpush1.xpose.msra.mxu0 0.0
        %6921 = vmatprep.subr.mxu0 0.0
        %6922 = vmatpush1.xpose.msra.mxu0 0.0
        %6923 = vmatprep.subr.mxu0 0.0
        %6924 = vmatpush1.xpose.msra.mxu0 0.0
        %6925 = vmatprep.subr.mxu0 0.0
        %6926 = vmatpush1.xpose.msra.mxu0 0.0
        %6927 = vmatprep.subr.mxu0 0.0
        %6928 = vmatpush1.xpose.msra.mxu0 0.0
        %6929 = vmatprep.subr.mxu0 0.0
        %6930 = vmatpush1.xpose.msra.mxu0 0.0
        %6931 = vmatprep.subr.mxu0 0.0
        %6932 = vmatpush1.xpose.msra.mxu0 0.0
        %6933 = vmatprep.subr.mxu0 0.0
        %6934 = vmatpush1.xpose.msra.mxu0 0.0
        %6935 = vmatprep.subr.mxu0 0.0
        %6936 = vmatpush1.xpose.msra.mxu0 0.0
        %6937 = vmatprep.mubr.f32.mxu0 0.0
        %v6938 = vand.u32 %v6788, 4294901760
        %6939 = vmatmul.mubr.f32.gmra.mrb[0].mxu0 %v6938
        %v6940 = vpop.f32.mrb[0].mxu0
        %v6941 = vadd.f32 %v6865, %v6940
        %v6942 = vpop.f32.mrb[0].mxu0
        %6943 = vdwg.mxu0
        %6944 = vmatprep.subr.mxu0 0.0
        %v6945 = vand.u32 %v6790, 4294901760
        %v6946 = vsub.f32 %v6790, %v6945
        %6947 = vmatpush1.xpose.msra.mxu0 %v6946
        %6948 = vmatprep.subr.mxu0 0.0
        %6949 = vmatpush1.xpose.msra.mxu0 0.0
        %6950 = vmatprep.subr.mxu0 0.0
        %6951 = vmatpush1.xpose.msra.mxu0 0.0
        %6952 = vmatprep.subr.mxu0 0.0
        %6953 = vmatpush1.xpose.msra.mxu0 0.0
        %6954 = vmatprep.subr.mxu0 0.0
        %6955 = vmatpush1.xpose.msra.mxu0 0.0
        %6956 = vmatprep.subr.mxu0 0.0
        %6957 = vmatpush1.xpose.msra.mxu0 0.0
        %6958 = vmatprep.subr.mxu0 0.0
        %6959 = vmatpush1.xpose.msra.mxu0 0.0
        %6960 = vmatprep.subr.mxu0 0.0
        %6961 = vmatpush1.xpose.msra.mxu0 0.0
        %6962 = vmatprep.subr.mxu0 0.0
        %6963 = vmatpush1.xpose.msra.mxu0 0.0
        %6964 = vmatprep.subr.mxu0 0.0
        %6965 = vmatpush1.xpose.msra.mxu0 0.0
        %6966 = vmatprep.subr.mxu0 0.0
        %6967 = vmatpush1.xpose.msra.mxu0 0.0
        %6968 = vmatprep.subr.mxu0 0.0
        %6969 = vmatpush1.xpose.msra.mxu0 0.0
        %6970 = vmatprep.subr.mxu0 0.0
        %6971 = vmatpush1.xpose.msra.mxu0 0.0
        %6972 = vmatprep.subr.mxu0 0.0
        %6973 = vmatpush1.xpose.msra.mxu0 0.0
        %6974 = vmatprep.subr.mxu0 0.0
        %6975 = vmatpush1.xpose.msra.mxu0 0.0
        %6976 = vmatprep.subr.mxu0 0.0
        %6977 = vmatpush1.xpose.msra.mxu0 0.0
        %6978 = vmatprep.subr.mxu0 0.0
        %6979 = vmatpush1.xpose.msra.mxu0 0.0
        %6980 = vmatprep.subr.mxu0 0.0
        %6981 = vmatpush1.xpose.msra.mxu0 0.0
        %6982 = vmatprep.subr.mxu0 0.0
        %6983 = vmatpush1.xpose.msra.mxu0 0.0
        %6984 = vmatprep.subr.mxu0 0.0
        %6985 = vmatpush1.xpose.msra.mxu0 0.0
        %6986 = vmatprep.subr.mxu0 0.0
        %6987 = vmatpush1.xpose.msra.mxu0 0.0
        %6988 = vmatprep.subr.mxu0 0.0
        %6989 = vmatpush1.xpose.msra.mxu0 0.0
        %6990 = vmatprep.subr.mxu0 0.0
        %6991 = vmatpush1.xpose.msra.mxu0 0.0
        %6992 = vmatprep.subr.mxu0 0.0
        %6993 = vmatpush1.xpose.msra.mxu0 0.0
        %6994 = vmatprep.subr.mxu0 0.0
        %6995 = vmatpush1.xpose.msra.mxu0 0.0
        %6996 = vmatprep.subr.mxu0 0.0
        %6997 = vmatpush1.xpose.msra.mxu0 0.0
        %6998 = vmatprep.subr.mxu0 0.0
        %6999 = vmatpush1.xpose.msra.mxu0 0.0
        %7000 = vmatprep.subr.mxu0 0.0
        %7001 = vmatpush1.xpose.msra.mxu0 0.0
        %7002 = vmatprep.subr.mxu0 0.0
        %7003 = vmatpush1.xpose.msra.mxu0 0.0
        %7004 = vmatprep.subr.mxu0 0.0
        %7005 = vmatpush1.xpose.msra.mxu0 0.0
        %7006 = vmatprep.subr.mxu0 0.0
        %7007 = vmatpush1.xpose.msra.mxu0 0.0
        %7008 = vmatprep.subr.mxu0 0.0
        %7009 = vmatpush1.xpose.msra.mxu0 0.0
        %7010 = vmatprep.mubr.f32.mxu0 0.0
        %v7011 = vand.u32 %v6788, 4294901760
        %v7012 = vsub.f32 %v6788, %v7011
        %7013 = vmatmul.mubr.f32.gmra.mrb[0].mxu0 %v7012
        %v7014 = vpop.f32.mrb[0].mxu0
        %v7015 = vadd.f32 %v6941, %v7014
        %v7016 = vpop.f32.mrb[0].mxu0
        %7017 = vdwg.mxu0
        %7018 = vmatprep.subr.mxu0 0.0
        %v7019 = vand.u32 %v6790, 4294901760
        %7020 = vmatpush1.xpose.msra.mxu0 %v7019
        %7021 = vmatprep.subr.mxu0 0.0
        %7022 = vmatpush1.xpose.msra.mxu0 0.0
        %7023 = vmatprep.subr.mxu0 0.0
        %7024 = vmatpush1.xpose.msra.mxu0 0.0
        %7025 = vmatprep.subr.mxu0 0.0
        %7026 = vmatpush1.xpose.msra.mxu0 0.0
        %7027 = vmatprep.subr.mxu0 0.0
        %7028 = vmatpush1.xpose.msra.mxu0 0.0
        %7029 = vmatprep.subr.mxu0 0.0
        %7030 = vmatpush1.xpose.msra.mxu0 0.0
        %7031 = vmatprep.subr.mxu0 0.0
        %7032 = vmatpush1.xpose.msra.mxu0 0.0
        %7033 = vmatprep.subr.mxu0 0.0
        %7034 = vmatpush1.xpose.msra.mxu0 0.0
        %7035 = vmatprep.subr.mxu0 0.0
        %7036 = vmatpush1.xpose.msra.mxu0 0.0
        %7037 = vmatprep.subr.mxu0 0.0
        %7038 = vmatpush1.xpose.msra.mxu0 0.0
        %7039 = vmatprep.subr.mxu0 0.0
        %7040 = vmatpush1.xpose.msra.mxu0 0.0
        %7041 = vmatprep.subr.mxu0 0.0
        %7042 = vmatpush1.xpose.msra.mxu0 0.0
        %7043 = vmatprep.subr.mxu0 0.0
        %7044 = vmatpush1.xpose.msra.mxu0 0.0
        %7045 = vmatprep.subr.mxu0 0.0
        %7046 = vmatpush1.xpose.msra.mxu0 0.0
        %7047 = vmatprep.subr.mxu0 0.0
        %7048 = vmatpush1.xpose.msra.mxu0 0.0
        %7049 = vmatprep.subr.mxu0 0.0
        %7050 = vmatpush1.xpose.msra.mxu0 0.0
        %7051 = vmatprep.subr.mxu0 0.0
        %7052 = vmatpush1.xpose.msra.mxu0 0.0
        %7053 = vmatprep.subr.mxu0 0.0
        %7054 = vmatpush1.xpose.msra.mxu0 0.0
        %7055 = vmatprep.subr.mxu0 0.0
        %7056 = vmatpush1.xpose.msra.mxu0 0.0
        %7057 = vmatprep.subr.mxu0 0.0
        %7058 = vmatpush1.xpose.msra.mxu0 0.0
        %7059 = vmatprep.subr.mxu0 0.0
        %7060 = vmatpush1.xpose.msra.mxu0 0.0
        %7061 = vmatprep.subr.mxu0 0.0
        %7062 = vmatpush1.xpose.msra.mxu0 0.0
        %7063 = vmatprep.subr.mxu0 0.0
        %7064 = vmatpush1.xpose.msra.mxu0 0.0
        %7065 = vmatprep.subr.mxu0 0.0
        %7066 = vmatpush1.xpose.msra.mxu0 0.0
        %7067 = vmatprep.subr.mxu0 0.0
        %7068 = vmatpush1.xpose.msra.mxu0 0.0
        %7069 = vmatprep.subr.mxu0 0.0
        %7070 = vmatpush1.xpose.msra.mxu0 0.0
        %7071 = vmatprep.subr.mxu0 0.0
        %7072 = vmatpush1.xpose.msra.mxu0 0.0
        %7073 = vmatprep.subr.mxu0 0.0
        %7074 = vmatpush1.xpose.msra.mxu0 0.0
        %7075 = vmatprep.subr.mxu0 0.0
        %7076 = vmatpush1.xpose.msra.mxu0 0.0
        %7077 = vmatprep.subr.mxu0 0.0
        %7078 = vmatpush1.xpose.msra.mxu0 0.0
        %7079 = vmatprep.subr.mxu0 0.0
        %7080 = vmatpush1.xpose.msra.mxu0 0.0
        %7081 = vmatprep.subr.mxu0 0.0
        %7082 = vmatpush1.xpose.msra.mxu0 0.0
        %7083 = vmatprep.mubr.f32.mxu0 0.0
        %v7084 = vand.u32 %v6788, 4294901760
        %v7085 = vsub.f32 %v6788, %v7084
        %v7086 = vand.u32 %v7085, 4294901760
        %7087 = vmatmul.mubr.f32.gmra.mrb[0].mxu0 %v7086
        %v7088 = vpop.f32.mrb[0].mxu0
        %v7089 = vadd.f32 %v7015, %v7088
        %v7090 = vpop.f32.mrb[0].mxu0
        %7091 = vdwg.mxu0
        %7092 = vmatprep.subr.mxu0 0.0
        %v7093 = vand.u32 %v6790, 4294901760
        %v7094 = vsub.f32 %v6790, %v7093
        %v7095 = vand.u32 %v7094, 4294901760
        %7096 = vmatpush1.xpose.msra.mxu0 %v7095
        %7097 = vmatprep.subr.mxu0 0.0
        %7098 = vmatpush1.xpose.msra.mxu0 0.0
        %7099 = vmatprep.subr.mxu0 0.0
        %7100 = vmatpush1.xpose.msra.mxu0 0.0
        %7101 = vmatprep.subr.mxu0 0.0
        %7102 = vmatpush1.xpose.msra.mxu0 0.0
        %7103 = vmatprep.subr.mxu0 0.0
        %7104 = vmatpush1.xpose.msra.mxu0 0.0
        %7105 = vmatprep.subr.mxu0 0.0
        %7106 = vmatpush1.xpose.msra.mxu0 0.0
        %7107 = vmatprep.subr.mxu0 0.0
        %7108 = vmatpush1.xpose.msra.mxu0 0.0
        %7109 = vmatprep.subr.mxu0 0.0
        %7110 = vmatpush1.xpose.msra.mxu0 0.0
        %7111 = vmatprep.subr.mxu0 0.0
        %7112 = vmatpush1.xpose.msra.mxu0 0.0
        %7113 = vmatprep.subr.mxu0 0.0
        %7114 = vmatpush1.xpose.msra.mxu0 0.0
        %7115 = vmatprep.subr.mxu0 0.0
        %7116 = vmatpush1.xpose.msra.mxu0 0.0
        %7117 = vmatprep.subr.mxu0 0.0
        %7118 = vmatpush1.xpose.msra.mxu0 0.0
        %7119 = vmatprep.subr.mxu0 0.0
        %7120 = vmatpush1.xpose.msra.mxu0 0.0
        %7121 = vmatprep.subr.mxu0 0.0
        %7122 = vmatpush1.xpose.msra.mxu0 0.0
        %7123 = vmatprep.subr.mxu0 0.0
        %7124 = vmatpush1.xpose.msra.mxu0 0.0
        %7125 = vmatprep.subr.mxu0 0.0
        %7126 = vmatpush1.xpose.msra.mxu0 0.0
        %7127 = vmatprep.subr.mxu0 0.0
        %7128 = vmatpush1.xpose.msra.mxu0 0.0
        %7129 = vmatprep.subr.mxu0 0.0
        %7130 = vmatpush1.xpose.msra.mxu0 0.0
        %7131 = vmatprep.subr.mxu0 0.0
        %7132 = vmatpush1.xpose.msra.mxu0 0.0
        %7133 = vmatprep.subr.mxu0 0.0
        %7134 = vmatpush1.xpose.msra.mxu0 0.0
        %7135 = vmatprep.subr.mxu0 0.0
        %7136 = vmatpush1.xpose.msra.mxu0 0.0
        %7137 = vmatprep.subr.mxu0 0.0
        %7138 = vmatpush1.xpose.msra.mxu0 0.0
        %7139 = vmatprep.subr.mxu0 0.0
        %7140 = vmatpush1.xpose.msra.mxu0 0.0
        %7141 = vmatprep.subr.mxu0 0.0
        %7142 = vmatpush1.xpose.msra.mxu0 0.0
        %7143 = vmatprep.subr.mxu0 0.0
        %7144 = vmatpush1.xpose.msra.mxu0 0.0
        %7145 = vmatprep.subr.mxu0 0.0
        %7146 = vmatpush1.xpose.msra.mxu0 0.0
        %7147 = vmatprep.subr.mxu0 0.0
        %7148 = vmatpush1.xpose.msra.mxu0 0.0
        %7149 = vmatprep.subr.mxu0 0.0
        %7150 = vmatpush1.xpose.msra.mxu0 0.0
        %7151 = vmatprep.subr.mxu0 0.0
        %7152 = vmatpush1.xpose.msra.mxu0 0.0
        %7153 = vmatprep.subr.mxu0 0.0
        %7154 = vmatpush1.xpose.msra.mxu0 0.0
        %7155 = vmatprep.subr.mxu0 0.0
        %7156 = vmatpush1.xpose.msra.mxu0 0.0
        %7157 = vmatprep.subr.mxu0 0.0
        %7158 = vmatpush1.xpose.msra.mxu0 0.0
        %7159 = vmatprep.mubr.f32.mxu0 0.0
        %v7160 = vand.u32 %v6788, 4294901760
        %7161 = vmatmul.mubr.f32.gmra.mrb[0].mxu0 %v7160
        %v7162 = vpop.f32.mrb[0].mxu0
        %v7163 = vadd.f32 %v7089, %v7162
        %v7164 = vpop.f32.mrb[0].mxu0
        %7165 = vdwg.mxu0
        %7166 = vmatprep.subr.mxu0 0.0
        %v7167 = vand.u32 %v6790, 4294901760
        %7168 = vmatpush1.xpose.msra.mxu0 %v7167
        %7169 = vmatprep.subr.mxu0 0.0
        %7170 = vmatpush1.xpose.msra.mxu0 0.0
        %7171 = vmatprep.subr.mxu0 0.0
        %7172 = vmatpush1.xpose.msra.mxu0 0.0
        %7173 = vmatprep.subr.mxu0 0.0
        %7174 = vmatpush1.xpose.msra.mxu0 0.0
        %7175 = vmatprep.subr.mxu0 0.0
        %7176 = vmatpush1.xpose.msra.mxu0 0.0
        %7177 = vmatprep.subr.mxu0 0.0
        %7178 = vmatpush1.xpose.msra.mxu0 0.0
        %7179 = vmatprep.subr.mxu0 0.0
        %7180 = vmatpush1.xpose.msra.mxu0 0.0
        %7181 = vmatprep.subr.mxu0 0.0
        %7182 = vmatpush1.xpose.msra.mxu0 0.0
        %7183 = vmatprep.subr.mxu0 0.0
        %7184 = vmatpush1.xpose.msra.mxu0 0.0
        %7185 = vmatprep.subr.mxu0 0.0
        %7186 = vmatpush1.xpose.msra.mxu0 0.0
        %7187 = vmatprep.subr.mxu0 0.0
        %7188 = vmatpush1.xpose.msra.mxu0 0.0
        %7189 = vmatprep.subr.mxu0 0.0
        %7190 = vmatpush1.xpose.msra.mxu0 0.0
        %7191 = vmatprep.subr.mxu0 0.0
        %7192 = vmatpush1.xpose.msra.mxu0 0.0
        %7193 = vmatprep.subr.mxu0 0.0
        %7194 = vmatpush1.xpose.msra.mxu0 0.0
        %7195 = vmatprep.subr.mxu0 0.0
        %7196 = vmatpush1.xpose.msra.mxu0 0.0
        %7197 = vmatprep.subr.mxu0 0.0
        %7198 = vmatpush1.xpose.msra.mxu0 0.0
        %7199 = vmatprep.subr.mxu0 0.0
        %7200 = vmatpush1.xpose.msra.mxu0 0.0
        %7201 = vmatprep.subr.mxu0 0.0
        %7202 = vmatpush1.xpose.msra.mxu0 0.0
        %7203 = vmatprep.subr.mxu0 0.0
        %7204 = vmatpush1.xpose.msra.mxu0 0.0
        %7205 = vmatprep.subr.mxu0 0.0
        %7206 = vmatpush1.xpose.msra.mxu0 0.0
        %7207 = vmatprep.subr.mxu0 0.0
        %7208 = vmatpush1.xpose.msra.mxu0 0.0
        %7209 = vmatprep.subr.mxu0 0.0
        %7210 = vmatpush1.xpose.msra.mxu0 0.0
        %7211 = vmatprep.subr.mxu0 0.0
        %7212 = vmatpush1.xpose.msra.mxu0 0.0
        %7213 = vmatprep.subr.mxu0 0.0
        %7214 = vmatpush1.xpose.msra.mxu0 0.0
        %7215 = vmatprep.subr.mxu0 0.0
        %7216 = vmatpush1.xpose.msra.mxu0 0.0
        %7217 = vmatprep.subr.mxu0 0.0
        %7218 = vmatpush1.xpose.msra.mxu0 0.0
        %7219 = vmatprep.subr.mxu0 0.0
        %7220 = vmatpush1.xpose.msra.mxu0 0.0
        %7221 = vmatprep.subr.mxu0 0.0
        %7222 = vmatpush1.xpose.msra.mxu0 0.0
        %7223 = vmatprep.subr.mxu0 0.0
        %7224 = vmatpush1.xpose.msra.mxu0 0.0
        %7225 = vmatprep.subr.mxu0 0.0
        %7226 = vmatpush1.xpose.msra.mxu0 0.0
        %7227 = vmatprep.subr.mxu0 0.0
        %7228 = vmatpush1.xpose.msra.mxu0 0.0
        %7229 = vmatprep.subr.mxu0 0.0
        %7230 = vmatpush1.xpose.msra.mxu0 0.0
        %7231 = vmatprep.mubr.f32.mxu0 0.0
        %v7232 = vand.u32 %v6788, 4294901760
        %7233 = vmatmul.mubr.f32.gmra.mrb[0].mxu0 %v7232
        %v7234 = vpop.f32.mrb[0].mxu0
        %v7235 = vadd.f32 %v7163, %v7234
        %v7236 = vpop.f32.mrb[0].mxu0
        %7237 = vdwg.mxu0
        %v7238 = vmul.f32 %v7235, 0.17677669
        %v7239 = vadd.f32 %v7238, %v2548
        %v7240 = vsel %vm3004, %v7239, -inf
        %7241 = vmax.xlane.f32.xlu0 %v7240
        %v7242 = vpop.xlane.xlu0 %7241
        %v7243 = vsub.f32 %v7239, %v7242
        %v7244 = vmul.f32 %v7243, 1.442695
        %v7245 = vpow.pop %v7244
        %v7246 = vsel %vm3004, %v7245, 0.0
        %7247 = vadd.xlane.f32.xlu0 %v7246
        %v7248 = vpop.xlane.xlu0 %7247
        %v7249 = vrcp.pop %v7248
        %v7250 = vmul.f32 1.0, %v7249
        %v7251 = vmul.f32 %v7245, %v7250
        %7252 = vrot.lane.b32.xlu0 %v2543, 32
        %v7253 = vpop.permute.xlu0 %7252
        %v7256 = vsel %vm3004, %v7251, 0
        %7258 = vmatprep.subr.mxu0 0.0
        %v7259 = vand.u32 %v7253, 4294901760
        %7260 = vmatpush1.msra.mxu0 %v7259
        %7261 = vmatprep.subr.mxu0 0.0
        %7262 = vmatpush1.msra.mxu0 0.0
        %7263 = vmatprep.subr.mxu0 0.0
        %7264 = vmatpush1.msra.mxu0 0.0
        %7265 = vmatprep.subr.mxu0 0.0
        %7266 = vmatpush1.msra.mxu0 0.0
        %7267 = vmatprep.subr.mxu0 0.0
        %7268 = vmatpush1.msra.mxu0 0.0
        %7269 = vmatprep.subr.mxu0 0.0
        %7270 = vmatpush1.msra.mxu0 0.0
        %7271 = vmatprep.subr.mxu0 0.0
        %7272 = vmatpush1.msra.mxu0 0.0
        %7273 = vmatprep.subr.mxu0 0.0
        %7274 = vmatpush1.msra.mxu0 0.0
        %7275 = vmatprep.subr.mxu0 0.0
        %7276 = vmatpush1.msra.mxu0 0.0
        %7277 = vmatprep.subr.mxu0 0.0
        %7278 = vmatpush1.msra.mxu0 0.0
        %7279 = vmatprep.subr.mxu0 0.0
        %7280 = vmatpush1.msra.mxu0 0.0
        %7281 = vmatprep.subr.mxu0 0.0
        %7282 = vmatpush1.msra.mxu0 0.0
        %7283 = vmatprep.subr.mxu0 0.0
        %7284 = vmatpush1.msra.mxu0 0.0
        %7285 = vmatprep.subr.mxu0 0.0
        %7286 = vmatpush1.msra.mxu0 0.0
        %7287 = vmatprep.subr.mxu0 0.0
        %7288 = vmatpush1.msra.mxu0 0.0
        %7289 = vmatprep.subr.mxu0 0.0
        %7290 = vmatpush1.msra.mxu0 0.0
        %7291 = vmatprep.subr.mxu0 0.0
        %7292 = vmatpush1.msra.mxu0 0.0
        %7293 = vmatprep.subr.mxu0 0.0
        %7294 = vmatpush1.msra.mxu0 0.0
        %7295 = vmatprep.subr.mxu0 0.0
        %7296 = vmatpush1.msra.mxu0 0.0
        %7297 = vmatprep.subr.mxu0 0.0
        %7298 = vmatpush1.msra.mxu0 0.0
        %7299 = vmatprep.subr.mxu0 0.0
        %7300 = vmatpush1.msra.mxu0 0.0
        %7301 = vmatprep.subr.mxu0 0.0
        %7302 = vmatpush1.msra.mxu0 0.0
        %7303 = vmatprep.subr.mxu0 0.0
        %7304 = vmatpush1.msra.mxu0 0.0
        %7305 = vmatprep.subr.mxu0 0.0
        %7306 = vmatpush1.msra.mxu0 0.0
        %7307 = vmatprep.subr.mxu0 0.0
        %7308 = vmatpush1.msra.mxu0 0.0
        %7309 = vmatprep.subr.mxu0 0.0
        %7310 = vmatpush1.msra.mxu0 0.0
        %7311 = vmatprep.subr.mxu0 0.0
        %7312 = vmatpush1.msra.mxu0 0.0
        %7313 = vmatprep.subr.mxu0 0.0
        %7314 = vmatpush1.msra.mxu0 0.0
        %7315 = vmatprep.subr.mxu0 0.0
        %7316 = vmatpush1.msra.mxu0 0.0
        %7317 = vmatprep.subr.mxu0 0.0
        %7318 = vmatpush1.msra.mxu0 0.0
        %7319 = vmatprep.subr.mxu0 0.0
        %7320 = vmatpush1.msra.mxu0 0.0
        %7321 = vmatprep.subr.mxu0 0.0
        %7322 = vmatpush1.msra.mxu0 0.0
        %7323 = vmatprep.mubr.f32.mxu0 0.0
        %v7324 = vand.u32 %v7256, 4294901760
        %v7325 = vsub.f32 %v7256, %v7324
        %v7326 = vand.u32 %v7325, 4294901760
        %v7327 = vsub.f32 %v7325, %v7326
        %v7328 = vand.u32 %v7327, 4294901760
        %7329 = vmatmul.mubr.f32.gmra.mrb[0].mxu0 %v7328
        %v7330 = vpop.f32.mrb[0].mxu0
        %v7331 = vadd.f32 0.0, %v7330
        %v7332 = vpop.f32.mrb[0].mxu0
        %7333 = vdwg.mxu0
        %7334 = vmatprep.subr.mxu0 0.0
        %v7335 = vand.u32 %v7253, 4294901760
        %v7336 = vsub.f32 %v7253, %v7335
        %v7337 = vand.u32 %v7336, 4294901760
        %v7338 = vsub.f32 %v7336, %v7337
        %v7339 = vand.u32 %v7338, 4294901760
        %7340 = vmatpush1.msra.mxu0 %v7339
        %7341 = vmatprep.subr.mxu0 0.0
        %7342 = vmatpush1.msra.mxu0 0.0
        %7343 = vmatprep.subr.mxu0 0.0
        %7344 = vmatpush1.msra.mxu0 0.0
        %7345 = vmatprep.subr.mxu0 0.0
        %7346 = vmatpush1.msra.mxu0 0.0
        %7347 = vmatprep.subr.mxu0 0.0
        %7348 = vmatpush1.msra.mxu0 0.0
        %7349 = vmatprep.subr.mxu0 0.0
        %7350 = vmatpush1.msra.mxu0 0.0
        %7351 = vmatprep.subr.mxu0 0.0
        %7352 = vmatpush1.msra.mxu0 0.0
        %7353 = vmatprep.subr.mxu0 0.0
        %7354 = vmatpush1.msra.mxu0 0.0
        %7355 = vmatprep.subr.mxu0 0.0
        %7356 = vmatpush1.msra.mxu0 0.0
        %7357 = vmatprep.subr.mxu0 0.0
        %7358 = vmatpush1.msra.mxu0 0.0
        %7359 = vmatprep.subr.mxu0 0.0
        %7360 = vmatpush1.msra.mxu0 0.0
        %7361 = vmatprep.subr.mxu0 0.0
        %7362 = vmatpush1.msra.mxu0 0.0
        %7363 = vmatprep.subr.mxu0 0.0
        %7364 = vmatpush1.msra.mxu0 0.0
        %7365 = vmatprep.subr.mxu0 0.0
        %7366 = vmatpush1.msra.mxu0 0.0
        %7367 = vmatprep.subr.mxu0 0.0
        %7368 = vmatpush1.msra.mxu0 0.0
        %7369 = vmatprep.subr.mxu0 0.0
        %7370 = vmatpush1.msra.mxu0 0.0
        %7371 = vmatprep.subr.mxu0 0.0
        %7372 = vmatpush1.msra.mxu0 0.0
        %7373 = vmatprep.subr.mxu0 0.0
        %7374 = vmatpush1.msra.mxu0 0.0
        %7375 = vmatprep.subr.mxu0 0.0
        %7376 = vmatpush1.msra.mxu0 0.0
        %7377 = vmatprep.subr.mxu0 0.0
        %7378 = vmatpush1.msra.mxu0 0.0
        %7379 = vmatprep.subr.mxu0 0.0
        %7380 = vmatpush1.msra.mxu0 0.0
        %7381 = vmatprep.subr.mxu0 0.0
        %7382 = vmatpush1.msra.mxu0 0.0
        %7383 = vmatprep.subr.mxu0 0.0
        %7384 = vmatpush1.msra.mxu0 0.0
        %7385 = vmatprep.subr.mxu0 0.0
        %7386 = vmatpush1.msra.mxu0 0.0
        %7387 = vmatprep.subr.mxu0 0.0
        %7388 = vmatpush1.msra.mxu0 0.0
        %7389 = vmatprep.subr.mxu0 0.0
        %7390 = vmatpush1.msra.mxu0 0.0
        %7391 = vmatprep.subr.mxu0 0.0
        %7392 = vmatpush1.msra.mxu0 0.0
        %7393 = vmatprep.subr.mxu0 0.0
        %7394 = vmatpush1.msra.mxu0 0.0
        %7395 = vmatprep.subr.mxu0 0.0
        %7396 = vmatpush1.msra.mxu0 0.0
        %7397 = vmatprep.subr.mxu0 0.0
        %7398 = vmatpush1.msra.mxu0 0.0
        %7399 = vmatprep.subr.mxu0 0.0
        %7400 = vmatpush1.msra.mxu0 0.0
        %7401 = vmatprep.subr.mxu0 0.0
        %7402 = vmatpush1.msra.mxu0 0.0
        %7403 = vmatprep.mubr.f32.mxu0 0.0
        %v7404 = vand.u32 %v7256, 4294901760
        %7405 = vmatmul.mubr.f32.gmra.mrb[0].mxu0 %v7404
        %v7406 = vpop.f32.mrb[0].mxu0
        %v7407 = vadd.f32 %v7331, %v7406
        %v7408 = vpop.f32.mrb[0].mxu0
        %7409 = vdwg.mxu0
        %7410 = vmatprep.subr.mxu0 0.0
        %v7411 = vand.u32 %v7253, 4294901760
        %v7412 = vsub.f32 %v7253, %v7411
        %7413 = vmatpush1.msra.mxu0 %v7412
        %7414 = vmatprep.subr.mxu0 0.0
        %7415 = vmatpush1.msra.mxu0 0.0
        %7416 = vmatprep.subr.mxu0 0.0
        %7417 = vmatpush1.msra.mxu0 0.0
        %7418 = vmatprep.subr.mxu0 0.0
        %7419 = vmatpush1.msra.mxu0 0.0
        %7420 = vmatprep.subr.mxu0 0.0
        %7421 = vmatpush1.msra.mxu0 0.0
        %7422 = vmatprep.subr.mxu0 0.0
        %7423 = vmatpush1.msra.mxu0 0.0
        %7424 = vmatprep.subr.mxu0 0.0
        %7425 = vmatpush1.msra.mxu0 0.0
        %7426 = vmatprep.subr.mxu0 0.0
        %7427 = vmatpush1.msra.mxu0 0.0
        %7428 = vmatprep.subr.mxu0 0.0
        %7429 = vmatpush1.msra.mxu0 0.0
        %7430 = vmatprep.subr.mxu0 0.0
        %7431 = vmatpush1.msra.mxu0 0.0
        %7432 = vmatprep.subr.mxu0 0.0
        %7433 = vmatpush1.msra.mxu0 0.0
        %7434 = vmatprep.subr.mxu0 0.0
        %7435 = vmatpush1.msra.mxu0 0.0
        %7436 = vmatprep.subr.mxu0 0.0
        %7437 = vmatpush1.msra.mxu0 0.0
        %7438 = vmatprep.subr.mxu0 0.0
        %7439 = vmatpush1.msra.mxu0 0.0
        %7440 = vmatprep.subr.mxu0 0.0
        %7441 = vmatpush1.msra.mxu0 0.0
        %7442 = vmatprep.subr.mxu0 0.0
        %7443 = vmatpush1.msra.mxu0 0.0
        %7444 = vmatprep.subr.mxu0 0.0
        %7445 = vmatpush1.msra.mxu0 0.0
        %7446 = vmatprep.subr.mxu0 0.0
        %7447 = vmatpush1.msra.mxu0 0.0
        %7448 = vmatprep.subr.mxu0 0.0
        %7449 = vmatpush1.msra.mxu0 0.0
        %7450 = vmatprep.subr.mxu0 0.0
        %7451 = vmatpush1.msra.mxu0 0.0
        %7452 = vmatprep.subr.mxu0 0.0
        %7453 = vmatpush1.msra.mxu0 0.0
        %7454 = vmatprep.subr.mxu0 0.0
        %7455 = vmatpush1.msra.mxu0 0.0
        %7456 = vmatprep.subr.mxu0 0.0
        %7457 = vmatpush1.msra.mxu0 0.0
        %7458 = vmatprep.subr.mxu0 0.0
        %7459 = vmatpush1.msra.mxu0 0.0
        %7460 = vmatprep.subr.mxu0 0.0
        %7461 = vmatpush1.msra.mxu0 0.0
        %7462 = vmatprep.subr.mxu0 0.0
        %7463 = vmatpush1.msra.mxu0 0.0
        %7464 = vmatprep.subr.mxu0 0.0
        %7465 = vmatpush1.msra.mxu0 0.0
        %7466 = vmatprep.subr.mxu0 0.0
        %7467 = vmatpush1.msra.mxu0 0.0
        %7468 = vmatprep.subr.mxu0 0.0
        %7469 = vmatpush1.msra.mxu0 0.0
        %7470 = vmatprep.subr.mxu0 0.0
        %7471 = vmatpush1.msra.mxu0 0.0
        %7472 = vmatprep.subr.mxu0 0.0
        %7473 = vmatpush1.msra.mxu0 0.0
        %7474 = vmatprep.subr.mxu0 0.0
        %7475 = vmatpush1.msra.mxu0 0.0
        %7476 = vmatprep.mubr.f32.mxu0 0.0
        %v7477 = vand.u32 %v7256, 4294901760
        %v7478 = vsub.f32 %v7256, %v7477
        %7479 = vmatmul.mubr.f32.gmra.mrb[0].mxu0 %v7478
        %v7480 = vpop.f32.mrb[0].mxu0
        %v7481 = vadd.f32 %v7407, %v7480
        %v7482 = vpop.f32.mrb[0].mxu0
        %7483 = vdwg.mxu0
        %7484 = vmatprep.subr.mxu0 0.0
        %v7485 = vand.u32 %v7253, 4294901760
        %7486 = vmatpush1.msra.mxu0 %v7485
        %7487 = vmatprep.subr.mxu0 0.0
        %7488 = vmatpush1.msra.mxu0 0.0
        %7489 = vmatprep.subr.mxu0 0.0
        %7490 = vmatpush1.msra.mxu0 0.0
        %7491 = vmatprep.subr.mxu0 0.0
        %7492 = vmatpush1.msra.mxu0 0.0
        %7493 = vmatprep.subr.mxu0 0.0
        %7494 = vmatpush1.msra.mxu0 0.0
        %7495 = vmatprep.subr.mxu0 0.0
        %7496 = vmatpush1.msra.mxu0 0.0
        %7497 = vmatprep.subr.mxu0 0.0
        %7498 = vmatpush1.msra.mxu0 0.0
        %7499 = vmatprep.subr.mxu0 0.0
        %7500 = vmatpush1.msra.mxu0 0.0
        %7501 = vmatprep.subr.mxu0 0.0
        %7502 = vmatpush1.msra.mxu0 0.0
        %7503 = vmatprep.subr.mxu0 0.0
        %7504 = vmatpush1.msra.mxu0 0.0
        %7505 = vmatprep.subr.mxu0 0.0
        %7506 = vmatpush1.msra.mxu0 0.0
        %7507 = vmatprep.subr.mxu0 0.0
        %7508 = vmatpush1.msra.mxu0 0.0
        %7509 = vmatprep.subr.mxu0 0.0
        %7510 = vmatpush1.msra.mxu0 0.0
        %7511 = vmatprep.subr.mxu0 0.0
        %7512 = vmatpush1.msra.mxu0 0.0
        %7513 = vmatprep.subr.mxu0 0.0
        %7514 = vmatpush1.msra.mxu0 0.0
        %7515 = vmatprep.subr.mxu0 0.0
        %7516 = vmatpush1.msra.mxu0 0.0
        %7517 = vmatprep.subr.mxu0 0.0
        %7518 = vmatpush1.msra.mxu0 0.0
        %7519 = vmatprep.subr.mxu0 0.0
        %7520 = vmatpush1.msra.mxu0 0.0
        %7521 = vmatprep.subr.mxu0 0.0
        %7522 = vmatpush1.msra.mxu0 0.0
        %7523 = vmatprep.subr.mxu0 0.0
        %7524 = vmatpush1.msra.mxu0 0.0
        %7525 = vmatprep.subr.mxu0 0.0
        %7526 = vmatpush1.msra.mxu0 0.0
        %7527 = vmatprep.subr.mxu0 0.0
        %7528 = vmatpush1.msra.mxu0 0.0
        %7529 = vmatprep.subr.mxu0 0.0
        %7530 = vmatpush1.msra.mxu0 0.0
        %7531 = vmatprep.subr.mxu0 0.0
        %7532 = vmatpush1.msra.mxu0 0.0
        %7533 = vmatprep.subr.mxu0 0.0
        %7534 = vmatpush1.msra.mxu0 0.0
        %7535 = vmatprep.subr.mxu0 0.0
        %7536 = vmatpush1.msra.mxu0 0.0
        %7537 = vmatprep.subr.mxu0 0.0
        %7538 = vmatpush1.msra.mxu0 0.0
        %7539 = vmatprep.subr.mxu0 0.0
        %7540 = vmatpush1.msra.mxu0 0.0
        %7541 = vmatprep.subr.mxu0 0.0
        %7542 = vmatpush1.msra.mxu0 0.0
        %7543 = vmatprep.subr.mxu0 0.0
        %7544 = vmatpush1.msra.mxu0 0.0
        %7545 = vmatprep.subr.mxu0 0.0
        %7546 = vmatpush1.msra.mxu0 0.0
        %7547 = vmatprep.subr.mxu0 0.0
        %7548 = vmatpush1.msra.mxu0 0.0
        %7549 = vmatprep.mubr.f32.mxu0 0.0
        %v7550 = vand.u32 %v7256, 4294901760
        %v7551 = vsub.f32 %v7256, %v7550
        %v7552 = vand.u32 %v7551, 4294901760
        %7553 = vmatmul.mubr.f32.gmra.mrb[0].mxu0 %v7552
        %v7554 = vpop.f32.mrb[0].mxu0
        %v7555 = vadd.f32 %v7481, %v7554
        %v7556 = vpop.f32.mrb[0].mxu0
        %7557 = vdwg.mxu0
        %7558 = vmatprep.subr.mxu0 0.0
        %v7559 = vand.u32 %v7253, 4294901760
        %v7560 = vsub.f32 %v7253, %v7559
        %v7561 = vand.u32 %v7560, 4294901760
        %7562 = vmatpush1.msra.mxu0 %v7561
        %7563 = vmatprep.subr.mxu0 0.0
        %7564 = vmatpush1.msra.mxu0 0.0
        %7565 = vmatprep.subr.mxu0 0.0
        %7566 = vmatpush1.msra.mxu0 0.0
        %7567 = vmatprep.subr.mxu0 0.0
        %7568 = vmatpush1.msra.mxu0 0.0
        %7569 = vmatprep.subr.mxu0 0.0
        %7570 = vmatpush1.msra.mxu0 0.0
        %7571 = vmatprep.subr.mxu0 0.0
        %7572 = vmatpush1.msra.mxu0 0.0
        %7573 = vmatprep.subr.mxu0 0.0
        %7574 = vmatpush1.msra.mxu0 0.0
        %7575 = vmatprep.subr.mxu0 0.0
        %7576 = vmatpush1.msra.mxu0 0.0
        %7577 = vmatprep.subr.mxu0 0.0
        %7578 = vmatpush1.msra.mxu0 0.0
        %7579 = vmatprep.subr.mxu0 0.0
        %7580 = vmatpush1.msra.mxu0 0.0
        %7581 = vmatprep.subr.mxu0 0.0
        %7582 = vmatpush1.msra.mxu0 0.0
        %7583 = vmatprep.subr.mxu0 0.0
        %7584 = vmatpush1.msra.mxu0 0.0
        %7585 = vmatprep.subr.mxu0 0.0
        %7586 = vmatpush1.msra.mxu0 0.0
        %7587 = vmatprep.subr.mxu0 0.0
        %7588 = vmatpush1.msra.mxu0 0.0
        %7589 = vmatprep.subr.mxu0 0.0
        %7590 = vmatpush1.msra.mxu0 0.0
        %7591 = vmatprep.subr.mxu0 0.0
        %7592 = vmatpush1.msra.mxu0 0.0
        %7593 = vmatprep.subr.mxu0 0.0
        %7594 = vmatpush1.msra.mxu0 0.0
        %7595 = vmatprep.subr.mxu0 0.0
        %7596 = vmatpush1.msra.mxu0 0.0
        %7597 = vmatprep.subr.mxu0 0.0
        %7598 = vmatpush1.msra.mxu0 0.0
        %7599 = vmatprep.subr.mxu0 0.0
        %7600 = vmatpush1.msra.mxu0 0.0
        %7601 = vmatprep.subr.mxu0 0.0
        %7602 = vmatpush1.msra.mxu0 0.0
        %7603 = vmatprep.subr.mxu0 0.0
        %7604 = vmatpush1.msra.mxu0 0.0
        %7605 = vmatprep.subr.mxu0 0.0
        %7606 = vmatpush1.msra.mxu0 0.0
        %7607 = vmatprep.subr.mxu0 0.0
        %7608 = vmatpush1.msra.mxu0 0.0
        %7609 = vmatprep.subr.mxu0 0.0
        %7610 = vmatpush1.msra.mxu0 0.0
        %7611 = vmatprep.subr.mxu0 0.0
        %7612 = vmatpush1.msra.mxu0 0.0
        %7613 = vmatprep.subr.mxu0 0.0
        %7614 = vmatpush1.msra.mxu0 0.0
        %7615 = vmatprep.subr.mxu0 0.0
        %7616 = vmatpush1.msra.mxu0 0.0
        %7617 = vmatprep.subr.mxu0 0.0
        %7618 = vmatpush1.msra.mxu0 0.0
        %7619 = vmatprep.subr.mxu0 0.0
        %7620 = vmatpush1.msra.mxu0 0.0
        %7621 = vmatprep.subr.mxu0 0.0
        %7622 = vmatpush1.msra.mxu0 0.0
        %7623 = vmatprep.subr.mxu0 0.0
        %7624 = vmatpush1.msra.mxu0 0.0
        %7625 = vmatprep.mubr.f32.mxu0 0.0
        %v7626 = vand.u32 %v7256, 4294901760
        %7627 = vmatmul.mubr.f32.gmra.mrb[0].mxu0 %v7626
        %v7628 = vpop.f32.mrb[0].mxu0
        %v7629 = vadd.f32 %v7555, %v7628
        %v7630 = vpop.f32.mrb[0].mxu0
        %7631 = vdwg.mxu0
        %7632 = vmatprep.subr.mxu0 0.0
        %v7633 = vand.u32 %v7253, 4294901760
        %7634 = vmatpush1.msra.mxu0 %v7633
        %7635 = vmatprep.subr.mxu0 0.0
        %7636 = vmatpush1.msra.mxu0 0.0
        %7637 = vmatprep.subr.mxu0 0.0
        %7638 = vmatpush1.msra.mxu0 0.0
        %7639 = vmatprep.subr.mxu0 0.0
        %7640 = vmatpush1.msra.mxu0 0.0
        %7641 = vmatprep.subr.mxu0 0.0
        %7642 = vmatpush1.msra.mxu0 0.0
        %7643 = vmatprep.subr.mxu0 0.0
        %7644 = vmatpush1.msra.mxu0 0.0
        %7645 = vmatprep.subr.mxu0 0.0
        %7646 = vmatpush1.msra.mxu0 0.0
        %7647 = vmatprep.subr.mxu0 0.0
        %7648 = vmatpush1.msra.mxu0 0.0
        %7649 = vmatprep.subr.mxu0 0.0
        %7650 = vmatpush1.msra.mxu0 0.0
        %7651 = vmatprep.subr.mxu0 0.0
        %7652 = vmatpush1.msra.mxu0 0.0
        %7653 = vmatprep.subr.mxu0 0.0
        %7654 = vmatpush1.msra.mxu0 0.0
        %7655 = vmatprep.subr.mxu0 0.0
        %7656 = vmatpush1.msra.mxu0 0.0
        %7657 = vmatprep.subr.mxu0 0.0
        %7658 = vmatpush1.msra.mxu0 0.0
        %7659 = vmatprep.subr.mxu0 0.0
        %7660 = vmatpush1.msra.mxu0 0.0
        %7661 = vmatprep.subr.mxu0 0.0
        %7662 = vmatpush1.msra.mxu0 0.0
        %7663 = vmatprep.subr.mxu0 0.0
        %7664 = vmatpush1.msra.mxu0 0.0
        %7665 = vmatprep.subr.mxu0 0.0
        %7666 = vmatpush1.msra.mxu0 0.0
        %7667 = vmatprep.subr.mxu0 0.0
        %7668 = vmatpush1.msra.mxu0 0.0
        %7669 = vmatprep.subr.mxu0 0.0
        %7670 = vmatpush1.msra.mxu0 0.0
        %7671 = vmatprep.subr.mxu0 0.0
        %7672 = vmatpush1.msra.mxu0 0.0
        %7673 = vmatprep.subr.mxu0 0.0
        %7674 = vmatpush1.msra.mxu0 0.0
        %7675 = vmatprep.subr.mxu0 0.0
        %7676 = vmatpush1.msra.mxu0 0.0
        %7677 = vmatprep.subr.mxu0 0.0
        %7678 = vmatpush1.msra.mxu0 0.0
        %7679 = vmatprep.subr.mxu0 0.0
        %7680 = vmatpush1.msra.mxu0 0.0
        %7681 = vmatprep.subr.mxu0 0.0
        %7682 = vmatpush1.msra.mxu0 0.0
        %7683 = vmatprep.subr.mxu0 0.0
        %7684 = vmatpush1.msra.mxu0 0.0
        %7685 = vmatprep.subr.mxu0 0.0
        %7686 = vmatpush1.msra.mxu0 0.0
        %7687 = vmatprep.subr.mxu0 0.0
        %7688 = vmatpush1.msra.mxu0 0.0
        %7689 = vmatprep.subr.mxu0 0.0
        %7690 = vmatpush1.msra.mxu0 0.0
        %7691 = vmatprep.subr.mxu0 0.0
        %7692 = vmatpush1.msra.mxu0 0.0
        %7693 = vmatprep.subr.mxu0 0.0
        %7694 = vmatpush1.msra.mxu0 0.0
        %7695 = vmatprep.subr.mxu0 0.0
        %7696 = vmatpush1.msra.mxu0 0.0
        %7697 = vmatprep.mubr.f32.mxu0 0.0
        %v7698 = vand.u32 %v7256, 4294901760
        %7699 = vmatmul.mubr.f32.gmra.mrb[0].mxu0 %v7698
        %v7700 = vpop.f32.mrb[0].mxu0
        %v7701 = vadd.f32 %v7629, %v7700
        %v7702 = vpop.f32.mrb[0].mxu0
        %7703 = vdwg.mxu0
        %v7704 = vld [vmem:[#allocation13 + $0x60] sm:$0xff]
        %v7705 = vld [vmem:[#allocation13 + $0x68] sm:$0xff]
        %v7706 = vld [vmem:[#allocation13 + $0x70] sm:$0xff]
        %v7707 = vld [vmem:[#allocation13 + $0x78] sm:$0xff]
        %v7709 = vsel %vm2549, %v7701, 0
        %7711 = vmatprep.subr.mxu0 0.0
        %v7712 = vand.u32 %v7704, 4294901760
        %7713 = vmatpush1.msra.mxu0 %v7712
        %7714 = vmatprep.subr.mxu0 0.0
        %v7715 = vand.u32 %v7705, 4294901760
        %7716 = vmatpush1.msra.mxu0 %v7715
        %7717 = vmatprep.subr.mxu0 0.0
        %v7718 = vand.u32 %v7706, 4294901760
        %7719 = vmatpush1.msra.mxu0 %v7718
        %7720 = vmatprep.subr.mxu0 0.0
        %v7721 = vand.u32 %v7707, 4294901760
        %7722 = vmatpush1.msra.mxu0 %v7721
        %7723 = vmatprep.subr.mxu0 0.0
        %7724 = vmatpush1.msra.mxu0 0.0
        %7725 = vmatprep.subr.mxu0 0.0
        %7726 = vmatpush1.msra.mxu0 0.0
        %7727 = vmatprep.subr.mxu0 0.0
        %7728 = vmatpush1.msra.mxu0 0.0
        %7729 = vmatprep.subr.mxu0 0.0
        %7730 = vmatpush1.msra.mxu0 0.0
        %7731 = vmatprep.subr.mxu0 0.0
        %7732 = vmatpush1.msra.mxu0 0.0
        %7733 = vmatprep.subr.mxu0 0.0
        %7734 = vmatpush1.msra.mxu0 0.0
        %7735 = vmatprep.subr.mxu0 0.0
        %7736 = vmatpush1.msra.mxu0 0.0
        %7737 = vmatprep.subr.mxu0 0.0
        %7738 = vmatpush1.msra.mxu0 0.0
        %7739 = vmatprep.subr.mxu0 0.0
        %7740 = vmatpush1.msra.mxu0 0.0
        %7741 = vmatprep.subr.mxu0 0.0
        %7742 = vmatpush1.msra.mxu0 0.0
        %7743 = vmatprep.subr.mxu0 0.0
        %7744 = vmatpush1.msra.mxu0 0.0
        %7745 = vmatprep.subr.mxu0 0.0
        %7746 = vmatpush1.msra.mxu0 0.0
        %7747 = vmatprep.subr.mxu0 0.0
        %7748 = vmatpush1.msra.mxu0 0.0
        %7749 = vmatprep.subr.mxu0 0.0
        %7750 = vmatpush1.msra.mxu0 0.0
        %7751 = vmatprep.subr.mxu0 0.0
        %7752 = vmatpush1.msra.mxu0 0.0
        %7753 = vmatprep.subr.mxu0 0.0
        %7754 = vmatpush1.msra.mxu0 0.0
        %7755 = vmatprep.subr.mxu0 0.0
        %7756 = vmatpush1.msra.mxu0 0.0
        %7757 = vmatprep.subr.mxu0 0.0
        %7758 = vmatpush1.msra.mxu0 0.0
        %7759 = vmatprep.subr.mxu0 0.0
        %7760 = vmatpush1.msra.mxu0 0.0
        %7761 = vmatprep.subr.mxu0 0.0
        %7762 = vmatpush1.msra.mxu0 0.0
        %7763 = vmatprep.subr.mxu0 0.0
        %7764 = vmatpush1.msra.mxu0 0.0
        %7765 = vmatprep.subr.mxu0 0.0
        %7766 = vmatpush1.msra.mxu0 0.0
        %7767 = vmatprep.subr.mxu0 0.0
        %7768 = vmatpush1.msra.mxu0 0.0
        %7769 = vmatprep.subr.mxu0 0.0
        %7770 = vmatpush1.msra.mxu0 0.0
        %7771 = vmatprep.subr.mxu0 0.0
        %7772 = vmatpush1.msra.mxu0 0.0
        %7773 = vmatprep.subr.mxu0 0.0
        %7774 = vmatpush1.msra.mxu0 0.0
        %7775 = vmatprep.subr.mxu0 0.0
        %7776 = vmatpush1.msra.mxu0 0.0
        %7777 = vmatprep.subr.mxu0 0.0
        %7778 = vmatpush1.msra.mxu0 0.0
        %7779 = vmatprep.mubr.f32.mxu0 0.0
        %v7780 = vand.u32 %v7709, 4294901760
        %v7781 = vsub.f32 %v7709, %v7780
        %v7782 = vand.u32 %v7781, 4294901760
        %v7783 = vsub.f32 %v7781, %v7782
        %v7784 = vand.u32 %v7783, 4294901760
        %7785 = vmatmul.mubr.f32.gmra.mrb[0].mxu0 %v7784
        %v7786 = vpop.f32.mrb[0].mxu0
        %v7787 = vadd.f32 0.0, %v7786
        %v7788 = vpop.f32.mrb[0].mxu0
        %7789 = vdwg.mxu0
        %7790 = vmatprep.subr.mxu0 0.0
        %v7791 = vand.u32 %v7704, 4294901760
        %v7792 = vsub.f32 %v7704, %v7791
        %v7793 = vand.u32 %v7792, 4294901760
        %v7794 = vsub.f32 %v7792, %v7793
        %v7795 = vand.u32 %v7794, 4294901760
        %7796 = vmatpush1.msra.mxu0 %v7795
        %7797 = vmatprep.subr.mxu0 0.0
        %v7798 = vand.u32 %v7705, 4294901760
        %v7799 = vsub.f32 %v7705, %v7798
        %v7800 = vand.u32 %v7799, 4294901760
        %v7801 = vsub.f32 %v7799, %v7800
        %v7802 = vand.u32 %v7801, 4294901760
        %7803 = vmatpush1.msra.mxu0 %v7802
        %7804 = vmatprep.subr.mxu0 0.0
        %v7805 = vand.u32 %v7706, 4294901760
        %v7806 = vsub.f32 %v7706, %v7805
        %v7807 = vand.u32 %v7806, 4294901760
        %v7808 = vsub.f32 %v7806, %v7807
        %v7809 = vand.u32 %v7808, 4294901760
        %7810 = vmatpush1.msra.mxu0 %v7809
        %7811 = vmatprep.subr.mxu0 0.0
        %v7812 = vand.u32 %v7707, 4294901760
        %v7813 = vsub.f32 %v7707, %v7812
        %v7814 = vand.u32 %v7813, 4294901760
        %v7815 = vsub.f32 %v7813, %v7814
        %v7816 = vand.u32 %v7815, 4294901760
        %7817 = vmatpush1.msra.mxu0 %v7816
        %7818 = vmatprep.subr.mxu0 0.0
        %7819 = vmatpush1.msra.mxu0 0.0
        %7820 = vmatprep.subr.mxu0 0.0
        %7821 = vmatpush1.msra.mxu0 0.0
        %7822 = vmatprep.subr.mxu0 0.0
        %7823 = vmatpush1.msra.mxu0 0.0
        %7824 = vmatprep.subr.mxu0 0.0
        %7825 = vmatpush1.msra.mxu0 0.0
        %7826 = vmatprep.subr.mxu0 0.0
        %7827 = vmatpush1.msra.mxu0 0.0
        %7828 = vmatprep.subr.mxu0 0.0
        %7829 = vmatpush1.msra.mxu0 0.0
        %7830 = vmatprep.subr.mxu0 0.0
        %7831 = vmatpush1.msra.mxu0 0.0
        %7832 = vmatprep.subr.mxu0 0.0
        %7833 = vmatpush1.msra.mxu0 0.0
        %7834 = vmatprep.subr.mxu0 0.0
        %7835 = vmatpush1.msra.mxu0 0.0
        %7836 = vmatprep.subr.mxu0 0.0
        %7837 = vmatpush1.msra.mxu0 0.0
        %7838 = vmatprep.subr.mxu0 0.0
        %7839 = vmatpush1.msra.mxu0 0.0
        %7840 = vmatprep.subr.mxu0 0.0
        %7841 = vmatpush1.msra.mxu0 0.0
        %7842 = vmatprep.subr.mxu0 0.0
        %7843 = vmatpush1.msra.mxu0 0.0
        %7844 = vmatprep.subr.mxu0 0.0
        %7845 = vmatpush1.msra.mxu0 0.0
        %7846 = vmatprep.subr.mxu0 0.0
        %7847 = vmatpush1.msra.mxu0 0.0
        %7848 = vmatprep.subr.mxu0 0.0
        %7849 = vmatpush1.msra.mxu0 0.0
        %7850 = vmatprep.subr.mxu0 0.0
        %7851 = vmatpush1.msra.mxu0 0.0
        %7852 = vmatprep.subr.mxu0 0.0
        %7853 = vmatpush1.msra.mxu0 0.0
        %7854 = vmatprep.subr.mxu0 0.0
        %7855 = vmatpush1.msra.mxu0 0.0
        %7856 = vmatprep.subr.mxu0 0.0
        %7857 = vmatpush1.msra.mxu0 0.0
        %7858 = vmatprep.subr.mxu0 0.0
        %7859 = vmatpush1.msra.mxu0 0.0
        %7860 = vmatprep.subr.mxu0 0.0
        %7861 = vmatpush1.msra.mxu0 0.0
        %7862 = vmatprep.subr.mxu0 0.0
        %7863 = vmatpush1.msra.mxu0 0.0
        %7864 = vmatprep.subr.mxu0 0.0
        %7865 = vmatpush1.msra.mxu0 0.0
        %7866 = vmatprep.subr.mxu0 0.0
        %7867 = vmatpush1.msra.mxu0 0.0
        %7868 = vmatprep.subr.mxu0 0.0
        %7869 = vmatpush1.msra.mxu0 0.0
        %7870 = vmatprep.subr.mxu0 0.0
        %7871 = vmatpush1.msra.mxu0 0.0
        %7872 = vmatprep.subr.mxu0 0.0
        %7873 = vmatpush1.msra.mxu0 0.0
        %7874 = vmatprep.mubr.f32.mxu0 0.0
        %v7875 = vand.u32 %v7709, 4294901760
        %7876 = vmatmul.mubr.f32.gmra.mrb[0].mxu0 %v7875
        %v7877 = vpop.f32.mrb[0].mxu0
        %v7878 = vadd.f32 %v7787, %v7877
        %v7879 = vpop.f32.mrb[0].mxu0
        %7880 = vdwg.mxu0
        %7881 = vmatprep.subr.mxu0 0.0
        %v7882 = vand.u32 %v7704, 4294901760
        %v7883 = vsub.f32 %v7704, %v7882
        %7884 = vmatpush1.msra.mxu0 %v7883
        %7885 = vmatprep.subr.mxu0 0.0
        %v7886 = vand.u32 %v7705, 4294901760
        %v7887 = vsub.f32 %v7705, %v7886
        %7888 = vmatpush1.msra.mxu0 %v7887
        %7889 = vmatprep.subr.mxu0 0.0
        %v7890 = vand.u32 %v7706, 4294901760
        %v7891 = vsub.f32 %v7706, %v7890
        %7892 = vmatpush1.msra.mxu0 %v7891
        %7893 = vmatprep.subr.mxu0 0.0
        %v7894 = vand.u32 %v7707, 4294901760
        %v7895 = vsub.f32 %v7707, %v7894
        %7896 = vmatpush1.msra.mxu0 %v7895
        %7897 = vmatprep.subr.mxu0 0.0
        %7898 = vmatpush1.msra.mxu0 0.0
        %7899 = vmatprep.subr.mxu0 0.0
        %7900 = vmatpush1.msra.mxu0 0.0
        %7901 = vmatprep.subr.mxu0 0.0
        %7902 = vmatpush1.msra.mxu0 0.0
        %7903 = vmatprep.subr.mxu0 0.0
        %7904 = vmatpush1.msra.mxu0 0.0
        %7905 = vmatprep.subr.mxu0 0.0
        %7906 = vmatpush1.msra.mxu0 0.0
        %7907 = vmatprep.subr.mxu0 0.0
        %7908 = vmatpush1.msra.mxu0 0.0
        %7909 = vmatprep.subr.mxu0 0.0
        %7910 = vmatpush1.msra.mxu0 0.0
        %7911 = vmatprep.subr.mxu0 0.0
        %7912 = vmatpush1.msra.mxu0 0.0
        %7913 = vmatprep.subr.mxu0 0.0
        %7914 = vmatpush1.msra.mxu0 0.0
        %7915 = vmatprep.subr.mxu0 0.0
        %7916 = vmatpush1.msra.mxu0 0.0
        %7917 = vmatprep.subr.mxu0 0.0
        %7918 = vmatpush1.msra.mxu0 0.0
        %7919 = vmatprep.subr.mxu0 0.0
        %7920 = vmatpush1.msra.mxu0 0.0
        %7921 = vmatprep.subr.mxu0 0.0
        %7922 = vmatpush1.msra.mxu0 0.0
        %7923 = vmatprep.subr.mxu0 0.0
        %7924 = vmatpush1.msra.mxu0 0.0
        %7925 = vmatprep.subr.mxu0 0.0
        %7926 = vmatpush1.msra.mxu0 0.0
        %7927 = vmatprep.subr.mxu0 0.0
        %7928 = vmatpush1.msra.mxu0 0.0
        %7929 = vmatprep.subr.mxu0 0.0
        %7930 = vmatpush1.msra.mxu0 0.0
        %7931 = vmatprep.subr.mxu0 0.0
        %7932 = vmatpush1.msra.mxu0 0.0
        %7933 = vmatprep.subr.mxu0 0.0
        %7934 = vmatpush1.msra.mxu0 0.0
        %7935 = vmatprep.subr.mxu0 0.0
        %7936 = vmatpush1.msra.mxu0 0.0
        %7937 = vmatprep.subr.mxu0 0.0
        %7938 = vmatpush1.msra.mxu0 0.0
        %7939 = vmatprep.subr.mxu0 0.0
        %7940 = vmatpush1.msra.mxu0 0.0
        %7941 = vmatprep.subr.mxu0 0.0
        %7942 = vmatpush1.msra.mxu0 0.0
        %7943 = vmatprep.subr.mxu0 0.0
        %7944 = vmatpush1.msra.mxu0 0.0
        %7945 = vmatprep.subr.mxu0 0.0
        %7946 = vmatpush1.msra.mxu0 0.0
        %7947 = vmatprep.subr.mxu0 0.0
        %7948 = vmatpush1.msra.mxu0 0.0
        %7949 = vmatprep.subr.mxu0 0.0
        %7950 = vmatpush1.msra.mxu0 0.0
        %7951 = vmatprep.subr.mxu0 0.0
        %7952 = vmatpush1.msra.mxu0 0.0
        %7953 = vmatprep.mubr.f32.mxu0 0.0
        %v7954 = vand.u32 %v7709, 4294901760
        %v7955 = vsub.f32 %v7709, %v7954
        %7956 = vmatmul.mubr.f32.gmra.mrb[0].mxu0 %v7955
        %v7957 = vpop.f32.mrb[0].mxu0
        %v7958 = vadd.f32 %v7878, %v7957
        %v7959 = vpop.f32.mrb[0].mxu0
        %7960 = vdwg.mxu0
        %7961 = vmatprep.subr.mxu0 0.0
        %v7962 = vand.u32 %v7704, 4294901760
        %7963 = vmatpush1.msra.mxu0 %v7962
        %7964 = vmatprep.subr.mxu0 0.0
        %v7965 = vand.u32 %v7705, 4294901760
        %7966 = vmatpush1.msra.mxu0 %v7965
        %7967 = vmatprep.subr.mxu0 0.0
        %v7968 = vand.u32 %v7706, 4294901760
        %7969 = vmatpush1.msra.mxu0 %v7968
        %7970 = vmatprep.subr.mxu0 0.0
        %v7971 = vand.u32 %v7707, 4294901760
        %7972 = vmatpush1.msra.mxu0 %v7971
        %7973 = vmatprep.subr.mxu0 0.0
        %7974 = vmatpush1.msra.mxu0 0.0
        %7975 = vmatprep.subr.mxu0 0.0
        %7976 = vmatpush1.msra.mxu0 0.0
        %7977 = vmatprep.subr.mxu0 0.0
        %7978 = vmatpush1.msra.mxu0 0.0
        %7979 = vmatprep.subr.mxu0 0.0
        %7980 = vmatpush1.msra.mxu0 0.0
        %7981 = vmatprep.subr.mxu0 0.0
        %7982 = vmatpush1.msra.mxu0 0.0
        %7983 = vmatprep.subr.mxu0 0.0
        %7984 = vmatpush1.msra.mxu0 0.0
        %7985 = vmatprep.subr.mxu0 0.0
        %7986 = vmatpush1.msra.mxu0 0.0
        %7987 = vmatprep.subr.mxu0 0.0
        %7988 = vmatpush1.msra.mxu0 0.0
        %7989 = vmatprep.subr.mxu0 0.0
        %7990 = vmatpush1.msra.mxu0 0.0
        %7991 = vmatprep.subr.mxu0 0.0
        %7992 = vmatpush1.msra.mxu0 0.0
        %7993 = vmatprep.subr.mxu0 0.0
        %7994 = vmatpush1.msra.mxu0 0.0
        %7995 = vmatprep.subr.mxu0 0.0
        %7996 = vmatpush1.msra.mxu0 0.0
        %7997 = vmatprep.subr.mxu0 0.0
        %7998 = vmatpush1.msra.mxu0 0.0
        %7999 = vmatprep.subr.mxu0 0.0
        %8000 = vmatpush1.msra.mxu0 0.0
        %8001 = vmatprep.subr.mxu0 0.0
        %8002 = vmatpush1.msra.mxu0 0.0
        %8003 = vmatprep.subr.mxu0 0.0
        %8004 = vmatpush1.msra.mxu0 0.0
        %8005 = vmatprep.subr.mxu0 0.0
        %8006 = vmatpush1.msra.mxu0 0.0
        %8007 = vmatprep.subr.mxu0 0.0
        %8008 = vmatpush1.msra.mxu0 0.0
        %8009 = vmatprep.subr.mxu0 0.0
        %8010 = vmatpush1.msra.mxu0 0.0
        %8011 = vmatprep.subr.mxu0 0.0
        %8012 = vmatpush1.msra.mxu0 0.0
        %8013 = vmatprep.subr.mxu0 0.0
        %8014 = vmatpush1.msra.mxu0 0.0
        %8015 = vmatprep.subr.mxu0 0.0
        %8016 = vmatpush1.msra.mxu0 0.0
        %8017 = vmatprep.subr.mxu0 0.0
        %8018 = vmatpush1.msra.mxu0 0.0
        %8019 = vmatprep.subr.mxu0 0.0
        %8020 = vmatpush1.msra.mxu0 0.0
        %8021 = vmatprep.subr.mxu0 0.0
        %8022 = vmatpush1.msra.mxu0 0.0
        %8023 = vmatprep.subr.mxu0 0.0
        %8024 = vmatpush1.msra.mxu0 0.0
        %8025 = vmatprep.subr.mxu0 0.0
        %8026 = vmatpush1.msra.mxu0 0.0
        %8027 = vmatprep.subr.mxu0 0.0
        %8028 = vmatpush1.msra.mxu0 0.0
        %8029 = vmatprep.mubr.f32.mxu0 0.0
        %v8030 = vand.u32 %v7709, 4294901760
        %v8031 = vsub.f32 %v7709, %v8030
        %v8032 = vand.u32 %v8031, 4294901760
        %8033 = vmatmul.mubr.f32.gmra.mrb[0].mxu0 %v8032
        %v8034 = vpop.f32.mrb[0].mxu0
        %v8035 = vadd.f32 %v7958, %v8034
        %v8036 = vpop.f32.mrb[0].mxu0
        %8037 = vdwg.mxu0
        %8038 = vmatprep.subr.mxu0 0.0
        %v8039 = vand.u32 %v7704, 4294901760
        %v8040 = vsub.f32 %v7704, %v8039
        %v8041 = vand.u32 %v8040, 4294901760
        %8042 = vmatpush1.msra.mxu0 %v8041
        %8043 = vmatprep.subr.mxu0 0.0
        %v8044 = vand.u32 %v7705, 4294901760
        %v8045 = vsub.f32 %v7705, %v8044
        %v8046 = vand.u32 %v8045, 4294901760
        %8047 = vmatpush1.msra.mxu0 %v8046
        %8048 = vmatprep.subr.mxu0 0.0
        %v8049 = vand.u32 %v7706, 4294901760
        %v8050 = vsub.f32 %v7706, %v8049
        %v8051 = vand.u32 %v8050, 4294901760
        %8052 = vmatpush1.msra.mxu0 %v8051
        %8053 = vmatprep.subr.mxu0 0.0
        %v8054 = vand.u32 %v7707, 4294901760
        %v8055 = vsub.f32 %v7707, %v8054
        %v8056 = vand.u32 %v8055, 4294901760
        %8057 = vmatpush1.msra.mxu0 %v8056
        %8058 = vmatprep.subr.mxu0 0.0
        %8059 = vmatpush1.msra.mxu0 0.0
        %8060 = vmatprep.subr.mxu0 0.0
        %8061 = vmatpush1.msra.mxu0 0.0
        %8062 = vmatprep.subr.mxu0 0.0
        %8063 = vmatpush1.msra.mxu0 0.0
        %8064 = vmatprep.subr.mxu0 0.0
        %8065 = vmatpush1.msra.mxu0 0.0
        %8066 = vmatprep.subr.mxu0 0.0
        %8067 = vmatpush1.msra.mxu0 0.0
        %8068 = vmatprep.subr.mxu0 0.0
        %8069 = vmatpush1.msra.mxu0 0.0
        %8070 = vmatprep.subr.mxu0 0.0
        %8071 = vmatpush1.msra.mxu0 0.0
        %8072 = vmatprep.subr.mxu0 0.0
        %8073 = vmatpush1.msra.mxu0 0.0
        %8074 = vmatprep.subr.mxu0 0.0
        %8075 = vmatpush1.msra.mxu0 0.0
        %8076 = vmatprep.subr.mxu0 0.0
        %8077 = vmatpush1.msra.mxu0 0.0
        %8078 = vmatprep.subr.mxu0 0.0
        %8079 = vmatpush1.msra.mxu0 0.0
        %8080 = vmatprep.subr.mxu0 0.0
        %8081 = vmatpush1.msra.mxu0 0.0
        %8082 = vmatprep.subr.mxu0 0.0
        %8083 = vmatpush1.msra.mxu0 0.0
        %8084 = vmatprep.subr.mxu0 0.0
        %8085 = vmatpush1.msra.mxu0 0.0
        %8086 = vmatprep.subr.mxu0 0.0
        %8087 = vmatpush1.msra.mxu0 0.0
        %8088 = vmatprep.subr.mxu0 0.0
        %8089 = vmatpush1.msra.mxu0 0.0
        %8090 = vmatprep.subr.mxu0 0.0
        %8091 = vmatpush1.msra.mxu0 0.0
        %8092 = vmatprep.subr.mxu0 0.0
        %8093 = vmatpush1.msra.mxu0 0.0
        %8094 = vmatprep.subr.mxu0 0.0
        %8095 = vmatpush1.msra.mxu0 0.0
        %8096 = vmatprep.subr.mxu0 0.0
        %8097 = vmatpush1.msra.mxu0 0.0
        %8098 = vmatprep.subr.mxu0 0.0
        %8099 = vmatpush1.msra.mxu0 0.0
        %8100 = vmatprep.subr.mxu0 0.0
        %8101 = vmatpush1.msra.mxu0 0.0
        %8102 = vmatprep.subr.mxu0 0.0
        %8103 = vmatpush1.msra.mxu0 0.0
        %8104 = vmatprep.subr.mxu0 0.0
        %8105 = vmatpush1.msra.mxu0 0.0
        %8106 = vmatprep.subr.mxu0 0.0
        %8107 = vmatpush1.msra.mxu0 0.0
        %8108 = vmatprep.subr.mxu0 0.0
        %8109 = vmatpush1.msra.mxu0 0.0
        %8110 = vmatprep.subr.mxu0 0.0
        %8111 = vmatpush1.msra.mxu0 0.0
        %8112 = vmatprep.subr.mxu0 0.0
        %8113 = vmatpush1.msra.mxu0 0.0
        %8114 = vmatprep.mubr.f32.mxu0 0.0
        %v8115 = vand.u32 %v7709, 4294901760
        %8116 = vmatmul.mubr.f32.gmra.mrb[0].mxu0 %v8115
        %v8117 = vpop.f32.mrb[0].mxu0
        %v8118 = vadd.f32 %v8035, %v8117
        %v8119 = vpop.f32.mrb[0].mxu0
        %8120 = vdwg.mxu0
        %8121 = vmatprep.subr.mxu0 0.0
        %v8122 = vand.u32 %v7704, 4294901760
        %8123 = vmatpush1.msra.mxu0 %v8122
        %8124 = vmatprep.subr.mxu0 0.0
        %v8125 = vand.u32 %v7705, 4294901760
        %8126 = vmatpush1.msra.mxu0 %v8125
        %8127 = vmatprep.subr.mxu0 0.0
        %v8128 = vand.u32 %v7706, 4294901760
        %8129 = vmatpush1.msra.mxu0 %v8128
        %8130 = vmatprep.subr.mxu0 0.0
        %v8131 = vand.u32 %v7707, 4294901760
        %8132 = vmatpush1.msra.mxu0 %v8131
        %8133 = vmatprep.subr.mxu0 0.0
        %8134 = vmatpush1.msra.mxu0 0.0
        %8135 = vmatprep.subr.mxu0 0.0
        %8136 = vmatpush1.msra.mxu0 0.0
        %8137 = vmatprep.subr.mxu0 0.0
        %8138 = vmatpush1.msra.mxu0 0.0
        %8139 = vmatprep.subr.mxu0 0.0
        %8140 = vmatpush1.msra.mxu0 0.0
        %8141 = vmatprep.subr.mxu0 0.0
        %8142 = vmatpush1.msra.mxu0 0.0
        %8143 = vmatprep.subr.mxu0 0.0
        %8144 = vmatpush1.msra.mxu0 0.0
        %8145 = vmatprep.subr.mxu0 0.0
        %8146 = vmatpush1.msra.mxu0 0.0
        %8147 = vmatprep.subr.mxu0 0.0
        %8148 = vmatpush1.msra.mxu0 0.0
        %8149 = vmatprep.subr.mxu0 0.0
        %8150 = vmatpush1.msra.mxu0 0.0
        %8151 = vmatprep.subr.mxu0 0.0
        %8152 = vmatpush1.msra.mxu0 0.0
        %8153 = vmatprep.subr.mxu0 0.0
        %8154 = vmatpush1.msra.mxu0 0.0
        %8155 = vmatprep.subr.mxu0 0.0
        %8156 = vmatpush1.msra.mxu0 0.0
        %8157 = vmatprep.subr.mxu0 0.0
        %8158 = vmatpush1.msra.mxu0 0.0
        %8159 = vmatprep.subr.mxu0 0.0
        %8160 = vmatpush1.msra.mxu0 0.0
        %8161 = vmatprep.subr.mxu0 0.0
        %8162 = vmatpush1.msra.mxu0 0.0
        %8163 = vmatprep.subr.mxu0 0.0
        %8164 = vmatpush1.msra.mxu0 0.0
        %8165 = vmatprep.subr.mxu0 0.0
        %8166 = vmatpush1.msra.mxu0 0.0
        %8167 = vmatprep.subr.mxu0 0.0
        %8168 = vmatpush1.msra.mxu0 0.0
        %8169 = vmatprep.subr.mxu0 0.0
        %8170 = vmatpush1.msra.mxu0 0.0
        %8171 = vmatprep.subr.mxu0 0.0
        %8172 = vmatpush1.msra.mxu0 0.0
        %8173 = vmatprep.subr.mxu0 0.0
        %8174 = vmatpush1.msra.mxu0 0.0
        %8175 = vmatprep.subr.mxu0 0.0
        %8176 = vmatpush1.msra.mxu0 0.0
        %8177 = vmatprep.subr.mxu0 0.0
        %8178 = vmatpush1.msra.mxu0 0.0
        %8179 = vmatprep.subr.mxu0 0.0
        %8180 = vmatpush1.msra.mxu0 0.0
        %8181 = vmatprep.subr.mxu0 0.0
        %8182 = vmatpush1.msra.mxu0 0.0
        %8183 = vmatprep.subr.mxu0 0.0
        %8184 = vmatpush1.msra.mxu0 0.0
        %8185 = vmatprep.subr.mxu0 0.0
        %8186 = vmatpush1.msra.mxu0 0.0
        %8187 = vmatprep.subr.mxu0 0.0
        %8188 = vmatpush1.msra.mxu0 0.0
        %8189 = vmatprep.mubr.f32.mxu0 0.0
        %v8190 = vand.u32 %v7709, 4294901760
        %8191 = vmatmul.mubr.f32.gmra.mrb[0].mxu0 %v8190
        %v8192 = vpop.f32.mrb[0].mxu0
        %v8193 = vadd.f32 %v8118, %v8192
        %v8194 = vpop.f32.mrb[0].mxu0
        %8195 = vdwg.mxu0
        %v8196 = vadd.f32 %v6783, %v8193
        %v8197 = vld [vmem:[%s11] sm:$0x1]
        %v8199 = vlaneseq
        %v8200 = vshrl.u32 %v8199, 7
        %v8201 = vsub.s32 0, %v8200
        %v8202 = vrot.slane %v8197, %v8201
        %v8204 = vadd.f32 %v8196, %v8202
        %v8205 = vadd.f32 %v526, %v8204
        %8206 = vst [vmem:[%s525] sm:$0xff] %v8205
        %s8207 = sand.u32 %s306, 1
        %s8208 = scalar_lea.sflag [#allocation6], %s8207
        %s8209 = sand.u32 %s306, 1
        %s8210 = smul.addr %s8209, 8
        %s8211 = scalar_lea.vmem [#allocation15], %s8210
        // Predicated region
        $region93: #{tpu_custom_call.1} parent=67 // pred_check
          %p8212 = pneg %p316
        $region94: #{tpu_custom_call.1} parent=67 // pred_check_branch
          %8214 = sbr.rel (%p8212) target = $region96
        $region95: #{tpu_custom_call.1} parent=67 // pred_region
          %s8216 = ssub.s32 128, 128
          %8217 = vsyncadd %s8208, %s8216
          %s8218 = smul.addr %s36, 128
          %s8219 = scalar_lea.hbm %s12, %s8218
          %s8221 = sshll.u32 %s8211, 4
          %s8222 = int_to_ptr.vmem [resolvable:$true] %s8221
          %8224 = dma.vmem_to_hbm [thread:$0]  %s8222, 128, %s8219, %s8208
        $region96: #{tpu_custom_call.1} parent=67 // pred_fallthru
          _
      $region68: #{tpu_custom_call.1} parent=5 // pred_fallthru
        _
      %p8225 = scmp.le.s32.totalorder 2, %s31
      // Predicated region
      $region97: #{tpu_custom_call.1} parent=5 // pred_check
        %p8226 = pneg %p8225
      $region98: #{tpu_custom_call.1} parent=5 // pred_check_branch
        %8228 = sbr.rel (%p8226) target = $region100
      $region99: #{tpu_custom_call.1} parent=5 // pred_region
        %s8229 = ssub.s32 %s31, 2
        // Predicated region
        $region101: #{tpu_custom_call.1} parent=99 // pred_check
          %p8230 = pneg %p322
        $region102: #{tpu_custom_call.1} parent=99 // pred_check_branch
          %8232 = sbr.rel (%p8230) target = $region104
        $region103: #{tpu_custom_call.1} parent=99 // pred_region
          %s8233 = sand.u32 %s307, 1
          %s8234 = scalar_lea.sflag [#allocation6], %s8233
          %s8235 = sand.u32 %s307, 1
          %s8236 = smul.addr %s8235, 8
          %s8237 = scalar_lea.vmem [#allocation15], %s8236
          %8238 = dma.done %s8234, 128
        $region104: #{tpu_custom_call.1} parent=99 // pred_fallthru
          _
      $region100: #{tpu_custom_call.1} parent=5 // pred_fallthru
        _
    $region6: #{tpu_custom_call.1} parent=1 // loop_footer
      %s35 = sadd.s32 1, %s31
    $region7: #{tpu_custom_call.1} parent=1 // loop_footer_branch
      %30 = sbr.rel target = $region3
    $region8: #{tpu_custom_call.1} parent=1 // loop_exit
      _
    %8239 = vsyncpa [#allocation5], 1
    %s8240 = scalar_lea.sflag [#allocation5], 1
    %8241 = vsyncpa %s8240, 1
    %8242 = vsyncpa [#allocation8], 1
    %s8243 = scalar_lea.sflag [#allocation8], 1
    %8244 = vsyncpa %s8243, 1
    %8245 = vsyncpa [#allocation11], 1
    %8246 = vsyncpa [#allocation14], 1
    %8247 = vsyncpa [#allocation6], 1
    %s8248 = scalar_lea.sflag [#allocation6], 1
    %8249 = vsyncpa %s8248, 1

</llo_original>
